<compile_context>
chip_gen: v7x
topology: tpu7x:2x2x1
jax: 0.10.0
libtpu: 0.0.40
codegen_flags: <defaults>
</compile_context>

<pallas_src>
import numpy as np
import jax
import jax.numpy as jnp
from jax.experimental import pallas as pl
from jax.experimental.pallas import tpu as pltpu

_EPS = 1e-5  # nn.InstanceNorm2d default


def _round_up(v, m):
    return (v + m - 1) // m * m


# ---------------------------------------------------------------------------
# Constant 0/1 matrices (built once at prepare time, consumed by MXU dots)
# ---------------------------------------------------------------------------

def _pool_select_matrix(H, W):
    """(H*W, (H/2)*(W/2)) selector that compacts the top-left corner of every
    2x2 window (where the in-kernel shifted-max has already placed the max)."""
    S, H2, W2 = H * W, H // 2, W // 2
    sel = np.zeros((S, H2 * W2), np.float32)
    for h2 in range(H2):
        for w2 in range(W2):
            sel[(2 * h2) * W + 2 * w2, h2 * W2 + w2] = 1.0
    return jnp.asarray(sel)


def _convt_scatter_matrices(H, W):
    """(4, H*W, 4*H*W): phase p = kh*2+kw of a k=2, s=2 transposed conv with
    input position (h, w) lands at output position (2h+kh, 2w+kw) of (2H, 2W)."""
    S = H * W
    sc = np.zeros((4, S, 4 * S), np.float32)
    for kh in range(2):
        for kw in range(2):
            p = kh * 2 + kw
            for h in range(H):
                for w in range(W):
                    sc[p, h * W + w, (2 * h + kh) * (2 * W) + (2 * w + kw)] = 1.0
    return jnp.asarray(sc)


# ---------------------------------------------------------------------------
# Synthetic parameters in PyTorch layouts
#   Conv2d:          w (Cout, Cin, 3, 3), b (Cout,)
#   InstanceNorm2d:  weight (C,), bias (C,)            (affine=True)
#   ConvTranspose2d: w (Cin, Cout, 2, 2), b (Cout,)
#   final Conv2d:    w (Cout, Cin, 1, 1), b (Cout,)
# ---------------------------------------------------------------------------

def init_unet_params(key, num_blocks, in_channels, out_channels, channel_base):
    f = jnp.float32

    def dc(k, cin, cout):
        ks = jax.random.split(k, 8)
        return dict(
            conv1_w=(0.1 * jax.random.normal(ks[0], (cout, cin, 3, 3))).astype(f),
            conv1_b=(0.1 * jax.random.normal(ks[1], (cout,))).astype(f),
            in1_w=(1.0 + 0.1 * jax.random.normal(ks[2], (cout,))).astype(f),
            in1_b=(0.1 * jax.random.normal(ks[3], (cout,))).astype(f),
            conv2_w=(0.1 * jax.random.normal(ks[4], (cout, cout, 3, 3))).astype(f),
            conv2_b=(0.1 * jax.random.normal(ks[5], (cout,))).astype(f),
            in2_w=(1.0 + 0.1 * jax.random.normal(ks[6], (cout,))).astype(f),
            in2_b=(0.1 * jax.random.normal(ks[7], (cout,))).astype(f),
        )

    keys = jax.random.split(key, 4 * num_blocks + 4)
    ki = iter(keys)

    down_convs = []
    cur_in = in_channels
    for i in range(num_blocks):
        cout = channel_base * 2 ** i
        down_convs.append(dc(next(ki), cur_in, cout))
        cur_in = cout

    up_sample = []
    for i in range(num_blocks - 1, 0, -1):
        cin, cout = channel_base * 2 ** i, channel_base * 2 ** (i - 1)
        up_sample.append(dict(
            w=(0.1 * jax.random.normal(next(ki), (cin, cout, 2, 2))).astype(f),
            b=(0.1 * jax.random.normal(next(ki), (cout,))).astype(f),
        ))

    up_convs = []
    for i in range(num_blocks - 2, -1, -1):
        cin, cout = channel_base * 2 ** (i + 1), channel_base * 2 ** i
        up_convs.append(dc(next(ki), cin, cout))

    final_conv = dict(
        w=(0.1 * jax.random.normal(next(ki), (out_channels, channel_base, 1, 1))).astype(f),
        b=(0.1 * jax.random.normal(next(ki), (out_channels,))).astype(f),
    )
    return dict(down_convs=down_convs, up_sample=up_sample,
                up_convs=up_convs, final_conv=final_conv)


# ---------------------------------------------------------------------------
# One-time parameter repacking (hoisted out of the jitted forward)
# ---------------------------------------------------------------------------

def _flatten_conv3x3(w):
    """(Cout, Cin, 3, 3) -> (Cout, 9*Cin); K ordered tap-major, channel-minor,
    matching the in-kernel window-matrix layout (tap t = (dy+1)*3 + (dx+1))."""
    cout, cin = int(w.shape[0]), int(w.shape[1])
    return jnp.transpose(w, (0, 2, 3, 1)).reshape(cout, 9 * cin)


def _prep_double_conv(dc, split=None):
    """Repack a double_conv block. `split` (c_up, c_skip) reorders conv1's K so
    the fused torch.cat((up, skip), dim=1) can feed two separate tap groups."""
    w1 = dc["conv1_w"]
    if split is None:
        w1f = _flatten_conv3x3(w1)
    else:
        parts, off = [], 0
        for c in split:
            parts.append(_flatten_conv3x3(w1[:, off:off + c]))
            off += c
        w1f = jnp.concatenate(parts, axis=1)
    col = lambda v: v.reshape(-1, 1)
    return [w1f, col(dc["conv1_b"]), col(dc["in1_w"]), col(dc["in1_b"]),
            _flatten_conv3x3(dc["conv2_w"]),
            col(dc["conv2_b"]), col(dc["in2_w"]), col(dc["in2_b"])]


def prepare_unet_params(params, H, W):
    """PyTorch-layout params -> flat tuple of kernel operands (run once)."""
    num_blocks = len(params["down_convs"])
    flat = []
    h, w = H, W
    for i in range(num_blocks):
        dc = params["down_convs"][i]
        if i == 0:
            # Pad the stem's Cin up to a multiple of 8 (sublane alignment of the
            # window matrix); the input is zero-padded to match in the wrapper.
            cin = int(dc["conv1_w"].shape[1])
            cpad = _round_up(cin, 8)
            if cpad != cin:
                dc = dict(dc)
                dc["conv1_w"] = jnp.pad(
                    dc["conv1_w"], ((0, 0), (0, cpad - cin), (0, 0), (0, 0)))
        else:
            flat.append(_pool_select_matrix(h, w))
            h, w = h // 2, w // 2
        flat.extend(_prep_double_conv(dc))
    for i in range(num_blocks - 1):
        up = params["up_sample"][i]
        cin_t, cout_t = int(up["w"].shape[0]), int(up["w"].shape[1])
        # (Cin, Cout, 2, 2) -> (4*Cout, Cin), rows ordered phase-major
        flat.append(jnp.transpose(up["w"], (2, 3, 1, 0)).reshape(4 * cout_t, cin_t))
        flat.append(up["b"].reshape(-1, 1))
        flat.append(_convt_scatter_matrices(h, w))
        h, w = 2 * h, 2 * w
        c_total = int(params["up_convs"][i]["conv1_w"].shape[1])
        flat.extend(_prep_double_conv(params["up_convs"][i],
                                      split=(cout_t, c_total - cout_t)))
    flat.append(params["final_conv"]["w"][:, :, 0, 0])
    flat.append(params["final_conv"]["b"].reshape(-1, 1))
    return tuple(flat)


# ---------------------------------------------------------------------------
# The single fused UNet kernel
# ---------------------------------------------------------------------------

def _make_unet_kernel(num_blocks, in_channels_padded, out_channels, channel_base,
                      H0, W0):

    def conv3x3_in_relu(xs, cins, H, W, w_ref, b_ref, g_ref, be_ref):
        """3x3 conv (pad=1) + bias + InstanceNorm2d(affine) + ReLU on
        channel-major (C, H*W) activations, as ONE deep-K MXU dot."""
        S = H * W
        col = jax.lax.broadcasted_iota(jnp.int32, (1, S), 1) % W
        not_left = col != 0
        not_right = col != (W - 1)
        taps = []
        for x, cin in zip(xs, cins):
            zpad = jnp.zeros((cin, W + 1), jnp.float32)
            xz = jnp.concatenate([zpad, x, zpad], axis=1)      # (cin, S + 2W + 2)
            for dy in (-1, 0, 1):
                for dx in (-1, 0, 1):
                    off = (W + 1) + dy * W + dx
                    t = xz[:, off:off + S]                     # shifted tap slab
                    if dx == -1:
                        t = jnp.where(not_left, t, 0.0)
                    elif dx == 1:
                        t = jnp.where(not_right, t, 0.0)
                    taps.append(t)
        win = jnp.concatenate(taps, axis=0)                    # (9*sum(cins), S)
        y = jnp.dot(w_ref[...], win, preferred_element_type=jnp.float32)
        y = y + b_ref[...]                                     # (cout, S)
        # InstanceNorm2d (biased variance), one pass over the lane (spatial) dim
        inv_s = 1.0 / S
        mean = jnp.sum(y, axis=1, keepdims=True) * inv_s
        var = jnp.sum(y * y, axis=1, keepdims=True) * inv_s - mean * mean
        var = jnp.maximum(var, 0.0)
        y = (y - mean) * jax.lax.rsqrt(var + _EPS)
        y = y * g_ref[...] + be_ref[...]
        return jnp.maximum(y, 0.0)                             # ReLU

    def max_pool_2x2(x, H, W, sel_ref):
        """MaxPool2d(2) on (C, H*W): 3 shifted VPU maxima + 1 compaction dot."""
        C, S = x.shape[0], H * W

        def shift(k):
            return jnp.concatenate([x[:, k:], jnp.zeros((C, k), jnp.float32)],
                                   axis=1)

        m = jnp.maximum(jnp.maximum(x, shift(1)),
                        jnp.maximum(shift(W), shift(W + 1)))
        return jnp.dot(m, sel_ref[...], preferred_element_type=jnp.float32)

    def conv_transpose_2x2(x, H, W, cout, wt_ref, bt_ref, sc_ref):
        """ConvTranspose2d(k=2, s=2): (Cin, H*W) -> (Cout, 4*H*W); phase
        interleave done with constant 0/1 scatter dots (all in VMEM)."""
        yp = jnp.dot(wt_ref[...], x, preferred_element_type=jnp.float32)  # (4*cout, S)
        out = None
        for p in range(4):
            part = jnp.dot(yp[p * cout:(p + 1) * cout, :], sc_ref[p],
                           preferred_element_type=jnp.float32)            # (cout, 4S)
            out = part if out is None else out + part
        return out + bt_ref[...]

    def kernel(*refs):
        x_ref, o_ref = refs[0], refs[-1]
        it = iter(refs[1:-1])
        nxt = lambda: next(it)

        H, W = H0, W0
        cur = x_ref[0]                          # (Cin_padded, H0*W0), channel-major
        cin = in_channels_padded
        skips = []

        # ---------------- encoder ----------------
        for i in range(num_blocks):
            cout = channel_base * 2 ** i
            if i > 0:
                skips.append((cur, cin, H, W))
                cur = max_pool_2x2(cur, H, W, nxt())
                H, W = H // 2, W // 2
            w1, b1, g1, be1, w2, b2, g2, be2 = [nxt() for _ in range(8)]
            cur = conv3x3_in_relu([cur], (cin,), H, W, w1, b1, g1, be1)
            cur = conv3x3_in_relu([cur], (cout,), H, W, w2, b2, g2, be2)
            cin = cout

        # ---------------- decoder ----------------
        for i in range(num_blocks - 1):
            cout = channel_base * 2 ** (num_blocks - 2 - i)
            wt, bt, sc = nxt(), nxt(), nxt()
            cur = conv_transpose_2x2(cur, H, W, cout, wt, bt, sc)
            H, W = 2 * H, 2 * W
            skip_x, skip_c, sh, sw = skips[-(i + 1)]
            assert (sh, sw) == (H, W)           # static (trace-time) check
            w1, b1, g1, be1, w2, b2, g2, be2 = [nxt() for _ in range(8)]
            # torch.cat((up, skip), dim=1) fused: two tap groups in one deep-K dot
            cur = conv3x3_in_relu([cur, skip_x], (cout, skip_c), H, W,
                                  w1, b1, g1, be1)
            cur = conv3x3_in_relu([cur], (cout,), H, W, w2, b2, g2, be2)
            cin = cout

        # ---------------- final 1x1 conv ----------------
        wf, bf = nxt(), nxt()
        o_ref[0] = (jnp.dot(wf[...], cur, preferred_element_type=jnp.float32)
                    + bf[...])

    return kernel


# ---------------------------------------------------------------------------
# Forward wrapper (one pallas_call for the whole network)
# ---------------------------------------------------------------------------

def make_unet_forward(num_blocks, in_channels, out_channels, channel_base, H, W):
    S = H * W
    cin_pad = _round_up(in_channels, 8)
    kernel = _make_unet_kernel(num_blocks, cin_pad, out_channels, channel_base, H, W)

    def forward(flat_params, x_nchw):
        N = x_nchw.shape[0]
        x = x_nchw.reshape(N, in_channels, S)            # free metadata reshape
        if cin_pad != in_channels:                       # align stem channels to 8
            x = jnp.pad(x, ((0, 0), (0, cin_pad - in_channels), (0, 0)))

        in_specs = [pl.BlockSpec((1, cin_pad, S), lambda n: (n, 0, 0))]
        for a in flat_params:                            # full-array weight blocks
            in_specs.append(pl.BlockSpec(a.shape, lambda n, nd=a.ndim: (0,) * nd))

        out = pl.pallas_call(
            kernel,
            out_shape=jax.ShapeDtypeStruct((N, out_channels, S), jnp.float32),
            grid_spec=pltpu.PrefetchScalarGridSpec(
                num_scalar_prefetch=0,
                grid=(N,),
                in_specs=in_specs,
                out_specs=pl.BlockSpec((1, out_channels, S), lambda n: (n, 0, 0)),
            ),
            compiler_params=pltpu.CompilerParams(
                dimension_semantics=("parallel",)),
        )(x, *flat_params)
        return {"out": out.reshape(N, out_channels, H, W)}   # NCHW for free

    return forward


# ---------------------------------------------------------------------------

if __name__ == "__main__":
    # UNet(num_blocks=3, in_channels=3, out_channels=4, channel_base=8)
    NUM_BLOCKS, IN_CH, OUT_CH, BASE = 3, 3, 4, 8
    N, H, W = 2, 16, 16

    key = jax.random.PRNGKey(0)
    kp, kx = jax.random.split(key)
    torch_layout_params = init_unet_params(kp, NUM_BLOCKS, IN_CH, OUT_CH, BASE)
    flat_params = prepare_unet_params(torch_layout_params, H, W)   # hoisted repack
    x = jax.random.normal(kx, (N, IN_CH, H, W), dtype=jnp.float32)  # NCHW input

    fwd = jax.jit(make_unet_forward(NUM_BLOCKS, IN_CH, OUT_CH, BASE, H, W))
    out = fwd(flat_params, x)
    jax.block_until_ready(out["out"])
    assert out["out"].shape == (N, OUT_CH, H, W)
    assert bool(jnp.all(jnp.isfinite(out["out"])))
    print("KERNEL_OK")
</pallas_src>

<mosaic_0001>
module attributes {stable_mosaic.version = 11 : i64} {
  func.func @kernel(%arg0: i32, %arg1: memref<1x8x256xf32, #tpu.memory_space<vmem>>, %arg2: memref<8x72xf32, #tpu.memory_space<vmem>>, %arg3: memref<8x1xf32, #tpu.memory_space<vmem>>, %arg4: memref<8x1xf32, #tpu.memory_space<vmem>>, %arg5: memref<8x1xf32, #tpu.memory_space<vmem>>, %arg6: memref<8x72xf32, #tpu.memory_space<vmem>>, %arg7: memref<8x1xf32, #tpu.memory_space<vmem>>, %arg8: memref<8x1xf32, #tpu.memory_space<vmem>>, %arg9: memref<8x1xf32, #tpu.memory_space<vmem>>, %arg10: memref<256x64xf32, #tpu.memory_space<vmem>>, %arg11: memref<16x72xf32, #tpu.memory_space<vmem>>, %arg12: memref<16x1xf32, #tpu.memory_space<vmem>>, %arg13: memref<16x1xf32, #tpu.memory_space<vmem>>, %arg14: memref<16x1xf32, #tpu.memory_space<vmem>>, %arg15: memref<16x144xf32, #tpu.memory_space<vmem>>, %arg16: memref<16x1xf32, #tpu.memory_space<vmem>>, %arg17: memref<16x1xf32, #tpu.memory_space<vmem>>, %arg18: memref<16x1xf32, #tpu.memory_space<vmem>>, %arg19: memref<64x16xf32, #tpu.memory_space<vmem>>, %arg20: memref<32x144xf32, #tpu.memory_space<vmem>>, %arg21: memref<32x1xf32, #tpu.memory_space<vmem>>, %arg22: memref<32x1xf32, #tpu.memory_space<vmem>>, %arg23: memref<32x1xf32, #tpu.memory_space<vmem>>, %arg24: memref<32x288xf32, #tpu.memory_space<vmem>>, %arg25: memref<32x1xf32, #tpu.memory_space<vmem>>, %arg26: memref<32x1xf32, #tpu.memory_space<vmem>>, %arg27: memref<32x1xf32, #tpu.memory_space<vmem>>, %arg28: memref<64x32xf32, #tpu.memory_space<vmem>>, %arg29: memref<16x1xf32, #tpu.memory_space<vmem>>, %arg30: memref<4x16x64xf32, #tpu.memory_space<vmem>>, %arg31: memref<16x288xf32, #tpu.memory_space<vmem>>, %arg32: memref<16x1xf32, #tpu.memory_space<vmem>>, %arg33: memref<16x1xf32, #tpu.memory_space<vmem>>, %arg34: memref<16x1xf32, #tpu.memory_space<vmem>>, %arg35: memref<16x144xf32, #tpu.memory_space<vmem>>, %arg36: memref<16x1xf32, #tpu.memory_space<vmem>>, %arg37: memref<16x1xf32, #tpu.memory_space<vmem>>, %arg38: memref<16x1xf32, #tpu.memory_space<vmem>>, %arg39: memref<32x16xf32, #tpu.memory_space<vmem>>, %arg40: memref<8x1xf32, #tpu.memory_space<vmem>>, %arg41: memref<4x64x256xf32, #tpu.memory_space<vmem>>, %arg42: memref<8x144xf32, #tpu.memory_space<vmem>>, %arg43: memref<8x1xf32, #tpu.memory_space<vmem>>, %arg44: memref<8x1xf32, #tpu.memory_space<vmem>>, %arg45: memref<8x1xf32, #tpu.memory_space<vmem>>, %arg46: memref<8x72xf32, #tpu.memory_space<vmem>>, %arg47: memref<8x1xf32, #tpu.memory_space<vmem>>, %arg48: memref<8x1xf32, #tpu.memory_space<vmem>>, %arg49: memref<8x1xf32, #tpu.memory_space<vmem>>, %arg50: memref<4x8xf32, #tpu.memory_space<vmem>>, %arg51: memref<4x1xf32, #tpu.memory_space<vmem>>, %arg52: memref<1x4x256xf32, #tpu.memory_space<vmem>>) attributes {dimension_semantics = [#tpu.dimension_semantics<parallel>], iteration_bounds = array<i64: 2>, scalar_prefetch = 0 : i64, scratch_operands = 0 : i64, tpu.core_type = #tpu.core_type<tc>, window_params = [{transform_indices = @transform_0, window_bounds = array<i64: 1, 8, 256>}, {pipeline_mode = #tpu.pipeline_mode<synchronous>, transform_indices = @transform_1, window_bounds = array<i64: 8, 72>}, {pipeline_mode = #tpu.pipeline_mode<synchronous>, transform_indices = @transform_2, window_bounds = array<i64: 8, 1>}, {pipeline_mode = #tpu.pipeline_mode<synchronous>, transform_indices = @transform_3, window_bounds = array<i64: 8, 1>}, {pipeline_mode = #tpu.pipeline_mode<synchronous>, transform_indices = @transform_4, window_bounds = array<i64: 8, 1>}, {pipeline_mode = #tpu.pipeline_mode<synchronous>, transform_indices = @transform_5, window_bounds = array<i64: 8, 72>}, {pipeline_mode = #tpu.pipeline_mode<synchronous>, transform_indices = @transform_6, window_bounds = array<i64: 8, 1>}, {pipeline_mode = #tpu.pipeline_mode<synchronous>, transform_indices = @transform_7, window_bounds = array<i64: 8, 1>}, {pipeline_mode = #tpu.pipeline_mode<synchronous>, transform_indices = @transform_8, window_bounds = array<i64: 8, 1>}, {pipeline_mode = #tpu.pipeline_mode<synchronous>, transform_indices = @transform_9, window_bounds = array<i64: 256, 64>}, {pipeline_mode = #tpu.pipeline_mode<synchronous>, transform_indices = @transform_10, window_bounds = array<i64: 16, 72>}, {pipeline_mode = #tpu.pipeline_mode<synchronous>, transform_indices = @transform_11, window_bounds = array<i64: 16, 1>}, {pipeline_mode = #tpu.pipeline_mode<synchronous>, transform_indices = @transform_12, window_bounds = array<i64: 16, 1>}, {pipeline_mode = #tpu.pipeline_mode<synchronous>, transform_indices = @transform_13, window_bounds = array<i64: 16, 1>}, {pipeline_mode = #tpu.pipeline_mode<synchronous>, transform_indices = @transform_14, window_bounds = array<i64: 16, 144>}, {pipeline_mode = #tpu.pipeline_mode<synchronous>, transform_indices = @transform_15, window_bounds = array<i64: 16, 1>}, {pipeline_mode = #tpu.pipeline_mode<synchronous>, transform_indices = @transform_16, window_bounds = array<i64: 16, 1>}, {pipeline_mode = #tpu.pipeline_mode<synchronous>, transform_indices = @transform_17, window_bounds = array<i64: 16, 1>}, {pipeline_mode = #tpu.pipeline_mode<synchronous>, transform_indices = @transform_18, window_bounds = array<i64: 64, 16>}, {pipeline_mode = #tpu.pipeline_mode<synchronous>, transform_indices = @transform_19, window_bounds = array<i64: 32, 144>}, {pipeline_mode = #tpu.pipeline_mode<synchronous>, transform_indices = @transform_20, window_bounds = array<i64: 32, 1>}, {pipeline_mode = #tpu.pipeline_mode<synchronous>, transform_indices = @transform_21, window_bounds = array<i64: 32, 1>}, {pipeline_mode = #tpu.pipeline_mode<synchronous>, transform_indices = @transform_22, window_bounds = array<i64: 32, 1>}, {pipeline_mode = #tpu.pipeline_mode<synchronous>, transform_indices = @transform_23, window_bounds = array<i64: 32, 288>}, {pipeline_mode = #tpu.pipeline_mode<synchronous>, transform_indices = @transform_24, window_bounds = array<i64: 32, 1>}, {pipeline_mode = #tpu.pipeline_mode<synchronous>, transform_indices = @transform_25, window_bounds = array<i64: 32, 1>}, {pipeline_mode = #tpu.pipeline_mode<synchronous>, transform_indices = @transform_26, window_bounds = array<i64: 32, 1>}, {pipeline_mode = #tpu.pipeline_mode<synchronous>, transform_indices = @transform_27, window_bounds = array<i64: 64, 32>}, {pipeline_mode = #tpu.pipeline_mode<synchronous>, transform_indices = @transform_28, window_bounds = array<i64: 16, 1>}, {pipeline_mode = #tpu.pipeline_mode<synchronous>, transform_indices = @transform_29, window_bounds = array<i64: 4, 16, 64>}, {pipeline_mode = #tpu.pipeline_mode<synchronous>, transform_indices = @transform_30, window_bounds = array<i64: 16, 288>}, {pipeline_mode = #tpu.pipeline_mode<synchronous>, transform_indices = @transform_31, window_bounds = array<i64: 16, 1>}, {pipeline_mode = #tpu.pipeline_mode<synchronous>, transform_indices = @transform_32, window_bounds = array<i64: 16, 1>}, {pipeline_mode = #tpu.pipeline_mode<synchronous>, transform_indices = @transform_33, window_bounds = array<i64: 16, 1>}, {pipeline_mode = #tpu.pipeline_mode<synchronous>, transform_indices = @transform_34, window_bounds = array<i64: 16, 144>}, {pipeline_mode = #tpu.pipeline_mode<synchronous>, transform_indices = @transform_35, window_bounds = array<i64: 16, 1>}, {pipeline_mode = #tpu.pipeline_mode<synchronous>, transform_indices = @transform_36, window_bounds = array<i64: 16, 1>}, {pipeline_mode = #tpu.pipeline_mode<synchronous>, transform_indices = @transform_37, window_bounds = array<i64: 16, 1>}, {pipeline_mode = #tpu.pipeline_mode<synchronous>, transform_indices = @transform_38, window_bounds = array<i64: 32, 16>}, {pipeline_mode = #tpu.pipeline_mode<synchronous>, transform_indices = @transform_39, window_bounds = array<i64: 8, 1>}, {pipeline_mode = #tpu.pipeline_mode<synchronous>, transform_indices = @transform_40, window_bounds = array<i64: 4, 64, 256>}, {pipeline_mode = #tpu.pipeline_mode<synchronous>, transform_indices = @transform_41, window_bounds = array<i64: 8, 144>}, {pipeline_mode = #tpu.pipeline_mode<synchronous>, transform_indices = @transform_42, window_bounds = array<i64: 8, 1>}, {pipeline_mode = #tpu.pipeline_mode<synchronous>, transform_indices = @transform_43, window_bounds = array<i64: 8, 1>}, {pipeline_mode = #tpu.pipeline_mode<synchronous>, transform_indices = @transform_44, window_bounds = array<i64: 8, 1>}, {pipeline_mode = #tpu.pipeline_mode<synchronous>, transform_indices = @transform_45, window_bounds = array<i64: 8, 72>}, {pipeline_mode = #tpu.pipeline_mode<synchronous>, transform_indices = @transform_46, window_bounds = array<i64: 8, 1>}, {pipeline_mode = #tpu.pipeline_mode<synchronous>, transform_indices = @transform_47, window_bounds = array<i64: 8, 1>}, {pipeline_mode = #tpu.pipeline_mode<synchronous>, transform_indices = @transform_48, window_bounds = array<i64: 8, 1>}, {pipeline_mode = #tpu.pipeline_mode<synchronous>, transform_indices = @transform_49, window_bounds = array<i64: 4, 8>}, {pipeline_mode = #tpu.pipeline_mode<synchronous>, transform_indices = @transform_50, window_bounds = array<i64: 4, 1>}, {transform_indices = @transform_51, window_bounds = array<i64: 1, 4, 256>}]} {
    %c0 = arith.constant 0 : index
    %c0_0 = arith.constant 0 : index
    %c0_1 = arith.constant 0 : index
    %0 = vector.load %arg1[%c0, %c0_0, %c0_1] : memref<1x8x256xf32, #tpu.memory_space<vmem>>, vector<1x8x256xf32>
    %1 = vector.shape_cast %0 : vector<1x8x256xf32> to vector<8x256xf32>
    %2 = tpu.iota {dimensions = array<i32: 1>} : vector<1x256xi32>
    %c16_i32 = arith.constant 16 : i32
    %c0_i32 = arith.constant 0 : i32
    %3 = arith.cmpi eq, %c16_i32, %c0_i32 : i32
    %c1_i32 = arith.constant 1 : i32
    %4 = arith.select %3, %c1_i32, %c16_i32 : i32
    %5 = vector.broadcast %4 : i32 to vector<1x256xi32>
    %6 = arith.remsi %2, %5 : vector<1x256xi32>
    %c0_i32_2 = arith.constant 0 : i32
    %7 = vector.broadcast %c0_i32_2 : i32 to vector<1x256xi32>
    %8 = arith.cmpi ne, %6, %7 : vector<1x256xi32>
    %c0_i32_3 = arith.constant 0 : i32
    %9 = vector.broadcast %c0_i32_3 : i32 to vector<1x256xi32>
    %10 = arith.cmpi slt, %6, %9 : vector<1x256xi32>
    %c0_i32_4 = arith.constant 0 : i32
    %11 = arith.cmpi slt, %4, %c0_i32_4 : i32
    %12 = vector.broadcast %11 : i1 to vector<1x256xi1>
    %13 = vector.broadcast %12 : vector<1x256xi1> to vector<1x256xi1>
    %14 = arith.xori %10, %13 : vector<1x256xi1>
    %15 = arith.andi %14, %8 : vector<1x256xi1>
    %16 = vector.broadcast %4 : i32 to vector<1x256xi32>
    %17 = arith.addi %6, %16 : vector<1x256xi32>
    %18 = arith.select %15, %17, %6 : vector<1x256xi1>, vector<1x256xi32>
    %c0_i32_5 = arith.constant 0 : i32
    %19 = vector.broadcast %c0_i32_5 : i32 to vector<1x256xi32>
    %20 = arith.cmpi ne, %18, %19 : vector<1x256xi32>
    %c15_i32 = arith.constant 15 : i32
    %21 = vector.broadcast %c15_i32 : i32 to vector<1x256xi32>
    %22 = arith.cmpi ne, %18, %21 : vector<1x256xi32>
    %cst = arith.constant 0.000000e+00 : f32
    %23 = vector.broadcast %cst : f32 to vector<8x17xf32>
    %24 = tpu.concatenate %23, %1, %23 in 1 : vector<8x17xf32>, vector<8x256xf32>, vector<8x17xf32> -> vector<8x290xf32>
    %25 = vector.extract_strided_slice %24 {offsets = [0, 0], sizes = [8, 256], strides = [1, 1]} : vector<8x290xf32> to vector<8x256xf32>
    %cst_6 = arith.constant 0.000000e+00 : f32
    %26 = vector.shape_cast %20 : vector<1x256xi1> to vector<1x256xi1>
    %27 = vector.broadcast %26 : vector<1x256xi1> to vector<8x256xi1>
    %28 = vector.broadcast %cst_6 : f32 to vector<8x256xf32>
    %29 = arith.select %27, %25, %28 : vector<8x256xi1>, vector<8x256xf32>
    %30 = vector.extract_strided_slice %24 {offsets = [0, 1], sizes = [8, 256], strides = [1, 1]} : vector<8x290xf32> to vector<8x256xf32>
    %31 = vector.extract_strided_slice %24 {offsets = [0, 2], sizes = [8, 256], strides = [1, 1]} : vector<8x290xf32> to vector<8x256xf32>
    %cst_7 = arith.constant 0.000000e+00 : f32
    %32 = vector.shape_cast %22 : vector<1x256xi1> to vector<1x256xi1>
    %33 = vector.broadcast %32 : vector<1x256xi1> to vector<8x256xi1>
    %34 = vector.broadcast %cst_7 : f32 to vector<8x256xf32>
    %35 = arith.select %33, %31, %34 : vector<8x256xi1>, vector<8x256xf32>
    %36 = vector.extract_strided_slice %24 {offsets = [0, 16], sizes = [8, 256], strides = [1, 1]} : vector<8x290xf32> to vector<8x256xf32>
    %cst_8 = arith.constant 0.000000e+00 : f32
    %37 = vector.shape_cast %20 : vector<1x256xi1> to vector<1x256xi1>
    %38 = vector.broadcast %37 : vector<1x256xi1> to vector<8x256xi1>
    %39 = vector.broadcast %cst_8 : f32 to vector<8x256xf32>
    %40 = arith.select %38, %36, %39 : vector<8x256xi1>, vector<8x256xf32>
    %41 = vector.extract_strided_slice %24 {offsets = [0, 17], sizes = [8, 256], strides = [1, 1]} : vector<8x290xf32> to vector<8x256xf32>
    %42 = vector.extract_strided_slice %24 {offsets = [0, 18], sizes = [8, 256], strides = [1, 1]} : vector<8x290xf32> to vector<8x256xf32>
    %cst_9 = arith.constant 0.000000e+00 : f32
    %43 = vector.shape_cast %22 : vector<1x256xi1> to vector<1x256xi1>
    %44 = vector.broadcast %43 : vector<1x256xi1> to vector<8x256xi1>
    %45 = vector.broadcast %cst_9 : f32 to vector<8x256xf32>
    %46 = arith.select %44, %42, %45 : vector<8x256xi1>, vector<8x256xf32>
    %47 = vector.extract_strided_slice %24 {offsets = [0, 32], sizes = [8, 256], strides = [1, 1]} : vector<8x290xf32> to vector<8x256xf32>
    %cst_10 = arith.constant 0.000000e+00 : f32
    %48 = vector.shape_cast %20 : vector<1x256xi1> to vector<1x256xi1>
    %49 = vector.broadcast %48 : vector<1x256xi1> to vector<8x256xi1>
    %50 = vector.broadcast %cst_10 : f32 to vector<8x256xf32>
    %51 = arith.select %49, %47, %50 : vector<8x256xi1>, vector<8x256xf32>
    %52 = vector.extract_strided_slice %24 {offsets = [0, 33], sizes = [8, 256], strides = [1, 1]} : vector<8x290xf32> to vector<8x256xf32>
    %53 = vector.extract_strided_slice %24 {offsets = [0, 34], sizes = [8, 256], strides = [1, 1]} : vector<8x290xf32> to vector<8x256xf32>
    %cst_11 = arith.constant 0.000000e+00 : f32
    %54 = vector.shape_cast %22 : vector<1x256xi1> to vector<1x256xi1>
    %55 = vector.broadcast %54 : vector<1x256xi1> to vector<8x256xi1>
    %56 = vector.broadcast %cst_11 : f32 to vector<8x256xf32>
    %57 = arith.select %55, %53, %56 : vector<8x256xi1>, vector<8x256xf32>
    %58 = tpu.concatenate %29, %30, %35, %40, %41, %46, %51, %52, %57 in 0 : vector<8x256xf32>, vector<8x256xf32>, vector<8x256xf32>, vector<8x256xf32>, vector<8x256xf32>, vector<8x256xf32>, vector<8x256xf32>, vector<8x256xf32>, vector<8x256xf32> -> vector<72x256xf32>
    %c0_12 = arith.constant 0 : index
    %c0_13 = arith.constant 0 : index
    %59 = vector.load %arg2[%c0_12, %c0_13] : memref<8x72xf32, #tpu.memory_space<vmem>>, vector<8x72xf32>
    %cst_14 = arith.constant dense<0.000000e+00> : vector<8x256xf32>
    %60 = tpu.matmul %59, %58, %cst_14 {dimension_numbers = #tpu.dot_dimension_numbers<[1], [0], [0], [1], [0, 0, 1, 1], [], []>} : vector<8x72xf32>, vector<72x256xf32>, vector<8x256xf32> -> vector<8x256xf32>
    %c0_15 = arith.constant 0 : index
    %c0_16 = arith.constant 0 : index
    %61 = vector.load %arg3[%c0_15, %c0_16] : memref<8x1xf32, #tpu.memory_space<vmem>>, vector<8x1xf32>
    %62 = vector.broadcast %61 : vector<8x1xf32> to vector<8x256xf32>
    %63 = arith.addf %60, %62 : vector<8x256xf32>
    %cst_17 = arith.constant dense<0.000000e+00> : vector<8xf32>
    %64 = vector.multi_reduction <add>, %63, %cst_17 [1] : vector<8x256xf32> to vector<8xf32>
    %65 = vector.shape_cast %64 : vector<8xf32> to vector<8x1xf32>
    %cst_18 = arith.constant 3.906250e-03 : f32
    %66 = vector.broadcast %cst_18 : f32 to vector<8x1xf32>
    %67 = arith.mulf %65, %66 : vector<8x1xf32>
    %68 = arith.mulf %63, %63 : vector<8x256xf32>
    %cst_19 = arith.constant dense<0.000000e+00> : vector<8xf32>
    %69 = vector.multi_reduction <add>, %68, %cst_19 [1] : vector<8x256xf32> to vector<8xf32>
    %70 = vector.shape_cast %69 : vector<8xf32> to vector<8x1xf32>
    %cst_20 = arith.constant 3.906250e-03 : f32
    %71 = vector.broadcast %cst_20 : f32 to vector<8x1xf32>
    %72 = arith.mulf %70, %71 : vector<8x1xf32>
    %73 = arith.mulf %67, %67 : vector<8x1xf32>
    %74 = arith.subf %72, %73 : vector<8x1xf32>
    %cst_21 = arith.constant 0.000000e+00 : f32
    %75 = vector.broadcast %cst_21 : f32 to vector<8x1xf32>
    %76 = arith.maximumf %74, %75 : vector<8x1xf32>
    %77 = vector.broadcast %67 : vector<8x1xf32> to vector<8x256xf32>
    %78 = arith.subf %63, %77 : vector<8x256xf32>
    %cst_22 = arith.constant 9.99999974E-6 : f32
    %79 = vector.broadcast %cst_22 : f32 to vector<8x1xf32>
    %80 = arith.addf %76, %79 : vector<8x1xf32>
    %81 = math.rsqrt %80 : vector<8x1xf32>
    %82 = vector.broadcast %81 : vector<8x1xf32> to vector<8x256xf32>
    %83 = arith.mulf %78, %82 : vector<8x256xf32>
    %c0_23 = arith.constant 0 : index
    %c0_24 = arith.constant 0 : index
    %84 = vector.load %arg4[%c0_23, %c0_24] : memref<8x1xf32, #tpu.memory_space<vmem>>, vector<8x1xf32>
    %85 = vector.broadcast %84 : vector<8x1xf32> to vector<8x256xf32>
    %86 = arith.mulf %83, %85 : vector<8x256xf32>
    %c0_25 = arith.constant 0 : index
    %c0_26 = arith.constant 0 : index
    %87 = vector.load %arg5[%c0_25, %c0_26] : memref<8x1xf32, #tpu.memory_space<vmem>>, vector<8x1xf32>
    %88 = vector.broadcast %87 : vector<8x1xf32> to vector<8x256xf32>
    %89 = arith.addf %86, %88 : vector<8x256xf32>
    %cst_27 = arith.constant 0.000000e+00 : f32
    %90 = vector.broadcast %cst_27 : f32 to vector<8x256xf32>
    %91 = arith.maximumf %89, %90 : vector<8x256xf32>
    %92 = tpu.iota {dimensions = array<i32: 1>} : vector<1x256xi32>
    %c16_i32_28 = arith.constant 16 : i32
    %c0_i32_29 = arith.constant 0 : i32
    %93 = arith.cmpi eq, %c16_i32_28, %c0_i32_29 : i32
    %c1_i32_30 = arith.constant 1 : i32
    %94 = arith.select %93, %c1_i32_30, %c16_i32_28 : i32
    %95 = vector.broadcast %94 : i32 to vector<1x256xi32>
    %96 = arith.remsi %92, %95 : vector<1x256xi32>
    %c0_i32_31 = arith.constant 0 : i32
    %97 = vector.broadcast %c0_i32_31 : i32 to vector<1x256xi32>
    %98 = arith.cmpi ne, %96, %97 : vector<1x256xi32>
    %c0_i32_32 = arith.constant 0 : i32
    %99 = vector.broadcast %c0_i32_32 : i32 to vector<1x256xi32>
    %100 = arith.cmpi slt, %96, %99 : vector<1x256xi32>
    %c0_i32_33 = arith.constant 0 : i32
    %101 = arith.cmpi slt, %94, %c0_i32_33 : i32
    %102 = vector.broadcast %101 : i1 to vector<1x256xi1>
    %103 = vector.broadcast %102 : vector<1x256xi1> to vector<1x256xi1>
    %104 = arith.xori %100, %103 : vector<1x256xi1>
    %105 = arith.andi %104, %98 : vector<1x256xi1>
    %106 = vector.broadcast %94 : i32 to vector<1x256xi32>
    %107 = arith.addi %96, %106 : vector<1x256xi32>
    %108 = arith.select %105, %107, %96 : vector<1x256xi1>, vector<1x256xi32>
    %c0_i32_34 = arith.constant 0 : i32
    %109 = vector.broadcast %c0_i32_34 : i32 to vector<1x256xi32>
    %110 = arith.cmpi ne, %108, %109 : vector<1x256xi32>
    %c15_i32_35 = arith.constant 15 : i32
    %111 = vector.broadcast %c15_i32_35 : i32 to vector<1x256xi32>
    %112 = arith.cmpi ne, %108, %111 : vector<1x256xi32>
    %cst_36 = arith.constant 0.000000e+00 : f32
    %113 = vector.broadcast %cst_36 : f32 to vector<8x17xf32>
    %114 = tpu.concatenate %113, %91, %113 in 1 : vector<8x17xf32>, vector<8x256xf32>, vector<8x17xf32> -> vector<8x290xf32>
    %115 = vector.extract_strided_slice %114 {offsets = [0, 0], sizes = [8, 256], strides = [1, 1]} : vector<8x290xf32> to vector<8x256xf32>
    %cst_37 = arith.constant 0.000000e+00 : f32
    %116 = vector.shape_cast %110 : vector<1x256xi1> to vector<1x256xi1>
    %117 = vector.broadcast %116 : vector<1x256xi1> to vector<8x256xi1>
    %118 = vector.broadcast %cst_37 : f32 to vector<8x256xf32>
    %119 = arith.select %117, %115, %118 : vector<8x256xi1>, vector<8x256xf32>
    %120 = vector.extract_strided_slice %114 {offsets = [0, 1], sizes = [8, 256], strides = [1, 1]} : vector<8x290xf32> to vector<8x256xf32>
    %121 = vector.extract_strided_slice %114 {offsets = [0, 2], sizes = [8, 256], strides = [1, 1]} : vector<8x290xf32> to vector<8x256xf32>
    %cst_38 = arith.constant 0.000000e+00 : f32
    %122 = vector.shape_cast %112 : vector<1x256xi1> to vector<1x256xi1>
    %123 = vector.broadcast %122 : vector<1x256xi1> to vector<8x256xi1>
    %124 = vector.broadcast %cst_38 : f32 to vector<8x256xf32>
    %125 = arith.select %123, %121, %124 : vector<8x256xi1>, vector<8x256xf32>
    %126 = vector.extract_strided_slice %114 {offsets = [0, 16], sizes = [8, 256], strides = [1, 1]} : vector<8x290xf32> to vector<8x256xf32>
    %cst_39 = arith.constant 0.000000e+00 : f32
    %127 = vector.shape_cast %110 : vector<1x256xi1> to vector<1x256xi1>
    %128 = vector.broadcast %127 : vector<1x256xi1> to vector<8x256xi1>
    %129 = vector.broadcast %cst_39 : f32 to vector<8x256xf32>
    %130 = arith.select %128, %126, %129 : vector<8x256xi1>, vector<8x256xf32>
    %131 = vector.extract_strided_slice %114 {offsets = [0, 17], sizes = [8, 256], strides = [1, 1]} : vector<8x290xf32> to vector<8x256xf32>
    %132 = vector.extract_strided_slice %114 {offsets = [0, 18], sizes = [8, 256], strides = [1, 1]} : vector<8x290xf32> to vector<8x256xf32>
    %cst_40 = arith.constant 0.000000e+00 : f32
    %133 = vector.shape_cast %112 : vector<1x256xi1> to vector<1x256xi1>
    %134 = vector.broadcast %133 : vector<1x256xi1> to vector<8x256xi1>
    %135 = vector.broadcast %cst_40 : f32 to vector<8x256xf32>
    %136 = arith.select %134, %132, %135 : vector<8x256xi1>, vector<8x256xf32>
    %137 = vector.extract_strided_slice %114 {offsets = [0, 32], sizes = [8, 256], strides = [1, 1]} : vector<8x290xf32> to vector<8x256xf32>
    %cst_41 = arith.constant 0.000000e+00 : f32
    %138 = vector.shape_cast %110 : vector<1x256xi1> to vector<1x256xi1>
    %139 = vector.broadcast %138 : vector<1x256xi1> to vector<8x256xi1>
    %140 = vector.broadcast %cst_41 : f32 to vector<8x256xf32>
    %141 = arith.select %139, %137, %140 : vector<8x256xi1>, vector<8x256xf32>
    %142 = vector.extract_strided_slice %114 {offsets = [0, 33], sizes = [8, 256], strides = [1, 1]} : vector<8x290xf32> to vector<8x256xf32>
    %143 = vector.extract_strided_slice %114 {offsets = [0, 34], sizes = [8, 256], strides = [1, 1]} : vector<8x290xf32> to vector<8x256xf32>
    %cst_42 = arith.constant 0.000000e+00 : f32
    %144 = vector.shape_cast %112 : vector<1x256xi1> to vector<1x256xi1>
    %145 = vector.broadcast %144 : vector<1x256xi1> to vector<8x256xi1>
    %146 = vector.broadcast %cst_42 : f32 to vector<8x256xf32>
    %147 = arith.select %145, %143, %146 : vector<8x256xi1>, vector<8x256xf32>
    %148 = tpu.concatenate %119, %120, %125, %130, %131, %136, %141, %142, %147 in 0 : vector<8x256xf32>, vector<8x256xf32>, vector<8x256xf32>, vector<8x256xf32>, vector<8x256xf32>, vector<8x256xf32>, vector<8x256xf32>, vector<8x256xf32>, vector<8x256xf32> -> vector<72x256xf32>
    %c0_43 = arith.constant 0 : index
    %c0_44 = arith.constant 0 : index
    %149 = vector.load %arg6[%c0_43, %c0_44] : memref<8x72xf32, #tpu.memory_space<vmem>>, vector<8x72xf32>
    %cst_45 = arith.constant dense<0.000000e+00> : vector<8x256xf32>
    %150 = tpu.matmul %149, %148, %cst_45 {dimension_numbers = #tpu.dot_dimension_numbers<[1], [0], [0], [1], [0, 0, 1, 1], [], []>} : vector<8x72xf32>, vector<72x256xf32>, vector<8x256xf32> -> vector<8x256xf32>
    %c0_46 = arith.constant 0 : index
    %c0_47 = arith.constant 0 : index
    %151 = vector.load %arg7[%c0_46, %c0_47] : memref<8x1xf32, #tpu.memory_space<vmem>>, vector<8x1xf32>
    %152 = vector.broadcast %151 : vector<8x1xf32> to vector<8x256xf32>
    %153 = arith.addf %150, %152 : vector<8x256xf32>
    %cst_48 = arith.constant dense<0.000000e+00> : vector<8xf32>
    %154 = vector.multi_reduction <add>, %153, %cst_48 [1] : vector<8x256xf32> to vector<8xf32>
    %155 = vector.shape_cast %154 : vector<8xf32> to vector<8x1xf32>
    %cst_49 = arith.constant 3.906250e-03 : f32
    %156 = vector.broadcast %cst_49 : f32 to vector<8x1xf32>
    %157 = arith.mulf %155, %156 : vector<8x1xf32>
    %158 = arith.mulf %153, %153 : vector<8x256xf32>
    %cst_50 = arith.constant dense<0.000000e+00> : vector<8xf32>
    %159 = vector.multi_reduction <add>, %158, %cst_50 [1] : vector<8x256xf32> to vector<8xf32>
    %160 = vector.shape_cast %159 : vector<8xf32> to vector<8x1xf32>
    %cst_51 = arith.constant 3.906250e-03 : f32
    %161 = vector.broadcast %cst_51 : f32 to vector<8x1xf32>
    %162 = arith.mulf %160, %161 : vector<8x1xf32>
    %163 = arith.mulf %157, %157 : vector<8x1xf32>
    %164 = arith.subf %162, %163 : vector<8x1xf32>
    %cst_52 = arith.constant 0.000000e+00 : f32
    %165 = vector.broadcast %cst_52 : f32 to vector<8x1xf32>
    %166 = arith.maximumf %164, %165 : vector<8x1xf32>
    %167 = vector.broadcast %157 : vector<8x1xf32> to vector<8x256xf32>
    %168 = arith.subf %153, %167 : vector<8x256xf32>
    %cst_53 = arith.constant 9.99999974E-6 : f32
    %169 = vector.broadcast %cst_53 : f32 to vector<8x1xf32>
    %170 = arith.addf %166, %169 : vector<8x1xf32>
    %171 = math.rsqrt %170 : vector<8x1xf32>
    %172 = vector.broadcast %171 : vector<8x1xf32> to vector<8x256xf32>
    %173 = arith.mulf %168, %172 : vector<8x256xf32>
    %c0_54 = arith.constant 0 : index
    %c0_55 = arith.constant 0 : index
    %174 = vector.load %arg8[%c0_54, %c0_55] : memref<8x1xf32, #tpu.memory_space<vmem>>, vector<8x1xf32>
    %175 = vector.broadcast %174 : vector<8x1xf32> to vector<8x256xf32>
    %176 = arith.mulf %173, %175 : vector<8x256xf32>
    %c0_56 = arith.constant 0 : index
    %c0_57 = arith.constant 0 : index
    %177 = vector.load %arg9[%c0_56, %c0_57] : memref<8x1xf32, #tpu.memory_space<vmem>>, vector<8x1xf32>
    %178 = vector.broadcast %177 : vector<8x1xf32> to vector<8x256xf32>
    %179 = arith.addf %176, %178 : vector<8x256xf32>
    %cst_58 = arith.constant 0.000000e+00 : f32
    %180 = vector.broadcast %cst_58 : f32 to vector<8x256xf32>
    %181 = arith.maximumf %179, %180 : vector<8x256xf32>
    %182 = vector.extract_strided_slice %181 {offsets = [0, 1], sizes = [8, 255], strides = [1, 1]} : vector<8x256xf32> to vector<8x255xf32>
    %cst_59 = arith.constant 0.000000e+00 : f32
    %183 = vector.broadcast %cst_59 : f32 to vector<8x1xf32>
    %184 = tpu.concatenate %182, %183 in 1 : vector<8x255xf32>, vector<8x1xf32> -> vector<8x256xf32>
    %185 = arith.maximumf %181, %184 : vector<8x256xf32>
    %186 = vector.extract_strided_slice %181 {offsets = [0, 16], sizes = [8, 240], strides = [1, 1]} : vector<8x256xf32> to vector<8x240xf32>
    %cst_60 = arith.constant 0.000000e+00 : f32
    %187 = vector.broadcast %cst_60 : f32 to vector<8x16xf32>
    %188 = tpu.concatenate %186, %187 in 1 : vector<8x240xf32>, vector<8x16xf32> -> vector<8x256xf32>
    %189 = vector.extract_strided_slice %181 {offsets = [0, 17], sizes = [8, 239], strides = [1, 1]} : vector<8x256xf32> to vector<8x239xf32>
    %cst_61 = arith.constant 0.000000e+00 : f32
    %190 = vector.broadcast %cst_61 : f32 to vector<8x17xf32>
    %191 = tpu.concatenate %189, %190 in 1 : vector<8x239xf32>, vector<8x17xf32> -> vector<8x256xf32>
    %192 = arith.maximumf %188, %191 : vector<8x256xf32>
    %193 = arith.maximumf %185, %192 : vector<8x256xf32>
    %c0_62 = arith.constant 0 : index
    %c0_63 = arith.constant 0 : index
    %194 = vector.load %arg10[%c0_62, %c0_63] : memref<256x64xf32, #tpu.memory_space<vmem>>, vector<256x64xf32>
    %cst_64 = arith.constant dense<0.000000e+00> : vector<8x64xf32>
    %195 = tpu.matmul %193, %194, %cst_64 {dimension_numbers = #tpu.dot_dimension_numbers<[1], [0], [0], [1], [0, 0, 1, 1], [], []>} : vector<8x256xf32>, vector<256x64xf32>, vector<8x64xf32> -> vector<8x64xf32>
    %196 = tpu.iota {dimensions = array<i32: 1>} : vector<1x64xi32>
    %c8_i32 = arith.constant 8 : i32
    %c0_i32_65 = arith.constant 0 : i32
    %197 = arith.cmpi eq, %c8_i32, %c0_i32_65 : i32
    %c1_i32_66 = arith.constant 1 : i32
    %198 = arith.select %197, %c1_i32_66, %c8_i32 : i32
    %199 = vector.broadcast %198 : i32 to vector<1x64xi32>
    %200 = arith.remsi %196, %199 : vector<1x64xi32>
    %c0_i32_67 = arith.constant 0 : i32
    %201 = vector.broadcast %c0_i32_67 : i32 to vector<1x64xi32>
    %202 = arith.cmpi ne, %200, %201 : vector<1x64xi32>
    %c0_i32_68 = arith.constant 0 : i32
    %203 = vector.broadcast %c0_i32_68 : i32 to vector<1x64xi32>
    %204 = arith.cmpi slt, %200, %203 : vector<1x64xi32>
    %c0_i32_69 = arith.constant 0 : i32
    %205 = arith.cmpi slt, %198, %c0_i32_69 : i32
    %206 = vector.broadcast %205 : i1 to vector<1x64xi1>
    %207 = vector.broadcast %206 : vector<1x64xi1> to vector<1x64xi1>
    %208 = arith.xori %204, %207 : vector<1x64xi1>
    %209 = arith.andi %208, %202 : vector<1x64xi1>
    %210 = vector.broadcast %198 : i32 to vector<1x64xi32>
    %211 = arith.addi %200, %210 : vector<1x64xi32>
    %212 = arith.select %209, %211, %200 : vector<1x64xi1>, vector<1x64xi32>
    %c0_i32_70 = arith.constant 0 : i32
    %213 = vector.broadcast %c0_i32_70 : i32 to vector<1x64xi32>
    %214 = arith.cmpi ne, %212, %213 : vector<1x64xi32>
    %c7_i32 = arith.constant 7 : i32
    %215 = vector.broadcast %c7_i32 : i32 to vector<1x64xi32>
    %216 = arith.cmpi ne, %212, %215 : vector<1x64xi32>
    %cst_71 = arith.constant 0.000000e+00 : f32
    %217 = vector.broadcast %cst_71 : f32 to vector<8x9xf32>
    %218 = tpu.concatenate %217, %195, %217 in 1 : vector<8x9xf32>, vector<8x64xf32>, vector<8x9xf32> -> vector<8x82xf32>
    %219 = vector.extract_strided_slice %218 {offsets = [0, 0], sizes = [8, 64], strides = [1, 1]} : vector<8x82xf32> to vector<8x64xf32>
    %cst_72 = arith.constant 0.000000e+00 : f32
    %220 = vector.shape_cast %214 : vector<1x64xi1> to vector<1x64xi1>
    %221 = vector.broadcast %220 : vector<1x64xi1> to vector<8x64xi1>
    %222 = vector.broadcast %cst_72 : f32 to vector<8x64xf32>
    %223 = arith.select %221, %219, %222 : vector<8x64xi1>, vector<8x64xf32>
    %224 = vector.extract_strided_slice %218 {offsets = [0, 1], sizes = [8, 64], strides = [1, 1]} : vector<8x82xf32> to vector<8x64xf32>
    %225 = vector.extract_strided_slice %218 {offsets = [0, 2], sizes = [8, 64], strides = [1, 1]} : vector<8x82xf32> to vector<8x64xf32>
    %cst_73 = arith.constant 0.000000e+00 : f32
    %226 = vector.shape_cast %216 : vector<1x64xi1> to vector<1x64xi1>
    %227 = vector.broadcast %226 : vector<1x64xi1> to vector<8x64xi1>
    %228 = vector.broadcast %cst_73 : f32 to vector<8x64xf32>
    %229 = arith.select %227, %225, %228 : vector<8x64xi1>, vector<8x64xf32>
    %230 = vector.extract_strided_slice %218 {offsets = [0, 8], sizes = [8, 64], strides = [1, 1]} : vector<8x82xf32> to vector<8x64xf32>
    %cst_74 = arith.constant 0.000000e+00 : f32
    %231 = vector.shape_cast %214 : vector<1x64xi1> to vector<1x64xi1>
    %232 = vector.broadcast %231 : vector<1x64xi1> to vector<8x64xi1>
    %233 = vector.broadcast %cst_74 : f32 to vector<8x64xf32>
    %234 = arith.select %232, %230, %233 : vector<8x64xi1>, vector<8x64xf32>
    %235 = vector.extract_strided_slice %218 {offsets = [0, 9], sizes = [8, 64], strides = [1, 1]} : vector<8x82xf32> to vector<8x64xf32>
    %236 = vector.extract_strided_slice %218 {offsets = [0, 10], sizes = [8, 64], strides = [1, 1]} : vector<8x82xf32> to vector<8x64xf32>
    %cst_75 = arith.constant 0.000000e+00 : f32
    %237 = vector.shape_cast %216 : vector<1x64xi1> to vector<1x64xi1>
    %238 = vector.broadcast %237 : vector<1x64xi1> to vector<8x64xi1>
    %239 = vector.broadcast %cst_75 : f32 to vector<8x64xf32>
    %240 = arith.select %238, %236, %239 : vector<8x64xi1>, vector<8x64xf32>
    %241 = vector.extract_strided_slice %218 {offsets = [0, 16], sizes = [8, 64], strides = [1, 1]} : vector<8x82xf32> to vector<8x64xf32>
    %cst_76 = arith.constant 0.000000e+00 : f32
    %242 = vector.shape_cast %214 : vector<1x64xi1> to vector<1x64xi1>
    %243 = vector.broadcast %242 : vector<1x64xi1> to vector<8x64xi1>
    %244 = vector.broadcast %cst_76 : f32 to vector<8x64xf32>
    %245 = arith.select %243, %241, %244 : vector<8x64xi1>, vector<8x64xf32>
    %246 = vector.extract_strided_slice %218 {offsets = [0, 17], sizes = [8, 64], strides = [1, 1]} : vector<8x82xf32> to vector<8x64xf32>
    %247 = vector.extract_strided_slice %218 {offsets = [0, 18], sizes = [8, 64], strides = [1, 1]} : vector<8x82xf32> to vector<8x64xf32>
    %cst_77 = arith.constant 0.000000e+00 : f32
    %248 = vector.shape_cast %216 : vector<1x64xi1> to vector<1x64xi1>
    %249 = vector.broadcast %248 : vector<1x64xi1> to vector<8x64xi1>
    %250 = vector.broadcast %cst_77 : f32 to vector<8x64xf32>
    %251 = arith.select %249, %247, %250 : vector<8x64xi1>, vector<8x64xf32>
    %252 = tpu.concatenate %223, %224, %229, %234, %235, %240, %245, %246, %251 in 0 : vector<8x64xf32>, vector<8x64xf32>, vector<8x64xf32>, vector<8x64xf32>, vector<8x64xf32>, vector<8x64xf32>, vector<8x64xf32>, vector<8x64xf32>, vector<8x64xf32> -> vector<72x64xf32>
    %c0_78 = arith.constant 0 : index
    %c0_79 = arith.constant 0 : index
    %253 = vector.load %arg11[%c0_78, %c0_79] : memref<16x72xf32, #tpu.memory_space<vmem>>, vector<16x72xf32>
    %cst_80 = arith.constant dense<0.000000e+00> : vector<16x64xf32>
    %254 = tpu.matmul %253, %252, %cst_80 {dimension_numbers = #tpu.dot_dimension_numbers<[1], [0], [0], [1], [0, 0, 1, 1], [], []>} : vector<16x72xf32>, vector<72x64xf32>, vector<16x64xf32> -> vector<16x64xf32>
    %c0_81 = arith.constant 0 : index
    %c0_82 = arith.constant 0 : index
    %255 = vector.load %arg12[%c0_81, %c0_82] : memref<16x1xf32, #tpu.memory_space<vmem>>, vector<16x1xf32>
    %256 = vector.broadcast %255 : vector<16x1xf32> to vector<16x64xf32>
    %257 = arith.addf %254, %256 : vector<16x64xf32>
    %cst_83 = arith.constant dense<0.000000e+00> : vector<16xf32>
    %258 = vector.multi_reduction <add>, %257, %cst_83 [1] : vector<16x64xf32> to vector<16xf32>
    %259 = vector.shape_cast %258 : vector<16xf32> to vector<16x1xf32>
    %cst_84 = arith.constant 1.562500e-02 : f32
    %260 = vector.broadcast %cst_84 : f32 to vector<16x1xf32>
    %261 = arith.mulf %259, %260 : vector<16x1xf32>
    %262 = arith.mulf %257, %257 : vector<16x64xf32>
    %cst_85 = arith.constant dense<0.000000e+00> : vector<16xf32>
    %263 = vector.multi_reduction <add>, %262, %cst_85 [1] : vector<16x64xf32> to vector<16xf32>
    %264 = vector.shape_cast %263 : vector<16xf32> to vector<16x1xf32>
    %cst_86 = arith.constant 1.562500e-02 : f32
    %265 = vector.broadcast %cst_86 : f32 to vector<16x1xf32>
    %266 = arith.mulf %264, %265 : vector<16x1xf32>
    %267 = arith.mulf %261, %261 : vector<16x1xf32>
    %268 = arith.subf %266, %267 : vector<16x1xf32>
    %cst_87 = arith.constant 0.000000e+00 : f32
    %269 = vector.broadcast %cst_87 : f32 to vector<16x1xf32>
    %270 = arith.maximumf %268, %269 : vector<16x1xf32>
    %271 = vector.broadcast %261 : vector<16x1xf32> to vector<16x64xf32>
    %272 = arith.subf %257, %271 : vector<16x64xf32>
    %cst_88 = arith.constant 9.99999974E-6 : f32
    %273 = vector.broadcast %cst_88 : f32 to vector<16x1xf32>
    %274 = arith.addf %270, %273 : vector<16x1xf32>
    %275 = math.rsqrt %274 : vector<16x1xf32>
    %276 = vector.broadcast %275 : vector<16x1xf32> to vector<16x64xf32>
    %277 = arith.mulf %272, %276 : vector<16x64xf32>
    %c0_89 = arith.constant 0 : index
    %c0_90 = arith.constant 0 : index
    %278 = vector.load %arg13[%c0_89, %c0_90] : memref<16x1xf32, #tpu.memory_space<vmem>>, vector<16x1xf32>
    %279 = vector.broadcast %278 : vector<16x1xf32> to vector<16x64xf32>
    %280 = arith.mulf %277, %279 : vector<16x64xf32>
    %c0_91 = arith.constant 0 : index
    %c0_92 = arith.constant 0 : index
    %281 = vector.load %arg14[%c0_91, %c0_92] : memref<16x1xf32, #tpu.memory_space<vmem>>, vector<16x1xf32>
    %282 = vector.broadcast %281 : vector<16x1xf32> to vector<16x64xf32>
    %283 = arith.addf %280, %282 : vector<16x64xf32>
    %cst_93 = arith.constant 0.000000e+00 : f32
    %284 = vector.broadcast %cst_93 : f32 to vector<16x64xf32>
    %285 = arith.maximumf %283, %284 : vector<16x64xf32>
    %286 = tpu.iota {dimensions = array<i32: 1>} : vector<1x64xi32>
    %c8_i32_94 = arith.constant 8 : i32
    %c0_i32_95 = arith.constant 0 : i32
    %287 = arith.cmpi eq, %c8_i32_94, %c0_i32_95 : i32
    %c1_i32_96 = arith.constant 1 : i32
    %288 = arith.select %287, %c1_i32_96, %c8_i32_94 : i32
    %289 = vector.broadcast %288 : i32 to vector<1x64xi32>
    %290 = arith.remsi %286, %289 : vector<1x64xi32>
    %c0_i32_97 = arith.constant 0 : i32
    %291 = vector.broadcast %c0_i32_97 : i32 to vector<1x64xi32>
    %292 = arith.cmpi ne, %290, %291 : vector<1x64xi32>
    %c0_i32_98 = arith.constant 0 : i32
    %293 = vector.broadcast %c0_i32_98 : i32 to vector<1x64xi32>
    %294 = arith.cmpi slt, %290, %293 : vector<1x64xi32>
    %c0_i32_99 = arith.constant 0 : i32
    %295 = arith.cmpi slt, %288, %c0_i32_99 : i32
    %296 = vector.broadcast %295 : i1 to vector<1x64xi1>
    %297 = vector.broadcast %296 : vector<1x64xi1> to vector<1x64xi1>
    %298 = arith.xori %294, %297 : vector<1x64xi1>
    %299 = arith.andi %298, %292 : vector<1x64xi1>
    %300 = vector.broadcast %288 : i32 to vector<1x64xi32>
    %301 = arith.addi %290, %300 : vector<1x64xi32>
    %302 = arith.select %299, %301, %290 : vector<1x64xi1>, vector<1x64xi32>
    %c0_i32_100 = arith.constant 0 : i32
    %303 = vector.broadcast %c0_i32_100 : i32 to vector<1x64xi32>
    %304 = arith.cmpi ne, %302, %303 : vector<1x64xi32>
    %c7_i32_101 = arith.constant 7 : i32
    %305 = vector.broadcast %c7_i32_101 : i32 to vector<1x64xi32>
    %306 = arith.cmpi ne, %302, %305 : vector<1x64xi32>
    %cst_102 = arith.constant 0.000000e+00 : f32
    %307 = vector.broadcast %cst_102 : f32 to vector<16x9xf32>
    %308 = tpu.concatenate %307, %285, %307 in 1 : vector<16x9xf32>, vector<16x64xf32>, vector<16x9xf32> -> vector<16x82xf32>
    %309 = vector.extract_strided_slice %308 {offsets = [0, 0], sizes = [16, 64], strides = [1, 1]} : vector<16x82xf32> to vector<16x64xf32>
    %cst_103 = arith.constant 0.000000e+00 : f32
    %310 = vector.shape_cast %304 : vector<1x64xi1> to vector<1x64xi1>
    %311 = vector.broadcast %310 : vector<1x64xi1> to vector<16x64xi1>
    %312 = vector.broadcast %cst_103 : f32 to vector<16x64xf32>
    %313 = arith.select %311, %309, %312 : vector<16x64xi1>, vector<16x64xf32>
    %314 = vector.extract_strided_slice %308 {offsets = [0, 1], sizes = [16, 64], strides = [1, 1]} : vector<16x82xf32> to vector<16x64xf32>
    %315 = vector.extract_strided_slice %308 {offsets = [0, 2], sizes = [16, 64], strides = [1, 1]} : vector<16x82xf32> to vector<16x64xf32>
    %cst_104 = arith.constant 0.000000e+00 : f32
    %316 = vector.shape_cast %306 : vector<1x64xi1> to vector<1x64xi1>
    %317 = vector.broadcast %316 : vector<1x64xi1> to vector<16x64xi1>
    %318 = vector.broadcast %cst_104 : f32 to vector<16x64xf32>
    %319 = arith.select %317, %315, %318 : vector<16x64xi1>, vector<16x64xf32>
    %320 = vector.extract_strided_slice %308 {offsets = [0, 8], sizes = [16, 64], strides = [1, 1]} : vector<16x82xf32> to vector<16x64xf32>
    %cst_105 = arith.constant 0.000000e+00 : f32
    %321 = vector.shape_cast %304 : vector<1x64xi1> to vector<1x64xi1>
    %322 = vector.broadcast %321 : vector<1x64xi1> to vector<16x64xi1>
    %323 = vector.broadcast %cst_105 : f32 to vector<16x64xf32>
    %324 = arith.select %322, %320, %323 : vector<16x64xi1>, vector<16x64xf32>
    %325 = vector.extract_strided_slice %308 {offsets = [0, 9], sizes = [16, 64], strides = [1, 1]} : vector<16x82xf32> to vector<16x64xf32>
    %326 = vector.extract_strided_slice %308 {offsets = [0, 10], sizes = [16, 64], strides = [1, 1]} : vector<16x82xf32> to vector<16x64xf32>
    %cst_106 = arith.constant 0.000000e+00 : f32
    %327 = vector.shape_cast %306 : vector<1x64xi1> to vector<1x64xi1>
    %328 = vector.broadcast %327 : vector<1x64xi1> to vector<16x64xi1>
    %329 = vector.broadcast %cst_106 : f32 to vector<16x64xf32>
    %330 = arith.select %328, %326, %329 : vector<16x64xi1>, vector<16x64xf32>
    %331 = vector.extract_strided_slice %308 {offsets = [0, 16], sizes = [16, 64], strides = [1, 1]} : vector<16x82xf32> to vector<16x64xf32>
    %cst_107 = arith.constant 0.000000e+00 : f32
    %332 = vector.shape_cast %304 : vector<1x64xi1> to vector<1x64xi1>
    %333 = vector.broadcast %332 : vector<1x64xi1> to vector<16x64xi1>
    %334 = vector.broadcast %cst_107 : f32 to vector<16x64xf32>
    %335 = arith.select %333, %331, %334 : vector<16x64xi1>, vector<16x64xf32>
    %336 = vector.extract_strided_slice %308 {offsets = [0, 17], sizes = [16, 64], strides = [1, 1]} : vector<16x82xf32> to vector<16x64xf32>
    %337 = vector.extract_strided_slice %308 {offsets = [0, 18], sizes = [16, 64], strides = [1, 1]} : vector<16x82xf32> to vector<16x64xf32>
    %cst_108 = arith.constant 0.000000e+00 : f32
    %338 = vector.shape_cast %306 : vector<1x64xi1> to vector<1x64xi1>
    %339 = vector.broadcast %338 : vector<1x64xi1> to vector<16x64xi1>
    %340 = vector.broadcast %cst_108 : f32 to vector<16x64xf32>
    %341 = arith.select %339, %337, %340 : vector<16x64xi1>, vector<16x64xf32>
    %342 = tpu.concatenate %313, %314, %319, %324, %325, %330, %335, %336, %341 in 0 : vector<16x64xf32>, vector<16x64xf32>, vector<16x64xf32>, vector<16x64xf32>, vector<16x64xf32>, vector<16x64xf32>, vector<16x64xf32>, vector<16x64xf32>, vector<16x64xf32> -> vector<144x64xf32>
    %c0_109 = arith.constant 0 : index
    %c0_110 = arith.constant 0 : index
    %343 = vector.load %arg15[%c0_109, %c0_110] : memref<16x144xf32, #tpu.memory_space<vmem>>, vector<16x144xf32>
    %cst_111 = arith.constant dense<0.000000e+00> : vector<16x64xf32>
    %344 = tpu.matmul %343, %342, %cst_111 {dimension_numbers = #tpu.dot_dimension_numbers<[1], [0], [0], [1], [0, 0, 1, 1], [], []>} : vector<16x144xf32>, vector<144x64xf32>, vector<16x64xf32> -> vector<16x64xf32>
    %c0_112 = arith.constant 0 : index
    %c0_113 = arith.constant 0 : index
    %345 = vector.load %arg16[%c0_112, %c0_113] : memref<16x1xf32, #tpu.memory_space<vmem>>, vector<16x1xf32>
    %346 = vector.broadcast %345 : vector<16x1xf32> to vector<16x64xf32>
    %347 = arith.addf %344, %346 : vector<16x64xf32>
    %cst_114 = arith.constant dense<0.000000e+00> : vector<16xf32>
    %348 = vector.multi_reduction <add>, %347, %cst_114 [1] : vector<16x64xf32> to vector<16xf32>
    %349 = vector.shape_cast %348 : vector<16xf32> to vector<16x1xf32>
    %cst_115 = arith.constant 1.562500e-02 : f32
    %350 = vector.broadcast %cst_115 : f32 to vector<16x1xf32>
    %351 = arith.mulf %349, %350 : vector<16x1xf32>
    %352 = arith.mulf %347, %347 : vector<16x64xf32>
    %cst_116 = arith.constant dense<0.000000e+00> : vector<16xf32>
    %353 = vector.multi_reduction <add>, %352, %cst_116 [1] : vector<16x64xf32> to vector<16xf32>
    %354 = vector.shape_cast %353 : vector<16xf32> to vector<16x1xf32>
    %cst_117 = arith.constant 1.562500e-02 : f32
    %355 = vector.broadcast %cst_117 : f32 to vector<16x1xf32>
    %356 = arith.mulf %354, %355 : vector<16x1xf32>
    %357 = arith.mulf %351, %351 : vector<16x1xf32>
    %358 = arith.subf %356, %357 : vector<16x1xf32>
    %cst_118 = arith.constant 0.000000e+00 : f32
    %359 = vector.broadcast %cst_118 : f32 to vector<16x1xf32>
    %360 = arith.maximumf %358, %359 : vector<16x1xf32>
    %361 = vector.broadcast %351 : vector<16x1xf32> to vector<16x64xf32>
    %362 = arith.subf %347, %361 : vector<16x64xf32>
    %cst_119 = arith.constant 9.99999974E-6 : f32
    %363 = vector.broadcast %cst_119 : f32 to vector<16x1xf32>
    %364 = arith.addf %360, %363 : vector<16x1xf32>
    %365 = math.rsqrt %364 : vector<16x1xf32>
    %366 = vector.broadcast %365 : vector<16x1xf32> to vector<16x64xf32>
    %367 = arith.mulf %362, %366 : vector<16x64xf32>
    %c0_120 = arith.constant 0 : index
    %c0_121 = arith.constant 0 : index
    %368 = vector.load %arg17[%c0_120, %c0_121] : memref<16x1xf32, #tpu.memory_space<vmem>>, vector<16x1xf32>
    %369 = vector.broadcast %368 : vector<16x1xf32> to vector<16x64xf32>
    %370 = arith.mulf %367, %369 : vector<16x64xf32>
    %c0_122 = arith.constant 0 : index
    %c0_123 = arith.constant 0 : index
    %371 = vector.load %arg18[%c0_122, %c0_123] : memref<16x1xf32, #tpu.memory_space<vmem>>, vector<16x1xf32>
    %372 = vector.broadcast %371 : vector<16x1xf32> to vector<16x64xf32>
    %373 = arith.addf %370, %372 : vector<16x64xf32>
    %cst_124 = arith.constant 0.000000e+00 : f32
    %374 = vector.broadcast %cst_124 : f32 to vector<16x64xf32>
    %375 = arith.maximumf %373, %374 : vector<16x64xf32>
    %376 = vector.extract_strided_slice %375 {offsets = [0, 1], sizes = [16, 63], strides = [1, 1]} : vector<16x64xf32> to vector<16x63xf32>
    %cst_125 = arith.constant 0.000000e+00 : f32
    %377 = vector.broadcast %cst_125 : f32 to vector<16x1xf32>
    %378 = tpu.concatenate %376, %377 in 1 : vector<16x63xf32>, vector<16x1xf32> -> vector<16x64xf32>
    %379 = arith.maximumf %375, %378 : vector<16x64xf32>
    %380 = vector.extract_strided_slice %375 {offsets = [0, 8], sizes = [16, 56], strides = [1, 1]} : vector<16x64xf32> to vector<16x56xf32>
    %cst_126 = arith.constant 0.000000e+00 : f32
    %381 = vector.broadcast %cst_126 : f32 to vector<16x8xf32>
    %382 = tpu.concatenate %380, %381 in 1 : vector<16x56xf32>, vector<16x8xf32> -> vector<16x64xf32>
    %383 = vector.extract_strided_slice %375 {offsets = [0, 9], sizes = [16, 55], strides = [1, 1]} : vector<16x64xf32> to vector<16x55xf32>
    %cst_127 = arith.constant 0.000000e+00 : f32
    %384 = vector.broadcast %cst_127 : f32 to vector<16x9xf32>
    %385 = tpu.concatenate %383, %384 in 1 : vector<16x55xf32>, vector<16x9xf32> -> vector<16x64xf32>
    %386 = arith.maximumf %382, %385 : vector<16x64xf32>
    %387 = arith.maximumf %379, %386 : vector<16x64xf32>
    %c0_128 = arith.constant 0 : index
    %c0_129 = arith.constant 0 : index
    %388 = vector.load %arg19[%c0_128, %c0_129] : memref<64x16xf32, #tpu.memory_space<vmem>>, vector<64x16xf32>
    %cst_130 = arith.constant dense<0.000000e+00> : vector<16x16xf32>
    %389 = tpu.matmul %387, %388, %cst_130 {dimension_numbers = #tpu.dot_dimension_numbers<[1], [0], [0], [1], [0, 0, 1, 1], [], []>} : vector<16x64xf32>, vector<64x16xf32>, vector<16x16xf32> -> vector<16x16xf32>
    %390 = tpu.iota {dimensions = array<i32: 1>} : vector<1x16xi32>
    %c4_i32 = arith.constant 4 : i32
    %c0_i32_131 = arith.constant 0 : i32
    %391 = arith.cmpi eq, %c4_i32, %c0_i32_131 : i32
    %c1_i32_132 = arith.constant 1 : i32
    %392 = arith.select %391, %c1_i32_132, %c4_i32 : i32
    %393 = vector.broadcast %392 : i32 to vector<1x16xi32>
    %394 = arith.remsi %390, %393 : vector<1x16xi32>
    %c0_i32_133 = arith.constant 0 : i32
    %395 = vector.broadcast %c0_i32_133 : i32 to vector<1x16xi32>
    %396 = arith.cmpi ne, %394, %395 : vector<1x16xi32>
    %c0_i32_134 = arith.constant 0 : i32
    %397 = vector.broadcast %c0_i32_134 : i32 to vector<1x16xi32>
    %398 = arith.cmpi slt, %394, %397 : vector<1x16xi32>
    %c0_i32_135 = arith.constant 0 : i32
    %399 = arith.cmpi slt, %392, %c0_i32_135 : i32
    %400 = vector.broadcast %399 : i1 to vector<1x16xi1>
    %401 = vector.broadcast %400 : vector<1x16xi1> to vector<1x16xi1>
    %402 = arith.xori %398, %401 : vector<1x16xi1>
    %403 = arith.andi %402, %396 : vector<1x16xi1>
    %404 = vector.broadcast %392 : i32 to vector<1x16xi32>
    %405 = arith.addi %394, %404 : vector<1x16xi32>
    %406 = arith.select %403, %405, %394 : vector<1x16xi1>, vector<1x16xi32>
    %c0_i32_136 = arith.constant 0 : i32
    %407 = vector.broadcast %c0_i32_136 : i32 to vector<1x16xi32>
    %408 = arith.cmpi ne, %406, %407 : vector<1x16xi32>
    %c3_i32 = arith.constant 3 : i32
    %409 = vector.broadcast %c3_i32 : i32 to vector<1x16xi32>
    %410 = arith.cmpi ne, %406, %409 : vector<1x16xi32>
    %cst_137 = arith.constant 0.000000e+00 : f32
    %411 = vector.broadcast %cst_137 : f32 to vector<16x5xf32>
    %412 = tpu.concatenate %411, %389, %411 in 1 : vector<16x5xf32>, vector<16x16xf32>, vector<16x5xf32> -> vector<16x26xf32>
    %413 = vector.extract_strided_slice %412 {offsets = [0, 0], sizes = [16, 16], strides = [1, 1]} : vector<16x26xf32> to vector<16x16xf32>
    %cst_138 = arith.constant 0.000000e+00 : f32
    %414 = vector.shape_cast %408 : vector<1x16xi1> to vector<1x16xi1>
    %415 = vector.broadcast %414 : vector<1x16xi1> to vector<16x16xi1>
    %416 = vector.broadcast %cst_138 : f32 to vector<16x16xf32>
    %417 = arith.select %415, %413, %416 : vector<16x16xi1>, vector<16x16xf32>
    %418 = vector.extract_strided_slice %412 {offsets = [0, 1], sizes = [16, 16], strides = [1, 1]} : vector<16x26xf32> to vector<16x16xf32>
    %419 = vector.extract_strided_slice %412 {offsets = [0, 2], sizes = [16, 16], strides = [1, 1]} : vector<16x26xf32> to vector<16x16xf32>
    %cst_139 = arith.constant 0.000000e+00 : f32
    %420 = vector.shape_cast %410 : vector<1x16xi1> to vector<1x16xi1>
    %421 = vector.broadcast %420 : vector<1x16xi1> to vector<16x16xi1>
    %422 = vector.broadcast %cst_139 : f32 to vector<16x16xf32>
    %423 = arith.select %421, %419, %422 : vector<16x16xi1>, vector<16x16xf32>
    %424 = vector.extract_strided_slice %412 {offsets = [0, 4], sizes = [16, 16], strides = [1, 1]} : vector<16x26xf32> to vector<16x16xf32>
    %cst_140 = arith.constant 0.000000e+00 : f32
    %425 = vector.shape_cast %408 : vector<1x16xi1> to vector<1x16xi1>
    %426 = vector.broadcast %425 : vector<1x16xi1> to vector<16x16xi1>
    %427 = vector.broadcast %cst_140 : f32 to vector<16x16xf32>
    %428 = arith.select %426, %424, %427 : vector<16x16xi1>, vector<16x16xf32>
    %429 = vector.extract_strided_slice %412 {offsets = [0, 5], sizes = [16, 16], strides = [1, 1]} : vector<16x26xf32> to vector<16x16xf32>
    %430 = vector.extract_strided_slice %412 {offsets = [0, 6], sizes = [16, 16], strides = [1, 1]} : vector<16x26xf32> to vector<16x16xf32>
    %cst_141 = arith.constant 0.000000e+00 : f32
    %431 = vector.shape_cast %410 : vector<1x16xi1> to vector<1x16xi1>
    %432 = vector.broadcast %431 : vector<1x16xi1> to vector<16x16xi1>
    %433 = vector.broadcast %cst_141 : f32 to vector<16x16xf32>
    %434 = arith.select %432, %430, %433 : vector<16x16xi1>, vector<16x16xf32>
    %435 = vector.extract_strided_slice %412 {offsets = [0, 8], sizes = [16, 16], strides = [1, 1]} : vector<16x26xf32> to vector<16x16xf32>
    %cst_142 = arith.constant 0.000000e+00 : f32
    %436 = vector.shape_cast %408 : vector<1x16xi1> to vector<1x16xi1>
    %437 = vector.broadcast %436 : vector<1x16xi1> to vector<16x16xi1>
    %438 = vector.broadcast %cst_142 : f32 to vector<16x16xf32>
    %439 = arith.select %437, %435, %438 : vector<16x16xi1>, vector<16x16xf32>
    %440 = vector.extract_strided_slice %412 {offsets = [0, 9], sizes = [16, 16], strides = [1, 1]} : vector<16x26xf32> to vector<16x16xf32>
    %441 = vector.extract_strided_slice %412 {offsets = [0, 10], sizes = [16, 16], strides = [1, 1]} : vector<16x26xf32> to vector<16x16xf32>
    %cst_143 = arith.constant 0.000000e+00 : f32
    %442 = vector.shape_cast %410 : vector<1x16xi1> to vector<1x16xi1>
    %443 = vector.broadcast %442 : vector<1x16xi1> to vector<16x16xi1>
    %444 = vector.broadcast %cst_143 : f32 to vector<16x16xf32>
    %445 = arith.select %443, %441, %444 : vector<16x16xi1>, vector<16x16xf32>
    %446 = tpu.concatenate %417, %418, %423, %428, %429, %434, %439, %440, %445 in 0 : vector<16x16xf32>, vector<16x16xf32>, vector<16x16xf32>, vector<16x16xf32>, vector<16x16xf32>, vector<16x16xf32>, vector<16x16xf32>, vector<16x16xf32>, vector<16x16xf32> -> vector<144x16xf32>
    %c0_144 = arith.constant 0 : index
    %c0_145 = arith.constant 0 : index
    %447 = vector.load %arg20[%c0_144, %c0_145] : memref<32x144xf32, #tpu.memory_space<vmem>>, vector<32x144xf32>
    %cst_146 = arith.constant dense<0.000000e+00> : vector<32x16xf32>
    %448 = tpu.matmul %447, %446, %cst_146 {dimension_numbers = #tpu.dot_dimension_numbers<[1], [0], [0], [1], [0, 0, 1, 1], [], []>} : vector<32x144xf32>, vector<144x16xf32>, vector<32x16xf32> -> vector<32x16xf32>
    %c0_147 = arith.constant 0 : index
    %c0_148 = arith.constant 0 : index
    %449 = vector.load %arg21[%c0_147, %c0_148] : memref<32x1xf32, #tpu.memory_space<vmem>>, vector<32x1xf32>
    %450 = vector.broadcast %449 : vector<32x1xf32> to vector<32x16xf32>
    %451 = arith.addf %448, %450 : vector<32x16xf32>
    %cst_149 = arith.constant dense<0.000000e+00> : vector<32xf32>
    %452 = vector.multi_reduction <add>, %451, %cst_149 [1] : vector<32x16xf32> to vector<32xf32>
    %453 = vector.shape_cast %452 : vector<32xf32> to vector<32x1xf32>
    %cst_150 = arith.constant 6.250000e-02 : f32
    %454 = vector.broadcast %cst_150 : f32 to vector<32x1xf32>
    %455 = arith.mulf %453, %454 : vector<32x1xf32>
    %456 = arith.mulf %451, %451 : vector<32x16xf32>
    %cst_151 = arith.constant dense<0.000000e+00> : vector<32xf32>
    %457 = vector.multi_reduction <add>, %456, %cst_151 [1] : vector<32x16xf32> to vector<32xf32>
    %458 = vector.shape_cast %457 : vector<32xf32> to vector<32x1xf32>
    %cst_152 = arith.constant 6.250000e-02 : f32
    %459 = vector.broadcast %cst_152 : f32 to vector<32x1xf32>
    %460 = arith.mulf %458, %459 : vector<32x1xf32>
    %461 = arith.mulf %455, %455 : vector<32x1xf32>
    %462 = arith.subf %460, %461 : vector<32x1xf32>
    %cst_153 = arith.constant 0.000000e+00 : f32
    %463 = vector.broadcast %cst_153 : f32 to vector<32x1xf32>
    %464 = arith.maximumf %462, %463 : vector<32x1xf32>
    %465 = vector.broadcast %455 : vector<32x1xf32> to vector<32x16xf32>
    %466 = arith.subf %451, %465 : vector<32x16xf32>
    %cst_154 = arith.constant 9.99999974E-6 : f32
    %467 = vector.broadcast %cst_154 : f32 to vector<32x1xf32>
    %468 = arith.addf %464, %467 : vector<32x1xf32>
    %469 = math.rsqrt %468 : vector<32x1xf32>
    %470 = vector.broadcast %469 : vector<32x1xf32> to vector<32x16xf32>
    %471 = arith.mulf %466, %470 : vector<32x16xf32>
    %c0_155 = arith.constant 0 : index
    %c0_156 = arith.constant 0 : index
    %472 = vector.load %arg22[%c0_155, %c0_156] : memref<32x1xf32, #tpu.memory_space<vmem>>, vector<32x1xf32>
    %473 = vector.broadcast %472 : vector<32x1xf32> to vector<32x16xf32>
    %474 = arith.mulf %471, %473 : vector<32x16xf32>
    %c0_157 = arith.constant 0 : index
    %c0_158 = arith.constant 0 : index
    %475 = vector.load %arg23[%c0_157, %c0_158] : memref<32x1xf32, #tpu.memory_space<vmem>>, vector<32x1xf32>
    %476 = vector.broadcast %475 : vector<32x1xf32> to vector<32x16xf32>
    %477 = arith.addf %474, %476 : vector<32x16xf32>
    %cst_159 = arith.constant 0.000000e+00 : f32
    %478 = vector.broadcast %cst_159 : f32 to vector<32x16xf32>
    %479 = arith.maximumf %477, %478 : vector<32x16xf32>
    %480 = tpu.iota {dimensions = array<i32: 1>} : vector<1x16xi32>
    %c4_i32_160 = arith.constant 4 : i32
    %c0_i32_161 = arith.constant 0 : i32
    %481 = arith.cmpi eq, %c4_i32_160, %c0_i32_161 : i32
    %c1_i32_162 = arith.constant 1 : i32
    %482 = arith.select %481, %c1_i32_162, %c4_i32_160 : i32
    %483 = vector.broadcast %482 : i32 to vector<1x16xi32>
    %484 = arith.remsi %480, %483 : vector<1x16xi32>
    %c0_i32_163 = arith.constant 0 : i32
    %485 = vector.broadcast %c0_i32_163 : i32 to vector<1x16xi32>
    %486 = arith.cmpi ne, %484, %485 : vector<1x16xi32>
    %c0_i32_164 = arith.constant 0 : i32
    %487 = vector.broadcast %c0_i32_164 : i32 to vector<1x16xi32>
    %488 = arith.cmpi slt, %484, %487 : vector<1x16xi32>
    %c0_i32_165 = arith.constant 0 : i32
    %489 = arith.cmpi slt, %482, %c0_i32_165 : i32
    %490 = vector.broadcast %489 : i1 to vector<1x16xi1>
    %491 = vector.broadcast %490 : vector<1x16xi1> to vector<1x16xi1>
    %492 = arith.xori %488, %491 : vector<1x16xi1>
    %493 = arith.andi %492, %486 : vector<1x16xi1>
    %494 = vector.broadcast %482 : i32 to vector<1x16xi32>
    %495 = arith.addi %484, %494 : vector<1x16xi32>
    %496 = arith.select %493, %495, %484 : vector<1x16xi1>, vector<1x16xi32>
    %c0_i32_166 = arith.constant 0 : i32
    %497 = vector.broadcast %c0_i32_166 : i32 to vector<1x16xi32>
    %498 = arith.cmpi ne, %496, %497 : vector<1x16xi32>
    %c3_i32_167 = arith.constant 3 : i32
    %499 = vector.broadcast %c3_i32_167 : i32 to vector<1x16xi32>
    %500 = arith.cmpi ne, %496, %499 : vector<1x16xi32>
    %cst_168 = arith.constant 0.000000e+00 : f32
    %501 = vector.broadcast %cst_168 : f32 to vector<32x5xf32>
    %502 = tpu.concatenate %501, %479, %501 in 1 : vector<32x5xf32>, vector<32x16xf32>, vector<32x5xf32> -> vector<32x26xf32>
    %503 = vector.extract_strided_slice %502 {offsets = [0, 0], sizes = [32, 16], strides = [1, 1]} : vector<32x26xf32> to vector<32x16xf32>
    %cst_169 = arith.constant 0.000000e+00 : f32
    %504 = vector.shape_cast %498 : vector<1x16xi1> to vector<1x16xi1>
    %505 = vector.broadcast %504 : vector<1x16xi1> to vector<32x16xi1>
    %506 = vector.broadcast %cst_169 : f32 to vector<32x16xf32>
    %507 = arith.select %505, %503, %506 : vector<32x16xi1>, vector<32x16xf32>
    %508 = vector.extract_strided_slice %502 {offsets = [0, 1], sizes = [32, 16], strides = [1, 1]} : vector<32x26xf32> to vector<32x16xf32>
    %509 = vector.extract_strided_slice %502 {offsets = [0, 2], sizes = [32, 16], strides = [1, 1]} : vector<32x26xf32> to vector<32x16xf32>
    %cst_170 = arith.constant 0.000000e+00 : f32
    %510 = vector.shape_cast %500 : vector<1x16xi1> to vector<1x16xi1>
    %511 = vector.broadcast %510 : vector<1x16xi1> to vector<32x16xi1>
    %512 = vector.broadcast %cst_170 : f32 to vector<32x16xf32>
    %513 = arith.select %511, %509, %512 : vector<32x16xi1>, vector<32x16xf32>
    %514 = vector.extract_strided_slice %502 {offsets = [0, 4], sizes = [32, 16], strides = [1, 1]} : vector<32x26xf32> to vector<32x16xf32>
    %cst_171 = arith.constant 0.000000e+00 : f32
    %515 = vector.shape_cast %498 : vector<1x16xi1> to vector<1x16xi1>
    %516 = vector.broadcast %515 : vector<1x16xi1> to vector<32x16xi1>
    %517 = vector.broadcast %cst_171 : f32 to vector<32x16xf32>
    %518 = arith.select %516, %514, %517 : vector<32x16xi1>, vector<32x16xf32>
    %519 = vector.extract_strided_slice %502 {offsets = [0, 5], sizes = [32, 16], strides = [1, 1]} : vector<32x26xf32> to vector<32x16xf32>
    %520 = vector.extract_strided_slice %502 {offsets = [0, 6], sizes = [32, 16], strides = [1, 1]} : vector<32x26xf32> to vector<32x16xf32>
    %cst_172 = arith.constant 0.000000e+00 : f32
    %521 = vector.shape_cast %500 : vector<1x16xi1> to vector<1x16xi1>
    %522 = vector.broadcast %521 : vector<1x16xi1> to vector<32x16xi1>
    %523 = vector.broadcast %cst_172 : f32 to vector<32x16xf32>
    %524 = arith.select %522, %520, %523 : vector<32x16xi1>, vector<32x16xf32>
    %525 = vector.extract_strided_slice %502 {offsets = [0, 8], sizes = [32, 16], strides = [1, 1]} : vector<32x26xf32> to vector<32x16xf32>
    %cst_173 = arith.constant 0.000000e+00 : f32
    %526 = vector.shape_cast %498 : vector<1x16xi1> to vector<1x16xi1>
    %527 = vector.broadcast %526 : vector<1x16xi1> to vector<32x16xi1>
    %528 = vector.broadcast %cst_173 : f32 to vector<32x16xf32>
    %529 = arith.select %527, %525, %528 : vector<32x16xi1>, vector<32x16xf32>
    %530 = vector.extract_strided_slice %502 {offsets = [0, 9], sizes = [32, 16], strides = [1, 1]} : vector<32x26xf32> to vector<32x16xf32>
    %531 = vector.extract_strided_slice %502 {offsets = [0, 10], sizes = [32, 16], strides = [1, 1]} : vector<32x26xf32> to vector<32x16xf32>
    %cst_174 = arith.constant 0.000000e+00 : f32
    %532 = vector.shape_cast %500 : vector<1x16xi1> to vector<1x16xi1>
    %533 = vector.broadcast %532 : vector<1x16xi1> to vector<32x16xi1>
    %534 = vector.broadcast %cst_174 : f32 to vector<32x16xf32>
    %535 = arith.select %533, %531, %534 : vector<32x16xi1>, vector<32x16xf32>
    %536 = tpu.concatenate %507, %508, %513, %518, %519, %524, %529, %530, %535 in 0 : vector<32x16xf32>, vector<32x16xf32>, vector<32x16xf32>, vector<32x16xf32>, vector<32x16xf32>, vector<32x16xf32>, vector<32x16xf32>, vector<32x16xf32>, vector<32x16xf32> -> vector<288x16xf32>
    %c0_175 = arith.constant 0 : index
    %c0_176 = arith.constant 0 : index
    %537 = vector.load %arg24[%c0_175, %c0_176] : memref<32x288xf32, #tpu.memory_space<vmem>>, vector<32x288xf32>
    %cst_177 = arith.constant dense<0.000000e+00> : vector<32x16xf32>
    %538 = tpu.matmul %537, %536, %cst_177 {dimension_numbers = #tpu.dot_dimension_numbers<[1], [0], [0], [1], [0, 0, 1, 1], [], []>} : vector<32x288xf32>, vector<288x16xf32>, vector<32x16xf32> -> vector<32x16xf32>
    %c0_178 = arith.constant 0 : index
    %c0_179 = arith.constant 0 : index
    %539 = vector.load %arg25[%c0_178, %c0_179] : memref<32x1xf32, #tpu.memory_space<vmem>>, vector<32x1xf32>
    %540 = vector.broadcast %539 : vector<32x1xf32> to vector<32x16xf32>
    %541 = arith.addf %538, %540 : vector<32x16xf32>
    %cst_180 = arith.constant dense<0.000000e+00> : vector<32xf32>
    %542 = vector.multi_reduction <add>, %541, %cst_180 [1] : vector<32x16xf32> to vector<32xf32>
    %543 = vector.shape_cast %542 : vector<32xf32> to vector<32x1xf32>
    %cst_181 = arith.constant 6.250000e-02 : f32
    %544 = vector.broadcast %cst_181 : f32 to vector<32x1xf32>
    %545 = arith.mulf %543, %544 : vector<32x1xf32>
    %546 = arith.mulf %541, %541 : vector<32x16xf32>
    %cst_182 = arith.constant dense<0.000000e+00> : vector<32xf32>
    %547 = vector.multi_reduction <add>, %546, %cst_182 [1] : vector<32x16xf32> to vector<32xf32>
    %548 = vector.shape_cast %547 : vector<32xf32> to vector<32x1xf32>
    %cst_183 = arith.constant 6.250000e-02 : f32
    %549 = vector.broadcast %cst_183 : f32 to vector<32x1xf32>
    %550 = arith.mulf %548, %549 : vector<32x1xf32>
    %551 = arith.mulf %545, %545 : vector<32x1xf32>
    %552 = arith.subf %550, %551 : vector<32x1xf32>
    %cst_184 = arith.constant 0.000000e+00 : f32
    %553 = vector.broadcast %cst_184 : f32 to vector<32x1xf32>
    %554 = arith.maximumf %552, %553 : vector<32x1xf32>
    %555 = vector.broadcast %545 : vector<32x1xf32> to vector<32x16xf32>
    %556 = arith.subf %541, %555 : vector<32x16xf32>
    %cst_185 = arith.constant 9.99999974E-6 : f32
    %557 = vector.broadcast %cst_185 : f32 to vector<32x1xf32>
    %558 = arith.addf %554, %557 : vector<32x1xf32>
    %559 = math.rsqrt %558 : vector<32x1xf32>
    %560 = vector.broadcast %559 : vector<32x1xf32> to vector<32x16xf32>
    %561 = arith.mulf %556, %560 : vector<32x16xf32>
    %c0_186 = arith.constant 0 : index
    %c0_187 = arith.constant 0 : index
    %562 = vector.load %arg26[%c0_186, %c0_187] : memref<32x1xf32, #tpu.memory_space<vmem>>, vector<32x1xf32>
    %563 = vector.broadcast %562 : vector<32x1xf32> to vector<32x16xf32>
    %564 = arith.mulf %561, %563 : vector<32x16xf32>
    %c0_188 = arith.constant 0 : index
    %c0_189 = arith.constant 0 : index
    %565 = vector.load %arg27[%c0_188, %c0_189] : memref<32x1xf32, #tpu.memory_space<vmem>>, vector<32x1xf32>
    %566 = vector.broadcast %565 : vector<32x1xf32> to vector<32x16xf32>
    %567 = arith.addf %564, %566 : vector<32x16xf32>
    %cst_190 = arith.constant 0.000000e+00 : f32
    %568 = vector.broadcast %cst_190 : f32 to vector<32x16xf32>
    %569 = arith.maximumf %567, %568 : vector<32x16xf32>
    %c0_191 = arith.constant 0 : index
    %c0_192 = arith.constant 0 : index
    %570 = vector.load %arg28[%c0_191, %c0_192] : memref<64x32xf32, #tpu.memory_space<vmem>>, vector<64x32xf32>
    %cst_193 = arith.constant dense<0.000000e+00> : vector<64x16xf32>
    %571 = tpu.matmul %570, %569, %cst_193 {dimension_numbers = #tpu.dot_dimension_numbers<[1], [0], [0], [1], [0, 0, 1, 1], [], []>} : vector<64x32xf32>, vector<32x16xf32>, vector<64x16xf32> -> vector<64x16xf32>
    %572 = vector.extract_strided_slice %571 {offsets = [0, 0], sizes = [16, 16], strides = [1, 1]} : vector<64x16xf32> to vector<16x16xf32>
    %c0_194 = arith.constant 0 : index
    %c0_195 = arith.constant 0 : index
    %c0_196 = arith.constant 0 : index
    %573 = vector.load %arg30[%c0_194, %c0_195, %c0_196] : memref<4x16x64xf32, #tpu.memory_space<vmem>>, vector<1x16x64xf32>
    %574 = vector.shape_cast %573 : vector<1x16x64xf32> to vector<16x64xf32>
    %cst_197 = arith.constant dense<0.000000e+00> : vector<16x64xf32>
    %575 = tpu.matmul %572, %574, %cst_197 {dimension_numbers = #tpu.dot_dimension_numbers<[1], [0], [0], [1], [0, 0, 1, 1], [], []>} : vector<16x16xf32>, vector<16x64xf32>, vector<16x64xf32> -> vector<16x64xf32>
    %576 = vector.extract_strided_slice %571 {offsets = [16, 0], sizes = [16, 16], strides = [1, 1]} : vector<64x16xf32> to vector<16x16xf32>
    %c1 = arith.constant 1 : index
    %c0_198 = arith.constant 0 : index
    %c0_199 = arith.constant 0 : index
    %577 = vector.load %arg30[%c1, %c0_198, %c0_199] : memref<4x16x64xf32, #tpu.memory_space<vmem>>, vector<1x16x64xf32>
    %578 = vector.shape_cast %577 : vector<1x16x64xf32> to vector<16x64xf32>
    %cst_200 = arith.constant dense<0.000000e+00> : vector<16x64xf32>
    %579 = tpu.matmul %576, %578, %cst_200 {dimension_numbers = #tpu.dot_dimension_numbers<[1], [0], [0], [1], [0, 0, 1, 1], [], []>} : vector<16x16xf32>, vector<16x64xf32>, vector<16x64xf32> -> vector<16x64xf32>
    %580 = arith.addf %575, %579 : vector<16x64xf32>
    %581 = vector.extract_strided_slice %571 {offsets = [32, 0], sizes = [16, 16], strides = [1, 1]} : vector<64x16xf32> to vector<16x16xf32>
    %c2 = arith.constant 2 : index
    %c0_201 = arith.constant 0 : index
    %c0_202 = arith.constant 0 : index
    %582 = vector.load %arg30[%c2, %c0_201, %c0_202] : memref<4x16x64xf32, #tpu.memory_space<vmem>>, vector<1x16x64xf32>
    %583 = vector.shape_cast %582 : vector<1x16x64xf32> to vector<16x64xf32>
    %cst_203 = arith.constant dense<0.000000e+00> : vector<16x64xf32>
    %584 = tpu.matmul %581, %583, %cst_203 {dimension_numbers = #tpu.dot_dimension_numbers<[1], [0], [0], [1], [0, 0, 1, 1], [], []>} : vector<16x16xf32>, vector<16x64xf32>, vector<16x64xf32> -> vector<16x64xf32>
    %585 = arith.addf %580, %584 : vector<16x64xf32>
    %586 = vector.extract_strided_slice %571 {offsets = [48, 0], sizes = [16, 16], strides = [1, 1]} : vector<64x16xf32> to vector<16x16xf32>
    %c3 = arith.constant 3 : index
    %c0_204 = arith.constant 0 : index
    %c0_205 = arith.constant 0 : index
    %587 = vector.load %arg30[%c3, %c0_204, %c0_205] : memref<4x16x64xf32, #tpu.memory_space<vmem>>, vector<1x16x64xf32>
    %588 = vector.shape_cast %587 : vector<1x16x64xf32> to vector<16x64xf32>
    %cst_206 = arith.constant dense<0.000000e+00> : vector<16x64xf32>
    %589 = tpu.matmul %586, %588, %cst_206 {dimension_numbers = #tpu.dot_dimension_numbers<[1], [0], [0], [1], [0, 0, 1, 1], [], []>} : vector<16x16xf32>, vector<16x64xf32>, vector<16x64xf32> -> vector<16x64xf32>
    %590 = arith.addf %585, %589 : vector<16x64xf32>
    %c0_207 = arith.constant 0 : index
    %c0_208 = arith.constant 0 : index
    %591 = vector.load %arg29[%c0_207, %c0_208] : memref<16x1xf32, #tpu.memory_space<vmem>>, vector<16x1xf32>
    %592 = vector.broadcast %591 : vector<16x1xf32> to vector<16x64xf32>
    %593 = arith.addf %590, %592 : vector<16x64xf32>
    %594 = tpu.iota {dimensions = array<i32: 1>} : vector<1x64xi32>
    %c8_i32_209 = arith.constant 8 : i32
    %c0_i32_210 = arith.constant 0 : i32
    %595 = arith.cmpi eq, %c8_i32_209, %c0_i32_210 : i32
    %c1_i32_211 = arith.constant 1 : i32
    %596 = arith.select %595, %c1_i32_211, %c8_i32_209 : i32
    %597 = vector.broadcast %596 : i32 to vector<1x64xi32>
    %598 = arith.remsi %594, %597 : vector<1x64xi32>
    %c0_i32_212 = arith.constant 0 : i32
    %599 = vector.broadcast %c0_i32_212 : i32 to vector<1x64xi32>
    %600 = arith.cmpi ne, %598, %599 : vector<1x64xi32>
    %c0_i32_213 = arith.constant 0 : i32
    %601 = vector.broadcast %c0_i32_213 : i32 to vector<1x64xi32>
    %602 = arith.cmpi slt, %598, %601 : vector<1x64xi32>
    %c0_i32_214 = arith.constant 0 : i32
    %603 = arith.cmpi slt, %596, %c0_i32_214 : i32
    %604 = vector.broadcast %603 : i1 to vector<1x64xi1>
    %605 = vector.broadcast %604 : vector<1x64xi1> to vector<1x64xi1>
    %606 = arith.xori %602, %605 : vector<1x64xi1>
    %607 = arith.andi %606, %600 : vector<1x64xi1>
    %608 = vector.broadcast %596 : i32 to vector<1x64xi32>
    %609 = arith.addi %598, %608 : vector<1x64xi32>
    %610 = arith.select %607, %609, %598 : vector<1x64xi1>, vector<1x64xi32>
    %c0_i32_215 = arith.constant 0 : i32
    %611 = vector.broadcast %c0_i32_215 : i32 to vector<1x64xi32>
    %612 = arith.cmpi ne, %610, %611 : vector<1x64xi32>
    %c7_i32_216 = arith.constant 7 : i32
    %613 = vector.broadcast %c7_i32_216 : i32 to vector<1x64xi32>
    %614 = arith.cmpi ne, %610, %613 : vector<1x64xi32>
    %cst_217 = arith.constant 0.000000e+00 : f32
    %615 = vector.broadcast %cst_217 : f32 to vector<16x9xf32>
    %616 = tpu.concatenate %615, %593, %615 in 1 : vector<16x9xf32>, vector<16x64xf32>, vector<16x9xf32> -> vector<16x82xf32>
    %617 = vector.extract_strided_slice %616 {offsets = [0, 0], sizes = [16, 64], strides = [1, 1]} : vector<16x82xf32> to vector<16x64xf32>
    %cst_218 = arith.constant 0.000000e+00 : f32
    %618 = vector.shape_cast %612 : vector<1x64xi1> to vector<1x64xi1>
    %619 = vector.broadcast %618 : vector<1x64xi1> to vector<16x64xi1>
    %620 = vector.broadcast %cst_218 : f32 to vector<16x64xf32>
    %621 = arith.select %619, %617, %620 : vector<16x64xi1>, vector<16x64xf32>
    %622 = vector.extract_strided_slice %616 {offsets = [0, 1], sizes = [16, 64], strides = [1, 1]} : vector<16x82xf32> to vector<16x64xf32>
    %623 = vector.extract_strided_slice %616 {offsets = [0, 2], sizes = [16, 64], strides = [1, 1]} : vector<16x82xf32> to vector<16x64xf32>
    %cst_219 = arith.constant 0.000000e+00 : f32
    %624 = vector.shape_cast %614 : vector<1x64xi1> to vector<1x64xi1>
    %625 = vector.broadcast %624 : vector<1x64xi1> to vector<16x64xi1>
    %626 = vector.broadcast %cst_219 : f32 to vector<16x64xf32>
    %627 = arith.select %625, %623, %626 : vector<16x64xi1>, vector<16x64xf32>
    %628 = vector.extract_strided_slice %616 {offsets = [0, 8], sizes = [16, 64], strides = [1, 1]} : vector<16x82xf32> to vector<16x64xf32>
    %cst_220 = arith.constant 0.000000e+00 : f32
    %629 = vector.shape_cast %612 : vector<1x64xi1> to vector<1x64xi1>
    %630 = vector.broadcast %629 : vector<1x64xi1> to vector<16x64xi1>
    %631 = vector.broadcast %cst_220 : f32 to vector<16x64xf32>
    %632 = arith.select %630, %628, %631 : vector<16x64xi1>, vector<16x64xf32>
    %633 = vector.extract_strided_slice %616 {offsets = [0, 9], sizes = [16, 64], strides = [1, 1]} : vector<16x82xf32> to vector<16x64xf32>
    %634 = vector.extract_strided_slice %616 {offsets = [0, 10], sizes = [16, 64], strides = [1, 1]} : vector<16x82xf32> to vector<16x64xf32>
    %cst_221 = arith.constant 0.000000e+00 : f32
    %635 = vector.shape_cast %614 : vector<1x64xi1> to vector<1x64xi1>
    %636 = vector.broadcast %635 : vector<1x64xi1> to vector<16x64xi1>
    %637 = vector.broadcast %cst_221 : f32 to vector<16x64xf32>
    %638 = arith.select %636, %634, %637 : vector<16x64xi1>, vector<16x64xf32>
    %639 = vector.extract_strided_slice %616 {offsets = [0, 16], sizes = [16, 64], strides = [1, 1]} : vector<16x82xf32> to vector<16x64xf32>
    %cst_222 = arith.constant 0.000000e+00 : f32
    %640 = vector.shape_cast %612 : vector<1x64xi1> to vector<1x64xi1>
    %641 = vector.broadcast %640 : vector<1x64xi1> to vector<16x64xi1>
    %642 = vector.broadcast %cst_222 : f32 to vector<16x64xf32>
    %643 = arith.select %641, %639, %642 : vector<16x64xi1>, vector<16x64xf32>
    %644 = vector.extract_strided_slice %616 {offsets = [0, 17], sizes = [16, 64], strides = [1, 1]} : vector<16x82xf32> to vector<16x64xf32>
    %645 = vector.extract_strided_slice %616 {offsets = [0, 18], sizes = [16, 64], strides = [1, 1]} : vector<16x82xf32> to vector<16x64xf32>
    %cst_223 = arith.constant 0.000000e+00 : f32
    %646 = vector.shape_cast %614 : vector<1x64xi1> to vector<1x64xi1>
    %647 = vector.broadcast %646 : vector<1x64xi1> to vector<16x64xi1>
    %648 = vector.broadcast %cst_223 : f32 to vector<16x64xf32>
    %649 = arith.select %647, %645, %648 : vector<16x64xi1>, vector<16x64xf32>
    %cst_224 = arith.constant 0.000000e+00 : f32
    %650 = vector.broadcast %cst_224 : f32 to vector<16x9xf32>
    %651 = tpu.concatenate %650, %375, %650 in 1 : vector<16x9xf32>, vector<16x64xf32>, vector<16x9xf32> -> vector<16x82xf32>
    %652 = vector.extract_strided_slice %651 {offsets = [0, 0], sizes = [16, 64], strides = [1, 1]} : vector<16x82xf32> to vector<16x64xf32>
    %cst_225 = arith.constant 0.000000e+00 : f32
    %653 = vector.shape_cast %612 : vector<1x64xi1> to vector<1x64xi1>
    %654 = vector.broadcast %653 : vector<1x64xi1> to vector<16x64xi1>
    %655 = vector.broadcast %cst_225 : f32 to vector<16x64xf32>
    %656 = arith.select %654, %652, %655 : vector<16x64xi1>, vector<16x64xf32>
    %657 = vector.extract_strided_slice %651 {offsets = [0, 1], sizes = [16, 64], strides = [1, 1]} : vector<16x82xf32> to vector<16x64xf32>
    %658 = vector.extract_strided_slice %651 {offsets = [0, 2], sizes = [16, 64], strides = [1, 1]} : vector<16x82xf32> to vector<16x64xf32>
    %cst_226 = arith.constant 0.000000e+00 : f32
    %659 = vector.shape_cast %614 : vector<1x64xi1> to vector<1x64xi1>
    %660 = vector.broadcast %659 : vector<1x64xi1> to vector<16x64xi1>
    %661 = vector.broadcast %cst_226 : f32 to vector<16x64xf32>
    %662 = arith.select %660, %658, %661 : vector<16x64xi1>, vector<16x64xf32>
    %663 = vector.extract_strided_slice %651 {offsets = [0, 8], sizes = [16, 64], strides = [1, 1]} : vector<16x82xf32> to vector<16x64xf32>
    %cst_227 = arith.constant 0.000000e+00 : f32
    %664 = vector.shape_cast %612 : vector<1x64xi1> to vector<1x64xi1>
    %665 = vector.broadcast %664 : vector<1x64xi1> to vector<16x64xi1>
    %666 = vector.broadcast %cst_227 : f32 to vector<16x64xf32>
    %667 = arith.select %665, %663, %666 : vector<16x64xi1>, vector<16x64xf32>
    %668 = vector.extract_strided_slice %651 {offsets = [0, 9], sizes = [16, 64], strides = [1, 1]} : vector<16x82xf32> to vector<16x64xf32>
    %669 = vector.extract_strided_slice %651 {offsets = [0, 10], sizes = [16, 64], strides = [1, 1]} : vector<16x82xf32> to vector<16x64xf32>
    %cst_228 = arith.constant 0.000000e+00 : f32
    %670 = vector.shape_cast %614 : vector<1x64xi1> to vector<1x64xi1>
    %671 = vector.broadcast %670 : vector<1x64xi1> to vector<16x64xi1>
    %672 = vector.broadcast %cst_228 : f32 to vector<16x64xf32>
    %673 = arith.select %671, %669, %672 : vector<16x64xi1>, vector<16x64xf32>
    %674 = vector.extract_strided_slice %651 {offsets = [0, 16], sizes = [16, 64], strides = [1, 1]} : vector<16x82xf32> to vector<16x64xf32>
    %cst_229 = arith.constant 0.000000e+00 : f32
    %675 = vector.shape_cast %612 : vector<1x64xi1> to vector<1x64xi1>
    %676 = vector.broadcast %675 : vector<1x64xi1> to vector<16x64xi1>
    %677 = vector.broadcast %cst_229 : f32 to vector<16x64xf32>
    %678 = arith.select %676, %674, %677 : vector<16x64xi1>, vector<16x64xf32>
    %679 = vector.extract_strided_slice %651 {offsets = [0, 17], sizes = [16, 64], strides = [1, 1]} : vector<16x82xf32> to vector<16x64xf32>
    %680 = vector.extract_strided_slice %651 {offsets = [0, 18], sizes = [16, 64], strides = [1, 1]} : vector<16x82xf32> to vector<16x64xf32>
    %cst_230 = arith.constant 0.000000e+00 : f32
    %681 = vector.shape_cast %614 : vector<1x64xi1> to vector<1x64xi1>
    %682 = vector.broadcast %681 : vector<1x64xi1> to vector<16x64xi1>
    %683 = vector.broadcast %cst_230 : f32 to vector<16x64xf32>
    %684 = arith.select %682, %680, %683 : vector<16x64xi1>, vector<16x64xf32>
    %685 = tpu.concatenate %621, %622, %627, %632, %633, %638, %643, %644, %649, %656, %657, %662, %667, %668, %673, %678 in 0 : vector<16x64xf32>, vector<16x64xf32>, vector<16x64xf32>, vector<16x64xf32>, vector<16x64xf32>, vector<16x64xf32>, vector<16x64xf32>, vector<16x64xf32>, vector<16x64xf32>, vector<16x64xf32>, vector<16x64xf32>, vector<16x64xf32>, vector<16x64xf32>, vector<16x64xf32>, vector<16x64xf32>, vector<16x64xf32> -> vector<256x64xf32>
    %686 = tpu.concatenate %679, %684 in 0 : vector<16x64xf32>, vector<16x64xf32> -> vector<32x64xf32>
    %687 = tpu.concatenate %685, %686 in 0 : vector<256x64xf32>, vector<32x64xf32> -> vector<288x64xf32>
    %c0_231 = arith.constant 0 : index
    %c0_232 = arith.constant 0 : index
    %688 = vector.load %arg31[%c0_231, %c0_232] : memref<16x288xf32, #tpu.memory_space<vmem>>, vector<16x288xf32>
    %cst_233 = arith.constant dense<0.000000e+00> : vector<16x64xf32>
    %689 = tpu.matmul %688, %687, %cst_233 {dimension_numbers = #tpu.dot_dimension_numbers<[1], [0], [0], [1], [0, 0, 1, 1], [], []>} : vector<16x288xf32>, vector<288x64xf32>, vector<16x64xf32> -> vector<16x64xf32>
    %c0_234 = arith.constant 0 : index
    %c0_235 = arith.constant 0 : index
    %690 = vector.load %arg32[%c0_234, %c0_235] : memref<16x1xf32, #tpu.memory_space<vmem>>, vector<16x1xf32>
    %691 = vector.broadcast %690 : vector<16x1xf32> to vector<16x64xf32>
    %692 = arith.addf %689, %691 : vector<16x64xf32>
    %cst_236 = arith.constant dense<0.000000e+00> : vector<16xf32>
    %693 = vector.multi_reduction <add>, %692, %cst_236 [1] : vector<16x64xf32> to vector<16xf32>
    %694 = vector.shape_cast %693 : vector<16xf32> to vector<16x1xf32>
    %cst_237 = arith.constant 1.562500e-02 : f32
    %695 = vector.broadcast %cst_237 : f32 to vector<16x1xf32>
    %696 = arith.mulf %694, %695 : vector<16x1xf32>
    %697 = arith.mulf %692, %692 : vector<16x64xf32>
    %cst_238 = arith.constant dense<0.000000e+00> : vector<16xf32>
    %698 = vector.multi_reduction <add>, %697, %cst_238 [1] : vector<16x64xf32> to vector<16xf32>
    %699 = vector.shape_cast %698 : vector<16xf32> to vector<16x1xf32>
    %cst_239 = arith.constant 1.562500e-02 : f32
    %700 = vector.broadcast %cst_239 : f32 to vector<16x1xf32>
    %701 = arith.mulf %699, %700 : vector<16x1xf32>
    %702 = arith.mulf %696, %696 : vector<16x1xf32>
    %703 = arith.subf %701, %702 : vector<16x1xf32>
    %cst_240 = arith.constant 0.000000e+00 : f32
    %704 = vector.broadcast %cst_240 : f32 to vector<16x1xf32>
    %705 = arith.maximumf %703, %704 : vector<16x1xf32>
    %706 = vector.broadcast %696 : vector<16x1xf32> to vector<16x64xf32>
    %707 = arith.subf %692, %706 : vector<16x64xf32>
    %cst_241 = arith.constant 9.99999974E-6 : f32
    %708 = vector.broadcast %cst_241 : f32 to vector<16x1xf32>
    %709 = arith.addf %705, %708 : vector<16x1xf32>
    %710 = math.rsqrt %709 : vector<16x1xf32>
    %711 = vector.broadcast %710 : vector<16x1xf32> to vector<16x64xf32>
    %712 = arith.mulf %707, %711 : vector<16x64xf32>
    %c0_242 = arith.constant 0 : index
    %c0_243 = arith.constant 0 : index
    %713 = vector.load %arg33[%c0_242, %c0_243] : memref<16x1xf32, #tpu.memory_space<vmem>>, vector<16x1xf32>
    %714 = vector.broadcast %713 : vector<16x1xf32> to vector<16x64xf32>
    %715 = arith.mulf %712, %714 : vector<16x64xf32>
    %c0_244 = arith.constant 0 : index
    %c0_245 = arith.constant 0 : index
    %716 = vector.load %arg34[%c0_244, %c0_245] : memref<16x1xf32, #tpu.memory_space<vmem>>, vector<16x1xf32>
    %717 = vector.broadcast %716 : vector<16x1xf32> to vector<16x64xf32>
    %718 = arith.addf %715, %717 : vector<16x64xf32>
    %cst_246 = arith.constant 0.000000e+00 : f32
    %719 = vector.broadcast %cst_246 : f32 to vector<16x64xf32>
    %720 = arith.maximumf %718, %719 : vector<16x64xf32>
    %721 = tpu.iota {dimensions = array<i32: 1>} : vector<1x64xi32>
    %c8_i32_247 = arith.constant 8 : i32
    %c0_i32_248 = arith.constant 0 : i32
    %722 = arith.cmpi eq, %c8_i32_247, %c0_i32_248 : i32
    %c1_i32_249 = arith.constant 1 : i32
    %723 = arith.select %722, %c1_i32_249, %c8_i32_247 : i32
    %724 = vector.broadcast %723 : i32 to vector<1x64xi32>
    %725 = arith.remsi %721, %724 : vector<1x64xi32>
    %c0_i32_250 = arith.constant 0 : i32
    %726 = vector.broadcast %c0_i32_250 : i32 to vector<1x64xi32>
    %727 = arith.cmpi ne, %725, %726 : vector<1x64xi32>
    %c0_i32_251 = arith.constant 0 : i32
    %728 = vector.broadcast %c0_i32_251 : i32 to vector<1x64xi32>
    %729 = arith.cmpi slt, %725, %728 : vector<1x64xi32>
    %c0_i32_252 = arith.constant 0 : i32
    %730 = arith.cmpi slt, %723, %c0_i32_252 : i32
    %731 = vector.broadcast %730 : i1 to vector<1x64xi1>
    %732 = vector.broadcast %731 : vector<1x64xi1> to vector<1x64xi1>
    %733 = arith.xori %729, %732 : vector<1x64xi1>
    %734 = arith.andi %733, %727 : vector<1x64xi1>
    %735 = vector.broadcast %723 : i32 to vector<1x64xi32>
    %736 = arith.addi %725, %735 : vector<1x64xi32>
    %737 = arith.select %734, %736, %725 : vector<1x64xi1>, vector<1x64xi32>
    %c0_i32_253 = arith.constant 0 : i32
    %738 = vector.broadcast %c0_i32_253 : i32 to vector<1x64xi32>
    %739 = arith.cmpi ne, %737, %738 : vector<1x64xi32>
    %c7_i32_254 = arith.constant 7 : i32
    %740 = vector.broadcast %c7_i32_254 : i32 to vector<1x64xi32>
    %741 = arith.cmpi ne, %737, %740 : vector<1x64xi32>
    %cst_255 = arith.constant 0.000000e+00 : f32
    %742 = vector.broadcast %cst_255 : f32 to vector<16x9xf32>
    %743 = tpu.concatenate %742, %720, %742 in 1 : vector<16x9xf32>, vector<16x64xf32>, vector<16x9xf32> -> vector<16x82xf32>
    %744 = vector.extract_strided_slice %743 {offsets = [0, 0], sizes = [16, 64], strides = [1, 1]} : vector<16x82xf32> to vector<16x64xf32>
    %cst_256 = arith.constant 0.000000e+00 : f32
    %745 = vector.shape_cast %739 : vector<1x64xi1> to vector<1x64xi1>
    %746 = vector.broadcast %745 : vector<1x64xi1> to vector<16x64xi1>
    %747 = vector.broadcast %cst_256 : f32 to vector<16x64xf32>
    %748 = arith.select %746, %744, %747 : vector<16x64xi1>, vector<16x64xf32>
    %749 = vector.extract_strided_slice %743 {offsets = [0, 1], sizes = [16, 64], strides = [1, 1]} : vector<16x82xf32> to vector<16x64xf32>
    %750 = vector.extract_strided_slice %743 {offsets = [0, 2], sizes = [16, 64], strides = [1, 1]} : vector<16x82xf32> to vector<16x64xf32>
    %cst_257 = arith.constant 0.000000e+00 : f32
    %751 = vector.shape_cast %741 : vector<1x64xi1> to vector<1x64xi1>
    %752 = vector.broadcast %751 : vector<1x64xi1> to vector<16x64xi1>
    %753 = vector.broadcast %cst_257 : f32 to vector<16x64xf32>
    %754 = arith.select %752, %750, %753 : vector<16x64xi1>, vector<16x64xf32>
    %755 = vector.extract_strided_slice %743 {offsets = [0, 8], sizes = [16, 64], strides = [1, 1]} : vector<16x82xf32> to vector<16x64xf32>
    %cst_258 = arith.constant 0.000000e+00 : f32
    %756 = vector.shape_cast %739 : vector<1x64xi1> to vector<1x64xi1>
    %757 = vector.broadcast %756 : vector<1x64xi1> to vector<16x64xi1>
    %758 = vector.broadcast %cst_258 : f32 to vector<16x64xf32>
    %759 = arith.select %757, %755, %758 : vector<16x64xi1>, vector<16x64xf32>
    %760 = vector.extract_strided_slice %743 {offsets = [0, 9], sizes = [16, 64], strides = [1, 1]} : vector<16x82xf32> to vector<16x64xf32>
    %761 = vector.extract_strided_slice %743 {offsets = [0, 10], sizes = [16, 64], strides = [1, 1]} : vector<16x82xf32> to vector<16x64xf32>
    %cst_259 = arith.constant 0.000000e+00 : f32
    %762 = vector.shape_cast %741 : vector<1x64xi1> to vector<1x64xi1>
    %763 = vector.broadcast %762 : vector<1x64xi1> to vector<16x64xi1>
    %764 = vector.broadcast %cst_259 : f32 to vector<16x64xf32>
    %765 = arith.select %763, %761, %764 : vector<16x64xi1>, vector<16x64xf32>
    %766 = vector.extract_strided_slice %743 {offsets = [0, 16], sizes = [16, 64], strides = [1, 1]} : vector<16x82xf32> to vector<16x64xf32>
    %cst_260 = arith.constant 0.000000e+00 : f32
    %767 = vector.shape_cast %739 : vector<1x64xi1> to vector<1x64xi1>
    %768 = vector.broadcast %767 : vector<1x64xi1> to vector<16x64xi1>
    %769 = vector.broadcast %cst_260 : f32 to vector<16x64xf32>
    %770 = arith.select %768, %766, %769 : vector<16x64xi1>, vector<16x64xf32>
    %771 = vector.extract_strided_slice %743 {offsets = [0, 17], sizes = [16, 64], strides = [1, 1]} : vector<16x82xf32> to vector<16x64xf32>
    %772 = vector.extract_strided_slice %743 {offsets = [0, 18], sizes = [16, 64], strides = [1, 1]} : vector<16x82xf32> to vector<16x64xf32>
    %cst_261 = arith.constant 0.000000e+00 : f32
    %773 = vector.shape_cast %741 : vector<1x64xi1> to vector<1x64xi1>
    %774 = vector.broadcast %773 : vector<1x64xi1> to vector<16x64xi1>
    %775 = vector.broadcast %cst_261 : f32 to vector<16x64xf32>
    %776 = arith.select %774, %772, %775 : vector<16x64xi1>, vector<16x64xf32>
    %777 = tpu.concatenate %748, %749, %754, %759, %760, %765, %770, %771, %776 in 0 : vector<16x64xf32>, vector<16x64xf32>, vector<16x64xf32>, vector<16x64xf32>, vector<16x64xf32>, vector<16x64xf32>, vector<16x64xf32>, vector<16x64xf32>, vector<16x64xf32> -> vector<144x64xf32>
    %c0_262 = arith.constant 0 : index
    %c0_263 = arith.constant 0 : index
    %778 = vector.load %arg35[%c0_262, %c0_263] : memref<16x144xf32, #tpu.memory_space<vmem>>, vector<16x144xf32>
    %cst_264 = arith.constant dense<0.000000e+00> : vector<16x64xf32>
    %779 = tpu.matmul %778, %777, %cst_264 {dimension_numbers = #tpu.dot_dimension_numbers<[1], [0], [0], [1], [0, 0, 1, 1], [], []>} : vector<16x144xf32>, vector<144x64xf32>, vector<16x64xf32> -> vector<16x64xf32>
    %c0_265 = arith.constant 0 : index
    %c0_266 = arith.constant 0 : index
    %780 = vector.load %arg36[%c0_265, %c0_266] : memref<16x1xf32, #tpu.memory_space<vmem>>, vector<16x1xf32>
    %781 = vector.broadcast %780 : vector<16x1xf32> to vector<16x64xf32>
    %782 = arith.addf %779, %781 : vector<16x64xf32>
    %cst_267 = arith.constant dense<0.000000e+00> : vector<16xf32>
    %783 = vector.multi_reduction <add>, %782, %cst_267 [1] : vector<16x64xf32> to vector<16xf32>
    %784 = vector.shape_cast %783 : vector<16xf32> to vector<16x1xf32>
    %cst_268 = arith.constant 1.562500e-02 : f32
    %785 = vector.broadcast %cst_268 : f32 to vector<16x1xf32>
    %786 = arith.mulf %784, %785 : vector<16x1xf32>
    %787 = arith.mulf %782, %782 : vector<16x64xf32>
    %cst_269 = arith.constant dense<0.000000e+00> : vector<16xf32>
    %788 = vector.multi_reduction <add>, %787, %cst_269 [1] : vector<16x64xf32> to vector<16xf32>
    %789 = vector.shape_cast %788 : vector<16xf32> to vector<16x1xf32>
    %cst_270 = arith.constant 1.562500e-02 : f32
    %790 = vector.broadcast %cst_270 : f32 to vector<16x1xf32>
    %791 = arith.mulf %789, %790 : vector<16x1xf32>
    %792 = arith.mulf %786, %786 : vector<16x1xf32>
    %793 = arith.subf %791, %792 : vector<16x1xf32>
    %cst_271 = arith.constant 0.000000e+00 : f32
    %794 = vector.broadcast %cst_271 : f32 to vector<16x1xf32>
    %795 = arith.maximumf %793, %794 : vector<16x1xf32>
    %796 = vector.broadcast %786 : vector<16x1xf32> to vector<16x64xf32>
    %797 = arith.subf %782, %796 : vector<16x64xf32>
    %cst_272 = arith.constant 9.99999974E-6 : f32
    %798 = vector.broadcast %cst_272 : f32 to vector<16x1xf32>
    %799 = arith.addf %795, %798 : vector<16x1xf32>
    %800 = math.rsqrt %799 : vector<16x1xf32>
    %801 = vector.broadcast %800 : vector<16x1xf32> to vector<16x64xf32>
    %802 = arith.mulf %797, %801 : vector<16x64xf32>
    %c0_273 = arith.constant 0 : index
    %c0_274 = arith.constant 0 : index
    %803 = vector.load %arg37[%c0_273, %c0_274] : memref<16x1xf32, #tpu.memory_space<vmem>>, vector<16x1xf32>
    %804 = vector.broadcast %803 : vector<16x1xf32> to vector<16x64xf32>
    %805 = arith.mulf %802, %804 : vector<16x64xf32>
    %c0_275 = arith.constant 0 : index
    %c0_276 = arith.constant 0 : index
    %806 = vector.load %arg38[%c0_275, %c0_276] : memref<16x1xf32, #tpu.memory_space<vmem>>, vector<16x1xf32>
    %807 = vector.broadcast %806 : vector<16x1xf32> to vector<16x64xf32>
    %808 = arith.addf %805, %807 : vector<16x64xf32>
    %cst_277 = arith.constant 0.000000e+00 : f32
    %809 = vector.broadcast %cst_277 : f32 to vector<16x64xf32>
    %810 = arith.maximumf %808, %809 : vector<16x64xf32>
    %c0_278 = arith.constant 0 : index
    %c0_279 = arith.constant 0 : index
    %811 = vector.load %arg39[%c0_278, %c0_279] : memref<32x16xf32, #tpu.memory_space<vmem>>, vector<32x16xf32>
    %cst_280 = arith.constant dense<0.000000e+00> : vector<32x64xf32>
    %812 = tpu.matmul %811, %810, %cst_280 {dimension_numbers = #tpu.dot_dimension_numbers<[1], [0], [0], [1], [0, 0, 1, 1], [], []>} : vector<32x16xf32>, vector<16x64xf32>, vector<32x64xf32> -> vector<32x64xf32>
    %813 = vector.extract_strided_slice %812 {offsets = [0, 0], sizes = [8, 64], strides = [1, 1]} : vector<32x64xf32> to vector<8x64xf32>
    %c0_281 = arith.constant 0 : index
    %c0_282 = arith.constant 0 : index
    %c0_283 = arith.constant 0 : index
    %814 = vector.load %arg41[%c0_281, %c0_282, %c0_283] : memref<4x64x256xf32, #tpu.memory_space<vmem>>, vector<1x64x256xf32>
    %815 = vector.shape_cast %814 : vector<1x64x256xf32> to vector<64x256xf32>
    %cst_284 = arith.constant dense<0.000000e+00> : vector<8x256xf32>
    %816 = tpu.matmul %813, %815, %cst_284 {dimension_numbers = #tpu.dot_dimension_numbers<[1], [0], [0], [1], [0, 0, 1, 1], [], []>} : vector<8x64xf32>, vector<64x256xf32>, vector<8x256xf32> -> vector<8x256xf32>
    %817 = vector.extract_strided_slice %812 {offsets = [8, 0], sizes = [8, 64], strides = [1, 1]} : vector<32x64xf32> to vector<8x64xf32>
    %c1_285 = arith.constant 1 : index
    %c0_286 = arith.constant 0 : index
    %c0_287 = arith.constant 0 : index
    %818 = vector.load %arg41[%c1_285, %c0_286, %c0_287] : memref<4x64x256xf32, #tpu.memory_space<vmem>>, vector<1x64x256xf32>
    %819 = vector.shape_cast %818 : vector<1x64x256xf32> to vector<64x256xf32>
    %cst_288 = arith.constant dense<0.000000e+00> : vector<8x256xf32>
    %820 = tpu.matmul %817, %819, %cst_288 {dimension_numbers = #tpu.dot_dimension_numbers<[1], [0], [0], [1], [0, 0, 1, 1], [], []>} : vector<8x64xf32>, vector<64x256xf32>, vector<8x256xf32> -> vector<8x256xf32>
    %821 = arith.addf %816, %820 : vector<8x256xf32>
    %822 = vector.extract_strided_slice %812 {offsets = [16, 0], sizes = [8, 64], strides = [1, 1]} : vector<32x64xf32> to vector<8x64xf32>
    %c2_289 = arith.constant 2 : index
    %c0_290 = arith.constant 0 : index
    %c0_291 = arith.constant 0 : index
    %823 = vector.load %arg41[%c2_289, %c0_290, %c0_291] : memref<4x64x256xf32, #tpu.memory_space<vmem>>, vector<1x64x256xf32>
    %824 = vector.shape_cast %823 : vector<1x64x256xf32> to vector<64x256xf32>
    %cst_292 = arith.constant dense<0.000000e+00> : vector<8x256xf32>
    %825 = tpu.matmul %822, %824, %cst_292 {dimension_numbers = #tpu.dot_dimension_numbers<[1], [0], [0], [1], [0, 0, 1, 1], [], []>} : vector<8x64xf32>, vector<64x256xf32>, vector<8x256xf32> -> vector<8x256xf32>
    %826 = arith.addf %821, %825 : vector<8x256xf32>
    %827 = vector.extract_strided_slice %812 {offsets = [24, 0], sizes = [8, 64], strides = [1, 1]} : vector<32x64xf32> to vector<8x64xf32>
    %c3_293 = arith.constant 3 : index
    %c0_294 = arith.constant 0 : index
    %c0_295 = arith.constant 0 : index
    %828 = vector.load %arg41[%c3_293, %c0_294, %c0_295] : memref<4x64x256xf32, #tpu.memory_space<vmem>>, vector<1x64x256xf32>
    %829 = vector.shape_cast %828 : vector<1x64x256xf32> to vector<64x256xf32>
    %cst_296 = arith.constant dense<0.000000e+00> : vector<8x256xf32>
    %830 = tpu.matmul %827, %829, %cst_296 {dimension_numbers = #tpu.dot_dimension_numbers<[1], [0], [0], [1], [0, 0, 1, 1], [], []>} : vector<8x64xf32>, vector<64x256xf32>, vector<8x256xf32> -> vector<8x256xf32>
    %831 = arith.addf %826, %830 : vector<8x256xf32>
    %c0_297 = arith.constant 0 : index
    %c0_298 = arith.constant 0 : index
    %832 = vector.load %arg40[%c0_297, %c0_298] : memref<8x1xf32, #tpu.memory_space<vmem>>, vector<8x1xf32>
    %833 = vector.broadcast %832 : vector<8x1xf32> to vector<8x256xf32>
    %834 = arith.addf %831, %833 : vector<8x256xf32>
    %835 = tpu.iota {dimensions = array<i32: 1>} : vector<1x256xi32>
    %c16_i32_299 = arith.constant 16 : i32
    %c0_i32_300 = arith.constant 0 : i32
    %836 = arith.cmpi eq, %c16_i32_299, %c0_i32_300 : i32
    %c1_i32_301 = arith.constant 1 : i32
    %837 = arith.select %836, %c1_i32_301, %c16_i32_299 : i32
    %838 = vector.broadcast %837 : i32 to vector<1x256xi32>
    %839 = arith.remsi %835, %838 : vector<1x256xi32>
    %c0_i32_302 = arith.constant 0 : i32
    %840 = vector.broadcast %c0_i32_302 : i32 to vector<1x256xi32>
    %841 = arith.cmpi ne, %839, %840 : vector<1x256xi32>
    %c0_i32_303 = arith.constant 0 : i32
    %842 = vector.broadcast %c0_i32_303 : i32 to vector<1x256xi32>
    %843 = arith.cmpi slt, %839, %842 : vector<1x256xi32>
    %c0_i32_304 = arith.constant 0 : i32
    %844 = arith.cmpi slt, %837, %c0_i32_304 : i32
    %845 = vector.broadcast %844 : i1 to vector<1x256xi1>
    %846 = vector.broadcast %845 : vector<1x256xi1> to vector<1x256xi1>
    %847 = arith.xori %843, %846 : vector<1x256xi1>
    %848 = arith.andi %847, %841 : vector<1x256xi1>
    %849 = vector.broadcast %837 : i32 to vector<1x256xi32>
    %850 = arith.addi %839, %849 : vector<1x256xi32>
    %851 = arith.select %848, %850, %839 : vector<1x256xi1>, vector<1x256xi32>
    %c0_i32_305 = arith.constant 0 : i32
    %852 = vector.broadcast %c0_i32_305 : i32 to vector<1x256xi32>
    %853 = arith.cmpi ne, %851, %852 : vector<1x256xi32>
    %c15_i32_306 = arith.constant 15 : i32
    %854 = vector.broadcast %c15_i32_306 : i32 to vector<1x256xi32>
    %855 = arith.cmpi ne, %851, %854 : vector<1x256xi32>
    %cst_307 = arith.constant 0.000000e+00 : f32
    %856 = vector.broadcast %cst_307 : f32 to vector<8x17xf32>
    %857 = tpu.concatenate %856, %834, %856 in 1 : vector<8x17xf32>, vector<8x256xf32>, vector<8x17xf32> -> vector<8x290xf32>
    %858 = vector.extract_strided_slice %857 {offsets = [0, 0], sizes = [8, 256], strides = [1, 1]} : vector<8x290xf32> to vector<8x256xf32>
    %cst_308 = arith.constant 0.000000e+00 : f32
    %859 = vector.shape_cast %853 : vector<1x256xi1> to vector<1x256xi1>
    %860 = vector.broadcast %859 : vector<1x256xi1> to vector<8x256xi1>
    %861 = vector.broadcast %cst_308 : f32 to vector<8x256xf32>
    %862 = arith.select %860, %858, %861 : vector<8x256xi1>, vector<8x256xf32>
    %863 = vector.extract_strided_slice %857 {offsets = [0, 1], sizes = [8, 256], strides = [1, 1]} : vector<8x290xf32> to vector<8x256xf32>
    %864 = vector.extract_strided_slice %857 {offsets = [0, 2], sizes = [8, 256], strides = [1, 1]} : vector<8x290xf32> to vector<8x256xf32>
    %cst_309 = arith.constant 0.000000e+00 : f32
    %865 = vector.shape_cast %855 : vector<1x256xi1> to vector<1x256xi1>
    %866 = vector.broadcast %865 : vector<1x256xi1> to vector<8x256xi1>
    %867 = vector.broadcast %cst_309 : f32 to vector<8x256xf32>
    %868 = arith.select %866, %864, %867 : vector<8x256xi1>, vector<8x256xf32>
    %869 = vector.extract_strided_slice %857 {offsets = [0, 16], sizes = [8, 256], strides = [1, 1]} : vector<8x290xf32> to vector<8x256xf32>
    %cst_310 = arith.constant 0.000000e+00 : f32
    %870 = vector.shape_cast %853 : vector<1x256xi1> to vector<1x256xi1>
    %871 = vector.broadcast %870 : vector<1x256xi1> to vector<8x256xi1>
    %872 = vector.broadcast %cst_310 : f32 to vector<8x256xf32>
    %873 = arith.select %871, %869, %872 : vector<8x256xi1>, vector<8x256xf32>
    %874 = vector.extract_strided_slice %857 {offsets = [0, 17], sizes = [8, 256], strides = [1, 1]} : vector<8x290xf32> to vector<8x256xf32>
    %875 = vector.extract_strided_slice %857 {offsets = [0, 18], sizes = [8, 256], strides = [1, 1]} : vector<8x290xf32> to vector<8x256xf32>
    %cst_311 = arith.constant 0.000000e+00 : f32
    %876 = vector.shape_cast %855 : vector<1x256xi1> to vector<1x256xi1>
    %877 = vector.broadcast %876 : vector<1x256xi1> to vector<8x256xi1>
    %878 = vector.broadcast %cst_311 : f32 to vector<8x256xf32>
    %879 = arith.select %877, %875, %878 : vector<8x256xi1>, vector<8x256xf32>
    %880 = vector.extract_strided_slice %857 {offsets = [0, 32], sizes = [8, 256], strides = [1, 1]} : vector<8x290xf32> to vector<8x256xf32>
    %cst_312 = arith.constant 0.000000e+00 : f32
    %881 = vector.shape_cast %853 : vector<1x256xi1> to vector<1x256xi1>
    %882 = vector.broadcast %881 : vector<1x256xi1> to vector<8x256xi1>
    %883 = vector.broadcast %cst_312 : f32 to vector<8x256xf32>
    %884 = arith.select %882, %880, %883 : vector<8x256xi1>, vector<8x256xf32>
    %885 = vector.extract_strided_slice %857 {offsets = [0, 33], sizes = [8, 256], strides = [1, 1]} : vector<8x290xf32> to vector<8x256xf32>
    %886 = vector.extract_strided_slice %857 {offsets = [0, 34], sizes = [8, 256], strides = [1, 1]} : vector<8x290xf32> to vector<8x256xf32>
    %cst_313 = arith.constant 0.000000e+00 : f32
    %887 = vector.shape_cast %855 : vector<1x256xi1> to vector<1x256xi1>
    %888 = vector.broadcast %887 : vector<1x256xi1> to vector<8x256xi1>
    %889 = vector.broadcast %cst_313 : f32 to vector<8x256xf32>
    %890 = arith.select %888, %886, %889 : vector<8x256xi1>, vector<8x256xf32>
    %cst_314 = arith.constant 0.000000e+00 : f32
    %891 = vector.broadcast %cst_314 : f32 to vector<8x17xf32>
    %892 = tpu.concatenate %891, %181, %891 in 1 : vector<8x17xf32>, vector<8x256xf32>, vector<8x17xf32> -> vector<8x290xf32>
    %893 = vector.extract_strided_slice %892 {offsets = [0, 0], sizes = [8, 256], strides = [1, 1]} : vector<8x290xf32> to vector<8x256xf32>
    %cst_315 = arith.constant 0.000000e+00 : f32
    %894 = vector.shape_cast %853 : vector<1x256xi1> to vector<1x256xi1>
    %895 = vector.broadcast %894 : vector<1x256xi1> to vector<8x256xi1>
    %896 = vector.broadcast %cst_315 : f32 to vector<8x256xf32>
    %897 = arith.select %895, %893, %896 : vector<8x256xi1>, vector<8x256xf32>
    %898 = vector.extract_strided_slice %892 {offsets = [0, 1], sizes = [8, 256], strides = [1, 1]} : vector<8x290xf32> to vector<8x256xf32>
    %899 = vector.extract_strided_slice %892 {offsets = [0, 2], sizes = [8, 256], strides = [1, 1]} : vector<8x290xf32> to vector<8x256xf32>
    %cst_316 = arith.constant 0.000000e+00 : f32
    %900 = vector.shape_cast %855 : vector<1x256xi1> to vector<1x256xi1>
    %901 = vector.broadcast %900 : vector<1x256xi1> to vector<8x256xi1>
    %902 = vector.broadcast %cst_316 : f32 to vector<8x256xf32>
    %903 = arith.select %901, %899, %902 : vector<8x256xi1>, vector<8x256xf32>
    %904 = vector.extract_strided_slice %892 {offsets = [0, 16], sizes = [8, 256], strides = [1, 1]} : vector<8x290xf32> to vector<8x256xf32>
    %cst_317 = arith.constant 0.000000e+00 : f32
    %905 = vector.shape_cast %853 : vector<1x256xi1> to vector<1x256xi1>
    %906 = vector.broadcast %905 : vector<1x256xi1> to vector<8x256xi1>
    %907 = vector.broadcast %cst_317 : f32 to vector<8x256xf32>
    %908 = arith.select %906, %904, %907 : vector<8x256xi1>, vector<8x256xf32>
    %909 = vector.extract_strided_slice %892 {offsets = [0, 17], sizes = [8, 256], strides = [1, 1]} : vector<8x290xf32> to vector<8x256xf32>
    %910 = vector.extract_strided_slice %892 {offsets = [0, 18], sizes = [8, 256], strides = [1, 1]} : vector<8x290xf32> to vector<8x256xf32>
    %cst_318 = arith.constant 0.000000e+00 : f32
    %911 = vector.shape_cast %855 : vector<1x256xi1> to vector<1x256xi1>
    %912 = vector.broadcast %911 : vector<1x256xi1> to vector<8x256xi1>
    %913 = vector.broadcast %cst_318 : f32 to vector<8x256xf32>
    %914 = arith.select %912, %910, %913 : vector<8x256xi1>, vector<8x256xf32>
    %915 = vector.extract_strided_slice %892 {offsets = [0, 32], sizes = [8, 256], strides = [1, 1]} : vector<8x290xf32> to vector<8x256xf32>
    %cst_319 = arith.constant 0.000000e+00 : f32
    %916 = vector.shape_cast %853 : vector<1x256xi1> to vector<1x256xi1>
    %917 = vector.broadcast %916 : vector<1x256xi1> to vector<8x256xi1>
    %918 = vector.broadcast %cst_319 : f32 to vector<8x256xf32>
    %919 = arith.select %917, %915, %918 : vector<8x256xi1>, vector<8x256xf32>
    %920 = vector.extract_strided_slice %892 {offsets = [0, 33], sizes = [8, 256], strides = [1, 1]} : vector<8x290xf32> to vector<8x256xf32>
    %921 = vector.extract_strided_slice %892 {offsets = [0, 34], sizes = [8, 256], strides = [1, 1]} : vector<8x290xf32> to vector<8x256xf32>
    %cst_320 = arith.constant 0.000000e+00 : f32
    %922 = vector.shape_cast %855 : vector<1x256xi1> to vector<1x256xi1>
    %923 = vector.broadcast %922 : vector<1x256xi1> to vector<8x256xi1>
    %924 = vector.broadcast %cst_320 : f32 to vector<8x256xf32>
    %925 = arith.select %923, %921, %924 : vector<8x256xi1>, vector<8x256xf32>
    %926 = tpu.concatenate %862, %863, %868, %873, %874, %879, %884, %885, %890, %897, %898, %903, %908, %909, %914, %919 in 0 : vector<8x256xf32>, vector<8x256xf32>, vector<8x256xf32>, vector<8x256xf32>, vector<8x256xf32>, vector<8x256xf32>, vector<8x256xf32>, vector<8x256xf32>, vector<8x256xf32>, vector<8x256xf32>, vector<8x256xf32>, vector<8x256xf32>, vector<8x256xf32>, vector<8x256xf32>, vector<8x256xf32>, vector<8x256xf32> -> vector<128x256xf32>
    %927 = tpu.concatenate %920, %925 in 0 : vector<8x256xf32>, vector<8x256xf32> -> vector<16x256xf32>
    %928 = tpu.concatenate %926, %927 in 0 : vector<128x256xf32>, vector<16x256xf32> -> vector<144x256xf32>
    %c0_321 = arith.constant 0 : index
    %c0_322 = arith.constant 0 : index
    %929 = vector.load %arg42[%c0_321, %c0_322] : memref<8x144xf32, #tpu.memory_space<vmem>>, vector<8x144xf32>
    %cst_323 = arith.constant dense<0.000000e+00> : vector<8x256xf32>
    %930 = tpu.matmul %929, %928, %cst_323 {dimension_numbers = #tpu.dot_dimension_numbers<[1], [0], [0], [1], [0, 0, 1, 1], [], []>} : vector<8x144xf32>, vector<144x256xf32>, vector<8x256xf32> -> vector<8x256xf32>
    %c0_324 = arith.constant 0 : index
    %c0_325 = arith.constant 0 : index
    %931 = vector.load %arg43[%c0_324, %c0_325] : memref<8x1xf32, #tpu.memory_space<vmem>>, vector<8x1xf32>
    %932 = vector.broadcast %931 : vector<8x1xf32> to vector<8x256xf32>
    %933 = arith.addf %930, %932 : vector<8x256xf32>
    %cst_326 = arith.constant dense<0.000000e+00> : vector<8xf32>
    %934 = vector.multi_reduction <add>, %933, %cst_326 [1] : vector<8x256xf32> to vector<8xf32>
    %935 = vector.shape_cast %934 : vector<8xf32> to vector<8x1xf32>
    %cst_327 = arith.constant 3.906250e-03 : f32
    %936 = vector.broadcast %cst_327 : f32 to vector<8x1xf32>
    %937 = arith.mulf %935, %936 : vector<8x1xf32>
    %938 = arith.mulf %933, %933 : vector<8x256xf32>
    %cst_328 = arith.constant dense<0.000000e+00> : vector<8xf32>
    %939 = vector.multi_reduction <add>, %938, %cst_328 [1] : vector<8x256xf32> to vector<8xf32>
    %940 = vector.shape_cast %939 : vector<8xf32> to vector<8x1xf32>
    %cst_329 = arith.constant 3.906250e-03 : f32
    %941 = vector.broadcast %cst_329 : f32 to vector<8x1xf32>
    %942 = arith.mulf %940, %941 : vector<8x1xf32>
    %943 = arith.mulf %937, %937 : vector<8x1xf32>
    %944 = arith.subf %942, %943 : vector<8x1xf32>
    %cst_330 = arith.constant 0.000000e+00 : f32
    %945 = vector.broadcast %cst_330 : f32 to vector<8x1xf32>
    %946 = arith.maximumf %944, %945 : vector<8x1xf32>
    %947 = vector.broadcast %937 : vector<8x1xf32> to vector<8x256xf32>
    %948 = arith.subf %933, %947 : vector<8x256xf32>
    %cst_331 = arith.constant 9.99999974E-6 : f32
    %949 = vector.broadcast %cst_331 : f32 to vector<8x1xf32>
    %950 = arith.addf %946, %949 : vector<8x1xf32>
    %951 = math.rsqrt %950 : vector<8x1xf32>
    %952 = vector.broadcast %951 : vector<8x1xf32> to vector<8x256xf32>
    %953 = arith.mulf %948, %952 : vector<8x256xf32>
    %c0_332 = arith.constant 0 : index
    %c0_333 = arith.constant 0 : index
    %954 = vector.load %arg44[%c0_332, %c0_333] : memref<8x1xf32, #tpu.memory_space<vmem>>, vector<8x1xf32>
    %955 = vector.broadcast %954 : vector<8x1xf32> to vector<8x256xf32>
    %956 = arith.mulf %953, %955 : vector<8x256xf32>
    %c0_334 = arith.constant 0 : index
    %c0_335 = arith.constant 0 : index
    %957 = vector.load %arg45[%c0_334, %c0_335] : memref<8x1xf32, #tpu.memory_space<vmem>>, vector<8x1xf32>
    %958 = vector.broadcast %957 : vector<8x1xf32> to vector<8x256xf32>
    %959 = arith.addf %956, %958 : vector<8x256xf32>
    %cst_336 = arith.constant 0.000000e+00 : f32
    %960 = vector.broadcast %cst_336 : f32 to vector<8x256xf32>
    %961 = arith.maximumf %959, %960 : vector<8x256xf32>
    %962 = tpu.iota {dimensions = array<i32: 1>} : vector<1x256xi32>
    %c16_i32_337 = arith.constant 16 : i32
    %c0_i32_338 = arith.constant 0 : i32
    %963 = arith.cmpi eq, %c16_i32_337, %c0_i32_338 : i32
    %c1_i32_339 = arith.constant 1 : i32
    %964 = arith.select %963, %c1_i32_339, %c16_i32_337 : i32
    %965 = vector.broadcast %964 : i32 to vector<1x256xi32>
    %966 = arith.remsi %962, %965 : vector<1x256xi32>
    %c0_i32_340 = arith.constant 0 : i32
    %967 = vector.broadcast %c0_i32_340 : i32 to vector<1x256xi32>
    %968 = arith.cmpi ne, %966, %967 : vector<1x256xi32>
    %c0_i32_341 = arith.constant 0 : i32
    %969 = vector.broadcast %c0_i32_341 : i32 to vector<1x256xi32>
    %970 = arith.cmpi slt, %966, %969 : vector<1x256xi32>
    %c0_i32_342 = arith.constant 0 : i32
    %971 = arith.cmpi slt, %964, %c0_i32_342 : i32
    %972 = vector.broadcast %971 : i1 to vector<1x256xi1>
    %973 = vector.broadcast %972 : vector<1x256xi1> to vector<1x256xi1>
    %974 = arith.xori %970, %973 : vector<1x256xi1>
    %975 = arith.andi %974, %968 : vector<1x256xi1>
    %976 = vector.broadcast %964 : i32 to vector<1x256xi32>
    %977 = arith.addi %966, %976 : vector<1x256xi32>
    %978 = arith.select %975, %977, %966 : vector<1x256xi1>, vector<1x256xi32>
    %c0_i32_343 = arith.constant 0 : i32
    %979 = vector.broadcast %c0_i32_343 : i32 to vector<1x256xi32>
    %980 = arith.cmpi ne, %978, %979 : vector<1x256xi32>
    %c15_i32_344 = arith.constant 15 : i32
    %981 = vector.broadcast %c15_i32_344 : i32 to vector<1x256xi32>
    %982 = arith.cmpi ne, %978, %981 : vector<1x256xi32>
    %cst_345 = arith.constant 0.000000e+00 : f32
    %983 = vector.broadcast %cst_345 : f32 to vector<8x17xf32>
    %984 = tpu.concatenate %983, %961, %983 in 1 : vector<8x17xf32>, vector<8x256xf32>, vector<8x17xf32> -> vector<8x290xf32>
    %985 = vector.extract_strided_slice %984 {offsets = [0, 0], sizes = [8, 256], strides = [1, 1]} : vector<8x290xf32> to vector<8x256xf32>
    %cst_346 = arith.constant 0.000000e+00 : f32
    %986 = vector.shape_cast %980 : vector<1x256xi1> to vector<1x256xi1>
    %987 = vector.broadcast %986 : vector<1x256xi1> to vector<8x256xi1>
    %988 = vector.broadcast %cst_346 : f32 to vector<8x256xf32>
    %989 = arith.select %987, %985, %988 : vector<8x256xi1>, vector<8x256xf32>
    %990 = vector.extract_strided_slice %984 {offsets = [0, 1], sizes = [8, 256], strides = [1, 1]} : vector<8x290xf32> to vector<8x256xf32>
    %991 = vector.extract_strided_slice %984 {offsets = [0, 2], sizes = [8, 256], strides = [1, 1]} : vector<8x290xf32> to vector<8x256xf32>
    %cst_347 = arith.constant 0.000000e+00 : f32
    %992 = vector.shape_cast %982 : vector<1x256xi1> to vector<1x256xi1>
    %993 = vector.broadcast %992 : vector<1x256xi1> to vector<8x256xi1>
    %994 = vector.broadcast %cst_347 : f32 to vector<8x256xf32>
    %995 = arith.select %993, %991, %994 : vector<8x256xi1>, vector<8x256xf32>
    %996 = vector.extract_strided_slice %984 {offsets = [0, 16], sizes = [8, 256], strides = [1, 1]} : vector<8x290xf32> to vector<8x256xf32>
    %cst_348 = arith.constant 0.000000e+00 : f32
    %997 = vector.shape_cast %980 : vector<1x256xi1> to vector<1x256xi1>
    %998 = vector.broadcast %997 : vector<1x256xi1> to vector<8x256xi1>
    %999 = vector.broadcast %cst_348 : f32 to vector<8x256xf32>
    %1000 = arith.select %998, %996, %999 : vector<8x256xi1>, vector<8x256xf32>
    %1001 = vector.extract_strided_slice %984 {offsets = [0, 17], sizes = [8, 256], strides = [1, 1]} : vector<8x290xf32> to vector<8x256xf32>
    %1002 = vector.extract_strided_slice %984 {offsets = [0, 18], sizes = [8, 256], strides = [1, 1]} : vector<8x290xf32> to vector<8x256xf32>
    %cst_349 = arith.constant 0.000000e+00 : f32
    %1003 = vector.shape_cast %982 : vector<1x256xi1> to vector<1x256xi1>
    %1004 = vector.broadcast %1003 : vector<1x256xi1> to vector<8x256xi1>
    %1005 = vector.broadcast %cst_349 : f32 to vector<8x256xf32>
    %1006 = arith.select %1004, %1002, %1005 : vector<8x256xi1>, vector<8x256xf32>
    %1007 = vector.extract_strided_slice %984 {offsets = [0, 32], sizes = [8, 256], strides = [1, 1]} : vector<8x290xf32> to vector<8x256xf32>
    %cst_350 = arith.constant 0.000000e+00 : f32
    %1008 = vector.shape_cast %980 : vector<1x256xi1> to vector<1x256xi1>
    %1009 = vector.broadcast %1008 : vector<1x256xi1> to vector<8x256xi1>
    %1010 = vector.broadcast %cst_350 : f32 to vector<8x256xf32>
    %1011 = arith.select %1009, %1007, %1010 : vector<8x256xi1>, vector<8x256xf32>
    %1012 = vector.extract_strided_slice %984 {offsets = [0, 33], sizes = [8, 256], strides = [1, 1]} : vector<8x290xf32> to vector<8x256xf32>
    %1013 = vector.extract_strided_slice %984 {offsets = [0, 34], sizes = [8, 256], strides = [1, 1]} : vector<8x290xf32> to vector<8x256xf32>
    %cst_351 = arith.constant 0.000000e+00 : f32
    %1014 = vector.shape_cast %982 : vector<1x256xi1> to vector<1x256xi1>
    %1015 = vector.broadcast %1014 : vector<1x256xi1> to vector<8x256xi1>
    %1016 = vector.broadcast %cst_351 : f32 to vector<8x256xf32>
    %1017 = arith.select %1015, %1013, %1016 : vector<8x256xi1>, vector<8x256xf32>
    %1018 = tpu.concatenate %989, %990, %995, %1000, %1001, %1006, %1011, %1012, %1017 in 0 : vector<8x256xf32>, vector<8x256xf32>, vector<8x256xf32>, vector<8x256xf32>, vector<8x256xf32>, vector<8x256xf32>, vector<8x256xf32>, vector<8x256xf32>, vector<8x256xf32> -> vector<72x256xf32>
    %c0_352 = arith.constant 0 : index
    %c0_353 = arith.constant 0 : index
    %1019 = vector.load %arg46[%c0_352, %c0_353] : memref<8x72xf32, #tpu.memory_space<vmem>>, vector<8x72xf32>
    %cst_354 = arith.constant dense<0.000000e+00> : vector<8x256xf32>
    %1020 = tpu.matmul %1019, %1018, %cst_354 {dimension_numbers = #tpu.dot_dimension_numbers<[1], [0], [0], [1], [0, 0, 1, 1], [], []>} : vector<8x72xf32>, vector<72x256xf32>, vector<8x256xf32> -> vector<8x256xf32>
    %c0_355 = arith.constant 0 : index
    %c0_356 = arith.constant 0 : index
    %1021 = vector.load %arg47[%c0_355, %c0_356] : memref<8x1xf32, #tpu.memory_space<vmem>>, vector<8x1xf32>
    %1022 = vector.broadcast %1021 : vector<8x1xf32> to vector<8x256xf32>
    %1023 = arith.addf %1020, %1022 : vector<8x256xf32>
    %cst_357 = arith.constant dense<0.000000e+00> : vector<8xf32>
    %1024 = vector.multi_reduction <add>, %1023, %cst_357 [1] : vector<8x256xf32> to vector<8xf32>
    %1025 = vector.shape_cast %1024 : vector<8xf32> to vector<8x1xf32>
    %cst_358 = arith.constant 3.906250e-03 : f32
    %1026 = vector.broadcast %cst_358 : f32 to vector<8x1xf32>
    %1027 = arith.mulf %1025, %1026 : vector<8x1xf32>
    %1028 = arith.mulf %1023, %1023 : vector<8x256xf32>
    %cst_359 = arith.constant dense<0.000000e+00> : vector<8xf32>
    %1029 = vector.multi_reduction <add>, %1028, %cst_359 [1] : vector<8x256xf32> to vector<8xf32>
    %1030 = vector.shape_cast %1029 : vector<8xf32> to vector<8x1xf32>
    %cst_360 = arith.constant 3.906250e-03 : f32
    %1031 = vector.broadcast %cst_360 : f32 to vector<8x1xf32>
    %1032 = arith.mulf %1030, %1031 : vector<8x1xf32>
    %1033 = arith.mulf %1027, %1027 : vector<8x1xf32>
    %1034 = arith.subf %1032, %1033 : vector<8x1xf32>
    %cst_361 = arith.constant 0.000000e+00 : f32
    %1035 = vector.broadcast %cst_361 : f32 to vector<8x1xf32>
    %1036 = arith.maximumf %1034, %1035 : vector<8x1xf32>
    %1037 = vector.broadcast %1027 : vector<8x1xf32> to vector<8x256xf32>
    %1038 = arith.subf %1023, %1037 : vector<8x256xf32>
    %cst_362 = arith.constant 9.99999974E-6 : f32
    %1039 = vector.broadcast %cst_362 : f32 to vector<8x1xf32>
    %1040 = arith.addf %1036, %1039 : vector<8x1xf32>
    %1041 = math.rsqrt %1040 : vector<8x1xf32>
    %1042 = vector.broadcast %1041 : vector<8x1xf32> to vector<8x256xf32>
    %1043 = arith.mulf %1038, %1042 : vector<8x256xf32>
    %c0_363 = arith.constant 0 : index
    %c0_364 = arith.constant 0 : index
    %1044 = vector.load %arg48[%c0_363, %c0_364] : memref<8x1xf32, #tpu.memory_space<vmem>>, vector<8x1xf32>
    %1045 = vector.broadcast %1044 : vector<8x1xf32> to vector<8x256xf32>
    %1046 = arith.mulf %1043, %1045 : vector<8x256xf32>
    %c0_365 = arith.constant 0 : index
    %c0_366 = arith.constant 0 : index
    %1047 = vector.load %arg49[%c0_365, %c0_366] : memref<8x1xf32, #tpu.memory_space<vmem>>, vector<8x1xf32>
    %1048 = vector.broadcast %1047 : vector<8x1xf32> to vector<8x256xf32>
    %1049 = arith.addf %1046, %1048 : vector<8x256xf32>
    %cst_367 = arith.constant 0.000000e+00 : f32
    %1050 = vector.broadcast %cst_367 : f32 to vector<8x256xf32>
    %1051 = arith.maximumf %1049, %1050 : vector<8x256xf32>
    %c0_368 = arith.constant 0 : index
    %c0_369 = arith.constant 0 : index
    %1052 = vector.load %arg50[%c0_368, %c0_369] : memref<4x8xf32, #tpu.memory_space<vmem>>, vector<4x8xf32>
    %cst_370 = arith.constant dense<0.000000e+00> : vector<4x256xf32>
    %1053 = tpu.matmul %1052, %1051, %cst_370 {dimension_numbers = #tpu.dot_dimension_numbers<[1], [0], [0], [1], [0, 0, 1, 1], [], []>} : vector<4x8xf32>, vector<8x256xf32>, vector<4x256xf32> -> vector<4x256xf32>
    %c0_371 = arith.constant 0 : index
    %c0_372 = arith.constant 0 : index
    %1054 = vector.load %arg51[%c0_371, %c0_372] : memref<4x1xf32, #tpu.memory_space<vmem>>, vector<4x1xf32>
    %1055 = vector.broadcast %1054 : vector<4x1xf32> to vector<4x256xf32>
    %1056 = arith.addf %1053, %1055 : vector<4x256xf32>
    %c0_373 = arith.constant 0 : index
    %c0_374 = arith.constant 0 : index
    %c0_375 = arith.constant 0 : index
    %1057 = vector.load %arg52[%c0_373, %c0_374, %c0_375] : memref<1x4x256xf32, #tpu.memory_space<vmem>>, vector<1x4x256xf32>
    %1058 = vector.shape_cast %1057 : vector<1x4x256xf32> to vector<4x256xf32>
    %1059 = vector.shape_cast %1056 : vector<4x256xf32> to vector<1x4x256xf32>
    tpu.vector_store %arg52[%c0_373, %c0_374, %c0_375], %1059 {strides = array<i32>} : memref<1x4x256xf32, #tpu.memory_space<vmem>>, vector<1x4x256xf32>,
    return
  }
  func.func @transform_0(%arg0: i32) -> (i32, i32, i32) {
    %c0_i32 = arith.constant 0 : i32
    %c0_i32_0 = arith.constant 0 : i32
    %c0_i32_1 = arith.constant 0 : i32
    return %arg0, %c0_i32, %c0_i32_0 : i32, i32, i32
  }
  func.func @transform_1(%arg0: i32) -> (i32, i32) {
    %c0_i32 = arith.constant 0 : i32
    %c0_i32_0 = arith.constant 0 : i32
    %c0_i32_1 = arith.constant 0 : i32
    return %c0_i32, %c0_i32_0 : i32, i32
  }
  func.func @transform_2(%arg0: i32) -> (i32, i32) {
    %c0_i32 = arith.constant 0 : i32
    %c0_i32_0 = arith.constant 0 : i32
    %c0_i32_1 = arith.constant 0 : i32
    return %c0_i32, %c0_i32_0 : i32, i32
  }
  func.func @transform_3(%arg0: i32) -> (i32, i32) {
    %c0_i32 = arith.constant 0 : i32
    %c0_i32_0 = arith.constant 0 : i32
    %c0_i32_1 = arith.constant 0 : i32
    return %c0_i32, %c0_i32_0 : i32, i32
  }
  func.func @transform_4(%arg0: i32) -> (i32, i32) {
    %c0_i32 = arith.constant 0 : i32
    %c0_i32_0 = arith.constant 0 : i32
    %c0_i32_1 = arith.constant 0 : i32
    return %c0_i32, %c0_i32_0 : i32, i32
  }
  func.func @transform_5(%arg0: i32) -> (i32, i32) {
    %c0_i32 = arith.constant 0 : i32
    %c0_i32_0 = arith.constant 0 : i32
    %c0_i32_1 = arith.constant 0 : i32
    return %c0_i32, %c0_i32_0 : i32, i32
  }
  func.func @transform_6(%arg0: i32) -> (i32, i32) {
    %c0_i32 = arith.constant 0 : i32
    %c0_i32_0 = arith.constant 0 : i32
    %c0_i32_1 = arith.constant 0 : i32
    return %c0_i32, %c0_i32_0 : i32, i32
  }
  func.func @transform_7(%arg0: i32) -> (i32, i32) {
    %c0_i32 = arith.constant 0 : i32
    %c0_i32_0 = arith.constant 0 : i32
    %c0_i32_1 = arith.constant 0 : i32
    return %c0_i32, %c0_i32_0 : i32, i32
  }
  func.func @transform_8(%arg0: i32) -> (i32, i32) {
    %c0_i32 = arith.constant 0 : i32
    %c0_i32_0 = arith.constant 0 : i32
    %c0_i32_1 = arith.constant 0 : i32
    return %c0_i32, %c0_i32_0 : i32, i32
  }
  func.func @transform_9(%arg0: i32) -> (i32, i32) {
    %c0_i32 = arith.constant 0 : i32
    %c0_i32_0 = arith.constant 0 : i32
    %c0_i32_1 = arith.constant 0 : i32
    return %c0_i32, %c0_i32_0 : i32, i32
  }
  func.func @transform_10(%arg0: i32) -> (i32, i32) {
    %c0_i32 = arith.constant 0 : i32
    %c0_i32_0 = arith.constant 0 : i32
    %c0_i32_1 = arith.constant 0 : i32
    return %c0_i32, %c0_i32_0 : i32, i32
  }
  func.func @transform_11(%arg0: i32) -> (i32, i32) {
    %c0_i32 = arith.constant 0 : i32
    %c0_i32_0 = arith.constant 0 : i32
    %c0_i32_1 = arith.constant 0 : i32
    return %c0_i32, %c0_i32_0 : i32, i32
  }
  func.func @transform_12(%arg0: i32) -> (i32, i32) {
    %c0_i32 = arith.constant 0 : i32
    %c0_i32_0 = arith.constant 0 : i32
    %c0_i32_1 = arith.constant 0 : i32
    return %c0_i32, %c0_i32_0 : i32, i32
  }
  func.func @transform_13(%arg0: i32) -> (i32, i32) {
    %c0_i32 = arith.constant 0 : i32
    %c0_i32_0 = arith.constant 0 : i32
    %c0_i32_1 = arith.constant 0 : i32
    return %c0_i32, %c0_i32_0 : i32, i32
  }
  func.func @transform_14(%arg0: i32) -> (i32, i32) {
    %c0_i32 = arith.constant 0 : i32
    %c0_i32_0 = arith.constant 0 : i32
    %c0_i32_1 = arith.constant 0 : i32
    return %c0_i32, %c0_i32_0 : i32, i32
  }
  func.func @transform_15(%arg0: i32) -> (i32, i32) {
    %c0_i32 = arith.constant 0 : i32
    %c0_i32_0 = arith.constant 0 : i32
    %c0_i32_1 = arith.constant 0 : i32
    return %c0_i32, %c0_i32_0 : i32, i32
  }
  func.func @transform_16(%arg0: i32) -> (i32, i32) {
    %c0_i32 = arith.constant 0 : i32
    %c0_i32_0 = arith.constant 0 : i32
    %c0_i32_1 = arith.constant 0 : i32
    return %c0_i32, %c0_i32_0 : i32, i32
  }
  func.func @transform_17(%arg0: i32) -> (i32, i32) {
    %c0_i32 = arith.constant 0 : i32
    %c0_i32_0 = arith.constant 0 : i32
    %c0_i32_1 = arith.constant 0 : i32
    return %c0_i32, %c0_i32_0 : i32, i32
  }
  func.func @transform_18(%arg0: i32) -> (i32, i32) {
    %c0_i32 = arith.constant 0 : i32
    %c0_i32_0 = arith.constant 0 : i32
    %c0_i32_1 = arith.constant 0 : i32
    return %c0_i32, %c0_i32_0 : i32, i32
  }
  func.func @transform_19(%arg0: i32) -> (i32, i32) {
    %c0_i32 = arith.constant 0 : i32
    %c0_i32_0 = arith.constant 0 : i32
    %c0_i32_1 = arith.constant 0 : i32
    return %c0_i32, %c0_i32_0 : i32, i32
  }
  func.func @transform_20(%arg0: i32) -> (i32, i32) {
    %c0_i32 = arith.constant 0 : i32
    %c0_i32_0 = arith.constant 0 : i32
    %c0_i32_1 = arith.constant 0 : i32
    return %c0_i32, %c0_i32_0 : i32, i32
  }
  func.func @transform_21(%arg0: i32) -> (i32, i32) {
    %c0_i32 = arith.constant 0 : i32
    %c0_i32_0 = arith.constant 0 : i32
    %c0_i32_1 = arith.constant 0 : i32
    return %c0_i32, %c0_i32_0 : i32, i32
  }
  func.func @transform_22(%arg0: i32) -> (i32, i32) {
    %c0_i32 = arith.constant 0 : i32
    %c0_i32_0 = arith.constant 0 : i32
    %c0_i32_1 = arith.constant 0 : i32
    return %c0_i32, %c0_i32_0 : i32, i32
  }
  func.func @transform_23(%arg0: i32) -> (i32, i32) {
    %c0_i32 = arith.constant 0 : i32
    %c0_i32_0 = arith.constant 0 : i32
    %c0_i32_1 = arith.constant 0 : i32
    return %c0_i32, %c0_i32_0 : i32, i32
  }
  func.func @transform_24(%arg0: i32) -> (i32, i32) {
    %c0_i32 = arith.constant 0 : i32
    %c0_i32_0 = arith.constant 0 : i32
    %c0_i32_1 = arith.constant 0 : i32
    return %c0_i32, %c0_i32_0 : i32, i32
  }
  func.func @transform_25(%arg0: i32) -> (i32, i32) {
    %c0_i32 = arith.constant 0 : i32
    %c0_i32_0 = arith.constant 0 : i32
    %c0_i32_1 = arith.constant 0 : i32
    return %c0_i32, %c0_i32_0 : i32, i32
  }
  func.func @transform_26(%arg0: i32) -> (i32, i32) {
    %c0_i32 = arith.constant 0 : i32
    %c0_i32_0 = arith.constant 0 : i32
    %c0_i32_1 = arith.constant 0 : i32
    return %c0_i32, %c0_i32_0 : i32, i32
  }
  func.func @transform_27(%arg0: i32) -> (i32, i32) {
    %c0_i32 = arith.constant 0 : i32
    %c0_i32_0 = arith.constant 0 : i32
    %c0_i32_1 = arith.constant 0 : i32
    return %c0_i32, %c0_i32_0 : i32, i32
  }
  func.func @transform_28(%arg0: i32) -> (i32, i32) {
    %c0_i32 = arith.constant 0 : i32
    %c0_i32_0 = arith.constant 0 : i32
    %c0_i32_1 = arith.constant 0 : i32
    return %c0_i32, %c0_i32_0 : i32, i32
  }
  func.func @transform_29(%arg0: i32) -> (i32, i32, i32) {
    %c0_i32 = arith.constant 0 : i32
    %c0_i32_0 = arith.constant 0 : i32
    %c0_i32_1 = arith.constant 0 : i32
    %c0_i32_2 = arith.constant 0 : i32
    return %c0_i32, %c0_i32_0, %c0_i32_1 : i32, i32, i32
  }
  func.func @transform_30(%arg0: i32) -> (i32, i32) {
    %c0_i32 = arith.constant 0 : i32
    %c0_i32_0 = arith.constant 0 : i32
    %c0_i32_1 = arith.constant 0 : i32
    return %c0_i32, %c0_i32_0 : i32, i32
  }
  func.func @transform_31(%arg0: i32) -> (i32, i32) {
    %c0_i32 = arith.constant 0 : i32
    %c0_i32_0 = arith.constant 0 : i32
    %c0_i32_1 = arith.constant 0 : i32
    return %c0_i32, %c0_i32_0 : i32, i32
  }
  func.func @transform_32(%arg0: i32) -> (i32, i32) {
    %c0_i32 = arith.constant 0 : i32
    %c0_i32_0 = arith.constant 0 : i32
    %c0_i32_1 = arith.constant 0 : i32
    return %c0_i32, %c0_i32_0 : i32, i32
  }
  func.func @transform_33(%arg0: i32) -> (i32, i32) {
    %c0_i32 = arith.constant 0 : i32
    %c0_i32_0 = arith.constant 0 : i32
    %c0_i32_1 = arith.constant 0 : i32
    return %c0_i32, %c0_i32_0 : i32, i32
  }
  func.func @transform_34(%arg0: i32) -> (i32, i32) {
    %c0_i32 = arith.constant 0 : i32
    %c0_i32_0 = arith.constant 0 : i32
    %c0_i32_1 = arith.constant 0 : i32
    return %c0_i32, %c0_i32_0 : i32, i32
  }
  func.func @transform_35(%arg0: i32) -> (i32, i32) {
    %c0_i32 = arith.constant 0 : i32
    %c0_i32_0 = arith.constant 0 : i32
    %c0_i32_1 = arith.constant 0 : i32
    return %c0_i32, %c0_i32_0 : i32, i32
  }
  func.func @transform_36(%arg0: i32) -> (i32, i32) {
    %c0_i32 = arith.constant 0 : i32
    %c0_i32_0 = arith.constant 0 : i32
    %c0_i32_1 = arith.constant 0 : i32
    return %c0_i32, %c0_i32_0 : i32, i32
  }
  func.func @transform_37(%arg0: i32) -> (i32, i32) {
    %c0_i32 = arith.constant 0 : i32
    %c0_i32_0 = arith.constant 0 : i32
    %c0_i32_1 = arith.constant 0 : i32
    return %c0_i32, %c0_i32_0 : i32, i32
  }
  func.func @transform_38(%arg0: i32) -> (i32, i32) {
    %c0_i32 = arith.constant 0 : i32
    %c0_i32_0 = arith.constant 0 : i32
    %c0_i32_1 = arith.constant 0 : i32
    return %c0_i32, %c0_i32_0 : i32, i32
  }
  func.func @transform_39(%arg0: i32) -> (i32, i32) {
    %c0_i32 = arith.constant 0 : i32
    %c0_i32_0 = arith.constant 0 : i32
    %c0_i32_1 = arith.constant 0 : i32
    return %c0_i32, %c0_i32_0 : i32, i32
  }
  func.func @transform_40(%arg0: i32) -> (i32, i32, i32) {
    %c0_i32 = arith.constant 0 : i32
    %c0_i32_0 = arith.constant 0 : i32
    %c0_i32_1 = arith.constant 0 : i32
    %c0_i32_2 = arith.constant 0 : i32
    return %c0_i32, %c0_i32_0, %c0_i32_1 : i32, i32, i32
  }
  func.func @transform_41(%arg0: i32) -> (i32, i32) {
    %c0_i32 = arith.constant 0 : i32
    %c0_i32_0 = arith.constant 0 : i32
    %c0_i32_1 = arith.constant 0 : i32
    return %c0_i32, %c0_i32_0 : i32, i32
  }
  func.func @transform_42(%arg0: i32) -> (i32, i32) {
    %c0_i32 = arith.constant 0 : i32
    %c0_i32_0 = arith.constant 0 : i32
    %c0_i32_1 = arith.constant 0 : i32
    return %c0_i32, %c0_i32_0 : i32, i32
  }
  func.func @transform_43(%arg0: i32) -> (i32, i32) {
    %c0_i32 = arith.constant 0 : i32
    %c0_i32_0 = arith.constant 0 : i32
    %c0_i32_1 = arith.constant 0 : i32
    return %c0_i32, %c0_i32_0 : i32, i32
  }
  func.func @transform_44(%arg0: i32) -> (i32, i32) {
    %c0_i32 = arith.constant 0 : i32
    %c0_i32_0 = arith.constant 0 : i32
    %c0_i32_1 = arith.constant 0 : i32
    return %c0_i32, %c0_i32_0 : i32, i32
  }
  func.func @transform_45(%arg0: i32) -> (i32, i32) {
    %c0_i32 = arith.constant 0 : i32
    %c0_i32_0 = arith.constant 0 : i32
    %c0_i32_1 = arith.constant 0 : i32
    return %c0_i32, %c0_i32_0 : i32, i32
  }
  func.func @transform_46(%arg0: i32) -> (i32, i32) {
    %c0_i32 = arith.constant 0 : i32
    %c0_i32_0 = arith.constant 0 : i32
    %c0_i32_1 = arith.constant 0 : i32
    return %c0_i32, %c0_i32_0 : i32, i32
  }
  func.func @transform_47(%arg0: i32) -> (i32, i32) {
    %c0_i32 = arith.constant 0 : i32
    %c0_i32_0 = arith.constant 0 : i32
    %c0_i32_1 = arith.constant 0 : i32
    return %c0_i32, %c0_i32_0 : i32, i32
  }
  func.func @transform_48(%arg0: i32) -> (i32, i32) {
    %c0_i32 = arith.constant 0 : i32
    %c0_i32_0 = arith.constant 0 : i32
    %c0_i32_1 = arith.constant 0 : i32
    return %c0_i32, %c0_i32_0 : i32, i32
  }
  func.func @transform_49(%arg0: i32) -> (i32, i32) {
    %c0_i32 = arith.constant 0 : i32
    %c0_i32_0 = arith.constant 0 : i32
    %c0_i32_1 = arith.constant 0 : i32
    return %c0_i32, %c0_i32_0 : i32, i32
  }
  func.func @transform_50(%arg0: i32) -> (i32, i32) {
    %c0_i32 = arith.constant 0 : i32
    %c0_i32_0 = arith.constant 0 : i32
    %c0_i32_1 = arith.constant 0 : i32
    return %c0_i32, %c0_i32_0 : i32, i32
  }
  func.func @transform_51(%arg0: i32) -> (i32, i32, i32) {
    %c0_i32 = arith.constant 0 : i32
    %c0_i32_0 = arith.constant 0 : i32
    %c0_i32_1 = arith.constant 0 : i32
    return %arg0, %c0_i32, %c0_i32_0 : i32, i32, i32
  }
}

</mosaic_0001>

<llo_original>
// kernel: forward.1
$region0: #{forward.1}
  #allocation0 [shape = 'u32[]', space=smem, size = 0x4, offset = 0x4, fixed_abs, tag = 'smem constant byte address 0x4 - core index']
  #allocation1 [shape = 'u32[144,128]{1,0:T(1,128)}', space=vmem, size = 0x12000, scoped, tag = 'internal scratch']
  %s0 = inlined_call_operand.smem [shape: u32[52], index: -1, kind: input, shape index: {}]
  %s1 = sld [smem:[%s0]]
  %s2 = scalar_lea.smem %s0, 1
  %s3 = sld [smem:[%s2]]
  %s4 = scalar_lea.smem %s0, 2
  %s5 = sld [smem:[%s4]]
  %s6 = scalar_lea.smem %s0, 3
  %s7 = sld [smem:[%s6]]
  %s8 = scalar_lea.smem %s0, 4
  %s9 = sld [smem:[%s8]]
  %s10 = scalar_lea.smem %s0, 5
  %s11 = sld [smem:[%s10]]
  %s12 = scalar_lea.smem %s0, 6
  %s13 = sld [smem:[%s12]]
  %s14 = scalar_lea.smem %s0, 7
  %s15 = sld [smem:[%s14]]
  %s16 = scalar_lea.smem %s0, 8
  %s17 = sld [smem:[%s16]]
  %s18 = scalar_lea.smem %s0, 9
  %s19 = sld [smem:[%s18]]
  %s20 = scalar_lea.smem %s0, 10
  %s21 = sld [smem:[%s20]]
  %s22 = scalar_lea.smem %s0, 11
  %s23 = sld [smem:[%s22]]
  %s24 = scalar_lea.smem %s0, 12
  %s25 = sld [smem:[%s24]]
  %s26 = scalar_lea.smem %s0, 13
  %s27 = sld [smem:[%s26]]
  %s28 = scalar_lea.smem %s0, 14
  %s29 = sld [smem:[%s28]]
  %s30 = scalar_lea.smem %s0, 15
  %s31 = sld [smem:[%s30]]
  %s32 = scalar_lea.smem %s0, 16
  %s33 = sld [smem:[%s32]]
  %s34 = scalar_lea.smem %s0, 17
  %s35 = sld [smem:[%s34]]
  %s36 = scalar_lea.smem %s0, 18
  %s37 = sld [smem:[%s36]]
  %s38 = scalar_lea.smem %s0, 19
  %s39 = sld [smem:[%s38]]
  %s40 = scalar_lea.smem %s0, 20
  %s41 = sld [smem:[%s40]]
  %s42 = scalar_lea.smem %s0, 21
  %s43 = sld [smem:[%s42]]
  %s44 = scalar_lea.smem %s0, 22
  %s45 = sld [smem:[%s44]]
  %s46 = scalar_lea.smem %s0, 23
  %s47 = sld [smem:[%s46]]
  %s48 = scalar_lea.smem %s0, 24
  %s49 = sld [smem:[%s48]]
  %s50 = scalar_lea.smem %s0, 25
  %s51 = sld [smem:[%s50]]
  %s52 = scalar_lea.smem %s0, 26
  %s53 = sld [smem:[%s52]]
  %s54 = scalar_lea.smem %s0, 27
  %s55 = sld [smem:[%s54]]
  %s56 = scalar_lea.smem %s0, 28
  %s57 = sld [smem:[%s56]]
  %s58 = scalar_lea.smem %s0, 29
  %s59 = sld [smem:[%s58]]
  %s60 = scalar_lea.smem %s0, 30
  %s61 = sld [smem:[%s60]]
  %s62 = scalar_lea.smem %s0, 31
  %s63 = sld [smem:[%s62]]
  %s64 = scalar_lea.smem %s0, 32
  %s65 = sld [smem:[%s64]]
  %s66 = scalar_lea.smem %s0, 33
  %s67 = sld [smem:[%s66]]
  %s68 = scalar_lea.smem %s0, 34
  %s69 = sld [smem:[%s68]]
  %s70 = scalar_lea.smem %s0, 35
  %s71 = sld [smem:[%s70]]
  %s72 = scalar_lea.smem %s0, 36
  %s73 = sld [smem:[%s72]]
  %s74 = scalar_lea.smem %s0, 37
  %s75 = sld [smem:[%s74]]
  %s76 = scalar_lea.smem %s0, 38
  %s77 = sld [smem:[%s76]]
  %s78 = scalar_lea.smem %s0, 39
  %s79 = sld [smem:[%s78]]
  %s80 = scalar_lea.smem %s0, 40
  %s81 = sld [smem:[%s80]]
  %s82 = scalar_lea.smem %s0, 41
  %s83 = sld [smem:[%s82]]
  %s84 = scalar_lea.smem %s0, 42
  %s85 = sld [smem:[%s84]]
  %s86 = scalar_lea.smem %s0, 43
  %s87 = sld [smem:[%s86]]
  %s88 = scalar_lea.smem %s0, 44
  %s89 = sld [smem:[%s88]]
  %s90 = scalar_lea.smem %s0, 45
  %s91 = sld [smem:[%s90]]
  %s92 = scalar_lea.smem %s0, 46
  %s93 = sld [smem:[%s92]]
  %s94 = scalar_lea.smem %s0, 47
  %s95 = sld [smem:[%s94]]
  %s96 = scalar_lea.smem %s0, 48
  %s97 = sld [smem:[%s96]]
  %s98 = scalar_lea.smem %s0, 49
  %s99 = sld [smem:[%s98]]
  %s100 = scalar_lea.smem %s0, 50
  %s101 = sld [smem:[%s100]]
  %s102 = scalar_lea.smem %s0, 51
  %s103 = sld [smem:[%s102]]
  %s104 = sld [smem:[#allocation0]]
  $region237: #{forward.1} parent=0
    _
  %s106 = ssub.s32 1, %s104
  %s107 = scalar_select 0, %s106, %s104
  loop: start=0, step=1, limit=4
  $region2: #{forward.1} parent=0 // loop_pre_header
    _
  $region3: #{forward.1} parent=0 // loop_header
    %s109 = sphi 0, %s113
    %p110 = scmp.ge.s32.totalorder %s109, 4
    %s119 = sphi 0, %s121
    %s122 = sphi 0, %s119
    %s123 = sphi 0, %s122
    %s139 = sphi 0, %s123
    %s143 = sphi 0, %s143
    %s145 = sphi 0, %s143
    %s146 = sphi 0, %s145
    %s160 = sphi 0, %s146
    %s164 = sphi 0, %s164
    %s166 = sphi 0, %s164
    %s167 = sphi 0, %s166
    %s181 = sphi 0, %s167
    %s185 = sphi 0, %s185
    %s187 = sphi 0, %s185
    %s188 = sphi 0, %s187
    %s202 = sphi 0, %s188
    %s206 = sphi 0, %s206
    %s208 = sphi 0, %s206
    %s209 = sphi 0, %s208
    %s223 = sphi 0, %s209
    %s227 = sphi 0, %s227
    %s229 = sphi 0, %s227
    %s230 = sphi 0, %s229
    %s244 = sphi 0, %s230
    %s248 = sphi 0, %s248
    %s250 = sphi 0, %s248
    %s251 = sphi 0, %s250
    %s265 = sphi 0, %s251
    %s269 = sphi 0, %s269
    %s271 = sphi 0, %s269
    %s272 = sphi 0, %s271
    %s286 = sphi 0, %s272
    %s290 = sphi 0, %s290
    %s292 = sphi 0, %s290
    %s293 = sphi 0, %s292
    %s307 = sphi 0, %s293
    %s311 = sphi 0, %s311
    %s313 = sphi 0, %s311
    %s314 = sphi 0, %s313
    %s328 = sphi 0, %s314
    %s332 = sphi 0, %s332
    %s334 = sphi 0, %s332
    %s335 = sphi 0, %s334
    %s349 = sphi 0, %s335
    %s353 = sphi 0, %s353
    %s355 = sphi 0, %s353
    %s356 = sphi 0, %s355
    %s370 = sphi 0, %s356
    %s374 = sphi 0, %s374
    %s376 = sphi 0, %s374
    %s377 = sphi 0, %s376
    %s391 = sphi 0, %s377
    %s395 = sphi 0, %s395
    %s397 = sphi 0, %s395
    %s398 = sphi 0, %s397
    %s412 = sphi 0, %s398
    %s416 = sphi 0, %s416
    %s418 = sphi 0, %s416
    %s419 = sphi 0, %s418
    %s433 = sphi 0, %s419
    %s437 = sphi 0, %s437
    %s439 = sphi 0, %s437
    %s440 = sphi 0, %s439
    %s454 = sphi 0, %s440
    %s458 = sphi 0, %s458
    %s460 = sphi 0, %s458
    %s461 = sphi 0, %s460
    %s475 = sphi 0, %s461
    %s479 = sphi 0, %s479
    %s481 = sphi 0, %s479
    %s482 = sphi 0, %s481
    %s496 = sphi 0, %s482
    %s500 = sphi 0, %s500
    %s502 = sphi 0, %s500
    %s503 = sphi 0, %s502
    %s517 = sphi 0, %s503
    %s521 = sphi 0, %s521
    %s523 = sphi 0, %s521
    %s524 = sphi 0, %s523
    %s538 = sphi 0, %s524
    %s542 = sphi 0, %s542
    %s544 = sphi 0, %s542
    %s545 = sphi 0, %s544
    %s559 = sphi 0, %s545
    %s563 = sphi 0, %s563
    %s565 = sphi 0, %s563
    %s566 = sphi 0, %s565
    %s580 = sphi 0, %s566
    %s584 = sphi 0, %s584
    %s586 = sphi 0, %s584
    %s587 = sphi 0, %s586
    %s601 = sphi 0, %s587
    %s605 = sphi 0, %s605
    %s607 = sphi 0, %s605
    %s608 = sphi 0, %s607
    %s622 = sphi 0, %s608
    %s626 = sphi 0, %s626
    %s628 = sphi 0, %s626
    %s629 = sphi 0, %s628
    %s643 = sphi 0, %s629
    %s647 = sphi 0, %s647
    %s649 = sphi 0, %s647
    %s650 = sphi 0, %s649
    %s664 = sphi 0, %s650
    %s668 = sphi 0, %s668
    %s670 = sphi 0, %s668
    %s671 = sphi 0, %s670
    %s685 = sphi 0, %s671
    %s689 = sphi 0, %s689
    %s691 = sphi 0, %s689
    %s692 = sphi 0, %s691
    %s706 = sphi 0, %s692
    %s710 = sphi 0, %s710
    %s712 = sphi 0, %s710
    %s713 = sphi 0, %s712
    %s727 = sphi 0, %s713
    %s731 = sphi 0, %s731
    %s733 = sphi 0, %s731
    %s734 = sphi 0, %s733
    %s748 = sphi 0, %s734
    %s752 = sphi 0, %s752
    %s754 = sphi 0, %s752
    %s755 = sphi 0, %s754
    %s769 = sphi 0, %s755
    %s773 = sphi 0, %s773
    %s775 = sphi 0, %s773
    %s776 = sphi 0, %s775
    %s790 = sphi 0, %s776
    %s794 = sphi 0, %s794
    %s796 = sphi 0, %s794
    %s797 = sphi 0, %s796
    %s811 = sphi 0, %s797
    %s815 = sphi 0, %s815
    %s817 = sphi 0, %s815
    %s818 = sphi 0, %s817
    %s832 = sphi 0, %s818
    %s836 = sphi 0, %s836
    %s838 = sphi 0, %s836
    %s839 = sphi 0, %s838
    %s853 = sphi 0, %s839
    %s857 = sphi 0, %s857
    %s859 = sphi 0, %s857
    %s860 = sphi 0, %s859
    %s874 = sphi 0, %s860
    %s878 = sphi 0, %s878
    %s880 = sphi 0, %s878
    %s881 = sphi 0, %s880
    %s895 = sphi 0, %s881
    %s899 = sphi 0, %s899
    %s901 = sphi 0, %s899
    %s902 = sphi 0, %s901
    %s916 = sphi 0, %s902
    %s920 = sphi 0, %s920
    %s922 = sphi 0, %s920
    %s923 = sphi 0, %s922
    %s937 = sphi 0, %s923
    %s941 = sphi 0, %s941
    %s943 = sphi 0, %s941
    %s944 = sphi 0, %s943
    %s958 = sphi 0, %s944
    %s962 = sphi 0, %s962
    %s964 = sphi 0, %s962
    %s965 = sphi 0, %s964
    %s979 = sphi 0, %s965
    %s983 = sphi 0, %s983
    %s985 = sphi 0, %s983
    %s986 = sphi 0, %s985
    %s1000 = sphi 0, %s986
    %s1004 = sphi 0, %s1004
    %s1006 = sphi 0, %s1004
    %s1007 = sphi 0, %s1006
    %s1021 = sphi 0, %s1007
    %s1025 = sphi 0, %s1025
    %s1027 = sphi 0, %s1025
    %s1028 = sphi 0, %s1027
    %s1042 = sphi 0, %s1028
    %s1046 = sphi 0, %s1046
    %s1048 = sphi 0, %s1046
    %s1049 = sphi 0, %s1048
    %s1063 = sphi 0, %s1049
    %s1067 = sphi 0, %s1067
    %s1069 = sphi 0, %s1067
    %s1070 = sphi 0, %s1069
    %s1084 = sphi 0, %s1070
    %s1088 = sphi 0, %s1088
    %s1090 = sphi 0, %s1088
    %s1091 = sphi 0, %s1090
    %s1105 = sphi 0, %s1091
    %s1109 = sphi 0, %s1109
    %s1111 = sphi 0, %s1109
    %s1112 = sphi 0, %s1111
    %s1126 = sphi 0, %s1112
    %s1130 = sphi 0, %s1130
    %s1132 = sphi 0, %s1130
    %s1133 = sphi 0, %s1132
    %s1147 = sphi 0, %s1133
    %s1151 = sphi 0, %s1151
    %s1153 = sphi 0, %s1151
    %s1154 = sphi 0, %s1153
    %s1168 = sphi 0, %s1154
    %s1172 = sphi 0, %s1172
    %s1174 = sphi 0, %s1172
    %s1175 = sphi 0, %s1174
    %s1189 = sphi 0, %s1175
    %s1195 = sphi 0, %s1197
    %s1198 = sphi 0, %s1195
    %s1199 = sphi 0, %s1198
    %s1215 = sphi 0, %s1199
  $region4: #{forward.1} parent=0 // loop_header_branch
    %112 = sbr.rel (%p110) target = $region8
  $region5: #{forward.1} parent=0 // loop_body
    %s114 = ssub.s32 %s109, 1
    %s115 = ssub.s32 %s109, 2
    %s116 = sadd.s32 %s109, 1
    %s117 = ssub.s32 %s109, %s116
    %p118 = scmp.eq.s32.totalorder %s117, 0
    %s120 = sadd.s32 %s119, 1
    %s121 = scalar_select %p118, %s119, %s120
    %p124 = pneg %p118
    %p125 = scmp.eq.s32.totalorder %s109, 1
    %p126 = por %p124, %p125
    %p127 = scmp.ne.s32.totalorder %s119, %s122
    %p128 = scmp.eq.s32.totalorder %s109, 0
    %p129 = por %p127, %p128
    %p130 = scmp.ne.s32.totalorder %s119, %s122
    %p131 = scmp.eq.s32.totalorder %s114, 1
    %p132 = por %p130, %p131
    %p133 = scmp.ne.s32.totalorder %s122, %s123
    %p134 = scmp.eq.s32.totalorder %s114, 0
    %p135 = por %p133, %p134
    %p136 = scmp.ne.s32.totalorder %s122, %s123
    %p137 = scmp.eq.s32.totalorder %s115, 1
    %p138 = por %p136, %p137
    %p140 = scmp.ne.s32.totalorder %s123, %s139
    %p141 = scmp.eq.s32.totalorder %s115, 0
    %p142 = por %p140, %p141
    %s144 = sadd.s32 %s143, 1
    %p147 = scmp.eq.s32.totalorder %s109, 1
    %p148 = scmp.ne.s32.totalorder %s143, %s145
    %p149 = scmp.eq.s32.totalorder %s109, 0
    %p150 = por %p148, %p149
    %p151 = scmp.ne.s32.totalorder %s143, %s145
    %p152 = scmp.eq.s32.totalorder %s114, 1
    %p153 = por %p151, %p152
    %p154 = scmp.ne.s32.totalorder %s145, %s146
    %p155 = scmp.eq.s32.totalorder %s114, 0
    %p156 = por %p154, %p155
    %p157 = scmp.ne.s32.totalorder %s145, %s146
    %p158 = scmp.eq.s32.totalorder %s115, 1
    %p159 = por %p157, %p158
    %p161 = scmp.ne.s32.totalorder %s146, %s160
    %p162 = scmp.eq.s32.totalorder %s115, 0
    %p163 = por %p161, %p162
    %s165 = sadd.s32 %s164, 1
    %p168 = scmp.eq.s32.totalorder %s109, 1
    %p169 = scmp.ne.s32.totalorder %s164, %s166
    %p170 = scmp.eq.s32.totalorder %s109, 0
    %p171 = por %p169, %p170
    %p172 = scmp.ne.s32.totalorder %s164, %s166
    %p173 = scmp.eq.s32.totalorder %s114, 1
    %p174 = por %p172, %p173
    %p175 = scmp.ne.s32.totalorder %s166, %s167
    %p176 = scmp.eq.s32.totalorder %s114, 0
    %p177 = por %p175, %p176
    %p178 = scmp.ne.s32.totalorder %s166, %s167
    %p179 = scmp.eq.s32.totalorder %s115, 1
    %p180 = por %p178, %p179
    %p182 = scmp.ne.s32.totalorder %s167, %s181
    %p183 = scmp.eq.s32.totalorder %s115, 0
    %p184 = por %p182, %p183
    %s186 = sadd.s32 %s185, 1
    %p189 = scmp.eq.s32.totalorder %s109, 1
    %p190 = scmp.ne.s32.totalorder %s185, %s187
    %p191 = scmp.eq.s32.totalorder %s109, 0
    %p192 = por %p190, %p191
    %p193 = scmp.ne.s32.totalorder %s185, %s187
    %p194 = scmp.eq.s32.totalorder %s114, 1
    %p195 = por %p193, %p194
    %p196 = scmp.ne.s32.totalorder %s187, %s188
    %p197 = scmp.eq.s32.totalorder %s114, 0
    %p198 = por %p196, %p197
    %p199 = scmp.ne.s32.totalorder %s187, %s188
    %p200 = scmp.eq.s32.totalorder %s115, 1
    %p201 = por %p199, %p200
    %p203 = scmp.ne.s32.totalorder %s188, %s202
    %p204 = scmp.eq.s32.totalorder %s115, 0
    %p205 = por %p203, %p204
    %s207 = sadd.s32 %s206, 1
    %p210 = scmp.eq.s32.totalorder %s109, 1
    %p211 = scmp.ne.s32.totalorder %s206, %s208
    %p212 = scmp.eq.s32.totalorder %s109, 0
    %p213 = por %p211, %p212
    %p214 = scmp.ne.s32.totalorder %s206, %s208
    %p215 = scmp.eq.s32.totalorder %s114, 1
    %p216 = por %p214, %p215
    %p217 = scmp.ne.s32.totalorder %s208, %s209
    %p218 = scmp.eq.s32.totalorder %s114, 0
    %p219 = por %p217, %p218
    %p220 = scmp.ne.s32.totalorder %s208, %s209
    %p221 = scmp.eq.s32.totalorder %s115, 1
    %p222 = por %p220, %p221
    %p224 = scmp.ne.s32.totalorder %s209, %s223
    %p225 = scmp.eq.s32.totalorder %s115, 0
    %p226 = por %p224, %p225
    %s228 = sadd.s32 %s227, 1
    %p231 = scmp.eq.s32.totalorder %s109, 1
    %p232 = scmp.ne.s32.totalorder %s227, %s229
    %p233 = scmp.eq.s32.totalorder %s109, 0
    %p234 = por %p232, %p233
    %p235 = scmp.ne.s32.totalorder %s227, %s229
    %p236 = scmp.eq.s32.totalorder %s114, 1
    %p237 = por %p235, %p236
    %p238 = scmp.ne.s32.totalorder %s229, %s230
    %p239 = scmp.eq.s32.totalorder %s114, 0
    %p240 = por %p238, %p239
    %p241 = scmp.ne.s32.totalorder %s229, %s230
    %p242 = scmp.eq.s32.totalorder %s115, 1
    %p243 = por %p241, %p242
    %p245 = scmp.ne.s32.totalorder %s230, %s244
    %p246 = scmp.eq.s32.totalorder %s115, 0
    %p247 = por %p245, %p246
    %s249 = sadd.s32 %s248, 1
    %p252 = scmp.eq.s32.totalorder %s109, 1
    %p253 = scmp.ne.s32.totalorder %s248, %s250
    %p254 = scmp.eq.s32.totalorder %s109, 0
    %p255 = por %p253, %p254
    %p256 = scmp.ne.s32.totalorder %s248, %s250
    %p257 = scmp.eq.s32.totalorder %s114, 1
    %p258 = por %p256, %p257
    %p259 = scmp.ne.s32.totalorder %s250, %s251
    %p260 = scmp.eq.s32.totalorder %s114, 0
    %p261 = por %p259, %p260
    %p262 = scmp.ne.s32.totalorder %s250, %s251
    %p263 = scmp.eq.s32.totalorder %s115, 1
    %p264 = por %p262, %p263
    %p266 = scmp.ne.s32.totalorder %s251, %s265
    %p267 = scmp.eq.s32.totalorder %s115, 0
    %p268 = por %p266, %p267
    %s270 = sadd.s32 %s269, 1
    %p273 = scmp.eq.s32.totalorder %s109, 1
    %p274 = scmp.ne.s32.totalorder %s269, %s271
    %p275 = scmp.eq.s32.totalorder %s109, 0
    %p276 = por %p274, %p275
    %p277 = scmp.ne.s32.totalorder %s269, %s271
    %p278 = scmp.eq.s32.totalorder %s114, 1
    %p279 = por %p277, %p278
    %p280 = scmp.ne.s32.totalorder %s271, %s272
    %p281 = scmp.eq.s32.totalorder %s114, 0
    %p282 = por %p280, %p281
    %p283 = scmp.ne.s32.totalorder %s271, %s272
    %p284 = scmp.eq.s32.totalorder %s115, 1
    %p285 = por %p283, %p284
    %p287 = scmp.ne.s32.totalorder %s272, %s286
    %p288 = scmp.eq.s32.totalorder %s115, 0
    %p289 = por %p287, %p288
    %s291 = sadd.s32 %s290, 1
    %p294 = scmp.eq.s32.totalorder %s109, 1
    %p295 = scmp.ne.s32.totalorder %s290, %s292
    %p296 = scmp.eq.s32.totalorder %s109, 0
    %p297 = por %p295, %p296
    %p298 = scmp.ne.s32.totalorder %s290, %s292
    %p299 = scmp.eq.s32.totalorder %s114, 1
    %p300 = por %p298, %p299
    %p301 = scmp.ne.s32.totalorder %s292, %s293
    %p302 = scmp.eq.s32.totalorder %s114, 0
    %p303 = por %p301, %p302
    %p304 = scmp.ne.s32.totalorder %s292, %s293
    %p305 = scmp.eq.s32.totalorder %s115, 1
    %p306 = por %p304, %p305
    %p308 = scmp.ne.s32.totalorder %s293, %s307
    %p309 = scmp.eq.s32.totalorder %s115, 0
    %p310 = por %p308, %p309
    %s312 = sadd.s32 %s311, 1
    %p315 = scmp.eq.s32.totalorder %s109, 1
    %p316 = scmp.ne.s32.totalorder %s311, %s313
    %p317 = scmp.eq.s32.totalorder %s109, 0
    %p318 = por %p316, %p317
    %p319 = scmp.ne.s32.totalorder %s311, %s313
    %p320 = scmp.eq.s32.totalorder %s114, 1
    %p321 = por %p319, %p320
    %p322 = scmp.ne.s32.totalorder %s313, %s314
    %p323 = scmp.eq.s32.totalorder %s114, 0
    %p324 = por %p322, %p323
    %p325 = scmp.ne.s32.totalorder %s313, %s314
    %p326 = scmp.eq.s32.totalorder %s115, 1
    %p327 = por %p325, %p326
    %p329 = scmp.ne.s32.totalorder %s314, %s328
    %p330 = scmp.eq.s32.totalorder %s115, 0
    %p331 = por %p329, %p330
    %s333 = sadd.s32 %s332, 1
    %p336 = scmp.eq.s32.totalorder %s109, 1
    %p337 = scmp.ne.s32.totalorder %s332, %s334
    %p338 = scmp.eq.s32.totalorder %s109, 0
    %p339 = por %p337, %p338
    %p340 = scmp.ne.s32.totalorder %s332, %s334
    %p341 = scmp.eq.s32.totalorder %s114, 1
    %p342 = por %p340, %p341
    %p343 = scmp.ne.s32.totalorder %s334, %s335
    %p344 = scmp.eq.s32.totalorder %s114, 0
    %p345 = por %p343, %p344
    %p346 = scmp.ne.s32.totalorder %s334, %s335
    %p347 = scmp.eq.s32.totalorder %s115, 1
    %p348 = por %p346, %p347
    %p350 = scmp.ne.s32.totalorder %s335, %s349
    %p351 = scmp.eq.s32.totalorder %s115, 0
    %p352 = por %p350, %p351
    %s354 = sadd.s32 %s353, 1
    %p357 = scmp.eq.s32.totalorder %s109, 1
    %p358 = scmp.ne.s32.totalorder %s353, %s355
    %p359 = scmp.eq.s32.totalorder %s109, 0
    %p360 = por %p358, %p359
    %p361 = scmp.ne.s32.totalorder %s353, %s355
    %p362 = scmp.eq.s32.totalorder %s114, 1
    %p363 = por %p361, %p362
    %p364 = scmp.ne.s32.totalorder %s355, %s356
    %p365 = scmp.eq.s32.totalorder %s114, 0
    %p366 = por %p364, %p365
    %p367 = scmp.ne.s32.totalorder %s355, %s356
    %p368 = scmp.eq.s32.totalorder %s115, 1
    %p369 = por %p367, %p368
    %p371 = scmp.ne.s32.totalorder %s356, %s370
    %p372 = scmp.eq.s32.totalorder %s115, 0
    %p373 = por %p371, %p372
    %s375 = sadd.s32 %s374, 1
    %p378 = scmp.eq.s32.totalorder %s109, 1
    %p379 = scmp.ne.s32.totalorder %s374, %s376
    %p380 = scmp.eq.s32.totalorder %s109, 0
    %p381 = por %p379, %p380
    %p382 = scmp.ne.s32.totalorder %s374, %s376
    %p383 = scmp.eq.s32.totalorder %s114, 1
    %p384 = por %p382, %p383
    %p385 = scmp.ne.s32.totalorder %s376, %s377
    %p386 = scmp.eq.s32.totalorder %s114, 0
    %p387 = por %p385, %p386
    %p388 = scmp.ne.s32.totalorder %s376, %s377
    %p389 = scmp.eq.s32.totalorder %s115, 1
    %p390 = por %p388, %p389
    %p392 = scmp.ne.s32.totalorder %s377, %s391
    %p393 = scmp.eq.s32.totalorder %s115, 0
    %p394 = por %p392, %p393
    %s396 = sadd.s32 %s395, 1
    %p399 = scmp.eq.s32.totalorder %s109, 1
    %p400 = scmp.ne.s32.totalorder %s395, %s397
    %p401 = scmp.eq.s32.totalorder %s109, 0
    %p402 = por %p400, %p401
    %p403 = scmp.ne.s32.totalorder %s395, %s397
    %p404 = scmp.eq.s32.totalorder %s114, 1
    %p405 = por %p403, %p404
    %p406 = scmp.ne.s32.totalorder %s397, %s398
    %p407 = scmp.eq.s32.totalorder %s114, 0
    %p408 = por %p406, %p407
    %p409 = scmp.ne.s32.totalorder %s397, %s398
    %p410 = scmp.eq.s32.totalorder %s115, 1
    %p411 = por %p409, %p410
    %p413 = scmp.ne.s32.totalorder %s398, %s412
    %p414 = scmp.eq.s32.totalorder %s115, 0
    %p415 = por %p413, %p414
    %s417 = sadd.s32 %s416, 1
    %p420 = scmp.eq.s32.totalorder %s109, 1
    %p421 = scmp.ne.s32.totalorder %s416, %s418
    %p422 = scmp.eq.s32.totalorder %s109, 0
    %p423 = por %p421, %p422
    %p424 = scmp.ne.s32.totalorder %s416, %s418
    %p425 = scmp.eq.s32.totalorder %s114, 1
    %p426 = por %p424, %p425
    %p427 = scmp.ne.s32.totalorder %s418, %s419
    %p428 = scmp.eq.s32.totalorder %s114, 0
    %p429 = por %p427, %p428
    %p430 = scmp.ne.s32.totalorder %s418, %s419
    %p431 = scmp.eq.s32.totalorder %s115, 1
    %p432 = por %p430, %p431
    %p434 = scmp.ne.s32.totalorder %s419, %s433
    %p435 = scmp.eq.s32.totalorder %s115, 0
    %p436 = por %p434, %p435
    %s438 = sadd.s32 %s437, 1
    %p441 = scmp.eq.s32.totalorder %s109, 1
    %p442 = scmp.ne.s32.totalorder %s437, %s439
    %p443 = scmp.eq.s32.totalorder %s109, 0
    %p444 = por %p442, %p443
    %p445 = scmp.ne.s32.totalorder %s437, %s439
    %p446 = scmp.eq.s32.totalorder %s114, 1
    %p447 = por %p445, %p446
    %p448 = scmp.ne.s32.totalorder %s439, %s440
    %p449 = scmp.eq.s32.totalorder %s114, 0
    %p450 = por %p448, %p449
    %p451 = scmp.ne.s32.totalorder %s439, %s440
    %p452 = scmp.eq.s32.totalorder %s115, 1
    %p453 = por %p451, %p452
    %p455 = scmp.ne.s32.totalorder %s440, %s454
    %p456 = scmp.eq.s32.totalorder %s115, 0
    %p457 = por %p455, %p456
    %s459 = sadd.s32 %s458, 1
    %p462 = scmp.eq.s32.totalorder %s109, 1
    %p463 = scmp.ne.s32.totalorder %s458, %s460
    %p464 = scmp.eq.s32.totalorder %s109, 0
    %p465 = por %p463, %p464
    %p466 = scmp.ne.s32.totalorder %s458, %s460
    %p467 = scmp.eq.s32.totalorder %s114, 1
    %p468 = por %p466, %p467
    %p469 = scmp.ne.s32.totalorder %s460, %s461
    %p470 = scmp.eq.s32.totalorder %s114, 0
    %p471 = por %p469, %p470
    %p472 = scmp.ne.s32.totalorder %s460, %s461
    %p473 = scmp.eq.s32.totalorder %s115, 1
    %p474 = por %p472, %p473
    %p476 = scmp.ne.s32.totalorder %s461, %s475
    %p477 = scmp.eq.s32.totalorder %s115, 0
    %p478 = por %p476, %p477
    %s480 = sadd.s32 %s479, 1
    %p483 = scmp.eq.s32.totalorder %s109, 1
    %p484 = scmp.ne.s32.totalorder %s479, %s481
    %p485 = scmp.eq.s32.totalorder %s109, 0
    %p486 = por %p484, %p485
    %p487 = scmp.ne.s32.totalorder %s479, %s481
    %p488 = scmp.eq.s32.totalorder %s114, 1
    %p489 = por %p487, %p488
    %p490 = scmp.ne.s32.totalorder %s481, %s482
    %p491 = scmp.eq.s32.totalorder %s114, 0
    %p492 = por %p490, %p491
    %p493 = scmp.ne.s32.totalorder %s481, %s482
    %p494 = scmp.eq.s32.totalorder %s115, 1
    %p495 = por %p493, %p494
    %p497 = scmp.ne.s32.totalorder %s482, %s496
    %p498 = scmp.eq.s32.totalorder %s115, 0
    %p499 = por %p497, %p498
    %s501 = sadd.s32 %s500, 1
    %p504 = scmp.eq.s32.totalorder %s109, 1
    %p505 = scmp.ne.s32.totalorder %s500, %s502
    %p506 = scmp.eq.s32.totalorder %s109, 0
    %p507 = por %p505, %p506
    %p508 = scmp.ne.s32.totalorder %s500, %s502
    %p509 = scmp.eq.s32.totalorder %s114, 1
    %p510 = por %p508, %p509
    %p511 = scmp.ne.s32.totalorder %s502, %s503
    %p512 = scmp.eq.s32.totalorder %s114, 0
    %p513 = por %p511, %p512
    %p514 = scmp.ne.s32.totalorder %s502, %s503
    %p515 = scmp.eq.s32.totalorder %s115, 1
    %p516 = por %p514, %p515
    %p518 = scmp.ne.s32.totalorder %s503, %s517
    %p519 = scmp.eq.s32.totalorder %s115, 0
    %p520 = por %p518, %p519
    %s522 = sadd.s32 %s521, 1
    %p525 = scmp.eq.s32.totalorder %s109, 1
    %p526 = scmp.ne.s32.totalorder %s521, %s523
    %p527 = scmp.eq.s32.totalorder %s109, 0
    %p528 = por %p526, %p527
    %p529 = scmp.ne.s32.totalorder %s521, %s523
    %p530 = scmp.eq.s32.totalorder %s114, 1
    %p531 = por %p529, %p530
    %p532 = scmp.ne.s32.totalorder %s523, %s524
    %p533 = scmp.eq.s32.totalorder %s114, 0
    %p534 = por %p532, %p533
    %p535 = scmp.ne.s32.totalorder %s523, %s524
    %p536 = scmp.eq.s32.totalorder %s115, 1
    %p537 = por %p535, %p536
    %p539 = scmp.ne.s32.totalorder %s524, %s538
    %p540 = scmp.eq.s32.totalorder %s115, 0
    %p541 = por %p539, %p540
    %s543 = sadd.s32 %s542, 1
    %p546 = scmp.eq.s32.totalorder %s109, 1
    %p547 = scmp.ne.s32.totalorder %s542, %s544
    %p548 = scmp.eq.s32.totalorder %s109, 0
    %p549 = por %p547, %p548
    %p550 = scmp.ne.s32.totalorder %s542, %s544
    %p551 = scmp.eq.s32.totalorder %s114, 1
    %p552 = por %p550, %p551
    %p553 = scmp.ne.s32.totalorder %s544, %s545
    %p554 = scmp.eq.s32.totalorder %s114, 0
    %p555 = por %p553, %p554
    %p556 = scmp.ne.s32.totalorder %s544, %s545
    %p557 = scmp.eq.s32.totalorder %s115, 1
    %p558 = por %p556, %p557
    %p560 = scmp.ne.s32.totalorder %s545, %s559
    %p561 = scmp.eq.s32.totalorder %s115, 0
    %p562 = por %p560, %p561
    %s564 = sadd.s32 %s563, 1
    %p567 = scmp.eq.s32.totalorder %s109, 1
    %p568 = scmp.ne.s32.totalorder %s563, %s565
    %p569 = scmp.eq.s32.totalorder %s109, 0
    %p570 = por %p568, %p569
    %p571 = scmp.ne.s32.totalorder %s563, %s565
    %p572 = scmp.eq.s32.totalorder %s114, 1
    %p573 = por %p571, %p572
    %p574 = scmp.ne.s32.totalorder %s565, %s566
    %p575 = scmp.eq.s32.totalorder %s114, 0
    %p576 = por %p574, %p575
    %p577 = scmp.ne.s32.totalorder %s565, %s566
    %p578 = scmp.eq.s32.totalorder %s115, 1
    %p579 = por %p577, %p578
    %p581 = scmp.ne.s32.totalorder %s566, %s580
    %p582 = scmp.eq.s32.totalorder %s115, 0
    %p583 = por %p581, %p582
    %s585 = sadd.s32 %s584, 1
    %p588 = scmp.eq.s32.totalorder %s109, 1
    %p589 = scmp.ne.s32.totalorder %s584, %s586
    %p590 = scmp.eq.s32.totalorder %s109, 0
    %p591 = por %p589, %p590
    %p592 = scmp.ne.s32.totalorder %s584, %s586
    %p593 = scmp.eq.s32.totalorder %s114, 1
    %p594 = por %p592, %p593
    %p595 = scmp.ne.s32.totalorder %s586, %s587
    %p596 = scmp.eq.s32.totalorder %s114, 0
    %p597 = por %p595, %p596
    %p598 = scmp.ne.s32.totalorder %s586, %s587
    %p599 = scmp.eq.s32.totalorder %s115, 1
    %p600 = por %p598, %p599
    %p602 = scmp.ne.s32.totalorder %s587, %s601
    %p603 = scmp.eq.s32.totalorder %s115, 0
    %p604 = por %p602, %p603
    %s606 = sadd.s32 %s605, 1
    %p609 = scmp.eq.s32.totalorder %s109, 1
    %p610 = scmp.ne.s32.totalorder %s605, %s607
    %p611 = scmp.eq.s32.totalorder %s109, 0
    %p612 = por %p610, %p611
    %p613 = scmp.ne.s32.totalorder %s605, %s607
    %p614 = scmp.eq.s32.totalorder %s114, 1
    %p615 = por %p613, %p614
    %p616 = scmp.ne.s32.totalorder %s607, %s608
    %p617 = scmp.eq.s32.totalorder %s114, 0
    %p618 = por %p616, %p617
    %p619 = scmp.ne.s32.totalorder %s607, %s608
    %p620 = scmp.eq.s32.totalorder %s115, 1
    %p621 = por %p619, %p620
    %p623 = scmp.ne.s32.totalorder %s608, %s622
    %p624 = scmp.eq.s32.totalorder %s115, 0
    %p625 = por %p623, %p624
    %s627 = sadd.s32 %s626, 1
    %p630 = scmp.eq.s32.totalorder %s109, 1
    %p631 = scmp.ne.s32.totalorder %s626, %s628
    %p632 = scmp.eq.s32.totalorder %s109, 0
    %p633 = por %p631, %p632
    %p634 = scmp.ne.s32.totalorder %s626, %s628
    %p635 = scmp.eq.s32.totalorder %s114, 1
    %p636 = por %p634, %p635
    %p637 = scmp.ne.s32.totalorder %s628, %s629
    %p638 = scmp.eq.s32.totalorder %s114, 0
    %p639 = por %p637, %p638
    %p640 = scmp.ne.s32.totalorder %s628, %s629
    %p641 = scmp.eq.s32.totalorder %s115, 1
    %p642 = por %p640, %p641
    %p644 = scmp.ne.s32.totalorder %s629, %s643
    %p645 = scmp.eq.s32.totalorder %s115, 0
    %p646 = por %p644, %p645
    %s648 = sadd.s32 %s647, 1
    %p651 = scmp.eq.s32.totalorder %s109, 1
    %p652 = scmp.ne.s32.totalorder %s647, %s649
    %p653 = scmp.eq.s32.totalorder %s109, 0
    %p654 = por %p652, %p653
    %p655 = scmp.ne.s32.totalorder %s647, %s649
    %p656 = scmp.eq.s32.totalorder %s114, 1
    %p657 = por %p655, %p656
    %p658 = scmp.ne.s32.totalorder %s649, %s650
    %p659 = scmp.eq.s32.totalorder %s114, 0
    %p660 = por %p658, %p659
    %p661 = scmp.ne.s32.totalorder %s649, %s650
    %p662 = scmp.eq.s32.totalorder %s115, 1
    %p663 = por %p661, %p662
    %p665 = scmp.ne.s32.totalorder %s650, %s664
    %p666 = scmp.eq.s32.totalorder %s115, 0
    %p667 = por %p665, %p666
    %s669 = sadd.s32 %s668, 1
    %p672 = scmp.eq.s32.totalorder %s109, 1
    %p673 = scmp.ne.s32.totalorder %s668, %s670
    %p674 = scmp.eq.s32.totalorder %s109, 0
    %p675 = por %p673, %p674
    %p676 = scmp.ne.s32.totalorder %s668, %s670
    %p677 = scmp.eq.s32.totalorder %s114, 1
    %p678 = por %p676, %p677
    %p679 = scmp.ne.s32.totalorder %s670, %s671
    %p680 = scmp.eq.s32.totalorder %s114, 0
    %p681 = por %p679, %p680
    %p682 = scmp.ne.s32.totalorder %s670, %s671
    %p683 = scmp.eq.s32.totalorder %s115, 1
    %p684 = por %p682, %p683
    %p686 = scmp.ne.s32.totalorder %s671, %s685
    %p687 = scmp.eq.s32.totalorder %s115, 0
    %p688 = por %p686, %p687
    %s690 = sadd.s32 %s689, 1
    %p693 = scmp.eq.s32.totalorder %s109, 1
    %p694 = scmp.ne.s32.totalorder %s689, %s691
    %p695 = scmp.eq.s32.totalorder %s109, 0
    %p696 = por %p694, %p695
    %p697 = scmp.ne.s32.totalorder %s689, %s691
    %p698 = scmp.eq.s32.totalorder %s114, 1
    %p699 = por %p697, %p698
    %p700 = scmp.ne.s32.totalorder %s691, %s692
    %p701 = scmp.eq.s32.totalorder %s114, 0
    %p702 = por %p700, %p701
    %p703 = scmp.ne.s32.totalorder %s691, %s692
    %p704 = scmp.eq.s32.totalorder %s115, 1
    %p705 = por %p703, %p704
    %p707 = scmp.ne.s32.totalorder %s692, %s706
    %p708 = scmp.eq.s32.totalorder %s115, 0
    %p709 = por %p707, %p708
    %s711 = sadd.s32 %s710, 1
    %p714 = scmp.eq.s32.totalorder %s109, 1
    %p715 = scmp.ne.s32.totalorder %s710, %s712
    %p716 = scmp.eq.s32.totalorder %s109, 0
    %p717 = por %p715, %p716
    %p718 = scmp.ne.s32.totalorder %s710, %s712
    %p719 = scmp.eq.s32.totalorder %s114, 1
    %p720 = por %p718, %p719
    %p721 = scmp.ne.s32.totalorder %s712, %s713
    %p722 = scmp.eq.s32.totalorder %s114, 0
    %p723 = por %p721, %p722
    %p724 = scmp.ne.s32.totalorder %s712, %s713
    %p725 = scmp.eq.s32.totalorder %s115, 1
    %p726 = por %p724, %p725
    %p728 = scmp.ne.s32.totalorder %s713, %s727
    %p729 = scmp.eq.s32.totalorder %s115, 0
    %p730 = por %p728, %p729
    %s732 = sadd.s32 %s731, 1
    %p735 = scmp.eq.s32.totalorder %s109, 1
    %p736 = scmp.ne.s32.totalorder %s731, %s733
    %p737 = scmp.eq.s32.totalorder %s109, 0
    %p738 = por %p736, %p737
    %p739 = scmp.ne.s32.totalorder %s731, %s733
    %p740 = scmp.eq.s32.totalorder %s114, 1
    %p741 = por %p739, %p740
    %p742 = scmp.ne.s32.totalorder %s733, %s734
    %p743 = scmp.eq.s32.totalorder %s114, 0
    %p744 = por %p742, %p743
    %p745 = scmp.ne.s32.totalorder %s733, %s734
    %p746 = scmp.eq.s32.totalorder %s115, 1
    %p747 = por %p745, %p746
    %p749 = scmp.ne.s32.totalorder %s734, %s748
    %p750 = scmp.eq.s32.totalorder %s115, 0
    %p751 = por %p749, %p750
    %s753 = sadd.s32 %s752, 1
    %p756 = scmp.eq.s32.totalorder %s109, 1
    %p757 = scmp.ne.s32.totalorder %s752, %s754
    %p758 = scmp.eq.s32.totalorder %s109, 0
    %p759 = por %p757, %p758
    %p760 = scmp.ne.s32.totalorder %s752, %s754
    %p761 = scmp.eq.s32.totalorder %s114, 1
    %p762 = por %p760, %p761
    %p763 = scmp.ne.s32.totalorder %s754, %s755
    %p764 = scmp.eq.s32.totalorder %s114, 0
    %p765 = por %p763, %p764
    %p766 = scmp.ne.s32.totalorder %s754, %s755
    %p767 = scmp.eq.s32.totalorder %s115, 1
    %p768 = por %p766, %p767
    %p770 = scmp.ne.s32.totalorder %s755, %s769
    %p771 = scmp.eq.s32.totalorder %s115, 0
    %p772 = por %p770, %p771
    %s774 = sadd.s32 %s773, 1
    %p777 = scmp.eq.s32.totalorder %s109, 1
    %p778 = scmp.ne.s32.totalorder %s773, %s775
    %p779 = scmp.eq.s32.totalorder %s109, 0
    %p780 = por %p778, %p779
    %p781 = scmp.ne.s32.totalorder %s773, %s775
    %p782 = scmp.eq.s32.totalorder %s114, 1
    %p783 = por %p781, %p782
    %p784 = scmp.ne.s32.totalorder %s775, %s776
    %p785 = scmp.eq.s32.totalorder %s114, 0
    %p786 = por %p784, %p785
    %p787 = scmp.ne.s32.totalorder %s775, %s776
    %p788 = scmp.eq.s32.totalorder %s115, 1
    %p789 = por %p787, %p788
    %p791 = scmp.ne.s32.totalorder %s776, %s790
    %p792 = scmp.eq.s32.totalorder %s115, 0
    %p793 = por %p791, %p792
    %s795 = sadd.s32 %s794, 1
    %p798 = scmp.eq.s32.totalorder %s109, 1
    %p799 = scmp.ne.s32.totalorder %s794, %s796
    %p800 = scmp.eq.s32.totalorder %s109, 0
    %p801 = por %p799, %p800
    %p802 = scmp.ne.s32.totalorder %s794, %s796
    %p803 = scmp.eq.s32.totalorder %s114, 1
    %p804 = por %p802, %p803
    %p805 = scmp.ne.s32.totalorder %s796, %s797
    %p806 = scmp.eq.s32.totalorder %s114, 0
    %p807 = por %p805, %p806
    %p808 = scmp.ne.s32.totalorder %s796, %s797
    %p809 = scmp.eq.s32.totalorder %s115, 1
    %p810 = por %p808, %p809
    %p812 = scmp.ne.s32.totalorder %s797, %s811
    %p813 = scmp.eq.s32.totalorder %s115, 0
    %p814 = por %p812, %p813
    %s816 = sadd.s32 %s815, 1
    %p819 = scmp.eq.s32.totalorder %s109, 1
    %p820 = scmp.ne.s32.totalorder %s815, %s817
    %p821 = scmp.eq.s32.totalorder %s109, 0
    %p822 = por %p820, %p821
    %p823 = scmp.ne.s32.totalorder %s815, %s817
    %p824 = scmp.eq.s32.totalorder %s114, 1
    %p825 = por %p823, %p824
    %p826 = scmp.ne.s32.totalorder %s817, %s818
    %p827 = scmp.eq.s32.totalorder %s114, 0
    %p828 = por %p826, %p827
    %p829 = scmp.ne.s32.totalorder %s817, %s818
    %p830 = scmp.eq.s32.totalorder %s115, 1
    %p831 = por %p829, %p830
    %p833 = scmp.ne.s32.totalorder %s818, %s832
    %p834 = scmp.eq.s32.totalorder %s115, 0
    %p835 = por %p833, %p834
    %s837 = sadd.s32 %s836, 1
    %p840 = scmp.eq.s32.totalorder %s109, 1
    %p841 = scmp.ne.s32.totalorder %s836, %s838
    %p842 = scmp.eq.s32.totalorder %s109, 0
    %p843 = por %p841, %p842
    %p844 = scmp.ne.s32.totalorder %s836, %s838
    %p845 = scmp.eq.s32.totalorder %s114, 1
    %p846 = por %p844, %p845
    %p847 = scmp.ne.s32.totalorder %s838, %s839
    %p848 = scmp.eq.s32.totalorder %s114, 0
    %p849 = por %p847, %p848
    %p850 = scmp.ne.s32.totalorder %s838, %s839
    %p851 = scmp.eq.s32.totalorder %s115, 1
    %p852 = por %p850, %p851
    %p854 = scmp.ne.s32.totalorder %s839, %s853
    %p855 = scmp.eq.s32.totalorder %s115, 0
    %p856 = por %p854, %p855
    %s858 = sadd.s32 %s857, 1
    %p861 = scmp.eq.s32.totalorder %s109, 1
    %p862 = scmp.ne.s32.totalorder %s857, %s859
    %p863 = scmp.eq.s32.totalorder %s109, 0
    %p864 = por %p862, %p863
    %p865 = scmp.ne.s32.totalorder %s857, %s859
    %p866 = scmp.eq.s32.totalorder %s114, 1
    %p867 = por %p865, %p866
    %p868 = scmp.ne.s32.totalorder %s859, %s860
    %p869 = scmp.eq.s32.totalorder %s114, 0
    %p870 = por %p868, %p869
    %p871 = scmp.ne.s32.totalorder %s859, %s860
    %p872 = scmp.eq.s32.totalorder %s115, 1
    %p873 = por %p871, %p872
    %p875 = scmp.ne.s32.totalorder %s860, %s874
    %p876 = scmp.eq.s32.totalorder %s115, 0
    %p877 = por %p875, %p876
    %s879 = sadd.s32 %s878, 1
    %p882 = scmp.eq.s32.totalorder %s109, 1
    %p883 = scmp.ne.s32.totalorder %s878, %s880
    %p884 = scmp.eq.s32.totalorder %s109, 0
    %p885 = por %p883, %p884
    %p886 = scmp.ne.s32.totalorder %s878, %s880
    %p887 = scmp.eq.s32.totalorder %s114, 1
    %p888 = por %p886, %p887
    %p889 = scmp.ne.s32.totalorder %s880, %s881
    %p890 = scmp.eq.s32.totalorder %s114, 0
    %p891 = por %p889, %p890
    %p892 = scmp.ne.s32.totalorder %s880, %s881
    %p893 = scmp.eq.s32.totalorder %s115, 1
    %p894 = por %p892, %p893
    %p896 = scmp.ne.s32.totalorder %s881, %s895
    %p897 = scmp.eq.s32.totalorder %s115, 0
    %p898 = por %p896, %p897
    %s900 = sadd.s32 %s899, 1
    %p903 = scmp.eq.s32.totalorder %s109, 1
    %p904 = scmp.ne.s32.totalorder %s899, %s901
    %p905 = scmp.eq.s32.totalorder %s109, 0
    %p906 = por %p904, %p905
    %p907 = scmp.ne.s32.totalorder %s899, %s901
    %p908 = scmp.eq.s32.totalorder %s114, 1
    %p909 = por %p907, %p908
    %p910 = scmp.ne.s32.totalorder %s901, %s902
    %p911 = scmp.eq.s32.totalorder %s114, 0
    %p912 = por %p910, %p911
    %p913 = scmp.ne.s32.totalorder %s901, %s902
    %p914 = scmp.eq.s32.totalorder %s115, 1
    %p915 = por %p913, %p914
    %p917 = scmp.ne.s32.totalorder %s902, %s916
    %p918 = scmp.eq.s32.totalorder %s115, 0
    %p919 = por %p917, %p918
    %s921 = sadd.s32 %s920, 1
    %p924 = scmp.eq.s32.totalorder %s109, 1
    %p925 = scmp.ne.s32.totalorder %s920, %s922
    %p926 = scmp.eq.s32.totalorder %s109, 0
    %p927 = por %p925, %p926
    %p928 = scmp.ne.s32.totalorder %s920, %s922
    %p929 = scmp.eq.s32.totalorder %s114, 1
    %p930 = por %p928, %p929
    %p931 = scmp.ne.s32.totalorder %s922, %s923
    %p932 = scmp.eq.s32.totalorder %s114, 0
    %p933 = por %p931, %p932
    %p934 = scmp.ne.s32.totalorder %s922, %s923
    %p935 = scmp.eq.s32.totalorder %s115, 1
    %p936 = por %p934, %p935
    %p938 = scmp.ne.s32.totalorder %s923, %s937
    %p939 = scmp.eq.s32.totalorder %s115, 0
    %p940 = por %p938, %p939
    %s942 = sadd.s32 %s941, 1
    %p945 = scmp.eq.s32.totalorder %s109, 1
    %p946 = scmp.ne.s32.totalorder %s941, %s943
    %p947 = scmp.eq.s32.totalorder %s109, 0
    %p948 = por %p946, %p947
    %p949 = scmp.ne.s32.totalorder %s941, %s943
    %p950 = scmp.eq.s32.totalorder %s114, 1
    %p951 = por %p949, %p950
    %p952 = scmp.ne.s32.totalorder %s943, %s944
    %p953 = scmp.eq.s32.totalorder %s114, 0
    %p954 = por %p952, %p953
    %p955 = scmp.ne.s32.totalorder %s943, %s944
    %p956 = scmp.eq.s32.totalorder %s115, 1
    %p957 = por %p955, %p956
    %p959 = scmp.ne.s32.totalorder %s944, %s958
    %p960 = scmp.eq.s32.totalorder %s115, 0
    %p961 = por %p959, %p960
    %s963 = sadd.s32 %s962, 1
    %p966 = scmp.eq.s32.totalorder %s109, 1
    %p967 = scmp.ne.s32.totalorder %s962, %s964
    %p968 = scmp.eq.s32.totalorder %s109, 0
    %p969 = por %p967, %p968
    %p970 = scmp.ne.s32.totalorder %s962, %s964
    %p971 = scmp.eq.s32.totalorder %s114, 1
    %p972 = por %p970, %p971
    %p973 = scmp.ne.s32.totalorder %s964, %s965
    %p974 = scmp.eq.s32.totalorder %s114, 0
    %p975 = por %p973, %p974
    %p976 = scmp.ne.s32.totalorder %s964, %s965
    %p977 = scmp.eq.s32.totalorder %s115, 1
    %p978 = por %p976, %p977
    %p980 = scmp.ne.s32.totalorder %s965, %s979
    %p981 = scmp.eq.s32.totalorder %s115, 0
    %p982 = por %p980, %p981
    %s984 = sadd.s32 %s983, 1
    %p987 = scmp.eq.s32.totalorder %s109, 1
    %p988 = scmp.ne.s32.totalorder %s983, %s985
    %p989 = scmp.eq.s32.totalorder %s109, 0
    %p990 = por %p988, %p989
    %p991 = scmp.ne.s32.totalorder %s983, %s985
    %p992 = scmp.eq.s32.totalorder %s114, 1
    %p993 = por %p991, %p992
    %p994 = scmp.ne.s32.totalorder %s985, %s986
    %p995 = scmp.eq.s32.totalorder %s114, 0
    %p996 = por %p994, %p995
    %p997 = scmp.ne.s32.totalorder %s985, %s986
    %p998 = scmp.eq.s32.totalorder %s115, 1
    %p999 = por %p997, %p998
    %p1001 = scmp.ne.s32.totalorder %s986, %s1000
    %p1002 = scmp.eq.s32.totalorder %s115, 0
    %p1003 = por %p1001, %p1002
    %s1005 = sadd.s32 %s1004, 1
    %p1008 = scmp.eq.s32.totalorder %s109, 1
    %p1009 = scmp.ne.s32.totalorder %s1004, %s1006
    %p1010 = scmp.eq.s32.totalorder %s109, 0
    %p1011 = por %p1009, %p1010
    %p1012 = scmp.ne.s32.totalorder %s1004, %s1006
    %p1013 = scmp.eq.s32.totalorder %s114, 1
    %p1014 = por %p1012, %p1013
    %p1015 = scmp.ne.s32.totalorder %s1006, %s1007
    %p1016 = scmp.eq.s32.totalorder %s114, 0
    %p1017 = por %p1015, %p1016
    %p1018 = scmp.ne.s32.totalorder %s1006, %s1007
    %p1019 = scmp.eq.s32.totalorder %s115, 1
    %p1020 = por %p1018, %p1019
    %p1022 = scmp.ne.s32.totalorder %s1007, %s1021
    %p1023 = scmp.eq.s32.totalorder %s115, 0
    %p1024 = por %p1022, %p1023
    %s1026 = sadd.s32 %s1025, 1
    %p1029 = scmp.eq.s32.totalorder %s109, 1
    %p1030 = scmp.ne.s32.totalorder %s1025, %s1027
    %p1031 = scmp.eq.s32.totalorder %s109, 0
    %p1032 = por %p1030, %p1031
    %p1033 = scmp.ne.s32.totalorder %s1025, %s1027
    %p1034 = scmp.eq.s32.totalorder %s114, 1
    %p1035 = por %p1033, %p1034
    %p1036 = scmp.ne.s32.totalorder %s1027, %s1028
    %p1037 = scmp.eq.s32.totalorder %s114, 0
    %p1038 = por %p1036, %p1037
    %p1039 = scmp.ne.s32.totalorder %s1027, %s1028
    %p1040 = scmp.eq.s32.totalorder %s115, 1
    %p1041 = por %p1039, %p1040
    %p1043 = scmp.ne.s32.totalorder %s1028, %s1042
    %p1044 = scmp.eq.s32.totalorder %s115, 0
    %p1045 = por %p1043, %p1044
    %s1047 = sadd.s32 %s1046, 1
    %p1050 = scmp.eq.s32.totalorder %s109, 1
    %p1051 = scmp.ne.s32.totalorder %s1046, %s1048
    %p1052 = scmp.eq.s32.totalorder %s109, 0
    %p1053 = por %p1051, %p1052
    %p1054 = scmp.ne.s32.totalorder %s1046, %s1048
    %p1055 = scmp.eq.s32.totalorder %s114, 1
    %p1056 = por %p1054, %p1055
    %p1057 = scmp.ne.s32.totalorder %s1048, %s1049
    %p1058 = scmp.eq.s32.totalorder %s114, 0
    %p1059 = por %p1057, %p1058
    %p1060 = scmp.ne.s32.totalorder %s1048, %s1049
    %p1061 = scmp.eq.s32.totalorder %s115, 1
    %p1062 = por %p1060, %p1061
    %p1064 = scmp.ne.s32.totalorder %s1049, %s1063
    %p1065 = scmp.eq.s32.totalorder %s115, 0
    %p1066 = por %p1064, %p1065
    %s1068 = sadd.s32 %s1067, 1
    %p1071 = scmp.eq.s32.totalorder %s109, 1
    %p1072 = scmp.ne.s32.totalorder %s1067, %s1069
    %p1073 = scmp.eq.s32.totalorder %s109, 0
    %p1074 = por %p1072, %p1073
    %p1075 = scmp.ne.s32.totalorder %s1067, %s1069
    %p1076 = scmp.eq.s32.totalorder %s114, 1
    %p1077 = por %p1075, %p1076
    %p1078 = scmp.ne.s32.totalorder %s1069, %s1070
    %p1079 = scmp.eq.s32.totalorder %s114, 0
    %p1080 = por %p1078, %p1079
    %p1081 = scmp.ne.s32.totalorder %s1069, %s1070
    %p1082 = scmp.eq.s32.totalorder %s115, 1
    %p1083 = por %p1081, %p1082
    %p1085 = scmp.ne.s32.totalorder %s1070, %s1084
    %p1086 = scmp.eq.s32.totalorder %s115, 0
    %p1087 = por %p1085, %p1086
    %s1089 = sadd.s32 %s1088, 1
    %p1092 = scmp.eq.s32.totalorder %s109, 1
    %p1093 = scmp.ne.s32.totalorder %s1088, %s1090
    %p1094 = scmp.eq.s32.totalorder %s109, 0
    %p1095 = por %p1093, %p1094
    %p1096 = scmp.ne.s32.totalorder %s1088, %s1090
    %p1097 = scmp.eq.s32.totalorder %s114, 1
    %p1098 = por %p1096, %p1097
    %p1099 = scmp.ne.s32.totalorder %s1090, %s1091
    %p1100 = scmp.eq.s32.totalorder %s114, 0
    %p1101 = por %p1099, %p1100
    %p1102 = scmp.ne.s32.totalorder %s1090, %s1091
    %p1103 = scmp.eq.s32.totalorder %s115, 1
    %p1104 = por %p1102, %p1103
    %p1106 = scmp.ne.s32.totalorder %s1091, %s1105
    %p1107 = scmp.eq.s32.totalorder %s115, 0
    %p1108 = por %p1106, %p1107
    %s1110 = sadd.s32 %s1109, 1
    %p1113 = scmp.eq.s32.totalorder %s109, 1
    %p1114 = scmp.ne.s32.totalorder %s1109, %s1111
    %p1115 = scmp.eq.s32.totalorder %s109, 0
    %p1116 = por %p1114, %p1115
    %p1117 = scmp.ne.s32.totalorder %s1109, %s1111
    %p1118 = scmp.eq.s32.totalorder %s114, 1
    %p1119 = por %p1117, %p1118
    %p1120 = scmp.ne.s32.totalorder %s1111, %s1112
    %p1121 = scmp.eq.s32.totalorder %s114, 0
    %p1122 = por %p1120, %p1121
    %p1123 = scmp.ne.s32.totalorder %s1111, %s1112
    %p1124 = scmp.eq.s32.totalorder %s115, 1
    %p1125 = por %p1123, %p1124
    %p1127 = scmp.ne.s32.totalorder %s1112, %s1126
    %p1128 = scmp.eq.s32.totalorder %s115, 0
    %p1129 = por %p1127, %p1128
    %s1131 = sadd.s32 %s1130, 1
    %p1134 = scmp.eq.s32.totalorder %s109, 1
    %p1135 = scmp.ne.s32.totalorder %s1130, %s1132
    %p1136 = scmp.eq.s32.totalorder %s109, 0
    %p1137 = por %p1135, %p1136
    %p1138 = scmp.ne.s32.totalorder %s1130, %s1132
    %p1139 = scmp.eq.s32.totalorder %s114, 1
    %p1140 = por %p1138, %p1139
    %p1141 = scmp.ne.s32.totalorder %s1132, %s1133
    %p1142 = scmp.eq.s32.totalorder %s114, 0
    %p1143 = por %p1141, %p1142
    %p1144 = scmp.ne.s32.totalorder %s1132, %s1133
    %p1145 = scmp.eq.s32.totalorder %s115, 1
    %p1146 = por %p1144, %p1145
    %p1148 = scmp.ne.s32.totalorder %s1133, %s1147
    %p1149 = scmp.eq.s32.totalorder %s115, 0
    %p1150 = por %p1148, %p1149
    %s1152 = sadd.s32 %s1151, 1
    %p1155 = scmp.eq.s32.totalorder %s109, 1
    %p1156 = scmp.ne.s32.totalorder %s1151, %s1153
    %p1157 = scmp.eq.s32.totalorder %s109, 0
    %p1158 = por %p1156, %p1157
    %p1159 = scmp.ne.s32.totalorder %s1151, %s1153
    %p1160 = scmp.eq.s32.totalorder %s114, 1
    %p1161 = por %p1159, %p1160
    %p1162 = scmp.ne.s32.totalorder %s1153, %s1154
    %p1163 = scmp.eq.s32.totalorder %s114, 0
    %p1164 = por %p1162, %p1163
    %p1165 = scmp.ne.s32.totalorder %s1153, %s1154
    %p1166 = scmp.eq.s32.totalorder %s115, 1
    %p1167 = por %p1165, %p1166
    %p1169 = scmp.ne.s32.totalorder %s1154, %s1168
    %p1170 = scmp.eq.s32.totalorder %s115, 0
    %p1171 = por %p1169, %p1170
    %s1173 = sadd.s32 %s1172, 1
    %p1176 = scmp.eq.s32.totalorder %s109, 1
    %p1177 = scmp.ne.s32.totalorder %s1172, %s1174
    %p1178 = scmp.eq.s32.totalorder %s109, 0
    %p1179 = por %p1177, %p1178
    %p1180 = scmp.ne.s32.totalorder %s1172, %s1174
    %p1181 = scmp.eq.s32.totalorder %s114, 1
    %p1182 = por %p1180, %p1181
    %p1183 = scmp.ne.s32.totalorder %s1174, %s1175
    %p1184 = scmp.eq.s32.totalorder %s114, 0
    %p1185 = por %p1183, %p1184
    %p1186 = scmp.ne.s32.totalorder %s1174, %s1175
    %p1187 = scmp.eq.s32.totalorder %s115, 1
    %p1188 = por %p1186, %p1187
    %p1190 = scmp.ne.s32.totalorder %s1175, %s1189
    %p1191 = scmp.eq.s32.totalorder %s115, 0
    %p1192 = por %p1190, %p1191
    %s1193 = ssub.s32 %s109, %s116
    %p1194 = scmp.eq.s32.totalorder %s1193, 0
    %s1196 = sadd.s32 %s1195, 1
    %s1197 = scalar_select %p1194, %s1195, %s1196
    %p1200 = pneg %p1194
    %p1201 = scmp.eq.s32.totalorder %s109, 1
    %p1202 = por %p1200, %p1201
    %p1203 = scmp.ne.s32.totalorder %s1195, %s1198
    %p1204 = scmp.eq.s32.totalorder %s109, 0
    %p1205 = por %p1203, %p1204
    %p1206 = scmp.ne.s32.totalorder %s1195, %s1198
    %p1207 = scmp.eq.s32.totalorder %s114, 1
    %p1208 = por %p1206, %p1207
    %p1209 = scmp.ne.s32.totalorder %s1198, %s1199
    %p1210 = scmp.eq.s32.totalorder %s114, 0
    %p1211 = por %p1209, %p1210
    %p1212 = scmp.ne.s32.totalorder %s1198, %s1199
    %p1213 = scmp.eq.s32.totalorder %s115, 1
    %p1214 = por %p1212, %p1213
    %p1216 = scmp.ne.s32.totalorder %s1199, %s1215
    %p1217 = scmp.eq.s32.totalorder %s115, 0
    %p1218 = por %p1216, %p1217
    %p1219 = scmp.le.s32.totalorder 1, %s109
    %p1220 = scmp.lt.s32.totalorder %s109, 3
    %p1221 = pnand %p1219, %p1220
    %p1222 = pneg %p1221
    // Predicated region
    $region9: #{forward.1} parent=5 // pred_check
      _
    $region10: #{forward.1} parent=5 // pred_check_branch
      %1224 = sbr.rel (%p1221) target = $region12
    $region11: #{forward.1} parent=5 // pred_region
      %s1225 = ssub.s32 %s109, 1
      // Predicated region
      $region13: #{forward.1} parent=11 // pred_check
        %p1226 = pneg %p156
      $region14: #{forward.1} parent=11 // pred_check_branch
        %1228 = sbr.rel (%p1226) target = $region16
      $region15: #{forward.1} parent=11 // pred_region
        _
      $region16: #{forward.1} parent=11 // pred_fallthru
        _
      // Predicated region
      $region17: #{forward.1} parent=11 // pred_check
        %p1229 = pneg %p177
      $region18: #{forward.1} parent=11 // pred_check_branch
        %1231 = sbr.rel (%p1229) target = $region20
      $region19: #{forward.1} parent=11 // pred_region
        _
      $region20: #{forward.1} parent=11 // pred_fallthru
        _
      // Predicated region
      $region21: #{forward.1} parent=11 // pred_check
        %p1232 = pneg %p198
      $region22: #{forward.1} parent=11 // pred_check_branch
        %1234 = sbr.rel (%p1232) target = $region24
      $region23: #{forward.1} parent=11 // pred_region
        _
      $region24: #{forward.1} parent=11 // pred_fallthru
        _
      // Predicated region
      $region25: #{forward.1} parent=11 // pred_check
        %p1235 = pneg %p219
      $region26: #{forward.1} parent=11 // pred_check_branch
        %1237 = sbr.rel (%p1235) target = $region28
      $region27: #{forward.1} parent=11 // pred_region
        _
      $region28: #{forward.1} parent=11 // pred_fallthru
        _
      // Predicated region
      $region29: #{forward.1} parent=11 // pred_check
        %p1238 = pneg %p240
      $region30: #{forward.1} parent=11 // pred_check_branch
        %1240 = sbr.rel (%p1238) target = $region32
      $region31: #{forward.1} parent=11 // pred_region
        _
      $region32: #{forward.1} parent=11 // pred_fallthru
        _
      // Predicated region
      $region33: #{forward.1} parent=11 // pred_check
        %p1241 = pneg %p261
      $region34: #{forward.1} parent=11 // pred_check_branch
        %1243 = sbr.rel (%p1241) target = $region36
      $region35: #{forward.1} parent=11 // pred_region
        _
      $region36: #{forward.1} parent=11 // pred_fallthru
        _
      // Predicated region
      $region37: #{forward.1} parent=11 // pred_check
        %p1244 = pneg %p282
      $region38: #{forward.1} parent=11 // pred_check_branch
        %1246 = sbr.rel (%p1244) target = $region40
      $region39: #{forward.1} parent=11 // pred_region
        _
      $region40: #{forward.1} parent=11 // pred_fallthru
        _
      // Predicated region
      $region41: #{forward.1} parent=11 // pred_check
        %p1247 = pneg %p303
      $region42: #{forward.1} parent=11 // pred_check_branch
        %1249 = sbr.rel (%p1247) target = $region44
      $region43: #{forward.1} parent=11 // pred_region
        _
      $region44: #{forward.1} parent=11 // pred_fallthru
        _
      // Predicated region
      $region45: #{forward.1} parent=11 // pred_check
        %p1250 = pneg %p324
      $region46: #{forward.1} parent=11 // pred_check_branch
        %1252 = sbr.rel (%p1250) target = $region48
      $region47: #{forward.1} parent=11 // pred_region
        _
      $region48: #{forward.1} parent=11 // pred_fallthru
        _
      // Predicated region
      $region49: #{forward.1} parent=11 // pred_check
        %p1253 = pneg %p345
      $region50: #{forward.1} parent=11 // pred_check_branch
        %1255 = sbr.rel (%p1253) target = $region52
      $region51: #{forward.1} parent=11 // pred_region
        _
      $region52: #{forward.1} parent=11 // pred_fallthru
        _
      // Predicated region
      $region53: #{forward.1} parent=11 // pred_check
        %p1256 = pneg %p366
      $region54: #{forward.1} parent=11 // pred_check_branch
        %1258 = sbr.rel (%p1256) target = $region56
      $region55: #{forward.1} parent=11 // pred_region
        _
      $region56: #{forward.1} parent=11 // pred_fallthru
        _
      // Predicated region
      $region57: #{forward.1} parent=11 // pred_check
        %p1259 = pneg %p387
      $region58: #{forward.1} parent=11 // pred_check_branch
        %1261 = sbr.rel (%p1259) target = $region60
      $region59: #{forward.1} parent=11 // pred_region
        _
      $region60: #{forward.1} parent=11 // pred_fallthru
        _
      // Predicated region
      $region61: #{forward.1} parent=11 // pred_check
        %p1262 = pneg %p408
      $region62: #{forward.1} parent=11 // pred_check_branch
        %1264 = sbr.rel (%p1262) target = $region64
      $region63: #{forward.1} parent=11 // pred_region
        _
      $region64: #{forward.1} parent=11 // pred_fallthru
        _
      // Predicated region
      $region65: #{forward.1} parent=11 // pred_check
        %p1265 = pneg %p429
      $region66: #{forward.1} parent=11 // pred_check_branch
        %1267 = sbr.rel (%p1265) target = $region68
      $region67: #{forward.1} parent=11 // pred_region
        _
      $region68: #{forward.1} parent=11 // pred_fallthru
        _
      // Predicated region
      $region69: #{forward.1} parent=11 // pred_check
        %p1268 = pneg %p450
      $region70: #{forward.1} parent=11 // pred_check_branch
        %1270 = sbr.rel (%p1268) target = $region72
      $region71: #{forward.1} parent=11 // pred_region
        _
      $region72: #{forward.1} parent=11 // pred_fallthru
        _
      // Predicated region
      $region73: #{forward.1} parent=11 // pred_check
        %p1271 = pneg %p471
      $region74: #{forward.1} parent=11 // pred_check_branch
        %1273 = sbr.rel (%p1271) target = $region76
      $region75: #{forward.1} parent=11 // pred_region
        _
      $region76: #{forward.1} parent=11 // pred_fallthru
        _
      // Predicated region
      $region77: #{forward.1} parent=11 // pred_check
        %p1274 = pneg %p492
      $region78: #{forward.1} parent=11 // pred_check_branch
        %1276 = sbr.rel (%p1274) target = $region80
      $region79: #{forward.1} parent=11 // pred_region
        _
      $region80: #{forward.1} parent=11 // pred_fallthru
        _
      // Predicated region
      $region81: #{forward.1} parent=11 // pred_check
        %p1277 = pneg %p513
      $region82: #{forward.1} parent=11 // pred_check_branch
        %1279 = sbr.rel (%p1277) target = $region84
      $region83: #{forward.1} parent=11 // pred_region
        _
      $region84: #{forward.1} parent=11 // pred_fallthru
        _
      // Predicated region
      $region85: #{forward.1} parent=11 // pred_check
        %p1280 = pneg %p534
      $region86: #{forward.1} parent=11 // pred_check_branch
        %1282 = sbr.rel (%p1280) target = $region88
      $region87: #{forward.1} parent=11 // pred_region
        _
      $region88: #{forward.1} parent=11 // pred_fallthru
        _
      // Predicated region
      $region89: #{forward.1} parent=11 // pred_check
        %p1283 = pneg %p555
      $region90: #{forward.1} parent=11 // pred_check_branch
        %1285 = sbr.rel (%p1283) target = $region92
      $region91: #{forward.1} parent=11 // pred_region
        _
      $region92: #{forward.1} parent=11 // pred_fallthru
        _
      // Predicated region
      $region93: #{forward.1} parent=11 // pred_check
        %p1286 = pneg %p576
      $region94: #{forward.1} parent=11 // pred_check_branch
        %1288 = sbr.rel (%p1286) target = $region96
      $region95: #{forward.1} parent=11 // pred_region
        _
      $region96: #{forward.1} parent=11 // pred_fallthru
        _
      // Predicated region
      $region97: #{forward.1} parent=11 // pred_check
        %p1289 = pneg %p597
      $region98: #{forward.1} parent=11 // pred_check_branch
        %1291 = sbr.rel (%p1289) target = $region100
      $region99: #{forward.1} parent=11 // pred_region
        _
      $region100: #{forward.1} parent=11 // pred_fallthru
        _
      // Predicated region
      $region101: #{forward.1} parent=11 // pred_check
        %p1292 = pneg %p618
      $region102: #{forward.1} parent=11 // pred_check_branch
        %1294 = sbr.rel (%p1292) target = $region104
      $region103: #{forward.1} parent=11 // pred_region
        _
      $region104: #{forward.1} parent=11 // pred_fallthru
        _
      // Predicated region
      $region105: #{forward.1} parent=11 // pred_check
        %p1295 = pneg %p639
      $region106: #{forward.1} parent=11 // pred_check_branch
        %1297 = sbr.rel (%p1295) target = $region108
      $region107: #{forward.1} parent=11 // pred_region
        _
      $region108: #{forward.1} parent=11 // pred_fallthru
        _
      // Predicated region
      $region109: #{forward.1} parent=11 // pred_check
        %p1298 = pneg %p660
      $region110: #{forward.1} parent=11 // pred_check_branch
        %1300 = sbr.rel (%p1298) target = $region112
      $region111: #{forward.1} parent=11 // pred_region
        _
      $region112: #{forward.1} parent=11 // pred_fallthru
        _
      // Predicated region
      $region113: #{forward.1} parent=11 // pred_check
        %p1301 = pneg %p681
      $region114: #{forward.1} parent=11 // pred_check_branch
        %1303 = sbr.rel (%p1301) target = $region116
      $region115: #{forward.1} parent=11 // pred_region
        _
      $region116: #{forward.1} parent=11 // pred_fallthru
        _
      // Predicated region
      $region117: #{forward.1} parent=11 // pred_check
        %p1304 = pneg %p702
      $region118: #{forward.1} parent=11 // pred_check_branch
        %1306 = sbr.rel (%p1304) target = $region120
      $region119: #{forward.1} parent=11 // pred_region
        _
      $region120: #{forward.1} parent=11 // pred_fallthru
        _
      // Predicated region
      $region121: #{forward.1} parent=11 // pred_check
        %p1307 = pneg %p723
      $region122: #{forward.1} parent=11 // pred_check_branch
        %1309 = sbr.rel (%p1307) target = $region124
      $region123: #{forward.1} parent=11 // pred_region
        _
      $region124: #{forward.1} parent=11 // pred_fallthru
        _
      // Predicated region
      $region125: #{forward.1} parent=11 // pred_check
        %p1310 = pneg %p744
      $region126: #{forward.1} parent=11 // pred_check_branch
        %1312 = sbr.rel (%p1310) target = $region128
      $region127: #{forward.1} parent=11 // pred_region
        _
      $region128: #{forward.1} parent=11 // pred_fallthru
        _
      // Predicated region
      $region129: #{forward.1} parent=11 // pred_check
        %p1313 = pneg %p765
      $region130: #{forward.1} parent=11 // pred_check_branch
        %1315 = sbr.rel (%p1313) target = $region132
      $region131: #{forward.1} parent=11 // pred_region
        _
      $region132: #{forward.1} parent=11 // pred_fallthru
        _
      // Predicated region
      $region133: #{forward.1} parent=11 // pred_check
        %p1316 = pneg %p786
      $region134: #{forward.1} parent=11 // pred_check_branch
        %1318 = sbr.rel (%p1316) target = $region136
      $region135: #{forward.1} parent=11 // pred_region
        _
      $region136: #{forward.1} parent=11 // pred_fallthru
        _
      // Predicated region
      $region137: #{forward.1} parent=11 // pred_check
        %p1319 = pneg %p807
      $region138: #{forward.1} parent=11 // pred_check_branch
        %1321 = sbr.rel (%p1319) target = $region140
      $region139: #{forward.1} parent=11 // pred_region
        _
      $region140: #{forward.1} parent=11 // pred_fallthru
        _
      // Predicated region
      $region141: #{forward.1} parent=11 // pred_check
        %p1322 = pneg %p828
      $region142: #{forward.1} parent=11 // pred_check_branch
        %1324 = sbr.rel (%p1322) target = $region144
      $region143: #{forward.1} parent=11 // pred_region
        _
      $region144: #{forward.1} parent=11 // pred_fallthru
        _
      // Predicated region
      $region145: #{forward.1} parent=11 // pred_check
        %p1325 = pneg %p849
      $region146: #{forward.1} parent=11 // pred_check_branch
        %1327 = sbr.rel (%p1325) target = $region148
      $region147: #{forward.1} parent=11 // pred_region
        _
      $region148: #{forward.1} parent=11 // pred_fallthru
        _
      // Predicated region
      $region149: #{forward.1} parent=11 // pred_check
        %p1328 = pneg %p870
      $region150: #{forward.1} parent=11 // pred_check_branch
        %1330 = sbr.rel (%p1328) target = $region152
      $region151: #{forward.1} parent=11 // pred_region
        _
      $region152: #{forward.1} parent=11 // pred_fallthru
        _
      // Predicated region
      $region153: #{forward.1} parent=11 // pred_check
        %p1331 = pneg %p891
      $region154: #{forward.1} parent=11 // pred_check_branch
        %1333 = sbr.rel (%p1331) target = $region156
      $region155: #{forward.1} parent=11 // pred_region
        _
      $region156: #{forward.1} parent=11 // pred_fallthru
        _
      // Predicated region
      $region157: #{forward.1} parent=11 // pred_check
        %p1334 = pneg %p912
      $region158: #{forward.1} parent=11 // pred_check_branch
        %1336 = sbr.rel (%p1334) target = $region160
      $region159: #{forward.1} parent=11 // pred_region
        _
      $region160: #{forward.1} parent=11 // pred_fallthru
        _
      // Predicated region
      $region161: #{forward.1} parent=11 // pred_check
        %p1337 = pneg %p933
      $region162: #{forward.1} parent=11 // pred_check_branch
        %1339 = sbr.rel (%p1337) target = $region164
      $region163: #{forward.1} parent=11 // pred_region
        _
      $region164: #{forward.1} parent=11 // pred_fallthru
        _
      // Predicated region
      $region165: #{forward.1} parent=11 // pred_check
        %p1340 = pneg %p954
      $region166: #{forward.1} parent=11 // pred_check_branch
        %1342 = sbr.rel (%p1340) target = $region168
      $region167: #{forward.1} parent=11 // pred_region
        _
      $region168: #{forward.1} parent=11 // pred_fallthru
        _
      // Predicated region
      $region169: #{forward.1} parent=11 // pred_check
        %p1343 = pneg %p975
      $region170: #{forward.1} parent=11 // pred_check_branch
        %1345 = sbr.rel (%p1343) target = $region172
      $region171: #{forward.1} parent=11 // pred_region
        _
      $region172: #{forward.1} parent=11 // pred_fallthru
        _
      // Predicated region
      $region173: #{forward.1} parent=11 // pred_check
        %p1346 = pneg %p996
      $region174: #{forward.1} parent=11 // pred_check_branch
        %1348 = sbr.rel (%p1346) target = $region176
      $region175: #{forward.1} parent=11 // pred_region
        _
      $region176: #{forward.1} parent=11 // pred_fallthru
        _
      // Predicated region
      $region177: #{forward.1} parent=11 // pred_check
        %p1349 = pneg %p1017
      $region178: #{forward.1} parent=11 // pred_check_branch
        %1351 = sbr.rel (%p1349) target = $region180
      $region179: #{forward.1} parent=11 // pred_region
        _
      $region180: #{forward.1} parent=11 // pred_fallthru
        _
      // Predicated region
      $region181: #{forward.1} parent=11 // pred_check
        %p1352 = pneg %p1038
      $region182: #{forward.1} parent=11 // pred_check_branch
        %1354 = sbr.rel (%p1352) target = $region184
      $region183: #{forward.1} parent=11 // pred_region
        _
      $region184: #{forward.1} parent=11 // pred_fallthru
        _
      // Predicated region
      $region185: #{forward.1} parent=11 // pred_check
        %p1355 = pneg %p1059
      $region186: #{forward.1} parent=11 // pred_check_branch
        %1357 = sbr.rel (%p1355) target = $region188
      $region187: #{forward.1} parent=11 // pred_region
        _
      $region188: #{forward.1} parent=11 // pred_fallthru
        _
      // Predicated region
      $region189: #{forward.1} parent=11 // pred_check
        %p1358 = pneg %p1080
      $region190: #{forward.1} parent=11 // pred_check_branch
        %1360 = sbr.rel (%p1358) target = $region192
      $region191: #{forward.1} parent=11 // pred_region
        _
      $region192: #{forward.1} parent=11 // pred_fallthru
        _
      // Predicated region
      $region193: #{forward.1} parent=11 // pred_check
        %p1361 = pneg %p1101
      $region194: #{forward.1} parent=11 // pred_check_branch
        %1363 = sbr.rel (%p1361) target = $region196
      $region195: #{forward.1} parent=11 // pred_region
        _
      $region196: #{forward.1} parent=11 // pred_fallthru
        _
      // Predicated region
      $region197: #{forward.1} parent=11 // pred_check
        %p1364 = pneg %p1122
      $region198: #{forward.1} parent=11 // pred_check_branch
        %1366 = sbr.rel (%p1364) target = $region200
      $region199: #{forward.1} parent=11 // pred_region
        _
      $region200: #{forward.1} parent=11 // pred_fallthru
        _
      // Predicated region
      $region201: #{forward.1} parent=11 // pred_check
        %p1367 = pneg %p1143
      $region202: #{forward.1} parent=11 // pred_check_branch
        %1369 = sbr.rel (%p1367) target = $region204
      $region203: #{forward.1} parent=11 // pred_region
        _
      $region204: #{forward.1} parent=11 // pred_fallthru
        _
      // Predicated region
      $region205: #{forward.1} parent=11 // pred_check
        %p1370 = pneg %p1164
      $region206: #{forward.1} parent=11 // pred_check_branch
        %1372 = sbr.rel (%p1370) target = $region208
      $region207: #{forward.1} parent=11 // pred_region
        _
      $region208: #{forward.1} parent=11 // pred_fallthru
        _
      // Predicated region
      $region209: #{forward.1} parent=11 // pred_check
        %p1373 = pneg %p1185
      $region210: #{forward.1} parent=11 // pred_check_branch
        %1375 = sbr.rel (%p1373) target = $region212
      $region211: #{forward.1} parent=11 // pred_region
        _
      $region212: #{forward.1} parent=11 // pred_fallthru
        _
    $region12: #{forward.1} parent=5 // pred_fallthru
      _
    %p1376 = scmp.lt.s32.totalorder %s109, 2
    // Predicated region
    $region213: #{forward.1} parent=5 // pred_check
      %p1377 = pneg %p1376
    $region214: #{forward.1} parent=5 // pred_check_branch
      %1379 = sbr.rel (%p1377) target = $region216
    $region215: #{forward.1} parent=5 // pred_region
      // Predicated region
      $region217: #{forward.1} parent=215 // pred_check
        %p1380 = pneg %p129
      $region218: #{forward.1} parent=215 // pred_check_branch
        %1382 = sbr.rel (%p1380) target = $region220
      $region219: #{forward.1} parent=215 // pred_region
        %p1383 = scmp.lt.s32.totalorder %s109, 1
        %s1384 = scalar_select %p1383, %s109, 1
        %s1385 = smul.addr %s1384, 2
        %s1386 = smul.addr %s1385, 8
        %s1387 = scalar_lea.vmem %s1, %s1386
      $region220: #{forward.1} parent=215 // pred_fallthru
        _
    $region216: #{forward.1} parent=5 // pred_fallthru
      _
    %p1388 = scmp.le.s32.totalorder 1, %s109
    %p1389 = scmp.lt.s32.totalorder %s109, 3
    %p1390 = pnand %p1388, %p1389
    %p1391 = pneg %p1390
    // Predicated region
    $region221: #{forward.1} parent=5 // pred_check
      _
    $region222: #{forward.1} parent=5 // pred_check_branch
      %1393 = sbr.rel (%p1390) target = $region224
    $region223: #{forward.1} parent=5 // pred_region
      %s1394 = ssub.s32 %s109, 1
      %p1395 = scmp.lt.s32.totalorder %s114, 1
      %s1396 = scalar_select %p1395, %s114, 1
      %s1397 = smul.addr %s1396, 2
      %s1398 = smul.addr %s1397, 8
      %s1399 = scalar_lea.vmem %s1, %s1398
      %p1400 = pneg %p135
      %p1401 = pneg %p132
      %p1402 = pneg %p156
      %p1403 = pneg %p153
      %p1404 = pneg %p177
      %p1405 = pneg %p174
      %p1406 = pneg %p198
      %p1407 = pneg %p195
      %p1408 = pneg %p219
      %p1409 = pneg %p216
      %p1410 = pneg %p240
      %p1411 = pneg %p237
      %p1412 = pneg %p261
      %p1413 = pneg %p258
      %p1414 = pneg %p282
      %p1415 = pneg %p279
      %p1416 = pneg %p303
      %p1417 = pneg %p300
      %p1418 = pneg %p324
      %p1419 = pneg %p321
      %p1420 = pneg %p345
      %p1421 = pneg %p342
      %p1422 = pneg %p366
      %p1423 = pneg %p363
      %p1424 = pneg %p387
      %p1425 = pneg %p384
      %p1426 = pneg %p408
      %p1427 = pneg %p405
      %p1428 = pneg %p429
      %p1429 = pneg %p426
      %p1430 = pneg %p450
      %p1431 = pneg %p447
      %p1432 = pneg %p471
      %p1433 = pneg %p468
      %p1434 = pneg %p492
      %p1435 = pneg %p489
      %p1436 = pneg %p513
      %p1437 = pneg %p510
      %p1438 = pneg %p534
      %p1439 = pneg %p531
      %p1440 = pneg %p555
      %p1441 = pneg %p552
      %p1442 = pneg %p576
      %p1443 = pneg %p573
      %p1444 = pneg %p597
      %p1445 = pneg %p594
      %p1446 = pneg %p618
      %p1447 = pneg %p615
      %p1448 = pneg %p639
      %p1449 = pneg %p636
      %p1450 = pneg %p660
      %p1451 = pneg %p657
      %p1452 = pneg %p681
      %p1453 = pneg %p678
      %p1454 = pneg %p702
      %p1455 = pneg %p699
      %p1456 = pneg %p723
      %p1457 = pneg %p720
      %p1458 = pneg %p744
      %p1459 = pneg %p741
      %p1460 = pneg %p765
      %p1461 = pneg %p762
      %p1462 = pneg %p786
      %p1463 = pneg %p783
      %p1464 = pneg %p807
      %p1465 = pneg %p804
      %p1466 = pneg %p828
      %p1467 = pneg %p825
      %p1468 = pneg %p849
      %p1469 = pneg %p846
      %p1470 = pneg %p870
      %p1471 = pneg %p867
      %p1472 = pneg %p891
      %p1473 = pneg %p888
      %p1474 = pneg %p912
      %p1475 = pneg %p909
      %p1476 = pneg %p933
      %p1477 = pneg %p930
      %p1478 = pneg %p954
      %p1479 = pneg %p951
      %p1480 = pneg %p975
      %p1481 = pneg %p972
      %p1482 = pneg %p996
      %p1483 = pneg %p993
      %p1484 = pneg %p1017
      %p1485 = pneg %p1014
      %p1486 = pneg %p1038
      %p1487 = pneg %p1035
      %p1488 = pneg %p1059
      %p1489 = pneg %p1056
      %p1490 = pneg %p1080
      %p1491 = pneg %p1077
      %p1492 = pneg %p1101
      %p1493 = pneg %p1098
      %p1494 = pneg %p1122
      %p1495 = pneg %p1119
      %p1496 = pneg %p1143
      %p1497 = pneg %p1140
      %p1498 = pneg %p1164
      %p1499 = pneg %p1161
      %p1500 = pneg %p1185
      %p1501 = pneg %p1182
      %p1502 = pneg %p1211
      %p1503 = pneg %p1208
      %p1504 = scmp.lt.s32.totalorder %s114, 1
      %s1505 = scalar_select %p1504, %s114, 1
      %s1506 = smul.addr %s1505, 2
      %s1507 = smul.addr %s1506, 4
      %s1508 = scalar_lea.vmem %s103, %s1507
      %p1509 = scmp.lt.s32.totalorder %s114, 1
      %s1510 = scalar_select %p1509, %s114, 1
      %s1511 = smul.addr %s1510, 2
      %s1512 = smul.addr %s1511, 8
      %s1513 = scalar_lea.vmem %s1, %s1512
      %p1514 = scmp.lt.s32.totalorder %s114, 1
      %s1515 = scalar_select %p1514, %s114, 1
      %s1516 = smul.addr %s1515, 2
      %s1517 = smul.addr %s1516, 4
      %s1518 = scalar_lea.vmem %s103, %s1517
      %v1519 = vld [vmem:[%s1513] sm:$0xff]
      %v1520 = vld [vmem:[%s1513 + $0x8] sm:$0xff]
      %v1521 = vlaneseq
      %v1522 = vand.u32 %v1521, 127
      %v1523 = vadd.s32 %v1522, 128
      %vm1524 = vcmp.lt.s32.totalorder %v1522, 0
      %v1525 = vsub.s32 0, %v1522
      %v1526 = vsel %vm1524, %v1525, %v1522
      %v1527 = vshrl.u32 %v1526, 4
      %v1528 = vand.u32 %v1526, 15
      %v1529 = vsub.s32 0, %v1528
      %v1530 = vsel %vm1524, %v1529, %v1528
      %vm1531 = vcmp.lt.s32.totalorder %v1523, 0
      %v1532 = vsub.s32 0, %v1523
      %v1533 = vsel %vm1531, %v1532, %v1523
      %v1534 = vshrl.u32 %v1533, 4
      %v1535 = vand.u32 %v1533, 15
      %v1536 = vsub.s32 0, %v1535
      %v1537 = vsel %vm1531, %v1536, %v1535
      %vm1538 = vcmp.ne.s32.totalorder %v1530, 0
      %vm1539 = vcmp.ne.s32.totalorder %v1537, 0
      %vm1540 = vcmp.lt.s32.totalorder %v1530, 0
      %vm1541 = vcmp.lt.s32.totalorder %v1537, 0
      %vm1542 = vmand %vm1540, %vm1538
      %vm1543 = vmand %vm1541, %vm1539
      %v1544 = vadd.s32 %v1530, 16
      %v1545 = vadd.s32 %v1537, 16
      %v1546 = vsel %vm1542, %v1544, %v1530
      %v1547 = vsel %vm1543, %v1545, %v1537
      %vm1548 = vcmp.ne.s32.totalorder %v1546, 0
      %vm1549 = vcmp.ne.s32.totalorder %v1547, 0
      %vm1550 = vcmp.ne.s32.totalorder %v1546, 15
      %vm1551 = vcmp.ne.s32.totalorder %v1547, 15
      %1554 = vrot.lane.b32.xlu0 %v1519, 17
      %v1555 = vpop.permute.xlu0 %1554
      %1556 = vrot.lane.b32.xlu0 %v1520, 17
      %v1557 = vpop.permute.xlu0 %1556
      %vm1558 = vcmask 138240
      %v1559 = vsel %vm1558, %v1555, %v1557
      %v1563 = vsel %vm1558, 0.0, %v1555
      %v1564 = vsel %vm1558, %v1557, 0.0
      %v1565 = vsel %vm1548, 1, 0
      %v1566 = vsel %vm1549, 1, 0
      %vm1567 = vcmp.eq.s32.totalorder %v1565, 1
      %vm1568 = vcmp.eq.s32.totalorder %v1566, 1
      %v1569 = vsel %vm1567, %v1563, 0.0
      %v1570 = vsel %vm1568, %v1559, 0.0
      %v1571 = vsel %vm1550, 1, 0
      %v1572 = vsel %vm1551, 1, 0
      %vm1573 = vcmp.eq.s32.totalorder %v1571, 1
      %vm1574 = vcmp.eq.s32.totalorder %v1572, 1
      %1577 = vrot.lane.b32.xlu0 %v1563, 126
      %v1578 = vpop.permute.xlu0 %1577
      %1579 = vrot.lane.b32.xlu0 %v1559, 126
      %v1580 = vpop.permute.xlu0 %1579
      %1581 = vrot.lane.b32.xlu0 %v1564, 126
      %v1582 = vpop.permute.xlu0 %1581
      %vm1583 = vcmask 1031168
      %v1584 = vsel %vm1583, %v1578, %v1580
      %v1585 = vsel %vm1583, %v1580, %v1582
      %v1588 = vsel %vm1573, %v1584, 0.0
      %v1589 = vsel %vm1574, %v1585, 0.0
      %1590 = vrot.lane.b32.xlu0 %v1563, 112
      %v1591 = vpop.permute.xlu0 %1590
      %1592 = vrot.lane.b32.xlu0 %v1559, 112
      %v1593 = vpop.permute.xlu0 %1592
      %1594 = vrot.lane.b32.xlu0 %v1564, 112
      %v1595 = vpop.permute.xlu0 %1594
      %vm1596 = vcmask 916480
      %v1597 = vsel %vm1596, %v1591, %v1593
      %v1598 = vsel %vm1596, %v1593, %v1595
      %v1601 = vsel %vm1567, %v1597, 0.0
      %v1602 = vsel %vm1568, %v1598, 0.0
      %1603 = vrot.lane.b32.xlu0 %v1563, 110
      %v1604 = vpop.permute.xlu0 %1603
      %1605 = vrot.lane.b32.xlu0 %v1559, 110
      %v1606 = vpop.permute.xlu0 %1605
      %1607 = vrot.lane.b32.xlu0 %v1564, 110
      %v1608 = vpop.permute.xlu0 %1607
      %vm1609 = vcmask 900096
      %v1610 = vsel %vm1609, %v1604, %v1606
      %v1611 = vsel %vm1609, %v1606, %v1608
      %v1614 = vsel %vm1573, %v1610, 0.0
      %v1615 = vsel %vm1574, %v1611, 0.0
      %1616 = vrot.lane.b32.xlu0 %v1563, 96
      %v1617 = vpop.permute.xlu0 %1616
      %1618 = vrot.lane.b32.xlu0 %v1559, 96
      %v1619 = vpop.permute.xlu0 %1618
      %1620 = vrot.lane.b32.xlu0 %v1564, 96
      %v1621 = vpop.permute.xlu0 %1620
      %vm1622 = vcmask 785408
      %v1623 = vsel %vm1622, %v1617, %v1619
      %v1624 = vsel %vm1622, %v1619, %v1621
      %v1627 = vsel %vm1567, %v1623, 0.0
      %v1628 = vsel %vm1568, %v1624, 0.0
      %1629 = vrot.lane.b32.xlu0 %v1563, 94
      %v1630 = vpop.permute.xlu0 %1629
      %1631 = vrot.lane.b32.xlu0 %v1559, 94
      %v1632 = vpop.permute.xlu0 %1631
      %1633 = vrot.lane.b32.xlu0 %v1564, 94
      %v1634 = vpop.permute.xlu0 %1633
      %vm1635 = vcmask 769024
      %v1636 = vsel %vm1635, %v1630, %v1632
      %v1637 = vsel %vm1635, %v1632, %v1634
      %v1640 = vsel %vm1573, %v1636, 0.0
      %v1641 = vsel %vm1574, %v1637, 0.0
      %1642 = vrot.lane.b32.xlu0 %v1563, 127
      %v1643 = vpop.permute.xlu0 %1642
      %1644 = vrot.lane.b32.xlu0 %v1559, 127
      %v1645 = vpop.permute.xlu0 %1644
      %1646 = vrot.lane.b32.xlu0 %v1564, 127
      %v1647 = vpop.permute.xlu0 %1646
      %vm1648 = vcmask 1039360
      %v1649 = vsel %vm1648, %v1643, %v1645
      %v1650 = vsel %vm1648, %v1645, %v1647
      %1653 = vrot.lane.b32.xlu0 %v1563, 111
      %v1654 = vpop.permute.xlu0 %1653
      %1655 = vrot.lane.b32.xlu0 %v1559, 111
      %v1656 = vpop.permute.xlu0 %1655
      %1657 = vrot.lane.b32.xlu0 %v1564, 111
      %v1658 = vpop.permute.xlu0 %1657
      %vm1659 = vcmask 908288
      %v1660 = vsel %vm1659, %v1654, %v1656
      %v1661 = vsel %vm1659, %v1656, %v1658
      %1664 = vrot.lane.b32.xlu0 %v1563, 95
      %v1665 = vpop.permute.xlu0 %1664
      %1666 = vrot.lane.b32.xlu0 %v1559, 95
      %v1667 = vpop.permute.xlu0 %1666
      %1668 = vrot.lane.b32.xlu0 %v1564, 95
      %v1669 = vpop.permute.xlu0 %1668
      %vm1670 = vcmask 777216
      %v1671 = vsel %vm1670, %v1665, %v1667
      %v1672 = vsel %vm1670, %v1667, %v1669
      %v1675 = vld [vmem:[%s3] sm:$0xff]
      %v1676 = vld [vmem:[%s5] sm:$0xff]
      %1678 = vset.pattern.permute.xlu0 0
      %1679 = vperm.xlu0 %1678, %v1676
      %v1680 = vpop.permute.xlu0 %1679
      %vm1682 = vcmask 588800
      %v1684 = vsel %vm1682, %v1675, 0
      %1686 = vmatprep.subr.mxu0 %v1570
      %1687 = vmatpush1.msra.mxu0 %v1569
      %1688 = vmatprep.subr.mxu0 %v1650
      %1689 = vmatpush1.msra.mxu0 %v1649
      %1690 = vmatprep.subr.mxu0 %v1589
      %1691 = vmatpush1.msra.mxu0 %v1588
      %1692 = vmatprep.subr.mxu0 %v1602
      %1693 = vmatpush1.msra.mxu0 %v1601
      %1694 = vmatprep.subr.mxu0 %v1661
      %1695 = vmatpush1.msra.mxu0 %v1660
      %1696 = vmatprep.subr.mxu0 %v1615
      %1697 = vmatpush1.msra.mxu0 %v1614
      %1698 = vmatprep.subr.mxu0 %v1628
      %1699 = vmatpush1.msra.mxu0 %v1627
      %1700 = vmatprep.subr.mxu0 %v1672
      %1701 = vmatpush1.msra.mxu0 %v1671
      %1702 = vmatprep.subr.mxu0 %v1641
      %1703 = vmatpush1.msra.mxu0 %v1640
      %1704 = vmatprep.subr.mxu0 0.0
      %1705 = vmatpush1.msra.mxu0 0.0
      %1706 = vmatprep.subr.mxu0 0.0
      %1707 = vmatpush1.msra.mxu0 0.0
      %1708 = vmatprep.subr.mxu0 0.0
      %1709 = vmatpush1.msra.mxu0 0.0
      %1710 = vmatprep.subr.mxu0 0.0
      %1711 = vmatpush1.msra.mxu0 0.0
      %1712 = vmatprep.subr.mxu0 0.0
      %1713 = vmatpush1.msra.mxu0 0.0
      %1714 = vmatprep.subr.mxu0 0.0
      %1715 = vmatpush1.msra.mxu0 0.0
      %1716 = vmatprep.subr.mxu0 0.0
      %1717 = vmatpush1.msra.mxu0 0.0
      %1718 = vmatprep.subr.mxu0 0.0
      %1719 = vmatpush1.msra.mxu0 0.0
      %1720 = vmatprep.subr.mxu0 0.0
      %1721 = vmatpush1.msra.mxu0 0.0
      %1722 = vmatprep.subr.mxu0 0.0
      %1723 = vmatpush1.msra.mxu0 0.0
      %1724 = vmatprep.subr.mxu0 0.0
      %1725 = vmatpush1.msra.mxu0 0.0
      %1726 = vmatprep.subr.mxu0 0.0
      %1727 = vmatpush1.msra.mxu0 0.0
      %1728 = vmatprep.subr.mxu0 0.0
      %1729 = vmatpush1.msra.mxu0 0.0
      %1730 = vmatprep.subr.mxu0 0.0
      %1731 = vmatpush1.msra.mxu0 0.0
      %1732 = vmatprep.subr.mxu0 0.0
      %1733 = vmatpush1.msra.mxu0 0.0
      %1734 = vmatprep.subr.mxu0 0.0
      %1735 = vmatpush1.msra.mxu0 0.0
      %1736 = vmatprep.subr.mxu0 0.0
      %1737 = vmatpush1.msra.mxu0 0.0
      %1738 = vmatprep.subr.mxu0 0.0
      %1739 = vmatpush1.msra.mxu0 0.0
      %1740 = vmatprep.subr.mxu0 0.0
      %1741 = vmatpush1.msra.mxu0 0.0
      %1742 = vmatprep.subr.mxu0 0.0
      %1743 = vmatpush1.msra.mxu0 0.0
      %1744 = vmatprep.subr.mxu0 0.0
      %1745 = vmatpush1.msra.mxu0 0.0
      %1746 = vmatprep.subr.mxu0 0.0
      %1747 = vmatpush1.msra.mxu0 0.0
      %1748 = vmatprep.subr.mxu0 0.0
      %1749 = vmatpush1.msra.mxu0 0.0
      %1750 = vmatprep.mubr.f32.mxu0 0.0
      %1751 = vmatmul.mubr.f32.gmra.mrb[0].mxu0 %v1684
      %v1752 = vpop.f32.mrb[0].mxu0
      %v1753 = vadd.f32 %v1680, %v1752
      %v1754 = vpop.f32.mrb[0].mxu0
      %v1755 = vadd.f32 %v1680, %v1754
      %1756 = vdwg.mxu0
      %v1757 = vadd.f32 %v1753, %v1755
      %1758 = vadd.xlane.f32.xlu0 %v1757
      %v1759 = vpop.xlane.xlu0 %1758
      %v1760 = vmul.f32 %v1759, 0.00390625
      %v1761 = vmul.f32 %v1753, %v1753
      %v1762 = vmul.f32 %v1755, %v1755
      %v1763 = vadd.f32 %v1761, %v1762
      %1764 = vadd.xlane.f32.xlu0 %v1763
      %v1765 = vpop.xlane.xlu0 %1764
      %v1766 = vmul.f32 %v1765, 0.00390625
      %v1767 = vmul.f32 %v1760, %v1760
      %v1768 = vsub.f32 %v1766, %v1767
      %v1769 = vmax.f32 %v1768, 0.0
      %v1770 = vsub.f32 %v1753, %v1760
      %v1771 = vsub.f32 %v1755, %v1760
      %v1772 = vadd.f32 %v1769, 1e-05
      %v1773 = vrsqrt.pop %v1772
      %v1774 = vmul.f32 %v1770, %v1773
      %v1775 = vmul.f32 %v1771, %v1773
      %v1776 = vld [vmem:[%s7] sm:$0xff]
      %1778 = vset.pattern.permute.xlu0 0
      %1779 = vperm.xlu0 %1778, %v1776
      %v1780 = vpop.permute.xlu0 %1779
      %v1782 = vmul.f32 %v1774, %v1780
      %v1783 = vmul.f32 %v1775, %v1780
      %v1784 = vld [vmem:[%s9] sm:$0xff]
      %1786 = vset.pattern.permute.xlu0 0
      %1787 = vperm.xlu0 %1786, %v1784
      %v1788 = vpop.permute.xlu0 %1787
      %v1790 = vadd.f32 %v1782, %v1788
      %v1791 = vadd.f32 %v1783, %v1788
      %v1792 = vmax.f32 %v1790, 0.0
      %v1793 = vmax.f32 %v1791, 0.0
      %1796 = vrot.lane.b32.xlu0 %v1792, 17
      %v1797 = vpop.permute.xlu0 %1796
      %1798 = vrot.lane.b32.xlu0 %v1793, 17
      %v1799 = vpop.permute.xlu0 %1798
      %v1800 = vsel %vm1558, %v1797, %v1799
      %v1804 = vsel %vm1558, 0.0, %v1797
      %v1805 = vsel %vm1558, %v1799, 0.0
      %v1806 = vsel %vm1567, %v1804, 0.0
      %v1807 = vsel %vm1568, %v1800, 0.0
      %1810 = vrot.lane.b32.xlu0 %v1804, 126
      %v1811 = vpop.permute.xlu0 %1810
      %1812 = vrot.lane.b32.xlu0 %v1800, 126
      %v1813 = vpop.permute.xlu0 %1812
      %1814 = vrot.lane.b32.xlu0 %v1805, 126
      %v1815 = vpop.permute.xlu0 %1814
      %v1816 = vsel %vm1583, %v1811, %v1813
      %v1817 = vsel %vm1583, %v1813, %v1815
      %v1820 = vsel %vm1573, %v1816, 0.0
      %v1821 = vsel %vm1574, %v1817, 0.0
      %1822 = vrot.lane.b32.xlu0 %v1804, 112
      %v1823 = vpop.permute.xlu0 %1822
      %1824 = vrot.lane.b32.xlu0 %v1800, 112
      %v1825 = vpop.permute.xlu0 %1824
      %1826 = vrot.lane.b32.xlu0 %v1805, 112
      %v1827 = vpop.permute.xlu0 %1826
      %v1828 = vsel %vm1596, %v1823, %v1825
      %v1829 = vsel %vm1596, %v1825, %v1827
      %v1832 = vsel %vm1567, %v1828, 0.0
      %v1833 = vsel %vm1568, %v1829, 0.0
      %1834 = vrot.lane.b32.xlu0 %v1804, 110
      %v1835 = vpop.permute.xlu0 %1834
      %1836 = vrot.lane.b32.xlu0 %v1800, 110
      %v1837 = vpop.permute.xlu0 %1836
      %1838 = vrot.lane.b32.xlu0 %v1805, 110
      %v1839 = vpop.permute.xlu0 %1838
      %v1840 = vsel %vm1609, %v1835, %v1837
      %v1841 = vsel %vm1609, %v1837, %v1839
      %v1844 = vsel %vm1573, %v1840, 0.0
      %v1845 = vsel %vm1574, %v1841, 0.0
      %1846 = vrot.lane.b32.xlu0 %v1804, 96
      %v1847 = vpop.permute.xlu0 %1846
      %1848 = vrot.lane.b32.xlu0 %v1800, 96
      %v1849 = vpop.permute.xlu0 %1848
      %1850 = vrot.lane.b32.xlu0 %v1805, 96
      %v1851 = vpop.permute.xlu0 %1850
      %v1852 = vsel %vm1622, %v1847, %v1849
      %v1853 = vsel %vm1622, %v1849, %v1851
      %v1856 = vsel %vm1567, %v1852, 0.0
      %v1857 = vsel %vm1568, %v1853, 0.0
      %1858 = vrot.lane.b32.xlu0 %v1804, 94
      %v1859 = vpop.permute.xlu0 %1858
      %1860 = vrot.lane.b32.xlu0 %v1800, 94
      %v1861 = vpop.permute.xlu0 %1860
      %1862 = vrot.lane.b32.xlu0 %v1805, 94
      %v1863 = vpop.permute.xlu0 %1862
      %v1864 = vsel %vm1635, %v1859, %v1861
      %v1865 = vsel %vm1635, %v1861, %v1863
      %v1868 = vsel %vm1573, %v1864, 0.0
      %v1869 = vsel %vm1574, %v1865, 0.0
      %1870 = vrot.lane.b32.xlu0 %v1804, 127
      %v1871 = vpop.permute.xlu0 %1870
      %1872 = vrot.lane.b32.xlu0 %v1800, 127
      %v1873 = vpop.permute.xlu0 %1872
      %1874 = vrot.lane.b32.xlu0 %v1805, 127
      %v1875 = vpop.permute.xlu0 %1874
      %v1876 = vsel %vm1648, %v1871, %v1873
      %v1877 = vsel %vm1648, %v1873, %v1875
      %1880 = vrot.lane.b32.xlu0 %v1804, 111
      %v1881 = vpop.permute.xlu0 %1880
      %1882 = vrot.lane.b32.xlu0 %v1800, 111
      %v1883 = vpop.permute.xlu0 %1882
      %1884 = vrot.lane.b32.xlu0 %v1805, 111
      %v1885 = vpop.permute.xlu0 %1884
      %v1886 = vsel %vm1659, %v1881, %v1883
      %v1887 = vsel %vm1659, %v1883, %v1885
      %1890 = vrot.lane.b32.xlu0 %v1804, 95
      %v1891 = vpop.permute.xlu0 %1890
      %1892 = vrot.lane.b32.xlu0 %v1800, 95
      %v1893 = vpop.permute.xlu0 %1892
      %1894 = vrot.lane.b32.xlu0 %v1805, 95
      %v1895 = vpop.permute.xlu0 %1894
      %v1896 = vsel %vm1670, %v1891, %v1893
      %v1897 = vsel %vm1670, %v1893, %v1895
      %v1900 = vld [vmem:[%s11] sm:$0xff]
      %v1901 = vld [vmem:[%s13] sm:$0xff]
      %1903 = vset.pattern.permute.xlu0 0
      %1904 = vperm.xlu0 %1903, %v1901
      %v1905 = vpop.permute.xlu0 %1904
      %v1908 = vsel %vm1682, %v1900, 0
      %1910 = vmatprep.subr.mxu0 %v1807
      %1911 = vmatpush1.msra.mxu0 %v1806
      %1912 = vmatprep.subr.mxu0 %v1877
      %1913 = vmatpush1.msra.mxu0 %v1876
      %1914 = vmatprep.subr.mxu0 %v1821
      %1915 = vmatpush1.msra.mxu0 %v1820
      %1916 = vmatprep.subr.mxu0 %v1833
      %1917 = vmatpush1.msra.mxu0 %v1832
      %1918 = vmatprep.subr.mxu0 %v1887
      %1919 = vmatpush1.msra.mxu0 %v1886
      %1920 = vmatprep.subr.mxu0 %v1845
      %1921 = vmatpush1.msra.mxu0 %v1844
      %1922 = vmatprep.subr.mxu0 %v1857
      %1923 = vmatpush1.msra.mxu0 %v1856
      %1924 = vmatprep.subr.mxu0 %v1897
      %1925 = vmatpush1.msra.mxu0 %v1896
      %1926 = vmatprep.subr.mxu0 %v1869
      %1927 = vmatpush1.msra.mxu0 %v1868
      %1928 = vmatprep.subr.mxu0 0.0
      %1929 = vmatpush1.msra.mxu0 0.0
      %1930 = vmatprep.subr.mxu0 0.0
      %1931 = vmatpush1.msra.mxu0 0.0
      %1932 = vmatprep.subr.mxu0 0.0
      %1933 = vmatpush1.msra.mxu0 0.0
      %1934 = vmatprep.subr.mxu0 0.0
      %1935 = vmatpush1.msra.mxu0 0.0
      %1936 = vmatprep.subr.mxu0 0.0
      %1937 = vmatpush1.msra.mxu0 0.0
      %1938 = vmatprep.subr.mxu0 0.0
      %1939 = vmatpush1.msra.mxu0 0.0
      %1940 = vmatprep.subr.mxu0 0.0
      %1941 = vmatpush1.msra.mxu0 0.0
      %1942 = vmatprep.subr.mxu0 0.0
      %1943 = vmatpush1.msra.mxu0 0.0
      %1944 = vmatprep.subr.mxu0 0.0
      %1945 = vmatpush1.msra.mxu0 0.0
      %1946 = vmatprep.subr.mxu0 0.0
      %1947 = vmatpush1.msra.mxu0 0.0
      %1948 = vmatprep.subr.mxu0 0.0
      %1949 = vmatpush1.msra.mxu0 0.0
      %1950 = vmatprep.subr.mxu0 0.0
      %1951 = vmatpush1.msra.mxu0 0.0
      %1952 = vmatprep.subr.mxu0 0.0
      %1953 = vmatpush1.msra.mxu0 0.0
      %1954 = vmatprep.subr.mxu0 0.0
      %1955 = vmatpush1.msra.mxu0 0.0
      %1956 = vmatprep.subr.mxu0 0.0
      %1957 = vmatpush1.msra.mxu0 0.0
      %1958 = vmatprep.subr.mxu0 0.0
      %1959 = vmatpush1.msra.mxu0 0.0
      %1960 = vmatprep.subr.mxu0 0.0
      %1961 = vmatpush1.msra.mxu0 0.0
      %1962 = vmatprep.subr.mxu0 0.0
      %1963 = vmatpush1.msra.mxu0 0.0
      %1964 = vmatprep.subr.mxu0 0.0
      %1965 = vmatpush1.msra.mxu0 0.0
      %1966 = vmatprep.subr.mxu0 0.0
      %1967 = vmatpush1.msra.mxu0 0.0
      %1968 = vmatprep.subr.mxu0 0.0
      %1969 = vmatpush1.msra.mxu0 0.0
      %1970 = vmatprep.subr.mxu0 0.0
      %1971 = vmatpush1.msra.mxu0 0.0
      %1972 = vmatprep.subr.mxu0 0.0
      %1973 = vmatpush1.msra.mxu0 0.0
      %1974 = vmatprep.mubr.f32.mxu0 0.0
      %1975 = vmatmul.mubr.f32.gmra.mrb[0].mxu0 %v1908
      %v1976 = vpop.f32.mrb[0].mxu0
      %v1977 = vadd.f32 %v1905, %v1976
      %v1978 = vpop.f32.mrb[0].mxu0
      %v1979 = vadd.f32 %v1905, %v1978
      %1980 = vdwg.mxu0
      %v1981 = vadd.f32 %v1977, %v1979
      %1982 = vadd.xlane.f32.xlu0 %v1981
      %v1983 = vpop.xlane.xlu0 %1982
      %v1984 = vmul.f32 %v1983, 0.00390625
      %v1985 = vmul.f32 %v1977, %v1977
      %v1986 = vmul.f32 %v1979, %v1979
      %v1987 = vadd.f32 %v1985, %v1986
      %1988 = vadd.xlane.f32.xlu0 %v1987
      %v1989 = vpop.xlane.xlu0 %1988
      %v1990 = vmul.f32 %v1989, 0.00390625
      %v1991 = vmul.f32 %v1984, %v1984
      %v1992 = vsub.f32 %v1990, %v1991
      %v1993 = vmax.f32 %v1992, 0.0
      %v1994 = vsub.f32 %v1977, %v1984
      %v1995 = vsub.f32 %v1979, %v1984
      %v1996 = vadd.f32 %v1993, 1e-05
      %v1997 = vrsqrt.pop %v1996
      %v1998 = vmul.f32 %v1994, %v1997
      %v1999 = vmul.f32 %v1995, %v1997
      %v2000 = vld [vmem:[%s15] sm:$0xff]
      %2002 = vset.pattern.permute.xlu0 0
      %2003 = vperm.xlu0 %2002, %v2000
      %v2004 = vpop.permute.xlu0 %2003
      %v2006 = vmul.f32 %v1998, %v2004
      %v2007 = vmul.f32 %v1999, %v2004
      %v2008 = vld [vmem:[%s17] sm:$0xff]
      %2010 = vset.pattern.permute.xlu0 0
      %2011 = vperm.xlu0 %2010, %v2008
      %v2012 = vpop.permute.xlu0 %2011
      %v2014 = vadd.f32 %v2006, %v2012
      %v2015 = vadd.f32 %v2007, %v2012
      %v2016 = vmax.f32 %v2014, 0.0
      %v2017 = vmax.f32 %v2015, 0.0
      %2020 = vrot.lane.b32.xlu0 %v2016, 127
      %v2021 = vpop.permute.xlu0 %2020
      %2022 = vrot.lane.b32.xlu0 %v2017, 127
      %v2023 = vpop.permute.xlu0 %2022
      %v2024 = vsel %vm1648, %v2021, %v2023
      %v2027 = vsel %vm1648, %v2023, 0.0
      %v2028 = vmax.f32 %v2016, %v2024
      %v2029 = vmax.f32 %v2017, %v2027
      %2030 = vrot.lane.b32.xlu0 %v2016, 112
      %v2031 = vpop.permute.xlu0 %2030
      %2032 = vrot.lane.b32.xlu0 %v2017, 112
      %v2033 = vpop.permute.xlu0 %2032
      %v2034 = vsel %vm1596, %v2031, %v2033
      %v2037 = vsel %vm1596, %v2033, 0.0
      %2038 = vrot.lane.b32.xlu0 %v2016, 111
      %v2039 = vpop.permute.xlu0 %2038
      %2040 = vrot.lane.b32.xlu0 %v2017, 111
      %v2041 = vpop.permute.xlu0 %2040
      %v2042 = vsel %vm1659, %v2039, %v2041
      %v2045 = vsel %vm1659, %v2041, 0.0
      %v2046 = vmax.f32 %v2034, %v2042
      %v2047 = vmax.f32 %v2037, %v2045
      %v2048 = vmax.f32 %v2028, %v2046
      %v2049 = vmax.f32 %v2029, %v2047
      %v2050 = vld [vmem:[%s19] sm:$0xff]
      %v2051 = vld [vmem:[%s19 + $0x8] sm:$0xff]
      %v2052 = vld [vmem:[%s19 + $0x10] sm:$0xff]
      %v2053 = vld [vmem:[%s19 + $0x18] sm:$0xff]
      %v2054 = vld [vmem:[%s19 + $0x20] sm:$0xff]
      %v2055 = vld [vmem:[%s19 + $0x28] sm:$0xff]
      %v2056 = vld [vmem:[%s19 + $0x30] sm:$0xff]
      %v2057 = vld [vmem:[%s19 + $0x38] sm:$0xff]
      %v2058 = vld [vmem:[%s19 + $0x40] sm:$0xff]
      %v2059 = vld [vmem:[%s19 + $0x48] sm:$0xff]
      %v2060 = vld [vmem:[%s19 + $0x50] sm:$0xff]
      %v2061 = vld [vmem:[%s19 + $0x58] sm:$0xff]
      %v2062 = vld [vmem:[%s19 + $0x60] sm:$0xff]
      %v2063 = vld [vmem:[%s19 + $0x68] sm:$0xff]
      %v2064 = vld [vmem:[%s19 + $0x70] sm:$0xff]
      %v2065 = vld [vmem:[%s19 + $0x78] sm:$0xff]
      %v2066 = vld [vmem:[%s19 + $0x80] sm:$0xff]
      %v2067 = vld [vmem:[%s19 + $0x88] sm:$0xff]
      %v2068 = vld [vmem:[%s19 + $0x90] sm:$0xff]
      %v2069 = vld [vmem:[%s19 + $0x98] sm:$0xff]
      %v2070 = vld [vmem:[%s19 + $0xa0] sm:$0xff]
      %v2071 = vld [vmem:[%s19 + $0xa8] sm:$0xff]
      %v2072 = vld [vmem:[%s19 + $0xb0] sm:$0xff]
      %v2073 = vld [vmem:[%s19 + $0xb8] sm:$0xff]
      %v2074 = vld [vmem:[%s19 + $0xc0] sm:$0xff]
      %v2075 = vld [vmem:[%s19 + $0xc8] sm:$0xff]
      %v2076 = vld [vmem:[%s19 + $0xd0] sm:$0xff]
      %v2077 = vld [vmem:[%s19 + $0xd8] sm:$0xff]
      %v2078 = vld [vmem:[%s19 + $0xe0] sm:$0xff]
      %v2079 = vld [vmem:[%s19 + $0xe8] sm:$0xff]
      %v2080 = vld [vmem:[%s19 + $0xf0] sm:$0xff]
      %v2081 = vld [vmem:[%s19 + $0xf8] sm:$0xff]
      %2082 = vmatprep.subr.mxu0 0.0
      %2083 = vmatpush1.msra.mxu0 %v2050
      %2084 = vmatprep.subr.mxu0 0.0
      %2085 = vmatpush1.msra.mxu0 %v2051
      %2086 = vmatprep.subr.mxu0 0.0
      %2087 = vmatpush1.msra.mxu0 %v2052
      %2088 = vmatprep.subr.mxu0 0.0
      %2089 = vmatpush1.msra.mxu0 %v2053
      %2090 = vmatprep.subr.mxu0 0.0
      %2091 = vmatpush1.msra.mxu0 %v2054
      %2092 = vmatprep.subr.mxu0 0.0
      %2093 = vmatpush1.msra.mxu0 %v2055
      %2094 = vmatprep.subr.mxu0 0.0
      %2095 = vmatpush1.msra.mxu0 %v2056
      %2096 = vmatprep.subr.mxu0 0.0
      %2097 = vmatpush1.msra.mxu0 %v2057
      %2098 = vmatprep.subr.mxu0 0.0
      %2099 = vmatpush1.msra.mxu0 %v2058
      %2100 = vmatprep.subr.mxu0 0.0
      %2101 = vmatpush1.msra.mxu0 %v2059
      %2102 = vmatprep.subr.mxu0 0.0
      %2103 = vmatpush1.msra.mxu0 %v2060
      %2104 = vmatprep.subr.mxu0 0.0
      %2105 = vmatpush1.msra.mxu0 %v2061
      %2106 = vmatprep.subr.mxu0 0.0
      %2107 = vmatpush1.msra.mxu0 %v2062
      %2108 = vmatprep.subr.mxu0 0.0
      %2109 = vmatpush1.msra.mxu0 %v2063
      %2110 = vmatprep.subr.mxu0 0.0
      %2111 = vmatpush1.msra.mxu0 %v2064
      %2112 = vmatprep.subr.mxu0 0.0
      %2113 = vmatpush1.msra.mxu0 %v2065
      %2114 = vmatprep.subr.mxu0 0.0
      %2115 = vmatpush1.msra.mxu0 %v2066
      %2116 = vmatprep.subr.mxu0 0.0
      %2117 = vmatpush1.msra.mxu0 %v2067
      %2118 = vmatprep.subr.mxu0 0.0
      %2119 = vmatpush1.msra.mxu0 %v2068
      %2120 = vmatprep.subr.mxu0 0.0
      %2121 = vmatpush1.msra.mxu0 %v2069
      %2122 = vmatprep.subr.mxu0 0.0
      %2123 = vmatpush1.msra.mxu0 %v2070
      %2124 = vmatprep.subr.mxu0 0.0
      %2125 = vmatpush1.msra.mxu0 %v2071
      %2126 = vmatprep.subr.mxu0 0.0
      %2127 = vmatpush1.msra.mxu0 %v2072
      %2128 = vmatprep.subr.mxu0 0.0
      %2129 = vmatpush1.msra.mxu0 %v2073
      %2130 = vmatprep.subr.mxu0 0.0
      %2131 = vmatpush1.msra.mxu0 %v2074
      %2132 = vmatprep.subr.mxu0 0.0
      %2133 = vmatpush1.msra.mxu0 %v2075
      %2134 = vmatprep.subr.mxu0 0.0
      %2135 = vmatpush1.msra.mxu0 %v2076
      %2136 = vmatprep.subr.mxu0 0.0
      %2137 = vmatpush1.msra.mxu0 %v2077
      %2138 = vmatprep.subr.mxu0 0.0
      %2139 = vmatpush1.msra.mxu0 %v2078
      %2140 = vmatprep.subr.mxu0 0.0
      %2141 = vmatpush1.msra.mxu0 %v2079
      %2142 = vmatprep.subr.mxu0 0.0
      %2143 = vmatpush1.msra.mxu0 %v2080
      %2144 = vmatprep.subr.mxu0 0.0
      %2145 = vmatpush1.msra.mxu0 %v2081
      %2146 = vmatprep.mubr.f32.mxu0 %v2049
      %2147 = vmatmul.mubr.f32.gmra.mrb[0].mxu0 %v2048
      %v2148 = vpop.f32.mrb[0].mxu0
      %v2149 = vadd.f32 0.0, %v2148
      %v2150 = vpop.f32.mrb[0].mxu0
      %2151 = vdwg.mxu0
      %vm2152 = vcmp.lt.s32.totalorder %v1522, 0
      %v2153 = vsub.s32 0, %v1522
      %v2154 = vsel %vm2152, %v2153, %v1522
      %v2155 = vshrl.u32 %v2154, 3
      %v2156 = vand.u32 %v2154, 7
      %v2157 = vsub.s32 0, %v2156
      %v2158 = vsel %vm2152, %v2157, %v2156
      %vm2159 = vcmp.ne.s32.totalorder %v2158, 0
      %vm2160 = vcmp.lt.s32.totalorder %v2158, 0
      %vm2161 = vmand %vm2160, %vm2159
      %v2162 = vadd.s32 %v2158, 8
      %v2163 = vsel %vm2161, %v2162, %v2158
      %vm2164 = vcmp.ne.s32.totalorder %v2163, 0
      %vm2165 = vcmp.ne.s32.totalorder %v2163, 7
      %2167 = vrot.lane.b32.xlu0 %v2149, 9
      %v2168 = vpop.permute.xlu0 %2167
      %vm2170 = vcmask 72704
      %v2171 = vsel %vm2170, 0.0, %v2168
      %vm2172 = vcmask 596992
      %v2173 = vsel %vm2172, %v2171, 0.0
      %v2174 = vsel %vm2164, 1, 0
      %vm2175 = vcmp.eq.s32.totalorder %v2174, 1
      %v2176 = vsel %vm2175, %v2173, 0.0
      %v2177 = vsel %vm2165, 1, 0
      %vm2178 = vcmp.eq.s32.totalorder %v2177, 1
      %2180 = vrot.lane.b32.xlu0 %v2173, 126
      %v2181 = vpop.permute.xlu0 %2180
      %v2183 = vsel %vm2178, %v2181, 0.0
      %2184 = vrot.lane.b32.xlu0 %v2173, 120
      %v2185 = vpop.permute.xlu0 %2184
      %v2187 = vsel %vm2175, %v2185, 0.0
      %2188 = vrot.lane.b32.xlu0 %v2173, 118
      %v2189 = vpop.permute.xlu0 %2188
      %v2191 = vsel %vm2178, %v2189, 0.0
      %2192 = vrot.lane.b32.xlu0 %v2173, 112
      %v2193 = vpop.permute.xlu0 %2192
      %v2195 = vsel %vm2175, %v2193, 0.0
      %2196 = vrot.lane.b32.xlu0 %v2173, 110
      %v2197 = vpop.permute.xlu0 %2196
      %v2199 = vsel %vm2178, %v2197, 0.0
      %2200 = vrot.lane.b32.xlu0 %v2173, 127
      %v2201 = vpop.permute.xlu0 %2200
      %2203 = vrot.lane.b32.xlu0 %v2173, 119
      %v2204 = vpop.permute.xlu0 %2203
      %2206 = vrot.lane.b32.xlu0 %v2173, 111
      %v2207 = vpop.permute.xlu0 %2206
      %v2209 = vld [vmem:[%s21] sm:$0xff]
      %v2210 = vld [vmem:[%s21 + $0x8] sm:$0xff]
      %v2211 = vld [vmem:[%s23] sm:$0xff]
      %v2212 = vld [vmem:[%s23 + $0x8] sm:$0xff]
      %2214 = vset.pattern.permute.xlu0 0
      %2215 = vperm.xlu0 %2214, %v2211
      %v2216 = vpop.permute.xlu0 %2215
      %2219 = vset.pattern.permute.xlu0 0
      %2220 = vperm.xlu0 %2219, %v2212
      %v2221 = vpop.permute.xlu0 %2220
      %v2224 = vsel %vm1682, %v2209, 0
      %v2227 = vsel %vm1682, %v2210, 0
      %2229 = vmatprep.subr.mxu0 0.0
      %2230 = vmatpush1.msra.mxu0 %v2176
      %2231 = vmatprep.subr.mxu0 0.0
      %2232 = vmatpush1.msra.mxu0 %v2201
      %2233 = vmatprep.subr.mxu0 0.0
      %2234 = vmatpush1.msra.mxu0 %v2183
      %2235 = vmatprep.subr.mxu0 0.0
      %2236 = vmatpush1.msra.mxu0 %v2187
      %2237 = vmatprep.subr.mxu0 0.0
      %2238 = vmatpush1.msra.mxu0 %v2204
      %2239 = vmatprep.subr.mxu0 0.0
      %2240 = vmatpush1.msra.mxu0 %v2191
      %2241 = vmatprep.subr.mxu0 0.0
      %2242 = vmatpush1.msra.mxu0 %v2195
      %2243 = vmatprep.subr.mxu0 0.0
      %2244 = vmatpush1.msra.mxu0 %v2207
      %2245 = vmatprep.subr.mxu0 0.0
      %2246 = vmatpush1.msra.mxu0 %v2199
      %2247 = vmatprep.subr.mxu0 0.0
      %2248 = vmatpush1.msra.mxu0 0.0
      %2249 = vmatprep.subr.mxu0 0.0
      %2250 = vmatpush1.msra.mxu0 0.0
      %2251 = vmatprep.subr.mxu0 0.0
      %2252 = vmatpush1.msra.mxu0 0.0
      %2253 = vmatprep.subr.mxu0 0.0
      %2254 = vmatpush1.msra.mxu0 0.0
      %2255 = vmatprep.subr.mxu0 0.0
      %2256 = vmatpush1.msra.mxu0 0.0
      %2257 = vmatprep.subr.mxu0 0.0
      %2258 = vmatpush1.msra.mxu0 0.0
      %2259 = vmatprep.subr.mxu0 0.0
      %2260 = vmatpush1.msra.mxu0 0.0
      %2261 = vmatprep.subr.mxu0 0.0
      %2262 = vmatpush1.msra.mxu0 0.0
      %2263 = vmatprep.subr.mxu0 0.0
      %2264 = vmatpush1.msra.mxu0 0.0
      %2265 = vmatprep.subr.mxu0 0.0
      %2266 = vmatpush1.msra.mxu0 0.0
      %2267 = vmatprep.subr.mxu0 0.0
      %2268 = vmatpush1.msra.mxu0 0.0
      %2269 = vmatprep.subr.mxu0 0.0
      %2270 = vmatpush1.msra.mxu0 0.0
      %2271 = vmatprep.subr.mxu0 0.0
      %2272 = vmatpush1.msra.mxu0 0.0
      %2273 = vmatprep.subr.mxu0 0.0
      %2274 = vmatpush1.msra.mxu0 0.0
      %2275 = vmatprep.subr.mxu0 0.0
      %2276 = vmatpush1.msra.mxu0 0.0
      %2277 = vmatprep.subr.mxu0 0.0
      %2278 = vmatpush1.msra.mxu0 0.0
      %2279 = vmatprep.subr.mxu0 0.0
      %2280 = vmatpush1.msra.mxu0 0.0
      %2281 = vmatprep.subr.mxu0 0.0
      %2282 = vmatpush1.msra.mxu0 0.0
      %2283 = vmatprep.subr.mxu0 0.0
      %2284 = vmatpush1.msra.mxu0 0.0
      %2285 = vmatprep.subr.mxu0 0.0
      %2286 = vmatpush1.msra.mxu0 0.0
      %2287 = vmatprep.subr.mxu0 0.0
      %2288 = vmatpush1.msra.mxu0 0.0
      %2289 = vmatprep.subr.mxu0 0.0
      %2290 = vmatpush1.msra.mxu0 0.0
      %2291 = vmatprep.subr.mxu0 0.0
      %2292 = vmatpush1.msra.mxu0 0.0
      %2293 = vmatprep.mubr.f32.mxu0 0.0
      %2294 = vmatmul.mubr.f32.gmra.mrb[0].mxu0 %v2224
      %v2295 = vpop.f32.mrb[0].mxu0
      %v2296 = vadd.f32 %v2216, %v2295
      %v2297 = vpop.f32.mrb[0].mxu0
      %2298 = vmatprep.mubr.f32.mxu0 0.0
      %2299 = vmatmul.mubr.f32.gmra.mrb[0].mxu0 %v2227
      %v2300 = vpop.f32.mrb[0].mxu0
      %v2301 = vadd.f32 %v2221, %v2300
      %v2302 = vpop.f32.mrb[0].mxu0
      %2303 = vdwg.mxu0
      %vm2304 = vcmask 523264
      %v2305 = vsel %vm2304, %v2296, 0.0
      %2306 = vadd.xlane.f32.xlu0 %v2305
      %v2307 = vpop.xlane.xlu0 %2306
      %v2308 = vsel %vm2304, %v2301, 0.0
      %2309 = vadd.xlane.f32.xlu0 %v2308
      %v2310 = vpop.xlane.xlu0 %2309
      %v2311 = vmul.f32 %v2307, 0.015625
      %v2312 = vmul.f32 %v2310, 0.015625
      %v2313 = vmul.f32 %v2296, %v2296
      %v2314 = vmul.f32 %v2301, %v2301
      %v2315 = vsel %vm2304, %v2313, 0.0
      %2316 = vadd.xlane.f32.xlu0 %v2315
      %v2317 = vpop.xlane.xlu0 %2316
      %v2318 = vsel %vm2304, %v2314, 0.0
      %2319 = vadd.xlane.f32.xlu0 %v2318
      %v2320 = vpop.xlane.xlu0 %2319
      %v2321 = vmul.f32 %v2317, 0.015625
      %v2322 = vmul.f32 %v2320, 0.015625
      %v2323 = vmul.f32 %v2311, %v2311
      %v2324 = vmul.f32 %v2312, %v2312
      %v2325 = vsub.f32 %v2321, %v2323
      %v2326 = vsub.f32 %v2322, %v2324
      %v2327 = vmax.f32 %v2325, 0.0
      %v2328 = vmax.f32 %v2326, 0.0
      %v2329 = vsub.f32 %v2296, %v2311
      %v2330 = vsub.f32 %v2301, %v2312
      %v2331 = vadd.f32 %v2327, 1e-05
      %v2332 = vadd.f32 %v2328, 1e-05
      %v2333 = vrsqrt.pop %v2331
      %v2334 = vrsqrt.pop %v2332
      %v2335 = vmul.f32 %v2329, %v2333
      %v2336 = vmul.f32 %v2330, %v2334
      %v2337 = vld [vmem:[%s25] sm:$0xff]
      %v2338 = vld [vmem:[%s25 + $0x8] sm:$0xff]
      %2340 = vset.pattern.permute.xlu0 0
      %2341 = vperm.xlu0 %2340, %v2337
      %v2342 = vpop.permute.xlu0 %2341
      %2345 = vset.pattern.permute.xlu0 0
      %2346 = vperm.xlu0 %2345, %v2338
      %v2347 = vpop.permute.xlu0 %2346
      %v2349 = vmul.f32 %v2335, %v2342
      %v2350 = vmul.f32 %v2336, %v2347
      %v2351 = vld [vmem:[%s27] sm:$0xff]
      %v2352 = vld [vmem:[%s27 + $0x8] sm:$0xff]
      %2354 = vset.pattern.permute.xlu0 0
      %2355 = vperm.xlu0 %2354, %v2351
      %v2356 = vpop.permute.xlu0 %2355
      %2359 = vset.pattern.permute.xlu0 0
      %2360 = vperm.xlu0 %2359, %v2352
      %v2361 = vpop.permute.xlu0 %2360
      %v2363 = vadd.f32 %v2349, %v2356
      %v2364 = vadd.f32 %v2350, %v2361
      %v2365 = vmax.f32 %v2363, 0.0
      %v2366 = vmax.f32 %v2364, 0.0
      %2369 = vrot.lane.b32.xlu0 %v2365, 9
      %v2370 = vpop.permute.xlu0 %2369
      %2371 = vrot.lane.b32.xlu0 %v2366, 9
      %v2372 = vpop.permute.xlu0 %2371
      %v2375 = vsel %vm2170, 0.0, %v2370
      %v2376 = vsel %vm2170, 0.0, %v2372
      %v2377 = vsel %vm2172, %v2375, 0.0
      %v2378 = vsel %vm2172, %v2376, 0.0
      %v2379 = vsel %vm2175, %v2377, 0.0
      %v2380 = vsel %vm2175, %v2378, 0.0
      %2383 = vrot.lane.b32.xlu0 %v2377, 126
      %v2384 = vpop.permute.xlu0 %2383
      %2385 = vrot.lane.b32.xlu0 %v2378, 126
      %v2386 = vpop.permute.xlu0 %2385
      %v2389 = vsel %vm2178, %v2384, 0.0
      %v2390 = vsel %vm2178, %v2386, 0.0
      %2391 = vrot.lane.b32.xlu0 %v2377, 120
      %v2392 = vpop.permute.xlu0 %2391
      %2393 = vrot.lane.b32.xlu0 %v2378, 120
      %v2394 = vpop.permute.xlu0 %2393
      %v2397 = vsel %vm2175, %v2392, 0.0
      %v2398 = vsel %vm2175, %v2394, 0.0
      %2399 = vrot.lane.b32.xlu0 %v2377, 118
      %v2400 = vpop.permute.xlu0 %2399
      %2401 = vrot.lane.b32.xlu0 %v2378, 118
      %v2402 = vpop.permute.xlu0 %2401
      %v2405 = vsel %vm2178, %v2400, 0.0
      %v2406 = vsel %vm2178, %v2402, 0.0
      %2407 = vrot.lane.b32.xlu0 %v2377, 112
      %v2408 = vpop.permute.xlu0 %2407
      %2409 = vrot.lane.b32.xlu0 %v2378, 112
      %v2410 = vpop.permute.xlu0 %2409
      %v2413 = vsel %vm2175, %v2408, 0.0
      %v2414 = vsel %vm2175, %v2410, 0.0
      %2415 = vrot.lane.b32.xlu0 %v2377, 110
      %v2416 = vpop.permute.xlu0 %2415
      %2417 = vrot.lane.b32.xlu0 %v2378, 110
      %v2418 = vpop.permute.xlu0 %2417
      %v2421 = vsel %vm2178, %v2416, 0.0
      %v2422 = vsel %vm2178, %v2418, 0.0
      %2423 = vrot.lane.b32.xlu0 %v2377, 127
      %v2424 = vpop.permute.xlu0 %2423
      %2425 = vrot.lane.b32.xlu0 %v2378, 127
      %v2426 = vpop.permute.xlu0 %2425
      %2429 = vrot.lane.b32.xlu0 %v2377, 119
      %v2430 = vpop.permute.xlu0 %2429
      %2431 = vrot.lane.b32.xlu0 %v2378, 119
      %v2432 = vpop.permute.xlu0 %2431
      %2435 = vrot.lane.b32.xlu0 %v2377, 111
      %v2436 = vpop.permute.xlu0 %2435
      %2437 = vrot.lane.b32.xlu0 %v2378, 111
      %v2438 = vpop.permute.xlu0 %2437
      %v2441 = vld [vmem:[%s29] sm:$0xff]
      %v2442 = vld [vmem:[%s29 + $0x8] sm:$0xff]
      %v2443 = vld [vmem:[%s29 + $0x10] sm:$0xff]
      %v2444 = vld [vmem:[%s29 + $0x18] sm:$0xff]
      %v2445 = vld [vmem:[%s31] sm:$0xff]
      %v2446 = vld [vmem:[%s31 + $0x8] sm:$0xff]
      %2448 = vset.pattern.permute.xlu0 0
      %2449 = vperm.xlu0 %2448, %v2445
      %v2450 = vpop.permute.xlu0 %2449
      %2453 = vset.pattern.permute.xlu0 0
      %2454 = vperm.xlu0 %2453, %v2446
      %v2455 = vpop.permute.xlu0 %2454
      %vm2457 = vcmask 130048
      %v2459 = vsel %vm2457, %v2442, 0
      %v2462 = vsel %vm2457, %v2444, 0
      %2464 = vmatprep.subr.mxu0 0.0
      %2465 = vmatpush1.msra.mxu0 %v2379
      %2466 = vmatprep.subr.mxu0 0.0
      %2467 = vmatpush1.msra.mxu0 %v2380
      %2468 = vmatprep.subr.mxu0 0.0
      %2469 = vmatpush1.msra.mxu0 %v2424
      %2470 = vmatprep.subr.mxu0 0.0
      %2471 = vmatpush1.msra.mxu0 %v2426
      %2472 = vmatprep.subr.mxu0 0.0
      %2473 = vmatpush1.msra.mxu0 %v2389
      %2474 = vmatprep.subr.mxu0 0.0
      %2475 = vmatpush1.msra.mxu0 %v2390
      %2476 = vmatprep.subr.mxu0 0.0
      %2477 = vmatpush1.msra.mxu0 %v2397
      %2478 = vmatprep.subr.mxu0 0.0
      %2479 = vmatpush1.msra.mxu0 %v2398
      %2480 = vmatprep.subr.mxu0 0.0
      %2481 = vmatpush1.msra.mxu0 %v2430
      %2482 = vmatprep.subr.mxu0 0.0
      %2483 = vmatpush1.msra.mxu0 %v2432
      %2484 = vmatprep.subr.mxu0 0.0
      %2485 = vmatpush1.msra.mxu0 %v2405
      %2486 = vmatprep.subr.mxu0 0.0
      %2487 = vmatpush1.msra.mxu0 %v2406
      %2488 = vmatprep.subr.mxu0 0.0
      %2489 = vmatpush1.msra.mxu0 %v2413
      %2490 = vmatprep.subr.mxu0 0.0
      %2491 = vmatpush1.msra.mxu0 %v2414
      %2492 = vmatprep.subr.mxu0 0.0
      %2493 = vmatpush1.msra.mxu0 %v2436
      %2494 = vmatprep.subr.mxu0 0.0
      %2495 = vmatpush1.msra.mxu0 %v2438
      %2496 = vmatprep.subr.mxu0 0.0
      %2497 = vmatpush1.msra.mxu0 %v2421
      %2498 = vmatprep.subr.mxu0 0.0
      %2499 = vmatpush1.msra.mxu0 %v2422
      %2500 = vmatprep.subr.mxu0 0.0
      %2501 = vmatpush1.msra.mxu0 0.0
      %2502 = vmatprep.subr.mxu0 0.0
      %2503 = vmatpush1.msra.mxu0 0.0
      %2504 = vmatprep.subr.mxu0 0.0
      %2505 = vmatpush1.msra.mxu0 0.0
      %2506 = vmatprep.subr.mxu0 0.0
      %2507 = vmatpush1.msra.mxu0 0.0
      %2508 = vmatprep.subr.mxu0 0.0
      %2509 = vmatpush1.msra.mxu0 0.0
      %2510 = vmatprep.subr.mxu0 0.0
      %2511 = vmatpush1.msra.mxu0 0.0
      %2512 = vmatprep.subr.mxu0 0.0
      %2513 = vmatpush1.msra.mxu0 0.0
      %2514 = vmatprep.subr.mxu0 0.0
      %2515 = vmatpush1.msra.mxu0 0.0
      %2516 = vmatprep.subr.mxu0 0.0
      %2517 = vmatpush1.msra.mxu0 0.0
      %2518 = vmatprep.subr.mxu0 0.0
      %2519 = vmatpush1.msra.mxu0 0.0
      %2520 = vmatprep.subr.mxu0 0.0
      %2521 = vmatpush1.msra.mxu0 0.0
      %2522 = vmatprep.subr.mxu0 0.0
      %2523 = vmatpush1.msra.mxu0 0.0
      %2524 = vmatprep.subr.mxu0 0.0
      %2525 = vmatpush1.msra.mxu0 0.0
      %2526 = vmatprep.subr.mxu0 0.0
      %2527 = vmatpush1.msra.mxu0 0.0
      %2528 = vmatprep.mubr.f32.mxu0 %v2459
      %2529 = vmatmul.mubr.f32.gmra.mrb[0].mxu0 %v2441
      %v2530 = vpop.f32.mrb[0].mxu0
      %v2531 = vadd.f32 %v2450, %v2530
      %v2532 = vpop.f32.mrb[0].mxu0
      %2533 = vmatprep.mubr.f32.mxu0 %v2462
      %2534 = vmatmul.mubr.f32.gmra.mrb[0].mxu0 %v2443
      %v2535 = vpop.f32.mrb[0].mxu0
      %v2536 = vadd.f32 %v2455, %v2535
      %v2537 = vpop.f32.mrb[0].mxu0
      %2538 = vdwg.mxu0
      %v2539 = vsel %vm2304, %v2531, 0.0
      %2540 = vadd.xlane.f32.xlu0 %v2539
      %v2541 = vpop.xlane.xlu0 %2540
      %v2542 = vsel %vm2304, %v2536, 0.0
      %2543 = vadd.xlane.f32.xlu0 %v2542
      %v2544 = vpop.xlane.xlu0 %2543
      %v2545 = vmul.f32 %v2541, 0.015625
      %v2546 = vmul.f32 %v2544, 0.015625
      %v2547 = vmul.f32 %v2531, %v2531
      %v2548 = vmul.f32 %v2536, %v2536
      %v2549 = vsel %vm2304, %v2547, 0.0
      %2550 = vadd.xlane.f32.xlu0 %v2549
      %v2551 = vpop.xlane.xlu0 %2550
      %v2552 = vsel %vm2304, %v2548, 0.0
      %2553 = vadd.xlane.f32.xlu0 %v2552
      %v2554 = vpop.xlane.xlu0 %2553
      %v2555 = vmul.f32 %v2551, 0.015625
      %v2556 = vmul.f32 %v2554, 0.015625
      %v2557 = vmul.f32 %v2545, %v2545
      %v2558 = vmul.f32 %v2546, %v2546
      %v2559 = vsub.f32 %v2555, %v2557
      %v2560 = vsub.f32 %v2556, %v2558
      %v2561 = vmax.f32 %v2559, 0.0
      %v2562 = vmax.f32 %v2560, 0.0
      %v2563 = vsub.f32 %v2531, %v2545
      %v2564 = vsub.f32 %v2536, %v2546
      %v2565 = vadd.f32 %v2561, 1e-05
      %v2566 = vadd.f32 %v2562, 1e-05
      %v2567 = vrsqrt.pop %v2565
      %v2568 = vrsqrt.pop %v2566
      %v2569 = vmul.f32 %v2563, %v2567
      %v2570 = vmul.f32 %v2564, %v2568
      %v2571 = vld [vmem:[%s33] sm:$0xff]
      %v2572 = vld [vmem:[%s33 + $0x8] sm:$0xff]
      %2574 = vset.pattern.permute.xlu0 0
      %2575 = vperm.xlu0 %2574, %v2571
      %v2576 = vpop.permute.xlu0 %2575
      %2579 = vset.pattern.permute.xlu0 0
      %2580 = vperm.xlu0 %2579, %v2572
      %v2581 = vpop.permute.xlu0 %2580
      %v2583 = vmul.f32 %v2569, %v2576
      %v2584 = vmul.f32 %v2570, %v2581
      %v2585 = vld [vmem:[%s35] sm:$0xff]
      %v2586 = vld [vmem:[%s35 + $0x8] sm:$0xff]
      %2588 = vset.pattern.permute.xlu0 0
      %2589 = vperm.xlu0 %2588, %v2585
      %v2590 = vpop.permute.xlu0 %2589
      %2593 = vset.pattern.permute.xlu0 0
      %2594 = vperm.xlu0 %2593, %v2586
      %v2595 = vpop.permute.xlu0 %2594
      %v2597 = vadd.f32 %v2583, %v2590
      %v2598 = vadd.f32 %v2584, %v2595
      %v2599 = vmax.f32 %v2597, 0.0
      %v2600 = vmax.f32 %v2598, 0.0
      %2603 = vrot.lane.b32.xlu0 %v2599, 127
      %v2604 = vpop.permute.xlu0 %2603
      %2605 = vrot.lane.b32.xlu0 %v2600, 127
      %v2606 = vpop.permute.xlu0 %2605
      %vm2609 = vcmask 515072
      %v2610 = vsel %vm2609, %v2604, 0.0
      %v2611 = vsel %vm2609, %v2606, 0.0
      %v2612 = vmax.f32 %v2599, %v2610
      %v2613 = vmax.f32 %v2600, %v2611
      %2614 = vrot.lane.b32.xlu0 %v2599, 120
      %v2615 = vpop.permute.xlu0 %2614
      %2616 = vrot.lane.b32.xlu0 %v2600, 120
      %v2617 = vpop.permute.xlu0 %2616
      %vm2620 = vcmask 457728
      %v2621 = vsel %vm2620, %v2615, 0.0
      %v2622 = vsel %vm2620, %v2617, 0.0
      %2623 = vrot.lane.b32.xlu0 %v2599, 119
      %v2624 = vpop.permute.xlu0 %2623
      %2625 = vrot.lane.b32.xlu0 %v2600, 119
      %v2626 = vpop.permute.xlu0 %2625
      %vm2629 = vcmask 449536
      %v2630 = vsel %vm2629, %v2624, 0.0
      %v2631 = vsel %vm2629, %v2626, 0.0
      %v2632 = vmax.f32 %v2621, %v2630
      %v2633 = vmax.f32 %v2622, %v2631
      %v2634 = vmax.f32 %v2612, %v2632
      %v2635 = vmax.f32 %v2613, %v2633
      %v2636 = vld [vmem:[%s37] sm:$0xff]
      %v2637 = vld [vmem:[%s37 + $0x8] sm:$0xff]
      %v2638 = vld [vmem:[%s37 + $0x10] sm:$0xff]
      %v2639 = vld [vmem:[%s37 + $0x18] sm:$0xff]
      %v2640 = vld [vmem:[%s37 + $0x20] sm:$0xff]
      %v2641 = vld [vmem:[%s37 + $0x28] sm:$0xff]
      %v2642 = vld [vmem:[%s37 + $0x30] sm:$0xff]
      %v2643 = vld [vmem:[%s37 + $0x38] sm:$0xff]
      %v2645 = vsel %vm2304, %v2634, 0
      %v2648 = vsel %vm2304, %v2635, 0
      %2650 = vmatprep.subr.mxu0 0.0
      %2651 = vmatpush1.msra.mxu0 %v2636
      %2652 = vmatprep.subr.mxu0 0.0
      %2653 = vmatpush1.msra.mxu0 %v2637
      %2654 = vmatprep.subr.mxu0 0.0
      %2655 = vmatpush1.msra.mxu0 %v2638
      %2656 = vmatprep.subr.mxu0 0.0
      %2657 = vmatpush1.msra.mxu0 %v2639
      %2658 = vmatprep.subr.mxu0 0.0
      %2659 = vmatpush1.msra.mxu0 %v2640
      %2660 = vmatprep.subr.mxu0 0.0
      %2661 = vmatpush1.msra.mxu0 %v2641
      %2662 = vmatprep.subr.mxu0 0.0
      %2663 = vmatpush1.msra.mxu0 %v2642
      %2664 = vmatprep.subr.mxu0 0.0
      %2665 = vmatpush1.msra.mxu0 %v2643
      %2666 = vmatprep.subr.mxu0 0.0
      %2667 = vmatpush1.msra.mxu0 0.0
      %2668 = vmatprep.subr.mxu0 0.0
      %2669 = vmatpush1.msra.mxu0 0.0
      %2670 = vmatprep.subr.mxu0 0.0
      %2671 = vmatpush1.msra.mxu0 0.0
      %2672 = vmatprep.subr.mxu0 0.0
      %2673 = vmatpush1.msra.mxu0 0.0
      %2674 = vmatprep.subr.mxu0 0.0
      %2675 = vmatpush1.msra.mxu0 0.0
      %2676 = vmatprep.subr.mxu0 0.0
      %2677 = vmatpush1.msra.mxu0 0.0
      %2678 = vmatprep.subr.mxu0 0.0
      %2679 = vmatpush1.msra.mxu0 0.0
      %2680 = vmatprep.subr.mxu0 0.0
      %2681 = vmatpush1.msra.mxu0 0.0
      %2682 = vmatprep.subr.mxu0 0.0
      %2683 = vmatpush1.msra.mxu0 0.0
      %2684 = vmatprep.subr.mxu0 0.0
      %2685 = vmatpush1.msra.mxu0 0.0
      %2686 = vmatprep.subr.mxu0 0.0
      %2687 = vmatpush1.msra.mxu0 0.0
      %2688 = vmatprep.subr.mxu0 0.0
      %2689 = vmatpush1.msra.mxu0 0.0
      %2690 = vmatprep.subr.mxu0 0.0
      %2691 = vmatpush1.msra.mxu0 0.0
      %2692 = vmatprep.subr.mxu0 0.0
      %2693 = vmatpush1.msra.mxu0 0.0
      %2694 = vmatprep.subr.mxu0 0.0
      %2695 = vmatpush1.msra.mxu0 0.0
      %2696 = vmatprep.subr.mxu0 0.0
      %2697 = vmatpush1.msra.mxu0 0.0
      %2698 = vmatprep.subr.mxu0 0.0
      %2699 = vmatpush1.msra.mxu0 0.0
      %2700 = vmatprep.subr.mxu0 0.0
      %2701 = vmatpush1.msra.mxu0 0.0
      %2702 = vmatprep.subr.mxu0 0.0
      %2703 = vmatpush1.msra.mxu0 0.0
      %2704 = vmatprep.subr.mxu0 0.0
      %2705 = vmatpush1.msra.mxu0 0.0
      %2706 = vmatprep.subr.mxu0 0.0
      %2707 = vmatpush1.msra.mxu0 0.0
      %2708 = vmatprep.subr.mxu0 0.0
      %2709 = vmatpush1.msra.mxu0 0.0
      %2710 = vmatprep.subr.mxu0 0.0
      %2711 = vmatpush1.msra.mxu0 0.0
      %2712 = vmatprep.subr.mxu0 0.0
      %2713 = vmatpush1.msra.mxu0 0.0
      %2714 = vmatprep.mubr.f32.mxu0 0.0
      %2715 = vmatmul.mubr.f32.gmra.mrb[0].mxu0 %v2645
      %v2716 = vpop.f32.mrb[0].mxu0
      %v2717 = vadd.f32 0.0, %v2716
      %v2718 = vpop.f32.mrb[0].mxu0
      %2719 = vmatprep.mubr.f32.mxu0 0.0
      %2720 = vmatmul.mubr.f32.gmra.mrb[0].mxu0 %v2648
      %v2721 = vpop.f32.mrb[0].mxu0
      %v2722 = vadd.f32 0.0, %v2721
      %v2723 = vpop.f32.mrb[0].mxu0
      %2724 = vdwg.mxu0
      %vm2725 = vcmp.lt.s32.totalorder %v1522, 0
      %v2726 = vsub.s32 0, %v1522
      %v2727 = vsel %vm2725, %v2726, %v1522
      %v2728 = vshrl.u32 %v2727, 2
      %v2729 = vand.u32 %v2727, 3
      %v2730 = vsub.s32 0, %v2729
      %v2731 = vsel %vm2725, %v2730, %v2729
      %vm2732 = vcmp.ne.s32.totalorder %v2731, 0
      %vm2733 = vcmp.lt.s32.totalorder %v2731, 0
      %vm2734 = vmand %vm2733, %vm2732
      %v2735 = vadd.s32 %v2731, 4
      %v2736 = vsel %vm2734, %v2735, %v2731
      %vm2737 = vcmp.ne.s32.totalorder %v2736, 0
      %vm2738 = vcmp.ne.s32.totalorder %v2736, 3
      %2741 = vrot.lane.b32.xlu0 %v2717, 5
      %v2742 = vpop.permute.xlu0 %2741
      %2743 = vrot.lane.b32.xlu0 %v2722, 5
      %v2744 = vpop.permute.xlu0 %2743
      %vm2747 = vcmask 39936
      %v2748 = vsel %vm2747, 0.0, %v2742
      %v2749 = vsel %vm2747, 0.0, %v2744
      %vm2750 = vcmask 171008
      %v2751 = vsel %vm2750, %v2748, 0.0
      %v2752 = vsel %vm2750, %v2749, 0.0
      %v2753 = vsel %vm2737, 1, 0
      %vm2754 = vcmp.eq.s32.totalorder %v2753, 1
      %v2755 = vsel %vm2754, %v2751, 0.0
      %v2756 = vsel %vm2754, %v2752, 0.0
      %v2757 = vsel %vm2738, 1, 0
      %vm2758 = vcmp.eq.s32.totalorder %v2757, 1
      %2761 = vrot.lane.b32.xlu0 %v2751, 126
      %v2762 = vpop.permute.xlu0 %2761
      %2763 = vrot.lane.b32.xlu0 %v2752, 126
      %v2764 = vpop.permute.xlu0 %2763
      %v2767 = vsel %vm2758, %v2762, 0.0
      %v2768 = vsel %vm2758, %v2764, 0.0
      %2769 = vrot.lane.b32.xlu0 %v2751, 124
      %v2770 = vpop.permute.xlu0 %2769
      %2771 = vrot.lane.b32.xlu0 %v2752, 124
      %v2772 = vpop.permute.xlu0 %2771
      %v2775 = vsel %vm2754, %v2770, 0.0
      %v2776 = vsel %vm2754, %v2772, 0.0
      %2777 = vrot.lane.b32.xlu0 %v2751, 122
      %v2778 = vpop.permute.xlu0 %2777
      %2779 = vrot.lane.b32.xlu0 %v2752, 122
      %v2780 = vpop.permute.xlu0 %2779
      %v2783 = vsel %vm2758, %v2778, 0.0
      %v2784 = vsel %vm2758, %v2780, 0.0
      %2785 = vrot.lane.b32.xlu0 %v2751, 120
      %v2786 = vpop.permute.xlu0 %2785
      %2787 = vrot.lane.b32.xlu0 %v2752, 120
      %v2788 = vpop.permute.xlu0 %2787
      %v2791 = vsel %vm2754, %v2786, 0.0
      %v2792 = vsel %vm2754, %v2788, 0.0
      %2793 = vrot.lane.b32.xlu0 %v2751, 118
      %v2794 = vpop.permute.xlu0 %2793
      %2795 = vrot.lane.b32.xlu0 %v2752, 118
      %v2796 = vpop.permute.xlu0 %2795
      %v2799 = vsel %vm2758, %v2794, 0.0
      %v2800 = vsel %vm2758, %v2796, 0.0
      %2801 = vrot.lane.b32.xlu0 %v2751, 127
      %v2802 = vpop.permute.xlu0 %2801
      %2803 = vrot.lane.b32.xlu0 %v2752, 127
      %v2804 = vpop.permute.xlu0 %2803
      %2807 = vrot.lane.b32.xlu0 %v2751, 123
      %v2808 = vpop.permute.xlu0 %2807
      %2809 = vrot.lane.b32.xlu0 %v2752, 123
      %v2810 = vpop.permute.xlu0 %2809
      %2813 = vrot.lane.b32.xlu0 %v2751, 119
      %v2814 = vpop.permute.xlu0 %2813
      %2815 = vrot.lane.b32.xlu0 %v2752, 119
      %v2816 = vpop.permute.xlu0 %2815
      %v2819 = vld [vmem:[%s39] sm:$0xff]
      %v2820 = vld [vmem:[%s39 + $0x8] sm:$0xff]
      %v2821 = vld [vmem:[%s39 + $0x10] sm:$0xff]
      %v2822 = vld [vmem:[%s39 + $0x18] sm:$0xff]
      %v2823 = vld [vmem:[%s39 + $0x20] sm:$0xff]
      %v2824 = vld [vmem:[%s39 + $0x28] sm:$0xff]
      %v2825 = vld [vmem:[%s39 + $0x30] sm:$0xff]
      %v2826 = vld [vmem:[%s39 + $0x38] sm:$0xff]
      %v2827 = vld [vmem:[%s41] sm:$0xff]
      %v2828 = vld [vmem:[%s41 + $0x8] sm:$0xff]
      %v2829 = vld [vmem:[%s41 + $0x10] sm:$0xff]
      %v2830 = vld [vmem:[%s41 + $0x18] sm:$0xff]
      %2832 = vset.pattern.permute.xlu0 0
      %2833 = vperm.xlu0 %2832, %v2827
      %v2834 = vpop.permute.xlu0 %2833
      %2837 = vset.pattern.permute.xlu0 0
      %2838 = vperm.xlu0 %2837, %v2828
      %v2839 = vpop.permute.xlu0 %2838
      %2842 = vset.pattern.permute.xlu0 0
      %2843 = vperm.xlu0 %2842, %v2829
      %v2844 = vpop.permute.xlu0 %2843
      %2847 = vset.pattern.permute.xlu0 0
      %2848 = vperm.xlu0 %2847, %v2830
      %v2849 = vpop.permute.xlu0 %2848
      %v2852 = vsel %vm2457, %v2820, 0
      %v2855 = vsel %vm2457, %v2822, 0
      %v2858 = vsel %vm2457, %v2824, 0
      %v2861 = vsel %vm2457, %v2826, 0
      %2863 = vmatprep.subr.mxu0 0.0
      %2864 = vmatpush1.msra.mxu0 %v2755
      %2865 = vmatprep.subr.mxu0 0.0
      %2866 = vmatpush1.msra.mxu0 %v2756
      %2867 = vmatprep.subr.mxu0 0.0
      %2868 = vmatpush1.msra.mxu0 %v2802
      %2869 = vmatprep.subr.mxu0 0.0
      %2870 = vmatpush1.msra.mxu0 %v2804
      %2871 = vmatprep.subr.mxu0 0.0
      %2872 = vmatpush1.msra.mxu0 %v2767
      %2873 = vmatprep.subr.mxu0 0.0
      %2874 = vmatpush1.msra.mxu0 %v2768
      %2875 = vmatprep.subr.mxu0 0.0
      %2876 = vmatpush1.msra.mxu0 %v2775
      %2877 = vmatprep.subr.mxu0 0.0
      %2878 = vmatpush1.msra.mxu0 %v2776
      %2879 = vmatprep.subr.mxu0 0.0
      %2880 = vmatpush1.msra.mxu0 %v2808
      %2881 = vmatprep.subr.mxu0 0.0
      %2882 = vmatpush1.msra.mxu0 %v2810
      %2883 = vmatprep.subr.mxu0 0.0
      %2884 = vmatpush1.msra.mxu0 %v2783
      %2885 = vmatprep.subr.mxu0 0.0
      %2886 = vmatpush1.msra.mxu0 %v2784
      %2887 = vmatprep.subr.mxu0 0.0
      %2888 = vmatpush1.msra.mxu0 %v2791
      %2889 = vmatprep.subr.mxu0 0.0
      %2890 = vmatpush1.msra.mxu0 %v2792
      %2891 = vmatprep.subr.mxu0 0.0
      %2892 = vmatpush1.msra.mxu0 %v2814
      %2893 = vmatprep.subr.mxu0 0.0
      %2894 = vmatpush1.msra.mxu0 %v2816
      %2895 = vmatprep.subr.mxu0 0.0
      %2896 = vmatpush1.msra.mxu0 %v2799
      %2897 = vmatprep.subr.mxu0 0.0
      %2898 = vmatpush1.msra.mxu0 %v2800
      %2899 = vmatprep.subr.mxu0 0.0
      %2900 = vmatpush1.msra.mxu0 0.0
      %2901 = vmatprep.subr.mxu0 0.0
      %2902 = vmatpush1.msra.mxu0 0.0
      %2903 = vmatprep.subr.mxu0 0.0
      %2904 = vmatpush1.msra.mxu0 0.0
      %2905 = vmatprep.subr.mxu0 0.0
      %2906 = vmatpush1.msra.mxu0 0.0
      %2907 = vmatprep.subr.mxu0 0.0
      %2908 = vmatpush1.msra.mxu0 0.0
      %2909 = vmatprep.subr.mxu0 0.0
      %2910 = vmatpush1.msra.mxu0 0.0
      %2911 = vmatprep.subr.mxu0 0.0
      %2912 = vmatpush1.msra.mxu0 0.0
      %2913 = vmatprep.subr.mxu0 0.0
      %2914 = vmatpush1.msra.mxu0 0.0
      %2915 = vmatprep.subr.mxu0 0.0
      %2916 = vmatpush1.msra.mxu0 0.0
      %2917 = vmatprep.subr.mxu0 0.0
      %2918 = vmatpush1.msra.mxu0 0.0
      %2919 = vmatprep.subr.mxu0 0.0
      %2920 = vmatpush1.msra.mxu0 0.0
      %2921 = vmatprep.subr.mxu0 0.0
      %2922 = vmatpush1.msra.mxu0 0.0
      %2923 = vmatprep.subr.mxu0 0.0
      %2924 = vmatpush1.msra.mxu0 0.0
      %2925 = vmatprep.subr.mxu0 0.0
      %2926 = vmatpush1.msra.mxu0 0.0
      %2927 = vmatprep.mubr.f32.mxu0 %v2852
      %2928 = vmatmul.mubr.f32.gmra.mrb[0].mxu0 %v2819
      %v2929 = vpop.f32.mrb[0].mxu0
      %v2930 = vadd.f32 %v2834, %v2929
      %v2931 = vpop.f32.mrb[0].mxu0
      %2932 = vmatprep.mubr.f32.mxu0 %v2855
      %2933 = vmatmul.mubr.f32.gmra.mrb[0].mxu0 %v2821
      %v2934 = vpop.f32.mrb[0].mxu0
      %v2935 = vadd.f32 %v2839, %v2934
      %v2936 = vpop.f32.mrb[0].mxu0
      %2937 = vmatprep.mubr.f32.mxu0 %v2858
      %2938 = vmatmul.mubr.f32.gmra.mrb[0].mxu0 %v2823
      %v2939 = vpop.f32.mrb[0].mxu0
      %v2940 = vadd.f32 %v2844, %v2939
      %v2941 = vpop.f32.mrb[0].mxu0
      %2942 = vmatprep.mubr.f32.mxu0 %v2861
      %2943 = vmatmul.mubr.f32.gmra.mrb[0].mxu0 %v2825
      %v2944 = vpop.f32.mrb[0].mxu0
      %v2945 = vadd.f32 %v2849, %v2944
      %v2946 = vpop.f32.mrb[0].mxu0
      %2947 = vdwg.mxu0
      %v2948 = vsel %vm2457, %v2930, 0.0
      %2949 = vadd.xlane.f32.xlu0 %v2948
      %v2950 = vpop.xlane.xlu0 %2949
      %v2951 = vsel %vm2457, %v2935, 0.0
      %2952 = vadd.xlane.f32.xlu0 %v2951
      %v2953 = vpop.xlane.xlu0 %2952
      %v2954 = vsel %vm2457, %v2940, 0.0
      %2955 = vadd.xlane.f32.xlu0 %v2954
      %v2956 = vpop.xlane.xlu0 %2955
      %v2957 = vsel %vm2457, %v2945, 0.0
      %2958 = vadd.xlane.f32.xlu0 %v2957
      %v2959 = vpop.xlane.xlu0 %2958
      %v2960 = vmul.f32 %v2950, 0.0625
      %v2961 = vmul.f32 %v2953, 0.0625
      %v2962 = vmul.f32 %v2956, 0.0625
      %v2963 = vmul.f32 %v2959, 0.0625
      %v2964 = vmul.f32 %v2930, %v2930
      %v2965 = vmul.f32 %v2935, %v2935
      %v2966 = vmul.f32 %v2940, %v2940
      %v2967 = vmul.f32 %v2945, %v2945
      %v2968 = vsel %vm2457, %v2964, 0.0
      %2969 = vadd.xlane.f32.xlu0 %v2968
      %v2970 = vpop.xlane.xlu0 %2969
      %v2971 = vsel %vm2457, %v2965, 0.0
      %2972 = vadd.xlane.f32.xlu0 %v2971
      %v2973 = vpop.xlane.xlu0 %2972
      %v2974 = vsel %vm2457, %v2966, 0.0
      %2975 = vadd.xlane.f32.xlu0 %v2974
      %v2976 = vpop.xlane.xlu0 %2975
      %v2977 = vsel %vm2457, %v2967, 0.0
      %2978 = vadd.xlane.f32.xlu0 %v2977
      %v2979 = vpop.xlane.xlu0 %2978
      %v2980 = vmul.f32 %v2970, 0.0625
      %v2981 = vmul.f32 %v2973, 0.0625
      %v2982 = vmul.f32 %v2976, 0.0625
      %v2983 = vmul.f32 %v2979, 0.0625
      %v2984 = vmul.f32 %v2960, %v2960
      %v2985 = vmul.f32 %v2961, %v2961
      %v2986 = vmul.f32 %v2962, %v2962
      %v2987 = vmul.f32 %v2963, %v2963
      %v2988 = vsub.f32 %v2980, %v2984
      %v2989 = vsub.f32 %v2981, %v2985
      %v2990 = vsub.f32 %v2982, %v2986
      %v2991 = vsub.f32 %v2983, %v2987
      %v2992 = vmax.f32 %v2988, 0.0
      %v2993 = vmax.f32 %v2989, 0.0
      %v2994 = vmax.f32 %v2990, 0.0
      %v2995 = vmax.f32 %v2991, 0.0
      %v2996 = vsub.f32 %v2930, %v2960
      %v2997 = vsub.f32 %v2935, %v2961
      %v2998 = vsub.f32 %v2940, %v2962
      %v2999 = vsub.f32 %v2945, %v2963
      %v3000 = vadd.f32 %v2992, 1e-05
      %v3001 = vadd.f32 %v2993, 1e-05
      %v3002 = vadd.f32 %v2994, 1e-05
      %v3003 = vadd.f32 %v2995, 1e-05
      %v3004 = vrsqrt.pop %v3000
      %v3005 = vrsqrt.pop %v3001
      %v3006 = vrsqrt.pop %v3002
      %v3007 = vrsqrt.pop %v3003
      %v3008 = vmul.f32 %v2996, %v3004
      %v3009 = vmul.f32 %v2997, %v3005
      %v3010 = vmul.f32 %v2998, %v3006
      %v3011 = vmul.f32 %v2999, %v3007
      %v3012 = vld [vmem:[%s43] sm:$0xff]
      %v3013 = vld [vmem:[%s43 + $0x8] sm:$0xff]
      %v3014 = vld [vmem:[%s43 + $0x10] sm:$0xff]
      %v3015 = vld [vmem:[%s43 + $0x18] sm:$0xff]
      %3017 = vset.pattern.permute.xlu0 0
      %3018 = vperm.xlu0 %3017, %v3012
      %v3019 = vpop.permute.xlu0 %3018
      %3022 = vset.pattern.permute.xlu0 0
      %3023 = vperm.xlu0 %3022, %v3013
      %v3024 = vpop.permute.xlu0 %3023
      %3027 = vset.pattern.permute.xlu0 0
      %3028 = vperm.xlu0 %3027, %v3014
      %v3029 = vpop.permute.xlu0 %3028
      %3032 = vset.pattern.permute.xlu0 0
      %3033 = vperm.xlu0 %3032, %v3015
      %v3034 = vpop.permute.xlu0 %3033
      %v3036 = vmul.f32 %v3008, %v3019
      %v3037 = vmul.f32 %v3009, %v3024
      %v3038 = vmul.f32 %v3010, %v3029
      %v3039 = vmul.f32 %v3011, %v3034
      %v3040 = vld [vmem:[%s45] sm:$0xff]
      %v3041 = vld [vmem:[%s45 + $0x8] sm:$0xff]
      %v3042 = vld [vmem:[%s45 + $0x10] sm:$0xff]
      %v3043 = vld [vmem:[%s45 + $0x18] sm:$0xff]
      %3045 = vset.pattern.permute.xlu0 0
      %3046 = vperm.xlu0 %3045, %v3040
      %v3047 = vpop.permute.xlu0 %3046
      %3050 = vset.pattern.permute.xlu0 0
      %3051 = vperm.xlu0 %3050, %v3041
      %v3052 = vpop.permute.xlu0 %3051
      %3055 = vset.pattern.permute.xlu0 0
      %3056 = vperm.xlu0 %3055, %v3042
      %v3057 = vpop.permute.xlu0 %3056
      %3060 = vset.pattern.permute.xlu0 0
      %3061 = vperm.xlu0 %3060, %v3043
      %v3062 = vpop.permute.xlu0 %3061
      %v3064 = vadd.f32 %v3036, %v3047
      %v3065 = vadd.f32 %v3037, %v3052
      %v3066 = vadd.f32 %v3038, %v3057
      %v3067 = vadd.f32 %v3039, %v3062
      %v3068 = vmax.f32 %v3064, 0.0
      %v3069 = vmax.f32 %v3065, 0.0
      %v3070 = vmax.f32 %v3066, 0.0
      %v3071 = vmax.f32 %v3067, 0.0
      %3076 = vrot.lane.b32.xlu0 %v3068, 5
      %v3077 = vpop.permute.xlu0 %3076
      %3078 = vrot.lane.b32.xlu0 %v3069, 5
      %v3079 = vpop.permute.xlu0 %3078
      %3080 = vrot.lane.b32.xlu0 %v3070, 5
      %v3081 = vpop.permute.xlu0 %3080
      %3082 = vrot.lane.b32.xlu0 %v3071, 5
      %v3083 = vpop.permute.xlu0 %3082
      %v3088 = vsel %vm2747, 0.0, %v3077
      %v3089 = vsel %vm2747, 0.0, %v3079
      %v3090 = vsel %vm2747, 0.0, %v3081
      %v3091 = vsel %vm2747, 0.0, %v3083
      %v3092 = vsel %vm2750, %v3088, 0.0
      %v3093 = vsel %vm2750, %v3089, 0.0
      %v3094 = vsel %vm2750, %v3090, 0.0
      %v3095 = vsel %vm2750, %v3091, 0.0
      %v3096 = vsel %vm2754, %v3092, 0.0
      %v3097 = vsel %vm2754, %v3093, 0.0
      %v3098 = vsel %vm2754, %v3094, 0.0
      %v3099 = vsel %vm2754, %v3095, 0.0
      %3104 = vrot.lane.b32.xlu0 %v3092, 126
      %v3105 = vpop.permute.xlu0 %3104
      %3106 = vrot.lane.b32.xlu0 %v3093, 126
      %v3107 = vpop.permute.xlu0 %3106
      %3108 = vrot.lane.b32.xlu0 %v3094, 126
      %v3109 = vpop.permute.xlu0 %3108
      %3110 = vrot.lane.b32.xlu0 %v3095, 126
      %v3111 = vpop.permute.xlu0 %3110
      %v3116 = vsel %vm2758, %v3105, 0.0
      %v3117 = vsel %vm2758, %v3107, 0.0
      %v3118 = vsel %vm2758, %v3109, 0.0
      %v3119 = vsel %vm2758, %v3111, 0.0
      %3120 = vrot.lane.b32.xlu0 %v3092, 124
      %v3121 = vpop.permute.xlu0 %3120
      %3122 = vrot.lane.b32.xlu0 %v3093, 124
      %v3123 = vpop.permute.xlu0 %3122
      %3124 = vrot.lane.b32.xlu0 %v3094, 124
      %v3125 = vpop.permute.xlu0 %3124
      %3126 = vrot.lane.b32.xlu0 %v3095, 124
      %v3127 = vpop.permute.xlu0 %3126
      %v3132 = vsel %vm2754, %v3121, 0.0
      %v3133 = vsel %vm2754, %v3123, 0.0
      %v3134 = vsel %vm2754, %v3125, 0.0
      %v3135 = vsel %vm2754, %v3127, 0.0
      %3136 = vrot.lane.b32.xlu0 %v3092, 122
      %v3137 = vpop.permute.xlu0 %3136
      %3138 = vrot.lane.b32.xlu0 %v3093, 122
      %v3139 = vpop.permute.xlu0 %3138
      %3140 = vrot.lane.b32.xlu0 %v3094, 122
      %v3141 = vpop.permute.xlu0 %3140
      %3142 = vrot.lane.b32.xlu0 %v3095, 122
      %v3143 = vpop.permute.xlu0 %3142
      %v3148 = vsel %vm2758, %v3137, 0.0
      %v3149 = vsel %vm2758, %v3139, 0.0
      %v3150 = vsel %vm2758, %v3141, 0.0
      %v3151 = vsel %vm2758, %v3143, 0.0
      %3152 = vrot.lane.b32.xlu0 %v3092, 120
      %v3153 = vpop.permute.xlu0 %3152
      %3154 = vrot.lane.b32.xlu0 %v3093, 120
      %v3155 = vpop.permute.xlu0 %3154
      %3156 = vrot.lane.b32.xlu0 %v3094, 120
      %v3157 = vpop.permute.xlu0 %3156
      %3158 = vrot.lane.b32.xlu0 %v3095, 120
      %v3159 = vpop.permute.xlu0 %3158
      %v3164 = vsel %vm2754, %v3153, 0.0
      %v3165 = vsel %vm2754, %v3155, 0.0
      %v3166 = vsel %vm2754, %v3157, 0.0
      %v3167 = vsel %vm2754, %v3159, 0.0
      %3168 = vrot.lane.b32.xlu0 %v3092, 118
      %v3169 = vpop.permute.xlu0 %3168
      %3170 = vrot.lane.b32.xlu0 %v3093, 118
      %v3171 = vpop.permute.xlu0 %3170
      %3172 = vrot.lane.b32.xlu0 %v3094, 118
      %v3173 = vpop.permute.xlu0 %3172
      %3174 = vrot.lane.b32.xlu0 %v3095, 118
      %v3175 = vpop.permute.xlu0 %3174
      %v3180 = vsel %vm2758, %v3169, 0.0
      %v3181 = vsel %vm2758, %v3171, 0.0
      %v3182 = vsel %vm2758, %v3173, 0.0
      %v3183 = vsel %vm2758, %v3175, 0.0
      %3184 = vrot.lane.b32.xlu0 %v3092, 127
      %v3185 = vpop.permute.xlu0 %3184
      %3186 = vrot.lane.b32.xlu0 %v3093, 127
      %v3187 = vpop.permute.xlu0 %3186
      %3188 = vrot.lane.b32.xlu0 %v3094, 127
      %v3189 = vpop.permute.xlu0 %3188
      %3190 = vrot.lane.b32.xlu0 %v3095, 127
      %v3191 = vpop.permute.xlu0 %3190
      %3196 = vrot.lane.b32.xlu0 %v3092, 123
      %v3197 = vpop.permute.xlu0 %3196
      %3198 = vrot.lane.b32.xlu0 %v3093, 123
      %v3199 = vpop.permute.xlu0 %3198
      %3200 = vrot.lane.b32.xlu0 %v3094, 123
      %v3201 = vpop.permute.xlu0 %3200
      %3202 = vrot.lane.b32.xlu0 %v3095, 123
      %v3203 = vpop.permute.xlu0 %3202
      %3208 = vrot.lane.b32.xlu0 %v3092, 119
      %v3209 = vpop.permute.xlu0 %3208
      %3210 = vrot.lane.b32.xlu0 %v3093, 119
      %v3211 = vpop.permute.xlu0 %3210
      %3212 = vrot.lane.b32.xlu0 %v3094, 119
      %v3213 = vpop.permute.xlu0 %3212
      %3214 = vrot.lane.b32.xlu0 %v3095, 119
      %v3215 = vpop.permute.xlu0 %3214
      %v3220 = vld [vmem:[%s47] sm:$0xff]
      %v3221 = vld [vmem:[%s47 + $0x8] sm:$0xff]
      %v3222 = vld [vmem:[%s47 + $0x10] sm:$0xff]
      %v3223 = vld [vmem:[%s47 + $0x18] sm:$0xff]
      %v3224 = vld [vmem:[%s47 + $0x20] sm:$0xff]
      %v3225 = vld [vmem:[%s47 + $0x28] sm:$0xff]
      %v3226 = vld [vmem:[%s47 + $0x30] sm:$0xff]
      %v3227 = vld [vmem:[%s47 + $0x38] sm:$0xff]
      %v3228 = vld [vmem:[%s47 + $0x40] sm:$0xff]
      %v3229 = vld [vmem:[%s47 + $0x48] sm:$0xff]
      %v3230 = vld [vmem:[%s47 + $0x50] sm:$0xff]
      %v3231 = vld [vmem:[%s47 + $0x58] sm:$0xff]
      %v3232 = vld [vmem:[%s49] sm:$0xff]
      %v3233 = vld [vmem:[%s49 + $0x8] sm:$0xff]
      %v3234 = vld [vmem:[%s49 + $0x10] sm:$0xff]
      %v3235 = vld [vmem:[%s49 + $0x18] sm:$0xff]
      %3237 = vset.pattern.permute.xlu0 0
      %3238 = vperm.xlu0 %3237, %v3232
      %v3239 = vpop.permute.xlu0 %3238
      %3242 = vset.pattern.permute.xlu0 0
      %3243 = vperm.xlu0 %3242, %v3233
      %v3244 = vpop.permute.xlu0 %3243
      %3247 = vset.pattern.permute.xlu0 0
      %3248 = vperm.xlu0 %3247, %v3234
      %v3249 = vpop.permute.xlu0 %3248
      %3252 = vset.pattern.permute.xlu0 0
      %3253 = vperm.xlu0 %3252, %v3235
      %v3254 = vpop.permute.xlu0 %3253
      %vm3256 = vcmask 261120
      %v3258 = vsel %vm3256, %v3222, 0
      %v3261 = vsel %vm3256, %v3225, 0
      %v3264 = vsel %vm3256, %v3228, 0
      %v3267 = vsel %vm3256, %v3231, 0
      %3269 = vmatprep.subr.mxu0 0.0
      %3270 = vmatpush1.msra.mxu0 %v3096
      %3271 = vmatprep.subr.mxu0 0.0
      %3272 = vmatpush1.msra.mxu0 %v3097
      %3273 = vmatprep.subr.mxu0 0.0
      %3274 = vmatpush1.msra.mxu0 %v3098
      %3275 = vmatprep.subr.mxu0 0.0
      %3276 = vmatpush1.msra.mxu0 %v3099
      %3277 = vmatprep.subr.mxu0 0.0
      %3278 = vmatpush1.msra.mxu0 %v3185
      %3279 = vmatprep.subr.mxu0 0.0
      %3280 = vmatpush1.msra.mxu0 %v3187
      %3281 = vmatprep.subr.mxu0 0.0
      %3282 = vmatpush1.msra.mxu0 %v3189
      %3283 = vmatprep.subr.mxu0 0.0
      %3284 = vmatpush1.msra.mxu0 %v3191
      %3285 = vmatprep.subr.mxu0 0.0
      %3286 = vmatpush1.msra.mxu0 %v3116
      %3287 = vmatprep.subr.mxu0 0.0
      %3288 = vmatpush1.msra.mxu0 %v3117
      %3289 = vmatprep.subr.mxu0 0.0
      %3290 = vmatpush1.msra.mxu0 %v3118
      %3291 = vmatprep.subr.mxu0 0.0
      %3292 = vmatpush1.msra.mxu0 %v3119
      %3293 = vmatprep.subr.mxu0 0.0
      %3294 = vmatpush1.msra.mxu0 %v3132
      %3295 = vmatprep.subr.mxu0 0.0
      %3296 = vmatpush1.msra.mxu0 %v3133
      %3297 = vmatprep.subr.mxu0 0.0
      %3298 = vmatpush1.msra.mxu0 %v3134
      %3299 = vmatprep.subr.mxu0 0.0
      %3300 = vmatpush1.msra.mxu0 %v3135
      %3301 = vmatprep.subr.mxu0 0.0
      %3302 = vmatpush1.msra.mxu0 %v3197
      %3303 = vmatprep.subr.mxu0 0.0
      %3304 = vmatpush1.msra.mxu0 %v3199
      %3305 = vmatprep.subr.mxu0 0.0
      %3306 = vmatpush1.msra.mxu0 %v3201
      %3307 = vmatprep.subr.mxu0 0.0
      %3308 = vmatpush1.msra.mxu0 %v3203
      %3309 = vmatprep.subr.mxu0 0.0
      %3310 = vmatpush1.msra.mxu0 %v3148
      %3311 = vmatprep.subr.mxu0 0.0
      %3312 = vmatpush1.msra.mxu0 %v3149
      %3313 = vmatprep.subr.mxu0 0.0
      %3314 = vmatpush1.msra.mxu0 %v3150
      %3315 = vmatprep.subr.mxu0 0.0
      %3316 = vmatpush1.msra.mxu0 %v3151
      %3317 = vmatprep.subr.mxu0 0.0
      %3318 = vmatpush1.msra.mxu0 %v3164
      %3319 = vmatprep.subr.mxu0 0.0
      %3320 = vmatpush1.msra.mxu0 %v3165
      %3321 = vmatprep.subr.mxu0 0.0
      %3322 = vmatpush1.msra.mxu0 %v3166
      %3323 = vmatprep.subr.mxu0 0.0
      %3324 = vmatpush1.msra.mxu0 %v3167
      %3325 = vmatprep.subr.mxu0 0.0
      %3326 = vmatpush1.msra.mxu0 %v3209
      %3327 = vmatprep.subr.mxu0 0.0
      %3328 = vmatpush1.msra.mxu0 %v3211
      %3329 = vmatprep.subr.mxu0 0.0
      %3330 = vmatpush1.msra.mxu0 %v3213
      %3331 = vmatprep.subr.mxu0 0.0
      %3332 = vmatpush1.msra.mxu0 %v3215
      %3333 = vmatprep.mubr.f32.mxu0 %v3221
      %3334 = vmatmul.mubr.f32.gmra.mrb[0].mxu0 %v3220
      %v3335 = vpop.f32.mrb[0].mxu0
      %v3336 = vadd.f32 %v3239, %v3335
      %v3337 = vpop.f32.mrb[0].mxu0
      %3338 = vmatprep.mubr.f32.mxu0 %v3224
      %3339 = vmatmul.mubr.f32.gmra.mrb[0].mxu0 %v3223
      %v3340 = vpop.f32.mrb[0].mxu0
      %v3341 = vadd.f32 %v3244, %v3340
      %v3342 = vpop.f32.mrb[0].mxu0
      %3343 = vmatprep.mubr.f32.mxu0 %v3227
      %3344 = vmatmul.mubr.f32.gmra.mrb[0].mxu0 %v3226
      %v3345 = vpop.f32.mrb[0].mxu0
      %v3346 = vadd.f32 %v3249, %v3345
      %v3347 = vpop.f32.mrb[0].mxu0
      %3348 = vmatprep.mubr.f32.mxu0 %v3230
      %3349 = vmatmul.mubr.f32.gmra.mrb[0].mxu0 %v3229
      %v3350 = vpop.f32.mrb[0].mxu0
      %v3351 = vadd.f32 %v3254, %v3350
      %v3352 = vpop.f32.mrb[0].mxu0
      %3353 = vdwg.mxu0
      %3354 = vmatprep.subr.mxu0 0.0
      %3355 = vmatpush1.msra.mxu0 %v3180
      %3356 = vmatprep.subr.mxu0 0.0
      %3357 = vmatpush1.msra.mxu0 %v3181
      %3358 = vmatprep.subr.mxu0 0.0
      %3359 = vmatpush1.msra.mxu0 %v3182
      %3360 = vmatprep.subr.mxu0 0.0
      %3361 = vmatpush1.msra.mxu0 %v3183
      %3362 = vmatprep.subr.mxu0 0.0
      %3363 = vmatpush1.msra.mxu0 0.0
      %3364 = vmatprep.subr.mxu0 0.0
      %3365 = vmatpush1.msra.mxu0 0.0
      %3366 = vmatprep.subr.mxu0 0.0
      %3367 = vmatpush1.msra.mxu0 0.0
      %3368 = vmatprep.subr.mxu0 0.0
      %3369 = vmatpush1.msra.mxu0 0.0
      %3370 = vmatprep.subr.mxu0 0.0
      %3371 = vmatpush1.msra.mxu0 0.0
      %3372 = vmatprep.subr.mxu0 0.0
      %3373 = vmatpush1.msra.mxu0 0.0
      %3374 = vmatprep.subr.mxu0 0.0
      %3375 = vmatpush1.msra.mxu0 0.0
      %3376 = vmatprep.subr.mxu0 0.0
      %3377 = vmatpush1.msra.mxu0 0.0
      %3378 = vmatprep.subr.mxu0 0.0
      %3379 = vmatpush1.msra.mxu0 0.0
      %3380 = vmatprep.subr.mxu0 0.0
      %3381 = vmatpush1.msra.mxu0 0.0
      %3382 = vmatprep.subr.mxu0 0.0
      %3383 = vmatpush1.msra.mxu0 0.0
      %3384 = vmatprep.subr.mxu0 0.0
      %3385 = vmatpush1.msra.mxu0 0.0
      %3386 = vmatprep.subr.mxu0 0.0
      %3387 = vmatpush1.msra.mxu0 0.0
      %3388 = vmatprep.subr.mxu0 0.0
      %3389 = vmatpush1.msra.mxu0 0.0
      %3390 = vmatprep.subr.mxu0 0.0
      %3391 = vmatpush1.msra.mxu0 0.0
      %3392 = vmatprep.subr.mxu0 0.0
      %3393 = vmatpush1.msra.mxu0 0.0
      %3394 = vmatprep.subr.mxu0 0.0
      %3395 = vmatpush1.msra.mxu0 0.0
      %3396 = vmatprep.subr.mxu0 0.0
      %3397 = vmatpush1.msra.mxu0 0.0
      %3398 = vmatprep.subr.mxu0 0.0
      %3399 = vmatpush1.msra.mxu0 0.0
      %3400 = vmatprep.subr.mxu0 0.0
      %3401 = vmatpush1.msra.mxu0 0.0
      %3402 = vmatprep.subr.mxu0 0.0
      %3403 = vmatpush1.msra.mxu0 0.0
      %3404 = vmatprep.subr.mxu0 0.0
      %3405 = vmatpush1.msra.mxu0 0.0
      %3406 = vmatprep.subr.mxu0 0.0
      %3407 = vmatpush1.msra.mxu0 0.0
      %3408 = vmatprep.subr.mxu0 0.0
      %3409 = vmatpush1.msra.mxu0 0.0
      %3410 = vmatprep.subr.mxu0 0.0
      %3411 = vmatpush1.msra.mxu0 0.0
      %3412 = vmatprep.subr.mxu0 0.0
      %3413 = vmatpush1.msra.mxu0 0.0
      %3414 = vmatprep.subr.mxu0 0.0
      %3415 = vmatpush1.msra.mxu0 0.0
      %3416 = vmatprep.subr.mxu0 0.0
      %3417 = vmatpush1.msra.mxu0 0.0
      %3418 = vmatprep.mubr.f32.mxu0 0.0
      %3419 = vmatmul.mubr.f32.gmra.mrb[0].mxu0 %v3258
      %v3420 = vpop.f32.mrb[0].mxu0
      %v3421 = vadd.f32 %v3336, %v3420
      %v3422 = vpop.f32.mrb[0].mxu0
      %3423 = vmatprep.mubr.f32.mxu0 0.0
      %3424 = vmatmul.mubr.f32.gmra.mrb[0].mxu0 %v3261
      %v3425 = vpop.f32.mrb[0].mxu0
      %v3426 = vadd.f32 %v3341, %v3425
      %v3427 = vpop.f32.mrb[0].mxu0
      %3428 = vmatprep.mubr.f32.mxu0 0.0
      %3429 = vmatmul.mubr.f32.gmra.mrb[0].mxu0 %v3264
      %v3430 = vpop.f32.mrb[0].mxu0
      %v3431 = vadd.f32 %v3346, %v3430
      %v3432 = vpop.f32.mrb[0].mxu0
      %3433 = vmatprep.mubr.f32.mxu0 0.0
      %3434 = vmatmul.mubr.f32.gmra.mrb[0].mxu0 %v3267
      %v3435 = vpop.f32.mrb[0].mxu0
      %v3436 = vadd.f32 %v3351, %v3435
      %v3437 = vpop.f32.mrb[0].mxu0
      %3438 = vdwg.mxu0
      %v3439 = vsel %vm2457, %v3421, 0.0
      %3440 = vadd.xlane.f32.xlu0 %v3439
      %v3441 = vpop.xlane.xlu0 %3440
      %v3442 = vsel %vm2457, %v3426, 0.0
      %3443 = vadd.xlane.f32.xlu0 %v3442
      %v3444 = vpop.xlane.xlu0 %3443
      %v3445 = vsel %vm2457, %v3431, 0.0
      %3446 = vadd.xlane.f32.xlu0 %v3445
      %v3447 = vpop.xlane.xlu0 %3446
      %v3448 = vsel %vm2457, %v3436, 0.0
      %3449 = vadd.xlane.f32.xlu0 %v3448
      %v3450 = vpop.xlane.xlu0 %3449
      %v3451 = vmul.f32 %v3441, 0.0625
      %v3452 = vmul.f32 %v3444, 0.0625
      %v3453 = vmul.f32 %v3447, 0.0625
      %v3454 = vmul.f32 %v3450, 0.0625
      %v3455 = vmul.f32 %v3421, %v3421
      %v3456 = vmul.f32 %v3426, %v3426
      %v3457 = vmul.f32 %v3431, %v3431
      %v3458 = vmul.f32 %v3436, %v3436
      %v3459 = vsel %vm2457, %v3455, 0.0
      %3460 = vadd.xlane.f32.xlu0 %v3459
      %v3461 = vpop.xlane.xlu0 %3460
      %v3462 = vsel %vm2457, %v3456, 0.0
      %3463 = vadd.xlane.f32.xlu0 %v3462
      %v3464 = vpop.xlane.xlu0 %3463
      %v3465 = vsel %vm2457, %v3457, 0.0
      %3466 = vadd.xlane.f32.xlu0 %v3465
      %v3467 = vpop.xlane.xlu0 %3466
      %v3468 = vsel %vm2457, %v3458, 0.0
      %3469 = vadd.xlane.f32.xlu0 %v3468
      %v3470 = vpop.xlane.xlu0 %3469
      %v3471 = vmul.f32 %v3461, 0.0625
      %v3472 = vmul.f32 %v3464, 0.0625
      %v3473 = vmul.f32 %v3467, 0.0625
      %v3474 = vmul.f32 %v3470, 0.0625
      %v3475 = vmul.f32 %v3451, %v3451
      %v3476 = vmul.f32 %v3452, %v3452
      %v3477 = vmul.f32 %v3453, %v3453
      %v3478 = vmul.f32 %v3454, %v3454
      %v3479 = vsub.f32 %v3471, %v3475
      %v3480 = vsub.f32 %v3472, %v3476
      %v3481 = vsub.f32 %v3473, %v3477
      %v3482 = vsub.f32 %v3474, %v3478
      %v3483 = vmax.f32 %v3479, 0.0
      %v3484 = vmax.f32 %v3480, 0.0
      %v3485 = vmax.f32 %v3481, 0.0
      %v3486 = vmax.f32 %v3482, 0.0
      %v3487 = vsub.f32 %v3421, %v3451
      %v3488 = vsub.f32 %v3426, %v3452
      %v3489 = vsub.f32 %v3431, %v3453
      %v3490 = vsub.f32 %v3436, %v3454
      %v3491 = vadd.f32 %v3483, 1e-05
      %v3492 = vadd.f32 %v3484, 1e-05
      %v3493 = vadd.f32 %v3485, 1e-05
      %v3494 = vadd.f32 %v3486, 1e-05
      %v3495 = vrsqrt.pop %v3491
      %v3496 = vrsqrt.pop %v3492
      %v3497 = vrsqrt.pop %v3493
      %v3498 = vrsqrt.pop %v3494
      %v3499 = vmul.f32 %v3487, %v3495
      %v3500 = vmul.f32 %v3488, %v3496
      %v3501 = vmul.f32 %v3489, %v3497
      %v3502 = vmul.f32 %v3490, %v3498
      %v3503 = vld [vmem:[%s51] sm:$0xff]
      %v3504 = vld [vmem:[%s51 + $0x8] sm:$0xff]
      %v3505 = vld [vmem:[%s51 + $0x10] sm:$0xff]
      %v3506 = vld [vmem:[%s51 + $0x18] sm:$0xff]
      %3508 = vset.pattern.permute.xlu0 0
      %3509 = vperm.xlu0 %3508, %v3503
      %v3510 = vpop.permute.xlu0 %3509
      %3513 = vset.pattern.permute.xlu0 0
      %3514 = vperm.xlu0 %3513, %v3504
      %v3515 = vpop.permute.xlu0 %3514
      %3518 = vset.pattern.permute.xlu0 0
      %3519 = vperm.xlu0 %3518, %v3505
      %v3520 = vpop.permute.xlu0 %3519
      %3523 = vset.pattern.permute.xlu0 0
      %3524 = vperm.xlu0 %3523, %v3506
      %v3525 = vpop.permute.xlu0 %3524
      %v3527 = vmul.f32 %v3499, %v3510
      %v3528 = vmul.f32 %v3500, %v3515
      %v3529 = vmul.f32 %v3501, %v3520
      %v3530 = vmul.f32 %v3502, %v3525
      %v3531 = vld [vmem:[%s53] sm:$0xff]
      %v3532 = vld [vmem:[%s53 + $0x8] sm:$0xff]
      %v3533 = vld [vmem:[%s53 + $0x10] sm:$0xff]
      %v3534 = vld [vmem:[%s53 + $0x18] sm:$0xff]
      %3536 = vset.pattern.permute.xlu0 0
      %3537 = vperm.xlu0 %3536, %v3531
      %v3538 = vpop.permute.xlu0 %3537
      %3541 = vset.pattern.permute.xlu0 0
      %3542 = vperm.xlu0 %3541, %v3532
      %v3543 = vpop.permute.xlu0 %3542
      %3546 = vset.pattern.permute.xlu0 0
      %3547 = vperm.xlu0 %3546, %v3533
      %v3548 = vpop.permute.xlu0 %3547
      %3551 = vset.pattern.permute.xlu0 0
      %3552 = vperm.xlu0 %3551, %v3534
      %v3553 = vpop.permute.xlu0 %3552
      %v3555 = vadd.f32 %v3527, %v3538
      %v3556 = vadd.f32 %v3528, %v3543
      %v3557 = vadd.f32 %v3529, %v3548
      %v3558 = vadd.f32 %v3530, %v3553
      %v3559 = vmax.f32 %v3555, 0.0
      %v3560 = vmax.f32 %v3556, 0.0
      %v3561 = vmax.f32 %v3557, 0.0
      %v3562 = vmax.f32 %v3558, 0.0
      %v3563 = vld [vmem:[%s55] sm:$0xff]
      %v3564 = vld [vmem:[%s55 + $0x8] sm:$0xff]
      %v3565 = vld [vmem:[%s55 + $0x10] sm:$0xff]
      %v3566 = vld [vmem:[%s55 + $0x18] sm:$0xff]
      %v3567 = vld [vmem:[%s55 + $0x20] sm:$0xff]
      %v3568 = vld [vmem:[%s55 + $0x28] sm:$0xff]
      %v3569 = vld [vmem:[%s55 + $0x30] sm:$0xff]
      %v3570 = vld [vmem:[%s55 + $0x38] sm:$0xff]
      %v3572 = vsel %vm3256, %v3563, 0
      %v3575 = vsel %vm3256, %v3564, 0
      %v3578 = vsel %vm3256, %v3565, 0
      %v3581 = vsel %vm3256, %v3566, 0
      %v3584 = vsel %vm3256, %v3567, 0
      %v3587 = vsel %vm3256, %v3568, 0
      %v3590 = vsel %vm3256, %v3569, 0
      %v3593 = vsel %vm3256, %v3570, 0
      %3595 = vmatprep.subr.mxu0 0.0
      %3596 = vmatpush1.msra.mxu0 %v3559
      %3597 = vmatprep.subr.mxu0 0.0
      %3598 = vmatpush1.msra.mxu0 %v3560
      %3599 = vmatprep.subr.mxu0 0.0
      %3600 = vmatpush1.msra.mxu0 %v3561
      %3601 = vmatprep.subr.mxu0 0.0
      %3602 = vmatpush1.msra.mxu0 %v3562
      %3603 = vmatprep.subr.mxu0 0.0
      %3604 = vmatpush1.msra.mxu0 0.0
      %3605 = vmatprep.subr.mxu0 0.0
      %3606 = vmatpush1.msra.mxu0 0.0
      %3607 = vmatprep.subr.mxu0 0.0
      %3608 = vmatpush1.msra.mxu0 0.0
      %3609 = vmatprep.subr.mxu0 0.0
      %3610 = vmatpush1.msra.mxu0 0.0
      %3611 = vmatprep.subr.mxu0 0.0
      %3612 = vmatpush1.msra.mxu0 0.0
      %3613 = vmatprep.subr.mxu0 0.0
      %3614 = vmatpush1.msra.mxu0 0.0
      %3615 = vmatprep.subr.mxu0 0.0
      %3616 = vmatpush1.msra.mxu0 0.0
      %3617 = vmatprep.subr.mxu0 0.0
      %3618 = vmatpush1.msra.mxu0 0.0
      %3619 = vmatprep.subr.mxu0 0.0
      %3620 = vmatpush1.msra.mxu0 0.0
      %3621 = vmatprep.subr.mxu0 0.0
      %3622 = vmatpush1.msra.mxu0 0.0
      %3623 = vmatprep.subr.mxu0 0.0
      %3624 = vmatpush1.msra.mxu0 0.0
      %3625 = vmatprep.subr.mxu0 0.0
      %3626 = vmatpush1.msra.mxu0 0.0
      %3627 = vmatprep.subr.mxu0 0.0
      %3628 = vmatpush1.msra.mxu0 0.0
      %3629 = vmatprep.subr.mxu0 0.0
      %3630 = vmatpush1.msra.mxu0 0.0
      %3631 = vmatprep.subr.mxu0 0.0
      %3632 = vmatpush1.msra.mxu0 0.0
      %3633 = vmatprep.subr.mxu0 0.0
      %3634 = vmatpush1.msra.mxu0 0.0
      %3635 = vmatprep.subr.mxu0 0.0
      %3636 = vmatpush1.msra.mxu0 0.0
      %3637 = vmatprep.subr.mxu0 0.0
      %3638 = vmatpush1.msra.mxu0 0.0
      %3639 = vmatprep.subr.mxu0 0.0
      %3640 = vmatpush1.msra.mxu0 0.0
      %3641 = vmatprep.subr.mxu0 0.0
      %3642 = vmatpush1.msra.mxu0 0.0
      %3643 = vmatprep.subr.mxu0 0.0
      %3644 = vmatpush1.msra.mxu0 0.0
      %3645 = vmatprep.subr.mxu0 0.0
      %3646 = vmatpush1.msra.mxu0 0.0
      %3647 = vmatprep.subr.mxu0 0.0
      %3648 = vmatpush1.msra.mxu0 0.0
      %3649 = vmatprep.subr.mxu0 0.0
      %3650 = vmatpush1.msra.mxu0 0.0
      %3651 = vmatprep.subr.mxu0 0.0
      %3652 = vmatpush1.msra.mxu0 0.0
      %3653 = vmatprep.subr.mxu0 0.0
      %3654 = vmatpush1.msra.mxu0 0.0
      %3655 = vmatprep.subr.mxu0 0.0
      %3656 = vmatpush1.msra.mxu0 0.0
      %3657 = vmatprep.subr.mxu0 0.0
      %3658 = vmatpush1.msra.mxu0 0.0
      %3659 = vmatprep.mubr.f32.mxu0 0.0
      %3660 = vmatmul.mubr.f32.gmra.mrb[0].mxu0 %v3572
      %v3661 = vpop.f32.mrb[0].mxu0
      %v3662 = vadd.f32 0.0, %v3661
      %v3663 = vpop.f32.mrb[0].mxu0
      %3664 = vmatprep.mubr.f32.mxu0 0.0
      %3665 = vmatmul.mubr.f32.gmra.mrb[0].mxu0 %v3575
      %v3666 = vpop.f32.mrb[0].mxu0
      %v3667 = vadd.f32 0.0, %v3666
      %v3668 = vpop.f32.mrb[0].mxu0
      %3669 = vmatprep.mubr.f32.mxu0 0.0
      %3670 = vmatmul.mubr.f32.gmra.mrb[0].mxu0 %v3578
      %v3671 = vpop.f32.mrb[0].mxu0
      %v3672 = vadd.f32 0.0, %v3671
      %v3673 = vpop.f32.mrb[0].mxu0
      %3674 = vmatprep.mubr.f32.mxu0 0.0
      %3675 = vmatmul.mubr.f32.gmra.mrb[0].mxu0 %v3581
      %v3676 = vpop.f32.mrb[0].mxu0
      %v3677 = vadd.f32 0.0, %v3676
      %v3678 = vpop.f32.mrb[0].mxu0
      %3679 = vmatprep.mubr.f32.mxu0 0.0
      %3680 = vmatmul.mubr.f32.gmra.mrb[0].mxu0 %v3584
      %v3681 = vpop.f32.mrb[0].mxu0
      %v3682 = vadd.f32 0.0, %v3681
      %v3683 = vpop.f32.mrb[0].mxu0
      %3684 = vmatprep.mubr.f32.mxu0 0.0
      %3685 = vmatmul.mubr.f32.gmra.mrb[0].mxu0 %v3587
      %v3686 = vpop.f32.mrb[0].mxu0
      %v3687 = vadd.f32 0.0, %v3686
      %v3688 = vpop.f32.mrb[0].mxu0
      %3689 = vmatprep.mubr.f32.mxu0 0.0
      %3690 = vmatmul.mubr.f32.gmra.mrb[0].mxu0 %v3590
      %v3691 = vpop.f32.mrb[0].mxu0
      %v3692 = vadd.f32 0.0, %v3691
      %v3693 = vpop.f32.mrb[0].mxu0
      %3694 = vmatprep.mubr.f32.mxu0 0.0
      %3695 = vmatmul.mubr.f32.gmra.mrb[0].mxu0 %v3593
      %v3696 = vpop.f32.mrb[0].mxu0
      %v3697 = vadd.f32 0.0, %v3696
      %v3698 = vpop.f32.mrb[0].mxu0
      %3699 = vdwg.mxu0
      %v3700 = vld [vmem:[%s59] sm:$0xff]
      %v3701 = vld [vmem:[%s59 + $0x8] sm:$0xff]
      %s3702 = scalar_lea.vmem %s59, 16
      %v3703 = vld [vmem:[%s3702] sm:$0xff]
      %v3704 = vld [vmem:[%s3702 + $0x8] sm:$0xff]
      %v3706 = vsel %vm2457, %v3672, 0
      %v3709 = vsel %vm2457, %v3677, 0
      %3711 = vmatprep.subr.mxu0 0.0
      %3712 = vmatpush1.msra.mxu0 %v3703
      %3713 = vmatprep.subr.mxu0 0.0
      %3714 = vmatpush1.msra.mxu0 %v3704
      %3715 = vmatprep.subr.mxu0 0.0
      %3716 = vmatpush1.msra.mxu0 0.0
      %3717 = vmatprep.subr.mxu0 0.0
      %3718 = vmatpush1.msra.mxu0 0.0
      %3719 = vmatprep.subr.mxu0 0.0
      %3720 = vmatpush1.msra.mxu0 0.0
      %3721 = vmatprep.subr.mxu0 0.0
      %3722 = vmatpush1.msra.mxu0 0.0
      %3723 = vmatprep.subr.mxu0 0.0
      %3724 = vmatpush1.msra.mxu0 0.0
      %3725 = vmatprep.subr.mxu0 0.0
      %3726 = vmatpush1.msra.mxu0 0.0
      %3727 = vmatprep.subr.mxu0 0.0
      %3728 = vmatpush1.msra.mxu0 0.0
      %3729 = vmatprep.subr.mxu0 0.0
      %3730 = vmatpush1.msra.mxu0 0.0
      %3731 = vmatprep.subr.mxu0 0.0
      %3732 = vmatpush1.msra.mxu0 0.0
      %3733 = vmatprep.subr.mxu0 0.0
      %3734 = vmatpush1.msra.mxu0 0.0
      %3735 = vmatprep.subr.mxu0 0.0
      %3736 = vmatpush1.msra.mxu0 0.0
      %3737 = vmatprep.subr.mxu0 0.0
      %3738 = vmatpush1.msra.mxu0 0.0
      %3739 = vmatprep.subr.mxu0 0.0
      %3740 = vmatpush1.msra.mxu0 0.0
      %3741 = vmatprep.subr.mxu0 0.0
      %3742 = vmatpush1.msra.mxu0 0.0
      %3743 = vmatprep.subr.mxu0 0.0
      %3744 = vmatpush1.msra.mxu0 0.0
      %3745 = vmatprep.subr.mxu0 0.0
      %3746 = vmatpush1.msra.mxu0 0.0
      %3747 = vmatprep.subr.mxu0 0.0
      %3748 = vmatpush1.msra.mxu0 0.0
      %3749 = vmatprep.subr.mxu0 0.0
      %3750 = vmatpush1.msra.mxu0 0.0
      %3751 = vmatprep.subr.mxu0 0.0
      %3752 = vmatpush1.msra.mxu0 0.0
      %3753 = vmatprep.subr.mxu0 0.0
      %3754 = vmatpush1.msra.mxu0 0.0
      %3755 = vmatprep.subr.mxu0 0.0
      %3756 = vmatpush1.msra.mxu0 0.0
      %3757 = vmatprep.subr.mxu0 0.0
      %3758 = vmatpush1.msra.mxu0 0.0
      %3759 = vmatprep.subr.mxu0 0.0
      %3760 = vmatpush1.msra.mxu0 0.0
      %3761 = vmatprep.subr.mxu0 0.0
      %3762 = vmatpush1.msra.mxu0 0.0
      %3763 = vmatprep.subr.mxu0 0.0
      %3764 = vmatpush1.msra.mxu0 0.0
      %3765 = vmatprep.subr.mxu0 0.0
      %3766 = vmatpush1.msra.mxu0 0.0
      %3767 = vmatprep.subr.mxu0 0.0
      %3768 = vmatpush1.msra.mxu0 0.0
      %3769 = vmatprep.subr.mxu0 0.0
      %3770 = vmatpush1.msra.mxu0 0.0
      %3771 = vmatprep.subr.mxu0 0.0
      %3772 = vmatpush1.msra.mxu0 0.0
      %3773 = vmatprep.subr.mxu0 0.0
      %3774 = vmatpush1.msra.mxu0 0.0
      %3775 = vmatprep.mubr.f32.mxu0 0.0
      %3776 = vmatmul.mubr.f32.gmra.mrb[0].mxu0 %v3706
      %v3777 = vpop.f32.mrb[0].mxu0
      %v3778 = vadd.f32 0.0, %v3777
      %v3779 = vpop.f32.mrb[0].mxu0
      %3780 = vmatprep.mubr.f32.mxu0 0.0
      %3781 = vmatmul.mubr.f32.gmra.mrb[0].mxu0 %v3709
      %v3782 = vpop.f32.mrb[0].mxu0
      %v3783 = vadd.f32 0.0, %v3782
      %v3784 = vpop.f32.mrb[0].mxu0
      %3785 = vdwg.mxu0
      %v3787 = vsel %vm2457, %v3662, 0
      %v3790 = vsel %vm2457, %v3667, 0
      %3792 = vmatprep.subr.mxu0 0.0
      %3793 = vmatpush1.msra.mxu0 %v3700
      %3794 = vmatprep.subr.mxu0 0.0
      %3795 = vmatpush1.msra.mxu0 %v3701
      %3796 = vmatprep.subr.mxu0 0.0
      %3797 = vmatpush1.msra.mxu0 0.0
      %3798 = vmatprep.subr.mxu0 0.0
      %3799 = vmatpush1.msra.mxu0 0.0
      %3800 = vmatprep.subr.mxu0 0.0
      %3801 = vmatpush1.msra.mxu0 0.0
      %3802 = vmatprep.subr.mxu0 0.0
      %3803 = vmatpush1.msra.mxu0 0.0
      %3804 = vmatprep.subr.mxu0 0.0
      %3805 = vmatpush1.msra.mxu0 0.0
      %3806 = vmatprep.subr.mxu0 0.0
      %3807 = vmatpush1.msra.mxu0 0.0
      %3808 = vmatprep.subr.mxu0 0.0
      %3809 = vmatpush1.msra.mxu0 0.0
      %3810 = vmatprep.subr.mxu0 0.0
      %3811 = vmatpush1.msra.mxu0 0.0
      %3812 = vmatprep.subr.mxu0 0.0
      %3813 = vmatpush1.msra.mxu0 0.0
      %3814 = vmatprep.subr.mxu0 0.0
      %3815 = vmatpush1.msra.mxu0 0.0
      %3816 = vmatprep.subr.mxu0 0.0
      %3817 = vmatpush1.msra.mxu0 0.0
      %3818 = vmatprep.subr.mxu0 0.0
      %3819 = vmatpush1.msra.mxu0 0.0
      %3820 = vmatprep.subr.mxu0 0.0
      %3821 = vmatpush1.msra.mxu0 0.0
      %3822 = vmatprep.subr.mxu0 0.0
      %3823 = vmatpush1.msra.mxu0 0.0
      %3824 = vmatprep.subr.mxu0 0.0
      %3825 = vmatpush1.msra.mxu0 0.0
      %3826 = vmatprep.subr.mxu0 0.0
      %3827 = vmatpush1.msra.mxu0 0.0
      %3828 = vmatprep.subr.mxu0 0.0
      %3829 = vmatpush1.msra.mxu0 0.0
      %3830 = vmatprep.subr.mxu0 0.0
      %3831 = vmatpush1.msra.mxu0 0.0
      %3832 = vmatprep.subr.mxu0 0.0
      %3833 = vmatpush1.msra.mxu0 0.0
      %3834 = vmatprep.subr.mxu0 0.0
      %3835 = vmatpush1.msra.mxu0 0.0
      %3836 = vmatprep.subr.mxu0 0.0
      %3837 = vmatpush1.msra.mxu0 0.0
      %3838 = vmatprep.subr.mxu0 0.0
      %3839 = vmatpush1.msra.mxu0 0.0
      %3840 = vmatprep.subr.mxu0 0.0
      %3841 = vmatpush1.msra.mxu0 0.0
      %3842 = vmatprep.subr.mxu0 0.0
      %3843 = vmatpush1.msra.mxu0 0.0
      %3844 = vmatprep.subr.mxu0 0.0
      %3845 = vmatpush1.msra.mxu0 0.0
      %3846 = vmatprep.subr.mxu0 0.0
      %3847 = vmatpush1.msra.mxu0 0.0
      %3848 = vmatprep.subr.mxu0 0.0
      %3849 = vmatpush1.msra.mxu0 0.0
      %3850 = vmatprep.subr.mxu0 0.0
      %3851 = vmatpush1.msra.mxu0 0.0
      %3852 = vmatprep.subr.mxu0 0.0
      %3853 = vmatpush1.msra.mxu0 0.0
      %3854 = vmatprep.subr.mxu0 0.0
      %3855 = vmatpush1.msra.mxu0 0.0
      %3856 = vmatprep.mubr.f32.mxu0 0.0
      %3857 = vmatmul.mubr.f32.gmra.mrb[0].mxu0 %v3787
      %v3858 = vpop.f32.mrb[0].mxu0
      %v3859 = vadd.f32 %v3778, %v3858
      %v3860 = vpop.f32.mrb[0].mxu0
      %3861 = vmatprep.mubr.f32.mxu0 0.0
      %3862 = vmatmul.mubr.f32.gmra.mrb[0].mxu0 %v3790
      %v3863 = vpop.f32.mrb[0].mxu0
      %v3864 = vadd.f32 %v3783, %v3863
      %v3865 = vpop.f32.mrb[0].mxu0
      %3866 = vdwg.mxu0
      %s3867 = scalar_lea.vmem %s59, 32
      %v3868 = vld [vmem:[%s3867] sm:$0xff]
      %v3869 = vld [vmem:[%s3867 + $0x8] sm:$0xff]
      %v3871 = vsel %vm2457, %v3682, 0
      %v3874 = vsel %vm2457, %v3687, 0
      %3876 = vmatprep.subr.mxu0 0.0
      %3877 = vmatpush1.msra.mxu0 %v3868
      %3878 = vmatprep.subr.mxu0 0.0
      %3879 = vmatpush1.msra.mxu0 %v3869
      %3880 = vmatprep.subr.mxu0 0.0
      %3881 = vmatpush1.msra.mxu0 0.0
      %3882 = vmatprep.subr.mxu0 0.0
      %3883 = vmatpush1.msra.mxu0 0.0
      %3884 = vmatprep.subr.mxu0 0.0
      %3885 = vmatpush1.msra.mxu0 0.0
      %3886 = vmatprep.subr.mxu0 0.0
      %3887 = vmatpush1.msra.mxu0 0.0
      %3888 = vmatprep.subr.mxu0 0.0
      %3889 = vmatpush1.msra.mxu0 0.0
      %3890 = vmatprep.subr.mxu0 0.0
      %3891 = vmatpush1.msra.mxu0 0.0
      %3892 = vmatprep.subr.mxu0 0.0
      %3893 = vmatpush1.msra.mxu0 0.0
      %3894 = vmatprep.subr.mxu0 0.0
      %3895 = vmatpush1.msra.mxu0 0.0
      %3896 = vmatprep.subr.mxu0 0.0
      %3897 = vmatpush1.msra.mxu0 0.0
      %3898 = vmatprep.subr.mxu0 0.0
      %3899 = vmatpush1.msra.mxu0 0.0
      %3900 = vmatprep.subr.mxu0 0.0
      %3901 = vmatpush1.msra.mxu0 0.0
      %3902 = vmatprep.subr.mxu0 0.0
      %3903 = vmatpush1.msra.mxu0 0.0
      %3904 = vmatprep.subr.mxu0 0.0
      %3905 = vmatpush1.msra.mxu0 0.0
      %3906 = vmatprep.subr.mxu0 0.0
      %3907 = vmatpush1.msra.mxu0 0.0
      %3908 = vmatprep.subr.mxu0 0.0
      %3909 = vmatpush1.msra.mxu0 0.0
      %3910 = vmatprep.subr.mxu0 0.0
      %3911 = vmatpush1.msra.mxu0 0.0
      %3912 = vmatprep.subr.mxu0 0.0
      %3913 = vmatpush1.msra.mxu0 0.0
      %3914 = vmatprep.subr.mxu0 0.0
      %3915 = vmatpush1.msra.mxu0 0.0
      %3916 = vmatprep.subr.mxu0 0.0
      %3917 = vmatpush1.msra.mxu0 0.0
      %3918 = vmatprep.subr.mxu0 0.0
      %3919 = vmatpush1.msra.mxu0 0.0
      %3920 = vmatprep.subr.mxu0 0.0
      %3921 = vmatpush1.msra.mxu0 0.0
      %3922 = vmatprep.subr.mxu0 0.0
      %3923 = vmatpush1.msra.mxu0 0.0
      %3924 = vmatprep.subr.mxu0 0.0
      %3925 = vmatpush1.msra.mxu0 0.0
      %3926 = vmatprep.subr.mxu0 0.0
      %3927 = vmatpush1.msra.mxu0 0.0
      %3928 = vmatprep.subr.mxu0 0.0
      %3929 = vmatpush1.msra.mxu0 0.0
      %3930 = vmatprep.subr.mxu0 0.0
      %3931 = vmatpush1.msra.mxu0 0.0
      %3932 = vmatprep.subr.mxu0 0.0
      %3933 = vmatpush1.msra.mxu0 0.0
      %3934 = vmatprep.subr.mxu0 0.0
      %3935 = vmatpush1.msra.mxu0 0.0
      %3936 = vmatprep.subr.mxu0 0.0
      %3937 = vmatpush1.msra.mxu0 0.0
      %3938 = vmatprep.subr.mxu0 0.0
      %3939 = vmatpush1.msra.mxu0 0.0
      %3940 = vmatprep.mubr.f32.mxu0 0.0
      %3941 = vmatmul.mubr.f32.gmra.mrb[0].mxu0 %v3871
      %v3942 = vpop.f32.mrb[0].mxu0
      %v3943 = vadd.f32 0.0, %v3942
      %v3944 = vpop.f32.mrb[0].mxu0
      %3945 = vmatprep.mubr.f32.mxu0 0.0
      %3946 = vmatmul.mubr.f32.gmra.mrb[0].mxu0 %v3874
      %v3947 = vpop.f32.mrb[0].mxu0
      %v3948 = vadd.f32 0.0, %v3947
      %v3949 = vpop.f32.mrb[0].mxu0
      %3950 = vdwg.mxu0
      %v3951 = vadd.f32 %v3859, %v3943
      %v3952 = vadd.f32 %v3864, %v3948
      %s3953 = scalar_lea.vmem %s59, 48
      %v3954 = vld [vmem:[%s3953] sm:$0xff]
      %v3955 = vld [vmem:[%s3953 + $0x8] sm:$0xff]
      %v3957 = vsel %vm2457, %v3692, 0
      %v3960 = vsel %vm2457, %v3697, 0
      %3962 = vmatprep.subr.mxu0 0.0
      %3963 = vmatpush1.msra.mxu0 %v3954
      %3964 = vmatprep.subr.mxu0 0.0
      %3965 = vmatpush1.msra.mxu0 %v3955
      %3966 = vmatprep.subr.mxu0 0.0
      %3967 = vmatpush1.msra.mxu0 0.0
      %3968 = vmatprep.subr.mxu0 0.0
      %3969 = vmatpush1.msra.mxu0 0.0
      %3970 = vmatprep.subr.mxu0 0.0
      %3971 = vmatpush1.msra.mxu0 0.0
      %3972 = vmatprep.subr.mxu0 0.0
      %3973 = vmatpush1.msra.mxu0 0.0
      %3974 = vmatprep.subr.mxu0 0.0
      %3975 = vmatpush1.msra.mxu0 0.0
      %3976 = vmatprep.subr.mxu0 0.0
      %3977 = vmatpush1.msra.mxu0 0.0
      %3978 = vmatprep.subr.mxu0 0.0
      %3979 = vmatpush1.msra.mxu0 0.0
      %3980 = vmatprep.subr.mxu0 0.0
      %3981 = vmatpush1.msra.mxu0 0.0
      %3982 = vmatprep.subr.mxu0 0.0
      %3983 = vmatpush1.msra.mxu0 0.0
      %3984 = vmatprep.subr.mxu0 0.0
      %3985 = vmatpush1.msra.mxu0 0.0
      %3986 = vmatprep.subr.mxu0 0.0
      %3987 = vmatpush1.msra.mxu0 0.0
      %3988 = vmatprep.subr.mxu0 0.0
      %3989 = vmatpush1.msra.mxu0 0.0
      %3990 = vmatprep.subr.mxu0 0.0
      %3991 = vmatpush1.msra.mxu0 0.0
      %3992 = vmatprep.subr.mxu0 0.0
      %3993 = vmatpush1.msra.mxu0 0.0
      %3994 = vmatprep.subr.mxu0 0.0
      %3995 = vmatpush1.msra.mxu0 0.0
      %3996 = vmatprep.subr.mxu0 0.0
      %3997 = vmatpush1.msra.mxu0 0.0
      %3998 = vmatprep.subr.mxu0 0.0
      %3999 = vmatpush1.msra.mxu0 0.0
      %4000 = vmatprep.subr.mxu0 0.0
      %4001 = vmatpush1.msra.mxu0 0.0
      %4002 = vmatprep.subr.mxu0 0.0
      %4003 = vmatpush1.msra.mxu0 0.0
      %4004 = vmatprep.subr.mxu0 0.0
      %4005 = vmatpush1.msra.mxu0 0.0
      %4006 = vmatprep.subr.mxu0 0.0
      %4007 = vmatpush1.msra.mxu0 0.0
      %4008 = vmatprep.subr.mxu0 0.0
      %4009 = vmatpush1.msra.mxu0 0.0
      %4010 = vmatprep.subr.mxu0 0.0
      %4011 = vmatpush1.msra.mxu0 0.0
      %4012 = vmatprep.subr.mxu0 0.0
      %4013 = vmatpush1.msra.mxu0 0.0
      %4014 = vmatprep.subr.mxu0 0.0
      %4015 = vmatpush1.msra.mxu0 0.0
      %4016 = vmatprep.subr.mxu0 0.0
      %4017 = vmatpush1.msra.mxu0 0.0
      %4018 = vmatprep.subr.mxu0 0.0
      %4019 = vmatpush1.msra.mxu0 0.0
      %4020 = vmatprep.subr.mxu0 0.0
      %4021 = vmatpush1.msra.mxu0 0.0
      %4022 = vmatprep.subr.mxu0 0.0
      %4023 = vmatpush1.msra.mxu0 0.0
      %4024 = vmatprep.subr.mxu0 0.0
      %4025 = vmatpush1.msra.mxu0 0.0
      %4026 = vmatprep.mubr.f32.mxu0 0.0
      %4027 = vmatmul.mubr.f32.gmra.mrb[0].mxu0 %v3957
      %v4028 = vpop.f32.mrb[0].mxu0
      %v4029 = vadd.f32 0.0, %v4028
      %v4030 = vpop.f32.mrb[0].mxu0
      %4031 = vmatprep.mubr.f32.mxu0 0.0
      %4032 = vmatmul.mubr.f32.gmra.mrb[0].mxu0 %v3960
      %v4033 = vpop.f32.mrb[0].mxu0
      %v4034 = vadd.f32 0.0, %v4033
      %v4035 = vpop.f32.mrb[0].mxu0
      %4036 = vdwg.mxu0
      %v4037 = vadd.f32 %v3951, %v4029
      %v4038 = vadd.f32 %v3952, %v4034
      %v4039 = vld [vmem:[%s57] sm:$0xff]
      %v4040 = vld [vmem:[%s57 + $0x8] sm:$0xff]
      %4042 = vset.pattern.permute.xlu0 0
      %4043 = vperm.xlu0 %4042, %v4039
      %v4044 = vpop.permute.xlu0 %4043
      %4047 = vset.pattern.permute.xlu0 0
      %4048 = vperm.xlu0 %4047, %v4040
      %v4049 = vpop.permute.xlu0 %4048
      %v4051 = vadd.f32 %v4037, %v4044
      %v4052 = vadd.f32 %v4038, %v4049
      %4055 = vrot.lane.b32.xlu0 %v4051, 9
      %v4056 = vpop.permute.xlu0 %4055
      %4057 = vrot.lane.b32.xlu0 %v4052, 9
      %v4058 = vpop.permute.xlu0 %4057
      %v4061 = vsel %vm2170, 0.0, %v4056
      %v4062 = vsel %vm2170, 0.0, %v4058
      %v4063 = vsel %vm2172, %v4061, 0.0
      %v4064 = vsel %vm2172, %v4062, 0.0
      %v4065 = vsel %vm2175, %v4063, 0.0
      %v4066 = vsel %vm2175, %v4064, 0.0
      %4069 = vrot.lane.b32.xlu0 %v4063, 126
      %v4070 = vpop.permute.xlu0 %4069
      %4071 = vrot.lane.b32.xlu0 %v4064, 126
      %v4072 = vpop.permute.xlu0 %4071
      %v4075 = vsel %vm2178, %v4070, 0.0
      %v4076 = vsel %vm2178, %v4072, 0.0
      %4077 = vrot.lane.b32.xlu0 %v4063, 120
      %v4078 = vpop.permute.xlu0 %4077
      %4079 = vrot.lane.b32.xlu0 %v4064, 120
      %v4080 = vpop.permute.xlu0 %4079
      %v4083 = vsel %vm2175, %v4078, 0.0
      %v4084 = vsel %vm2175, %v4080, 0.0
      %4085 = vrot.lane.b32.xlu0 %v4063, 118
      %v4086 = vpop.permute.xlu0 %4085
      %4087 = vrot.lane.b32.xlu0 %v4064, 118
      %v4088 = vpop.permute.xlu0 %4087
      %v4091 = vsel %vm2178, %v4086, 0.0
      %v4092 = vsel %vm2178, %v4088, 0.0
      %4093 = vrot.lane.b32.xlu0 %v4063, 112
      %v4094 = vpop.permute.xlu0 %4093
      %4095 = vrot.lane.b32.xlu0 %v4064, 112
      %v4096 = vpop.permute.xlu0 %4095
      %v4099 = vsel %vm2175, %v4094, 0.0
      %v4100 = vsel %vm2175, %v4096, 0.0
      %4101 = vrot.lane.b32.xlu0 %v4063, 110
      %v4102 = vpop.permute.xlu0 %4101
      %4103 = vrot.lane.b32.xlu0 %v4064, 110
      %v4104 = vpop.permute.xlu0 %4103
      %v4107 = vsel %vm2178, %v4102, 0.0
      %v4108 = vsel %vm2178, %v4104, 0.0
      %4109 = vrot.lane.b32.xlu0 %v2599, 9
      %v4110 = vpop.permute.xlu0 %4109
      %4111 = vrot.lane.b32.xlu0 %v2600, 9
      %v4112 = vpop.permute.xlu0 %4111
      %v4115 = vsel %vm2170, 0.0, %v4110
      %v4116 = vsel %vm2170, 0.0, %v4112
      %v4117 = vsel %vm2172, %v4115, 0.0
      %v4118 = vsel %vm2172, %v4116, 0.0
      %v4119 = vsel %vm2175, %v4117, 0.0
      %v4120 = vsel %vm2175, %v4118, 0.0
      %4123 = vrot.lane.b32.xlu0 %v4117, 126
      %v4124 = vpop.permute.xlu0 %4123
      %4125 = vrot.lane.b32.xlu0 %v4118, 126
      %v4126 = vpop.permute.xlu0 %4125
      %v4129 = vsel %vm2178, %v4124, 0.0
      %v4130 = vsel %vm2178, %v4126, 0.0
      %4131 = vrot.lane.b32.xlu0 %v4117, 120
      %v4132 = vpop.permute.xlu0 %4131
      %4133 = vrot.lane.b32.xlu0 %v4118, 120
      %v4134 = vpop.permute.xlu0 %4133
      %v4137 = vsel %vm2175, %v4132, 0.0
      %v4138 = vsel %vm2175, %v4134, 0.0
      %4139 = vrot.lane.b32.xlu0 %v4117, 118
      %v4140 = vpop.permute.xlu0 %4139
      %4141 = vrot.lane.b32.xlu0 %v4118, 118
      %v4142 = vpop.permute.xlu0 %4141
      %v4145 = vsel %vm2178, %v4140, 0.0
      %v4146 = vsel %vm2178, %v4142, 0.0
      %4147 = vrot.lane.b32.xlu0 %v4117, 112
      %v4148 = vpop.permute.xlu0 %4147
      %4149 = vrot.lane.b32.xlu0 %v4118, 112
      %v4150 = vpop.permute.xlu0 %4149
      %v4153 = vsel %vm2175, %v4148, 0.0
      %v4154 = vsel %vm2175, %v4150, 0.0
      %4155 = vrot.lane.b32.xlu0 %v4117, 110
      %v4156 = vpop.permute.xlu0 %4155
      %4157 = vrot.lane.b32.xlu0 %v4118, 110
      %v4158 = vpop.permute.xlu0 %4157
      %v4161 = vsel %vm2178, %v4156, 0.0
      %v4162 = vsel %vm2178, %v4158, 0.0
      %4163 = vrot.lane.b32.xlu0 %v4063, 127
      %v4164 = vpop.permute.xlu0 %4163
      %4165 = vrot.lane.b32.xlu0 %v4064, 127
      %v4166 = vpop.permute.xlu0 %4165
      %4169 = vrot.lane.b32.xlu0 %v4063, 119
      %v4170 = vpop.permute.xlu0 %4169
      %4171 = vrot.lane.b32.xlu0 %v4064, 119
      %v4172 = vpop.permute.xlu0 %4171
      %4175 = vrot.lane.b32.xlu0 %v4063, 111
      %v4176 = vpop.permute.xlu0 %4175
      %4177 = vrot.lane.b32.xlu0 %v4064, 111
      %v4178 = vpop.permute.xlu0 %4177
      %4181 = vrot.lane.b32.xlu0 %v4117, 127
      %v4182 = vpop.permute.xlu0 %4181
      %4183 = vrot.lane.b32.xlu0 %v4118, 127
      %v4184 = vpop.permute.xlu0 %4183
      %4187 = vrot.lane.b32.xlu0 %v4117, 119
      %v4188 = vpop.permute.xlu0 %4187
      %4189 = vrot.lane.b32.xlu0 %v4118, 119
      %v4190 = vpop.permute.xlu0 %4189
      %4195 = vrot.lane.b32.xlu0 %v4161, 17
      %v4196 = vpop.permute.xlu0 %4195
      %4197 = vrot.lane.b32.xlu0 %v4162, 17
      %v4198 = vpop.permute.xlu0 %4197
      %4199 = vrot.lane.b32.xlu0 %v4117, 111
      %v4200 = vpop.permute.xlu0 %4199
      %4201 = vrot.lane.b32.xlu0 %v4118, 111
      %v4202 = vpop.permute.xlu0 %4201
      %4203 = vrot.lane.b32.xlu0 %v4196, 111
      %v4204 = vpop.permute.xlu0 %4203
      %4205 = vrot.lane.b32.xlu0 %v4198, 111
      %v4206 = vpop.permute.xlu0 %4205
      %v4211 = vld [vmem:[%s61] sm:$0xff]
      %v4212 = vld [vmem:[%s61 + $0x8] sm:$0xff]
      %v4213 = vld [vmem:[%s61 + $0x10] sm:$0xff]
      %v4214 = vld [vmem:[%s61 + $0x18] sm:$0xff]
      %v4215 = vld [vmem:[%s61 + $0x20] sm:$0xff]
      %v4216 = vld [vmem:[%s61 + $0x28] sm:$0xff]
      %v4217 = vld [vmem:[%s63] sm:$0xff]
      %v4218 = vld [vmem:[%s63 + $0x8] sm:$0xff]
      %4220 = vset.pattern.permute.xlu0 0
      %4221 = vperm.xlu0 %4220, %v4217
      %v4222 = vpop.permute.xlu0 %4221
      %4225 = vset.pattern.permute.xlu0 0
      %4226 = vperm.xlu0 %4225, %v4218
      %v4227 = vpop.permute.xlu0 %4226
      %v4230 = vsel %vm3256, %v4213, 0
      %v4233 = vsel %vm3256, %v4216, 0
      %4235 = vmatprep.subr.mxu0 0.0
      %4236 = vmatpush1.msra.mxu0 %v4065
      %4237 = vmatprep.subr.mxu0 0.0
      %4238 = vmatpush1.msra.mxu0 %v4066
      %4239 = vmatprep.subr.mxu0 0.0
      %4240 = vmatpush1.msra.mxu0 %v4164
      %4241 = vmatprep.subr.mxu0 0.0
      %4242 = vmatpush1.msra.mxu0 %v4166
      %4243 = vmatprep.subr.mxu0 0.0
      %4244 = vmatpush1.msra.mxu0 %v4075
      %4245 = vmatprep.subr.mxu0 0.0
      %4246 = vmatpush1.msra.mxu0 %v4076
      %4247 = vmatprep.subr.mxu0 0.0
      %4248 = vmatpush1.msra.mxu0 %v4083
      %4249 = vmatprep.subr.mxu0 0.0
      %4250 = vmatpush1.msra.mxu0 %v4084
      %4251 = vmatprep.subr.mxu0 0.0
      %4252 = vmatpush1.msra.mxu0 %v4170
      %4253 = vmatprep.subr.mxu0 0.0
      %4254 = vmatpush1.msra.mxu0 %v4172
      %4255 = vmatprep.subr.mxu0 0.0
      %4256 = vmatpush1.msra.mxu0 %v4091
      %4257 = vmatprep.subr.mxu0 0.0
      %4258 = vmatpush1.msra.mxu0 %v4092
      %4259 = vmatprep.subr.mxu0 0.0
      %4260 = vmatpush1.msra.mxu0 %v4099
      %4261 = vmatprep.subr.mxu0 0.0
      %4262 = vmatpush1.msra.mxu0 %v4100
      %4263 = vmatprep.subr.mxu0 0.0
      %4264 = vmatpush1.msra.mxu0 %v4176
      %4265 = vmatprep.subr.mxu0 0.0
      %4266 = vmatpush1.msra.mxu0 %v4178
      %4267 = vmatprep.subr.mxu0 0.0
      %4268 = vmatpush1.msra.mxu0 %v4107
      %4269 = vmatprep.subr.mxu0 0.0
      %4270 = vmatpush1.msra.mxu0 %v4108
      %4271 = vmatprep.subr.mxu0 0.0
      %4272 = vmatpush1.msra.mxu0 %v4119
      %4273 = vmatprep.subr.mxu0 0.0
      %4274 = vmatpush1.msra.mxu0 %v4120
      %4275 = vmatprep.subr.mxu0 0.0
      %4276 = vmatpush1.msra.mxu0 %v4182
      %4277 = vmatprep.subr.mxu0 0.0
      %4278 = vmatpush1.msra.mxu0 %v4184
      %4279 = vmatprep.subr.mxu0 0.0
      %4280 = vmatpush1.msra.mxu0 %v4129
      %4281 = vmatprep.subr.mxu0 0.0
      %4282 = vmatpush1.msra.mxu0 %v4130
      %4283 = vmatprep.subr.mxu0 0.0
      %4284 = vmatpush1.msra.mxu0 %v4137
      %4285 = vmatprep.subr.mxu0 0.0
      %4286 = vmatpush1.msra.mxu0 %v4138
      %4287 = vmatprep.subr.mxu0 0.0
      %4288 = vmatpush1.msra.mxu0 %v4188
      %4289 = vmatprep.subr.mxu0 0.0
      %4290 = vmatpush1.msra.mxu0 %v4190
      %4291 = vmatprep.subr.mxu0 0.0
      %4292 = vmatpush1.msra.mxu0 %v4145
      %4293 = vmatprep.subr.mxu0 0.0
      %4294 = vmatpush1.msra.mxu0 %v4146
      %4295 = vmatprep.subr.mxu0 0.0
      %4296 = vmatpush1.msra.mxu0 %v4153
      %4297 = vmatprep.subr.mxu0 0.0
      %4298 = vmatpush1.msra.mxu0 %v4154
      %4299 = vmatprep.mubr.f32.mxu0 %v4212
      %4300 = vmatmul.mubr.f32.gmra.mrb[0].mxu0 %v4211
      %v4301 = vpop.f32.mrb[0].mxu0
      %v4302 = vadd.f32 %v4222, %v4301
      %v4303 = vpop.f32.mrb[0].mxu0
      %4304 = vmatprep.mubr.f32.mxu0 %v4215
      %4305 = vmatmul.mubr.f32.gmra.mrb[0].mxu0 %v4214
      %v4306 = vpop.f32.mrb[0].mxu0
      %v4307 = vadd.f32 %v4227, %v4306
      %v4308 = vpop.f32.mrb[0].mxu0
      %4309 = vdwg.mxu0
      %4310 = vmatprep.subr.mxu0 0.0
      %4311 = vmatpush1.msra.mxu0 %v4200
      %4312 = vmatprep.subr.mxu0 0.0
      %4313 = vmatpush1.msra.mxu0 %v4202
      %4314 = vmatprep.subr.mxu0 0.0
      %4315 = vmatpush1.msra.mxu0 %v4204
      %4316 = vmatprep.subr.mxu0 0.0
      %4317 = vmatpush1.msra.mxu0 %v4206
      %4318 = vmatprep.subr.mxu0 0.0
      %4319 = vmatpush1.msra.mxu0 0.0
      %4320 = vmatprep.subr.mxu0 0.0
      %4321 = vmatpush1.msra.mxu0 0.0
      %4322 = vmatprep.subr.mxu0 0.0
      %4323 = vmatpush1.msra.mxu0 0.0
      %4324 = vmatprep.subr.mxu0 0.0
      %4325 = vmatpush1.msra.mxu0 0.0
      %4326 = vmatprep.subr.mxu0 0.0
      %4327 = vmatpush1.msra.mxu0 0.0
      %4328 = vmatprep.subr.mxu0 0.0
      %4329 = vmatpush1.msra.mxu0 0.0
      %4330 = vmatprep.subr.mxu0 0.0
      %4331 = vmatpush1.msra.mxu0 0.0
      %4332 = vmatprep.subr.mxu0 0.0
      %4333 = vmatpush1.msra.mxu0 0.0
      %4334 = vmatprep.subr.mxu0 0.0
      %4335 = vmatpush1.msra.mxu0 0.0
      %4336 = vmatprep.subr.mxu0 0.0
      %4337 = vmatpush1.msra.mxu0 0.0
      %4338 = vmatprep.subr.mxu0 0.0
      %4339 = vmatpush1.msra.mxu0 0.0
      %4340 = vmatprep.subr.mxu0 0.0
      %4341 = vmatpush1.msra.mxu0 0.0
      %4342 = vmatprep.subr.mxu0 0.0
      %4343 = vmatpush1.msra.mxu0 0.0
      %4344 = vmatprep.subr.mxu0 0.0
      %4345 = vmatpush1.msra.mxu0 0.0
      %4346 = vmatprep.subr.mxu0 0.0
      %4347 = vmatpush1.msra.mxu0 0.0
      %4348 = vmatprep.subr.mxu0 0.0
      %4349 = vmatpush1.msra.mxu0 0.0
      %4350 = vmatprep.subr.mxu0 0.0
      %4351 = vmatpush1.msra.mxu0 0.0
      %4352 = vmatprep.subr.mxu0 0.0
      %4353 = vmatpush1.msra.mxu0 0.0
      %4354 = vmatprep.subr.mxu0 0.0
      %4355 = vmatpush1.msra.mxu0 0.0
      %4356 = vmatprep.subr.mxu0 0.0
      %4357 = vmatpush1.msra.mxu0 0.0
      %4358 = vmatprep.subr.mxu0 0.0
      %4359 = vmatpush1.msra.mxu0 0.0
      %4360 = vmatprep.subr.mxu0 0.0
      %4361 = vmatpush1.msra.mxu0 0.0
      %4362 = vmatprep.subr.mxu0 0.0
      %4363 = vmatpush1.msra.mxu0 0.0
      %4364 = vmatprep.subr.mxu0 0.0
      %4365 = vmatpush1.msra.mxu0 0.0
      %4366 = vmatprep.subr.mxu0 0.0
      %4367 = vmatpush1.msra.mxu0 0.0
      %4368 = vmatprep.subr.mxu0 0.0
      %4369 = vmatpush1.msra.mxu0 0.0
      %4370 = vmatprep.subr.mxu0 0.0
      %4371 = vmatpush1.msra.mxu0 0.0
      %4372 = vmatprep.subr.mxu0 0.0
      %4373 = vmatpush1.msra.mxu0 0.0
      %4374 = vmatprep.mubr.f32.mxu0 0.0
      %4375 = vmatmul.mubr.f32.gmra.mrb[0].mxu0 %v4230
      %v4376 = vpop.f32.mrb[0].mxu0
      %v4377 = vadd.f32 %v4302, %v4376
      %v4378 = vpop.f32.mrb[0].mxu0
      %4379 = vmatprep.mubr.f32.mxu0 0.0
      %4380 = vmatmul.mubr.f32.gmra.mrb[0].mxu0 %v4233
      %v4381 = vpop.f32.mrb[0].mxu0
      %v4382 = vadd.f32 %v4307, %v4381
      %v4383 = vpop.f32.mrb[0].mxu0
      %4384 = vdwg.mxu0
      %v4385 = vsel %vm2304, %v4377, 0.0
      %4386 = vadd.xlane.f32.xlu0 %v4385
      %v4387 = vpop.xlane.xlu0 %4386
      %v4388 = vsel %vm2304, %v4382, 0.0
      %4389 = vadd.xlane.f32.xlu0 %v4388
      %v4390 = vpop.xlane.xlu0 %4389
      %v4391 = vmul.f32 %v4387, 0.015625
      %v4392 = vmul.f32 %v4390, 0.015625
      %v4393 = vmul.f32 %v4377, %v4377
      %v4394 = vmul.f32 %v4382, %v4382
      %v4395 = vsel %vm2304, %v4393, 0.0
      %4396 = vadd.xlane.f32.xlu0 %v4395
      %v4397 = vpop.xlane.xlu0 %4396
      %v4398 = vsel %vm2304, %v4394, 0.0
      %4399 = vadd.xlane.f32.xlu0 %v4398
      %v4400 = vpop.xlane.xlu0 %4399
      %v4401 = vmul.f32 %v4397, 0.015625
      %v4402 = vmul.f32 %v4400, 0.015625
      %v4403 = vmul.f32 %v4391, %v4391
      %v4404 = vmul.f32 %v4392, %v4392
      %v4405 = vsub.f32 %v4401, %v4403
      %v4406 = vsub.f32 %v4402, %v4404
      %v4407 = vmax.f32 %v4405, 0.0
      %v4408 = vmax.f32 %v4406, 0.0
      %v4409 = vsub.f32 %v4377, %v4391
      %v4410 = vsub.f32 %v4382, %v4392
      %v4411 = vadd.f32 %v4407, 1e-05
      %v4412 = vadd.f32 %v4408, 1e-05
      %v4413 = vrsqrt.pop %v4411
      %v4414 = vrsqrt.pop %v4412
      %v4415 = vmul.f32 %v4409, %v4413
      %v4416 = vmul.f32 %v4410, %v4414
      %v4417 = vld [vmem:[%s65] sm:$0xff]
      %v4418 = vld [vmem:[%s65 + $0x8] sm:$0xff]
      %4420 = vset.pattern.permute.xlu0 0
      %4421 = vperm.xlu0 %4420, %v4417
      %v4422 = vpop.permute.xlu0 %4421
      %4425 = vset.pattern.permute.xlu0 0
      %4426 = vperm.xlu0 %4425, %v4418
      %v4427 = vpop.permute.xlu0 %4426
      %v4429 = vmul.f32 %v4415, %v4422
      %v4430 = vmul.f32 %v4416, %v4427
      %v4431 = vld [vmem:[%s67] sm:$0xff]
      %v4432 = vld [vmem:[%s67 + $0x8] sm:$0xff]
      %4434 = vset.pattern.permute.xlu0 0
      %4435 = vperm.xlu0 %4434, %v4431
      %v4436 = vpop.permute.xlu0 %4435
      %4439 = vset.pattern.permute.xlu0 0
      %4440 = vperm.xlu0 %4439, %v4432
      %v4441 = vpop.permute.xlu0 %4440
      %v4443 = vadd.f32 %v4429, %v4436
      %v4444 = vadd.f32 %v4430, %v4441
      %v4445 = vmax.f32 %v4443, 0.0
      %v4446 = vmax.f32 %v4444, 0.0
      %4449 = vrot.lane.b32.xlu0 %v4445, 9
      %v4450 = vpop.permute.xlu0 %4449
      %4451 = vrot.lane.b32.xlu0 %v4446, 9
      %v4452 = vpop.permute.xlu0 %4451
      %v4455 = vsel %vm2170, 0.0, %v4450
      %v4456 = vsel %vm2170, 0.0, %v4452
      %v4457 = vsel %vm2172, %v4455, 0.0
      %v4458 = vsel %vm2172, %v4456, 0.0
      %v4459 = vsel %vm2175, %v4457, 0.0
      %v4460 = vsel %vm2175, %v4458, 0.0
      %4463 = vrot.lane.b32.xlu0 %v4457, 126
      %v4464 = vpop.permute.xlu0 %4463
      %4465 = vrot.lane.b32.xlu0 %v4458, 126
      %v4466 = vpop.permute.xlu0 %4465
      %v4469 = vsel %vm2178, %v4464, 0.0
      %v4470 = vsel %vm2178, %v4466, 0.0
      %4471 = vrot.lane.b32.xlu0 %v4457, 120
      %v4472 = vpop.permute.xlu0 %4471
      %4473 = vrot.lane.b32.xlu0 %v4458, 120
      %v4474 = vpop.permute.xlu0 %4473
      %v4477 = vsel %vm2175, %v4472, 0.0
      %v4478 = vsel %vm2175, %v4474, 0.0
      %4479 = vrot.lane.b32.xlu0 %v4457, 118
      %v4480 = vpop.permute.xlu0 %4479
      %4481 = vrot.lane.b32.xlu0 %v4458, 118
      %v4482 = vpop.permute.xlu0 %4481
      %v4485 = vsel %vm2178, %v4480, 0.0
      %v4486 = vsel %vm2178, %v4482, 0.0
      %4487 = vrot.lane.b32.xlu0 %v4457, 112
      %v4488 = vpop.permute.xlu0 %4487
      %4489 = vrot.lane.b32.xlu0 %v4458, 112
      %v4490 = vpop.permute.xlu0 %4489
      %v4493 = vsel %vm2175, %v4488, 0.0
      %v4494 = vsel %vm2175, %v4490, 0.0
      %4495 = vrot.lane.b32.xlu0 %v4457, 110
      %v4496 = vpop.permute.xlu0 %4495
      %4497 = vrot.lane.b32.xlu0 %v4458, 110
      %v4498 = vpop.permute.xlu0 %4497
      %v4501 = vsel %vm2178, %v4496, 0.0
      %v4502 = vsel %vm2178, %v4498, 0.0
      %4503 = vrot.lane.b32.xlu0 %v4457, 127
      %v4504 = vpop.permute.xlu0 %4503
      %4505 = vrot.lane.b32.xlu0 %v4458, 127
      %v4506 = vpop.permute.xlu0 %4505
      %4509 = vrot.lane.b32.xlu0 %v4457, 119
      %v4510 = vpop.permute.xlu0 %4509
      %4511 = vrot.lane.b32.xlu0 %v4458, 119
      %v4512 = vpop.permute.xlu0 %4511
      %4515 = vrot.lane.b32.xlu0 %v4457, 111
      %v4516 = vpop.permute.xlu0 %4515
      %4517 = vrot.lane.b32.xlu0 %v4458, 111
      %v4518 = vpop.permute.xlu0 %4517
      %v4521 = vld [vmem:[%s69] sm:$0xff]
      %v4522 = vld [vmem:[%s69 + $0x8] sm:$0xff]
      %v4523 = vld [vmem:[%s69 + $0x10] sm:$0xff]
      %v4524 = vld [vmem:[%s69 + $0x18] sm:$0xff]
      %v4525 = vld [vmem:[%s71] sm:$0xff]
      %v4526 = vld [vmem:[%s71 + $0x8] sm:$0xff]
      %4528 = vset.pattern.permute.xlu0 0
      %4529 = vperm.xlu0 %4528, %v4525
      %v4530 = vpop.permute.xlu0 %4529
      %4533 = vset.pattern.permute.xlu0 0
      %4534 = vperm.xlu0 %4533, %v4526
      %v4535 = vpop.permute.xlu0 %4534
      %v4538 = vsel %vm2457, %v4522, 0
      %v4541 = vsel %vm2457, %v4524, 0
      %4543 = vmatprep.subr.mxu0 0.0
      %4544 = vmatpush1.msra.mxu0 %v4459
      %4545 = vmatprep.subr.mxu0 0.0
      %4546 = vmatpush1.msra.mxu0 %v4460
      %4547 = vmatprep.subr.mxu0 0.0
      %4548 = vmatpush1.msra.mxu0 %v4504
      %4549 = vmatprep.subr.mxu0 0.0
      %4550 = vmatpush1.msra.mxu0 %v4506
      %4551 = vmatprep.subr.mxu0 0.0
      %4552 = vmatpush1.msra.mxu0 %v4469
      %4553 = vmatprep.subr.mxu0 0.0
      %4554 = vmatpush1.msra.mxu0 %v4470
      %4555 = vmatprep.subr.mxu0 0.0
      %4556 = vmatpush1.msra.mxu0 %v4477
      %4557 = vmatprep.subr.mxu0 0.0
      %4558 = vmatpush1.msra.mxu0 %v4478
      %4559 = vmatprep.subr.mxu0 0.0
      %4560 = vmatpush1.msra.mxu0 %v4510
      %4561 = vmatprep.subr.mxu0 0.0
      %4562 = vmatpush1.msra.mxu0 %v4512
      %4563 = vmatprep.subr.mxu0 0.0
      %4564 = vmatpush1.msra.mxu0 %v4485
      %4565 = vmatprep.subr.mxu0 0.0
      %4566 = vmatpush1.msra.mxu0 %v4486
      %4567 = vmatprep.subr.mxu0 0.0
      %4568 = vmatpush1.msra.mxu0 %v4493
      %4569 = vmatprep.subr.mxu0 0.0
      %4570 = vmatpush1.msra.mxu0 %v4494
      %4571 = vmatprep.subr.mxu0 0.0
      %4572 = vmatpush1.msra.mxu0 %v4516
      %4573 = vmatprep.subr.mxu0 0.0
      %4574 = vmatpush1.msra.mxu0 %v4518
      %4575 = vmatprep.subr.mxu0 0.0
      %4576 = vmatpush1.msra.mxu0 %v4501
      %4577 = vmatprep.subr.mxu0 0.0
      %4578 = vmatpush1.msra.mxu0 %v4502
      %4579 = vmatprep.subr.mxu0 0.0
      %4580 = vmatpush1.msra.mxu0 0.0
      %4581 = vmatprep.subr.mxu0 0.0
      %4582 = vmatpush1.msra.mxu0 0.0
      %4583 = vmatprep.subr.mxu0 0.0
      %4584 = vmatpush1.msra.mxu0 0.0
      %4585 = vmatprep.subr.mxu0 0.0
      %4586 = vmatpush1.msra.mxu0 0.0
      %4587 = vmatprep.subr.mxu0 0.0
      %4588 = vmatpush1.msra.mxu0 0.0
      %4589 = vmatprep.subr.mxu0 0.0
      %4590 = vmatpush1.msra.mxu0 0.0
      %4591 = vmatprep.subr.mxu0 0.0
      %4592 = vmatpush1.msra.mxu0 0.0
      %4593 = vmatprep.subr.mxu0 0.0
      %4594 = vmatpush1.msra.mxu0 0.0
      %4595 = vmatprep.subr.mxu0 0.0
      %4596 = vmatpush1.msra.mxu0 0.0
      %4597 = vmatprep.subr.mxu0 0.0
      %4598 = vmatpush1.msra.mxu0 0.0
      %4599 = vmatprep.subr.mxu0 0.0
      %4600 = vmatpush1.msra.mxu0 0.0
      %4601 = vmatprep.subr.mxu0 0.0
      %4602 = vmatpush1.msra.mxu0 0.0
      %4603 = vmatprep.subr.mxu0 0.0
      %4604 = vmatpush1.msra.mxu0 0.0
      %4605 = vmatprep.subr.mxu0 0.0
      %4606 = vmatpush1.msra.mxu0 0.0
      %4607 = vmatprep.mubr.f32.mxu0 %v4538
      %4608 = vmatmul.mubr.f32.gmra.mrb[0].mxu0 %v4521
      %v4609 = vpop.f32.mrb[0].mxu0
      %v4610 = vadd.f32 %v4530, %v4609
      %v4611 = vpop.f32.mrb[0].mxu0
      %4612 = vmatprep.mubr.f32.mxu0 %v4541
      %4613 = vmatmul.mubr.f32.gmra.mrb[0].mxu0 %v4523
      %v4614 = vpop.f32.mrb[0].mxu0
      %v4615 = vadd.f32 %v4535, %v4614
      %v4616 = vpop.f32.mrb[0].mxu0
      %4617 = vdwg.mxu0
      %v4618 = vsel %vm2304, %v4610, 0.0
      %4619 = vadd.xlane.f32.xlu0 %v4618
      %v4620 = vpop.xlane.xlu0 %4619
      %v4621 = vsel %vm2304, %v4615, 0.0
      %4622 = vadd.xlane.f32.xlu0 %v4621
      %v4623 = vpop.xlane.xlu0 %4622
      %v4624 = vmul.f32 %v4620, 0.015625
      %v4625 = vmul.f32 %v4623, 0.015625
      %v4626 = vmul.f32 %v4610, %v4610
      %v4627 = vmul.f32 %v4615, %v4615
      %v4628 = vsel %vm2304, %v4626, 0.0
      %4629 = vadd.xlane.f32.xlu0 %v4628
      %v4630 = vpop.xlane.xlu0 %4629
      %v4631 = vsel %vm2304, %v4627, 0.0
      %4632 = vadd.xlane.f32.xlu0 %v4631
      %v4633 = vpop.xlane.xlu0 %4632
      %v4634 = vmul.f32 %v4630, 0.015625
      %v4635 = vmul.f32 %v4633, 0.015625
      %v4636 = vmul.f32 %v4624, %v4624
      %v4637 = vmul.f32 %v4625, %v4625
      %v4638 = vsub.f32 %v4634, %v4636
      %v4639 = vsub.f32 %v4635, %v4637
      %v4640 = vmax.f32 %v4638, 0.0
      %v4641 = vmax.f32 %v4639, 0.0
      %v4642 = vsub.f32 %v4610, %v4624
      %v4643 = vsub.f32 %v4615, %v4625
      %v4644 = vadd.f32 %v4640, 1e-05
      %v4645 = vadd.f32 %v4641, 1e-05
      %v4646 = vrsqrt.pop %v4644
      %v4647 = vrsqrt.pop %v4645
      %v4648 = vmul.f32 %v4642, %v4646
      %v4649 = vmul.f32 %v4643, %v4647
      %v4650 = vld [vmem:[%s73] sm:$0xff]
      %v4651 = vld [vmem:[%s73 + $0x8] sm:$0xff]
      %4653 = vset.pattern.permute.xlu0 0
      %4654 = vperm.xlu0 %4653, %v4650
      %v4655 = vpop.permute.xlu0 %4654
      %4658 = vset.pattern.permute.xlu0 0
      %4659 = vperm.xlu0 %4658, %v4651
      %v4660 = vpop.permute.xlu0 %4659
      %v4662 = vmul.f32 %v4648, %v4655
      %v4663 = vmul.f32 %v4649, %v4660
      %v4664 = vld [vmem:[%s75] sm:$0xff]
      %v4665 = vld [vmem:[%s75 + $0x8] sm:$0xff]
      %4667 = vset.pattern.permute.xlu0 0
      %4668 = vperm.xlu0 %4667, %v4664
      %v4669 = vpop.permute.xlu0 %4668
      %4672 = vset.pattern.permute.xlu0 0
      %4673 = vperm.xlu0 %4672, %v4665
      %v4674 = vpop.permute.xlu0 %4673
      %v4676 = vadd.f32 %v4662, %v4669
      %v4677 = vadd.f32 %v4663, %v4674
      %v4678 = vmax.f32 %v4676, 0.0
      %v4679 = vmax.f32 %v4677, 0.0
      %v4680 = vld [vmem:[%s77] sm:$0xff]
      %v4681 = vld [vmem:[%s77 + $0x8] sm:$0xff]
      %v4682 = vld [vmem:[%s77 + $0x10] sm:$0xff]
      %v4683 = vld [vmem:[%s77 + $0x18] sm:$0xff]
      %v4685 = vsel %vm2457, %v4680, 0
      %v4688 = vsel %vm2457, %v4681, 0
      %v4691 = vsel %vm2457, %v4682, 0
      %v4694 = vsel %vm2457, %v4683, 0
      %4696 = vmatprep.subr.mxu0 0.0
      %4697 = vmatpush1.msra.mxu0 %v4678
      %4698 = vmatprep.subr.mxu0 0.0
      %4699 = vmatpush1.msra.mxu0 %v4679
      %4700 = vmatprep.subr.mxu0 0.0
      %4701 = vmatpush1.msra.mxu0 0.0
      %4702 = vmatprep.subr.mxu0 0.0
      %4703 = vmatpush1.msra.mxu0 0.0
      %4704 = vmatprep.subr.mxu0 0.0
      %4705 = vmatpush1.msra.mxu0 0.0
      %4706 = vmatprep.subr.mxu0 0.0
      %4707 = vmatpush1.msra.mxu0 0.0
      %4708 = vmatprep.subr.mxu0 0.0
      %4709 = vmatpush1.msra.mxu0 0.0
      %4710 = vmatprep.subr.mxu0 0.0
      %4711 = vmatpush1.msra.mxu0 0.0
      %4712 = vmatprep.subr.mxu0 0.0
      %4713 = vmatpush1.msra.mxu0 0.0
      %4714 = vmatprep.subr.mxu0 0.0
      %4715 = vmatpush1.msra.mxu0 0.0
      %4716 = vmatprep.subr.mxu0 0.0
      %4717 = vmatpush1.msra.mxu0 0.0
      %4718 = vmatprep.subr.mxu0 0.0
      %4719 = vmatpush1.msra.mxu0 0.0
      %4720 = vmatprep.subr.mxu0 0.0
      %4721 = vmatpush1.msra.mxu0 0.0
      %4722 = vmatprep.subr.mxu0 0.0
      %4723 = vmatpush1.msra.mxu0 0.0
      %4724 = vmatprep.subr.mxu0 0.0
      %4725 = vmatpush1.msra.mxu0 0.0
      %4726 = vmatprep.subr.mxu0 0.0
      %4727 = vmatpush1.msra.mxu0 0.0
      %4728 = vmatprep.subr.mxu0 0.0
      %4729 = vmatpush1.msra.mxu0 0.0
      %4730 = vmatprep.subr.mxu0 0.0
      %4731 = vmatpush1.msra.mxu0 0.0
      %4732 = vmatprep.subr.mxu0 0.0
      %4733 = vmatpush1.msra.mxu0 0.0
      %4734 = vmatprep.subr.mxu0 0.0
      %4735 = vmatpush1.msra.mxu0 0.0
      %4736 = vmatprep.subr.mxu0 0.0
      %4737 = vmatpush1.msra.mxu0 0.0
      %4738 = vmatprep.subr.mxu0 0.0
      %4739 = vmatpush1.msra.mxu0 0.0
      %4740 = vmatprep.subr.mxu0 0.0
      %4741 = vmatpush1.msra.mxu0 0.0
      %4742 = vmatprep.subr.mxu0 0.0
      %4743 = vmatpush1.msra.mxu0 0.0
      %4744 = vmatprep.subr.mxu0 0.0
      %4745 = vmatpush1.msra.mxu0 0.0
      %4746 = vmatprep.subr.mxu0 0.0
      %4747 = vmatpush1.msra.mxu0 0.0
      %4748 = vmatprep.subr.mxu0 0.0
      %4749 = vmatpush1.msra.mxu0 0.0
      %4750 = vmatprep.subr.mxu0 0.0
      %4751 = vmatpush1.msra.mxu0 0.0
      %4752 = vmatprep.subr.mxu0 0.0
      %4753 = vmatpush1.msra.mxu0 0.0
      %4754 = vmatprep.subr.mxu0 0.0
      %4755 = vmatpush1.msra.mxu0 0.0
      %4756 = vmatprep.subr.mxu0 0.0
      %4757 = vmatpush1.msra.mxu0 0.0
      %4758 = vmatprep.subr.mxu0 0.0
      %4759 = vmatpush1.msra.mxu0 0.0
      %4760 = vmatprep.mubr.f32.mxu0 0.0
      %4761 = vmatmul.mubr.f32.gmra.mrb[0].mxu0 %v4685
      %v4762 = vpop.f32.mrb[0].mxu0
      %v4763 = vadd.f32 0.0, %v4762
      %v4764 = vpop.f32.mrb[0].mxu0
      %4765 = vmatprep.mubr.f32.mxu0 0.0
      %4766 = vmatmul.mubr.f32.gmra.mrb[0].mxu0 %v4688
      %v4767 = vpop.f32.mrb[0].mxu0
      %v4768 = vadd.f32 0.0, %v4767
      %v4769 = vpop.f32.mrb[0].mxu0
      %4770 = vmatprep.mubr.f32.mxu0 0.0
      %4771 = vmatmul.mubr.f32.gmra.mrb[0].mxu0 %v4691
      %v4772 = vpop.f32.mrb[0].mxu0
      %v4773 = vadd.f32 0.0, %v4772
      %v4774 = vpop.f32.mrb[0].mxu0
      %4775 = vmatprep.mubr.f32.mxu0 0.0
      %4776 = vmatmul.mubr.f32.gmra.mrb[0].mxu0 %v4694
      %v4777 = vpop.f32.mrb[0].mxu0
      %v4778 = vadd.f32 0.0, %v4777
      %v4779 = vpop.f32.mrb[0].mxu0
      %4780 = vdwg.mxu0
      %v4781 = vld [vmem:[%s81] sm:$0xff]
      %v4782 = vld [vmem:[%s81 + $0x8] sm:$0xff]
      %v4783 = vld [vmem:[%s81 + $0x10] sm:$0xff]
      %v4784 = vld [vmem:[%s81 + $0x18] sm:$0xff]
      %v4785 = vld [vmem:[%s81 + $0x20] sm:$0xff]
      %v4786 = vld [vmem:[%s81 + $0x28] sm:$0xff]
      %v4787 = vld [vmem:[%s81 + $0x30] sm:$0xff]
      %v4788 = vld [vmem:[%s81 + $0x38] sm:$0xff]
      %v4789 = vld [vmem:[%s81 + $0x40] sm:$0xff]
      %v4790 = vld [vmem:[%s81 + $0x48] sm:$0xff]
      %v4791 = vld [vmem:[%s81 + $0x50] sm:$0xff]
      %v4792 = vld [vmem:[%s81 + $0x58] sm:$0xff]
      %v4793 = vld [vmem:[%s81 + $0x60] sm:$0xff]
      %v4794 = vld [vmem:[%s81 + $0x68] sm:$0xff]
      %v4795 = vld [vmem:[%s81 + $0x70] sm:$0xff]
      %v4796 = vld [vmem:[%s81 + $0x78] sm:$0xff]
      %s4797 = scalar_lea.vmem %s81, 128
      %v4798 = vld [vmem:[%s4797] sm:$0xff]
      %v4799 = vld [vmem:[%s4797 + $0x8] sm:$0xff]
      %v4800 = vld [vmem:[%s4797 + $0x10] sm:$0xff]
      %v4801 = vld [vmem:[%s4797 + $0x18] sm:$0xff]
      %v4802 = vld [vmem:[%s4797 + $0x20] sm:$0xff]
      %v4803 = vld [vmem:[%s4797 + $0x28] sm:$0xff]
      %v4804 = vld [vmem:[%s4797 + $0x30] sm:$0xff]
      %v4805 = vld [vmem:[%s4797 + $0x38] sm:$0xff]
      %v4806 = vld [vmem:[%s4797 + $0x40] sm:$0xff]
      %v4807 = vld [vmem:[%s4797 + $0x48] sm:$0xff]
      %v4808 = vld [vmem:[%s4797 + $0x50] sm:$0xff]
      %v4809 = vld [vmem:[%s4797 + $0x58] sm:$0xff]
      %v4810 = vld [vmem:[%s4797 + $0x60] sm:$0xff]
      %v4811 = vld [vmem:[%s4797 + $0x68] sm:$0xff]
      %v4812 = vld [vmem:[%s4797 + $0x70] sm:$0xff]
      %v4813 = vld [vmem:[%s4797 + $0x78] sm:$0xff]
      %v4815 = vsel %vm2304, %v4768, 0
      %4817 = vmatprep.subr.mxu0 %v4799
      %4818 = vmatpush1.msra.mxu0 %v4798
      %4819 = vmatprep.subr.mxu0 %v4801
      %4820 = vmatpush1.msra.mxu0 %v4800
      %4821 = vmatprep.subr.mxu0 %v4803
      %4822 = vmatpush1.msra.mxu0 %v4802
      %4823 = vmatprep.subr.mxu0 %v4805
      %4824 = vmatpush1.msra.mxu0 %v4804
      %4825 = vmatprep.subr.mxu0 %v4807
      %4826 = vmatpush1.msra.mxu0 %v4806
      %4827 = vmatprep.subr.mxu0 %v4809
      %4828 = vmatpush1.msra.mxu0 %v4808
      %4829 = vmatprep.subr.mxu0 %v4811
      %4830 = vmatpush1.msra.mxu0 %v4810
      %4831 = vmatprep.subr.mxu0 %v4813
      %4832 = vmatpush1.msra.mxu0 %v4812
      %4833 = vmatprep.subr.mxu0 0.0
      %4834 = vmatpush1.msra.mxu0 0.0
      %4835 = vmatprep.subr.mxu0 0.0
      %4836 = vmatpush1.msra.mxu0 0.0
      %4837 = vmatprep.subr.mxu0 0.0
      %4838 = vmatpush1.msra.mxu0 0.0
      %4839 = vmatprep.subr.mxu0 0.0
      %4840 = vmatpush1.msra.mxu0 0.0
      %4841 = vmatprep.subr.mxu0 0.0
      %4842 = vmatpush1.msra.mxu0 0.0
      %4843 = vmatprep.subr.mxu0 0.0
      %4844 = vmatpush1.msra.mxu0 0.0
      %4845 = vmatprep.subr.mxu0 0.0
      %4846 = vmatpush1.msra.mxu0 0.0
      %4847 = vmatprep.subr.mxu0 0.0
      %4848 = vmatpush1.msra.mxu0 0.0
      %4849 = vmatprep.subr.mxu0 0.0
      %4850 = vmatpush1.msra.mxu0 0.0
      %4851 = vmatprep.subr.mxu0 0.0
      %4852 = vmatpush1.msra.mxu0 0.0
      %4853 = vmatprep.subr.mxu0 0.0
      %4854 = vmatpush1.msra.mxu0 0.0
      %4855 = vmatprep.subr.mxu0 0.0
      %4856 = vmatpush1.msra.mxu0 0.0
      %4857 = vmatprep.subr.mxu0 0.0
      %4858 = vmatpush1.msra.mxu0 0.0
      %4859 = vmatprep.subr.mxu0 0.0
      %4860 = vmatpush1.msra.mxu0 0.0
      %4861 = vmatprep.subr.mxu0 0.0
      %4862 = vmatpush1.msra.mxu0 0.0
      %4863 = vmatprep.subr.mxu0 0.0
      %4864 = vmatpush1.msra.mxu0 0.0
      %4865 = vmatprep.subr.mxu0 0.0
      %4866 = vmatpush1.msra.mxu0 0.0
      %4867 = vmatprep.subr.mxu0 0.0
      %4868 = vmatpush1.msra.mxu0 0.0
      %4869 = vmatprep.subr.mxu0 0.0
      %4870 = vmatpush1.msra.mxu0 0.0
      %4871 = vmatprep.subr.mxu0 0.0
      %4872 = vmatpush1.msra.mxu0 0.0
      %4873 = vmatprep.subr.mxu0 0.0
      %4874 = vmatpush1.msra.mxu0 0.0
      %4875 = vmatprep.subr.mxu0 0.0
      %4876 = vmatpush1.msra.mxu0 0.0
      %4877 = vmatprep.subr.mxu0 0.0
      %4878 = vmatpush1.msra.mxu0 0.0
      %4879 = vmatprep.subr.mxu0 0.0
      %4880 = vmatpush1.msra.mxu0 0.0
      %4881 = vmatprep.mubr.f32.mxu0 0.0
      %4882 = vmatmul.mubr.f32.gmra.mrb[0].mxu0 %v4815
      %v4883 = vpop.f32.mrb[0].mxu0
      %v4884 = vadd.f32 0.0, %v4883
      %v4885 = vpop.f32.mrb[0].mxu0
      %v4886 = vadd.f32 0.0, %v4885
      %4887 = vdwg.mxu0
      %v4889 = vsel %vm2304, %v4763, 0
      %4891 = vmatprep.subr.mxu0 %v4782
      %4892 = vmatpush1.msra.mxu0 %v4781
      %4893 = vmatprep.subr.mxu0 %v4784
      %4894 = vmatpush1.msra.mxu0 %v4783
      %4895 = vmatprep.subr.mxu0 %v4786
      %4896 = vmatpush1.msra.mxu0 %v4785
      %4897 = vmatprep.subr.mxu0 %v4788
      %4898 = vmatpush1.msra.mxu0 %v4787
      %4899 = vmatprep.subr.mxu0 %v4790
      %4900 = vmatpush1.msra.mxu0 %v4789
      %4901 = vmatprep.subr.mxu0 %v4792
      %4902 = vmatpush1.msra.mxu0 %v4791
      %4903 = vmatprep.subr.mxu0 %v4794
      %4904 = vmatpush1.msra.mxu0 %v4793
      %4905 = vmatprep.subr.mxu0 %v4796
      %4906 = vmatpush1.msra.mxu0 %v4795
      %4907 = vmatprep.subr.mxu0 0.0
      %4908 = vmatpush1.msra.mxu0 0.0
      %4909 = vmatprep.subr.mxu0 0.0
      %4910 = vmatpush1.msra.mxu0 0.0
      %4911 = vmatprep.subr.mxu0 0.0
      %4912 = vmatpush1.msra.mxu0 0.0
      %4913 = vmatprep.subr.mxu0 0.0
      %4914 = vmatpush1.msra.mxu0 0.0
      %4915 = vmatprep.subr.mxu0 0.0
      %4916 = vmatpush1.msra.mxu0 0.0
      %4917 = vmatprep.subr.mxu0 0.0
      %4918 = vmatpush1.msra.mxu0 0.0
      %4919 = vmatprep.subr.mxu0 0.0
      %4920 = vmatpush1.msra.mxu0 0.0
      %4921 = vmatprep.subr.mxu0 0.0
      %4922 = vmatpush1.msra.mxu0 0.0
      %4923 = vmatprep.subr.mxu0 0.0
      %4924 = vmatpush1.msra.mxu0 0.0
      %4925 = vmatprep.subr.mxu0 0.0
      %4926 = vmatpush1.msra.mxu0 0.0
      %4927 = vmatprep.subr.mxu0 0.0
      %4928 = vmatpush1.msra.mxu0 0.0
      %4929 = vmatprep.subr.mxu0 0.0
      %4930 = vmatpush1.msra.mxu0 0.0
      %4931 = vmatprep.subr.mxu0 0.0
      %4932 = vmatpush1.msra.mxu0 0.0
      %4933 = vmatprep.subr.mxu0 0.0
      %4934 = vmatpush1.msra.mxu0 0.0
      %4935 = vmatprep.subr.mxu0 0.0
      %4936 = vmatpush1.msra.mxu0 0.0
      %4937 = vmatprep.subr.mxu0 0.0
      %4938 = vmatpush1.msra.mxu0 0.0
      %4939 = vmatprep.subr.mxu0 0.0
      %4940 = vmatpush1.msra.mxu0 0.0
      %4941 = vmatprep.subr.mxu0 0.0
      %4942 = vmatpush1.msra.mxu0 0.0
      %4943 = vmatprep.subr.mxu0 0.0
      %4944 = vmatpush1.msra.mxu0 0.0
      %4945 = vmatprep.subr.mxu0 0.0
      %4946 = vmatpush1.msra.mxu0 0.0
      %4947 = vmatprep.subr.mxu0 0.0
      %4948 = vmatpush1.msra.mxu0 0.0
      %4949 = vmatprep.subr.mxu0 0.0
      %4950 = vmatpush1.msra.mxu0 0.0
      %4951 = vmatprep.subr.mxu0 0.0
      %4952 = vmatpush1.msra.mxu0 0.0
      %4953 = vmatprep.subr.mxu0 0.0
      %4954 = vmatpush1.msra.mxu0 0.0
      %4955 = vmatprep.mubr.f32.mxu0 0.0
      %4956 = vmatmul.mubr.f32.gmra.mrb[0].mxu0 %v4889
      %v4957 = vpop.f32.mrb[0].mxu0
      %v4958 = vadd.f32 %v4884, %v4957
      %v4959 = vpop.f32.mrb[0].mxu0
      %v4960 = vadd.f32 %v4886, %v4959
      %4961 = vdwg.mxu0
      %s4962 = scalar_lea.vmem %s81, 256
      %v4963 = vld [vmem:[%s4962] sm:$0xff]
      %v4964 = vld [vmem:[%s4962 + $0x8] sm:$0xff]
      %v4965 = vld [vmem:[%s4962 + $0x10] sm:$0xff]
      %v4966 = vld [vmem:[%s4962 + $0x18] sm:$0xff]
      %v4967 = vld [vmem:[%s4962 + $0x20] sm:$0xff]
      %v4968 = vld [vmem:[%s4962 + $0x28] sm:$0xff]
      %v4969 = vld [vmem:[%s4962 + $0x30] sm:$0xff]
      %v4970 = vld [vmem:[%s4962 + $0x38] sm:$0xff]
      %v4971 = vld [vmem:[%s4962 + $0x40] sm:$0xff]
      %v4972 = vld [vmem:[%s4962 + $0x48] sm:$0xff]
      %v4973 = vld [vmem:[%s4962 + $0x50] sm:$0xff]
      %v4974 = vld [vmem:[%s4962 + $0x58] sm:$0xff]
      %v4975 = vld [vmem:[%s4962 + $0x60] sm:$0xff]
      %v4976 = vld [vmem:[%s4962 + $0x68] sm:$0xff]
      %v4977 = vld [vmem:[%s4962 + $0x70] sm:$0xff]
      %v4978 = vld [vmem:[%s4962 + $0x78] sm:$0xff]
      %v4980 = vsel %vm2304, %v4773, 0
      %4982 = vmatprep.subr.mxu0 %v4964
      %4983 = vmatpush1.msra.mxu0 %v4963
      %4984 = vmatprep.subr.mxu0 %v4966
      %4985 = vmatpush1.msra.mxu0 %v4965
      %4986 = vmatprep.subr.mxu0 %v4968
      %4987 = vmatpush1.msra.mxu0 %v4967
      %4988 = vmatprep.subr.mxu0 %v4970
      %4989 = vmatpush1.msra.mxu0 %v4969
      %4990 = vmatprep.subr.mxu0 %v4972
      %4991 = vmatpush1.msra.mxu0 %v4971
      %4992 = vmatprep.subr.mxu0 %v4974
      %4993 = vmatpush1.msra.mxu0 %v4973
      %4994 = vmatprep.subr.mxu0 %v4976
      %4995 = vmatpush1.msra.mxu0 %v4975
      %4996 = vmatprep.subr.mxu0 %v4978
      %4997 = vmatpush1.msra.mxu0 %v4977
      %4998 = vmatprep.subr.mxu0 0.0
      %4999 = vmatpush1.msra.mxu0 0.0
      %5000 = vmatprep.subr.mxu0 0.0
      %5001 = vmatpush1.msra.mxu0 0.0
      %5002 = vmatprep.subr.mxu0 0.0
      %5003 = vmatpush1.msra.mxu0 0.0
      %5004 = vmatprep.subr.mxu0 0.0
      %5005 = vmatpush1.msra.mxu0 0.0
      %5006 = vmatprep.subr.mxu0 0.0
      %5007 = vmatpush1.msra.mxu0 0.0
      %5008 = vmatprep.subr.mxu0 0.0
      %5009 = vmatpush1.msra.mxu0 0.0
      %5010 = vmatprep.subr.mxu0 0.0
      %5011 = vmatpush1.msra.mxu0 0.0
      %5012 = vmatprep.subr.mxu0 0.0
      %5013 = vmatpush1.msra.mxu0 0.0
      %5014 = vmatprep.subr.mxu0 0.0
      %5015 = vmatpush1.msra.mxu0 0.0
      %5016 = vmatprep.subr.mxu0 0.0
      %5017 = vmatpush1.msra.mxu0 0.0
      %5018 = vmatprep.subr.mxu0 0.0
      %5019 = vmatpush1.msra.mxu0 0.0
      %5020 = vmatprep.subr.mxu0 0.0
      %5021 = vmatpush1.msra.mxu0 0.0
      %5022 = vmatprep.subr.mxu0 0.0
      %5023 = vmatpush1.msra.mxu0 0.0
      %5024 = vmatprep.subr.mxu0 0.0
      %5025 = vmatpush1.msra.mxu0 0.0
      %5026 = vmatprep.subr.mxu0 0.0
      %5027 = vmatpush1.msra.mxu0 0.0
      %5028 = vmatprep.subr.mxu0 0.0
      %5029 = vmatpush1.msra.mxu0 0.0
      %5030 = vmatprep.subr.mxu0 0.0
      %5031 = vmatpush1.msra.mxu0 0.0
      %5032 = vmatprep.subr.mxu0 0.0
      %5033 = vmatpush1.msra.mxu0 0.0
      %5034 = vmatprep.subr.mxu0 0.0
      %5035 = vmatpush1.msra.mxu0 0.0
      %5036 = vmatprep.subr.mxu0 0.0
      %5037 = vmatpush1.msra.mxu0 0.0
      %5038 = vmatprep.subr.mxu0 0.0
      %5039 = vmatpush1.msra.mxu0 0.0
      %5040 = vmatprep.subr.mxu0 0.0
      %5041 = vmatpush1.msra.mxu0 0.0
      %5042 = vmatprep.subr.mxu0 0.0
      %5043 = vmatpush1.msra.mxu0 0.0
      %5044 = vmatprep.subr.mxu0 0.0
      %5045 = vmatpush1.msra.mxu0 0.0
      %5046 = vmatprep.mubr.f32.mxu0 0.0
      %5047 = vmatmul.mubr.f32.gmra.mrb[0].mxu0 %v4980
      %v5048 = vpop.f32.mrb[0].mxu0
      %v5049 = vadd.f32 0.0, %v5048
      %v5050 = vpop.f32.mrb[0].mxu0
      %v5051 = vadd.f32 0.0, %v5050
      %5052 = vdwg.mxu0
      %v5053 = vadd.f32 %v4958, %v5049
      %v5054 = vadd.f32 %v4960, %v5051
      %s5055 = scalar_lea.vmem %s81, 384
      %v5056 = vld [vmem:[%s5055] sm:$0xff]
      %v5057 = vld [vmem:[%s5055 + $0x8] sm:$0xff]
      %v5058 = vld [vmem:[%s5055 + $0x10] sm:$0xff]
      %v5059 = vld [vmem:[%s5055 + $0x18] sm:$0xff]
      %v5060 = vld [vmem:[%s5055 + $0x20] sm:$0xff]
      %v5061 = vld [vmem:[%s5055 + $0x28] sm:$0xff]
      %v5062 = vld [vmem:[%s5055 + $0x30] sm:$0xff]
      %v5063 = vld [vmem:[%s5055 + $0x38] sm:$0xff]
      %v5064 = vld [vmem:[%s5055 + $0x40] sm:$0xff]
      %v5065 = vld [vmem:[%s5055 + $0x48] sm:$0xff]
      %v5066 = vld [vmem:[%s5055 + $0x50] sm:$0xff]
      %v5067 = vld [vmem:[%s5055 + $0x58] sm:$0xff]
      %v5068 = vld [vmem:[%s5055 + $0x60] sm:$0xff]
      %v5069 = vld [vmem:[%s5055 + $0x68] sm:$0xff]
      %v5070 = vld [vmem:[%s5055 + $0x70] sm:$0xff]
      %v5071 = vld [vmem:[%s5055 + $0x78] sm:$0xff]
      %v5073 = vsel %vm2304, %v4778, 0
      %5075 = vmatprep.subr.mxu0 %v5057
      %5076 = vmatpush1.msra.mxu0 %v5056
      %5077 = vmatprep.subr.mxu0 %v5059
      %5078 = vmatpush1.msra.mxu0 %v5058
      %5079 = vmatprep.subr.mxu0 %v5061
      %5080 = vmatpush1.msra.mxu0 %v5060
      %5081 = vmatprep.subr.mxu0 %v5063
      %5082 = vmatpush1.msra.mxu0 %v5062
      %5083 = vmatprep.subr.mxu0 %v5065
      %5084 = vmatpush1.msra.mxu0 %v5064
      %5085 = vmatprep.subr.mxu0 %v5067
      %5086 = vmatpush1.msra.mxu0 %v5066
      %5087 = vmatprep.subr.mxu0 %v5069
      %5088 = vmatpush1.msra.mxu0 %v5068
      %5089 = vmatprep.subr.mxu0 %v5071
      %5090 = vmatpush1.msra.mxu0 %v5070
      %5091 = vmatprep.subr.mxu0 0.0
      %5092 = vmatpush1.msra.mxu0 0.0
      %5093 = vmatprep.subr.mxu0 0.0
      %5094 = vmatpush1.msra.mxu0 0.0
      %5095 = vmatprep.subr.mxu0 0.0
      %5096 = vmatpush1.msra.mxu0 0.0
      %5097 = vmatprep.subr.mxu0 0.0
      %5098 = vmatpush1.msra.mxu0 0.0
      %5099 = vmatprep.subr.mxu0 0.0
      %5100 = vmatpush1.msra.mxu0 0.0
      %5101 = vmatprep.subr.mxu0 0.0
      %5102 = vmatpush1.msra.mxu0 0.0
      %5103 = vmatprep.subr.mxu0 0.0
      %5104 = vmatpush1.msra.mxu0 0.0
      %5105 = vmatprep.subr.mxu0 0.0
      %5106 = vmatpush1.msra.mxu0 0.0
      %5107 = vmatprep.subr.mxu0 0.0
      %5108 = vmatpush1.msra.mxu0 0.0
      %5109 = vmatprep.subr.mxu0 0.0
      %5110 = vmatpush1.msra.mxu0 0.0
      %5111 = vmatprep.subr.mxu0 0.0
      %5112 = vmatpush1.msra.mxu0 0.0
      %5113 = vmatprep.subr.mxu0 0.0
      %5114 = vmatpush1.msra.mxu0 0.0
      %5115 = vmatprep.subr.mxu0 0.0
      %5116 = vmatpush1.msra.mxu0 0.0
      %5117 = vmatprep.subr.mxu0 0.0
      %5118 = vmatpush1.msra.mxu0 0.0
      %5119 = vmatprep.subr.mxu0 0.0
      %5120 = vmatpush1.msra.mxu0 0.0
      %5121 = vmatprep.subr.mxu0 0.0
      %5122 = vmatpush1.msra.mxu0 0.0
      %5123 = vmatprep.subr.mxu0 0.0
      %5124 = vmatpush1.msra.mxu0 0.0
      %5125 = vmatprep.subr.mxu0 0.0
      %5126 = vmatpush1.msra.mxu0 0.0
      %5127 = vmatprep.subr.mxu0 0.0
      %5128 = vmatpush1.msra.mxu0 0.0
      %5129 = vmatprep.subr.mxu0 0.0
      %5130 = vmatpush1.msra.mxu0 0.0
      %5131 = vmatprep.subr.mxu0 0.0
      %5132 = vmatpush1.msra.mxu0 0.0
      %5133 = vmatprep.subr.mxu0 0.0
      %5134 = vmatpush1.msra.mxu0 0.0
      %5135 = vmatprep.subr.mxu0 0.0
      %5136 = vmatpush1.msra.mxu0 0.0
      %5137 = vmatprep.subr.mxu0 0.0
      %5138 = vmatpush1.msra.mxu0 0.0
      %5139 = vmatprep.mubr.f32.mxu0 0.0
      %5140 = vmatmul.mubr.f32.gmra.mrb[0].mxu0 %v5073
      %v5141 = vpop.f32.mrb[0].mxu0
      %v5142 = vadd.f32 0.0, %v5141
      %v5143 = vpop.f32.mrb[0].mxu0
      %v5144 = vadd.f32 0.0, %v5143
      %5145 = vdwg.mxu0
      %v5146 = vadd.f32 %v5053, %v5142
      %v5147 = vadd.f32 %v5054, %v5144
      %v5148 = vld [vmem:[%s79] sm:$0xff]
      %5150 = vset.pattern.permute.xlu0 0
      %5151 = vperm.xlu0 %5150, %v5148
      %v5152 = vpop.permute.xlu0 %5151
      %v5154 = vadd.f32 %v5146, %v5152
      %v5155 = vadd.f32 %v5147, %v5152
      %5158 = vrot.lane.b32.xlu0 %v5154, 17
      %v5159 = vpop.permute.xlu0 %5158
      %5160 = vrot.lane.b32.xlu0 %v5155, 17
      %v5161 = vpop.permute.xlu0 %5160
      %v5162 = vsel %vm1558, %v5159, %v5161
      %v5166 = vsel %vm1558, 0.0, %v5159
      %v5167 = vsel %vm1558, %v5161, 0.0
      %v5168 = vsel %vm1567, %v5166, 0.0
      %v5169 = vsel %vm1568, %v5162, 0.0
      %5172 = vrot.lane.b32.xlu0 %v5166, 126
      %v5173 = vpop.permute.xlu0 %5172
      %5174 = vrot.lane.b32.xlu0 %v5162, 126
      %v5175 = vpop.permute.xlu0 %5174
      %5176 = vrot.lane.b32.xlu0 %v5167, 126
      %v5177 = vpop.permute.xlu0 %5176
      %v5178 = vsel %vm1583, %v5173, %v5175
      %v5179 = vsel %vm1583, %v5175, %v5177
      %v5182 = vsel %vm1573, %v5178, 0.0
      %v5183 = vsel %vm1574, %v5179, 0.0
      %5184 = vrot.lane.b32.xlu0 %v5166, 112
      %v5185 = vpop.permute.xlu0 %5184
      %5186 = vrot.lane.b32.xlu0 %v5162, 112
      %v5187 = vpop.permute.xlu0 %5186
      %5188 = vrot.lane.b32.xlu0 %v5167, 112
      %v5189 = vpop.permute.xlu0 %5188
      %v5190 = vsel %vm1596, %v5185, %v5187
      %v5191 = vsel %vm1596, %v5187, %v5189
      %v5194 = vsel %vm1567, %v5190, 0.0
      %v5195 = vsel %vm1568, %v5191, 0.0
      %5196 = vrot.lane.b32.xlu0 %v5166, 110
      %v5197 = vpop.permute.xlu0 %5196
      %5198 = vrot.lane.b32.xlu0 %v5162, 110
      %v5199 = vpop.permute.xlu0 %5198
      %5200 = vrot.lane.b32.xlu0 %v5167, 110
      %v5201 = vpop.permute.xlu0 %5200
      %v5202 = vsel %vm1609, %v5197, %v5199
      %v5203 = vsel %vm1609, %v5199, %v5201
      %v5206 = vsel %vm1573, %v5202, 0.0
      %v5207 = vsel %vm1574, %v5203, 0.0
      %5208 = vrot.lane.b32.xlu0 %v5166, 96
      %v5209 = vpop.permute.xlu0 %5208
      %5210 = vrot.lane.b32.xlu0 %v5162, 96
      %v5211 = vpop.permute.xlu0 %5210
      %5212 = vrot.lane.b32.xlu0 %v5167, 96
      %v5213 = vpop.permute.xlu0 %5212
      %v5214 = vsel %vm1622, %v5209, %v5211
      %v5215 = vsel %vm1622, %v5211, %v5213
      %v5218 = vsel %vm1567, %v5214, 0.0
      %v5219 = vsel %vm1568, %v5215, 0.0
      %5220 = vrot.lane.b32.xlu0 %v5166, 94
      %v5221 = vpop.permute.xlu0 %5220
      %5222 = vrot.lane.b32.xlu0 %v5162, 94
      %v5223 = vpop.permute.xlu0 %5222
      %5224 = vrot.lane.b32.xlu0 %v5167, 94
      %v5225 = vpop.permute.xlu0 %5224
      %v5226 = vsel %vm1635, %v5221, %v5223
      %v5227 = vsel %vm1635, %v5223, %v5225
      %v5230 = vsel %vm1573, %v5226, 0.0
      %v5231 = vsel %vm1574, %v5227, 0.0
      %5232 = vrot.lane.b32.xlu0 %v2016, 17
      %v5233 = vpop.permute.xlu0 %5232
      %5234 = vrot.lane.b32.xlu0 %v2017, 17
      %v5235 = vpop.permute.xlu0 %5234
      %v5236 = vsel %vm1558, %v5233, %v5235
      %v5240 = vsel %vm1558, 0.0, %v5233
      %v5241 = vsel %vm1558, %v5235, 0.0
      %v5242 = vsel %vm1567, %v5240, 0.0
      %v5243 = vsel %vm1568, %v5236, 0.0
      %5246 = vrot.lane.b32.xlu0 %v5240, 126
      %v5247 = vpop.permute.xlu0 %5246
      %5248 = vrot.lane.b32.xlu0 %v5236, 126
      %v5249 = vpop.permute.xlu0 %5248
      %5250 = vrot.lane.b32.xlu0 %v5241, 126
      %v5251 = vpop.permute.xlu0 %5250
      %v5252 = vsel %vm1583, %v5247, %v5249
      %v5253 = vsel %vm1583, %v5249, %v5251
      %v5256 = vsel %vm1573, %v5252, 0.0
      %v5257 = vsel %vm1574, %v5253, 0.0
      %5258 = vrot.lane.b32.xlu0 %v5240, 112
      %v5259 = vpop.permute.xlu0 %5258
      %5260 = vrot.lane.b32.xlu0 %v5236, 112
      %v5261 = vpop.permute.xlu0 %5260
      %5262 = vrot.lane.b32.xlu0 %v5241, 112
      %v5263 = vpop.permute.xlu0 %5262
      %v5264 = vsel %vm1596, %v5259, %v5261
      %v5265 = vsel %vm1596, %v5261, %v5263
      %v5268 = vsel %vm1567, %v5264, 0.0
      %v5269 = vsel %vm1568, %v5265, 0.0
      %5270 = vrot.lane.b32.xlu0 %v5240, 110
      %v5271 = vpop.permute.xlu0 %5270
      %5272 = vrot.lane.b32.xlu0 %v5236, 110
      %v5273 = vpop.permute.xlu0 %5272
      %5274 = vrot.lane.b32.xlu0 %v5241, 110
      %v5275 = vpop.permute.xlu0 %5274
      %v5276 = vsel %vm1609, %v5271, %v5273
      %v5277 = vsel %vm1609, %v5273, %v5275
      %v5280 = vsel %vm1573, %v5276, 0.0
      %v5281 = vsel %vm1574, %v5277, 0.0
      %5282 = vrot.lane.b32.xlu0 %v5240, 96
      %v5283 = vpop.permute.xlu0 %5282
      %5284 = vrot.lane.b32.xlu0 %v5236, 96
      %v5285 = vpop.permute.xlu0 %5284
      %5286 = vrot.lane.b32.xlu0 %v5241, 96
      %v5287 = vpop.permute.xlu0 %5286
      %v5288 = vsel %vm1622, %v5283, %v5285
      %v5289 = vsel %vm1622, %v5285, %v5287
      %v5292 = vsel %vm1567, %v5288, 0.0
      %v5293 = vsel %vm1568, %v5289, 0.0
      %5294 = vrot.lane.b32.xlu0 %v5240, 94
      %v5295 = vpop.permute.xlu0 %5294
      %5296 = vrot.lane.b32.xlu0 %v5236, 94
      %v5297 = vpop.permute.xlu0 %5296
      %5298 = vrot.lane.b32.xlu0 %v5241, 94
      %v5299 = vpop.permute.xlu0 %5298
      %v5300 = vsel %vm1635, %v5295, %v5297
      %v5301 = vsel %vm1635, %v5297, %v5299
      %v5304 = vsel %vm1573, %v5300, 0.0
      %v5305 = vsel %vm1574, %v5301, 0.0
      %5306 = vrot.lane.b32.xlu0 %v5166, 127
      %v5307 = vpop.permute.xlu0 %5306
      %5308 = vrot.lane.b32.xlu0 %v5162, 127
      %v5309 = vpop.permute.xlu0 %5308
      %5310 = vrot.lane.b32.xlu0 %v5167, 127
      %v5311 = vpop.permute.xlu0 %5310
      %v5312 = vsel %vm1648, %v5307, %v5309
      %v5313 = vsel %vm1648, %v5309, %v5311
      %5316 = vrot.lane.b32.xlu0 %v5166, 111
      %v5317 = vpop.permute.xlu0 %5316
      %5318 = vrot.lane.b32.xlu0 %v5162, 111
      %v5319 = vpop.permute.xlu0 %5318
      %5320 = vrot.lane.b32.xlu0 %v5167, 111
      %v5321 = vpop.permute.xlu0 %5320
      %v5322 = vsel %vm1659, %v5317, %v5319
      %v5323 = vsel %vm1659, %v5319, %v5321
      %5326 = vrot.lane.b32.xlu0 %v5166, 95
      %v5327 = vpop.permute.xlu0 %5326
      %5328 = vrot.lane.b32.xlu0 %v5162, 95
      %v5329 = vpop.permute.xlu0 %5328
      %5330 = vrot.lane.b32.xlu0 %v5167, 95
      %v5331 = vpop.permute.xlu0 %5330
      %v5332 = vsel %vm1670, %v5327, %v5329
      %v5333 = vsel %vm1670, %v5329, %v5331
      %5336 = vrot.lane.b32.xlu0 %v5240, 127
      %v5337 = vpop.permute.xlu0 %5336
      %5338 = vrot.lane.b32.xlu0 %v5236, 127
      %v5339 = vpop.permute.xlu0 %5338
      %5340 = vrot.lane.b32.xlu0 %v5241, 127
      %v5341 = vpop.permute.xlu0 %5340
      %v5342 = vsel %vm1648, %v5337, %v5339
      %v5343 = vsel %vm1648, %v5339, %v5341
      %5346 = vrot.lane.b32.xlu0 %v5240, 111
      %v5347 = vpop.permute.xlu0 %5346
      %5348 = vrot.lane.b32.xlu0 %v5236, 111
      %v5349 = vpop.permute.xlu0 %5348
      %5350 = vrot.lane.b32.xlu0 %v5241, 111
      %v5351 = vpop.permute.xlu0 %5350
      %v5352 = vsel %vm1659, %v5347, %v5349
      %v5353 = vsel %vm1659, %v5349, %v5351
      %5358 = vrot.lane.b32.xlu0 %v5304, 33
      %v5359 = vpop.permute.xlu0 %5358
      %5360 = vrot.lane.b32.xlu0 %v5305, 33
      %v5361 = vpop.permute.xlu0 %5360
      %vm5362 = vcmask 269312
      %v5363 = vsel %vm5362, %v5359, %v5361
      %5364 = vrot.lane.b32.xlu0 %v5240, 95
      %v5365 = vpop.permute.xlu0 %5364
      %5366 = vrot.lane.b32.xlu0 %v5236, 95
      %v5367 = vpop.permute.xlu0 %5366
      %5368 = vrot.lane.b32.xlu0 %v5241, 95
      %v5369 = vpop.permute.xlu0 %5368
      %5370 = vrot.lane.b32.xlu0 %v5359, 95
      %v5371 = vpop.permute.xlu0 %5370
      %5372 = vrot.lane.b32.xlu0 %v5363, 95
      %v5373 = vpop.permute.xlu0 %5372
      %5374 = vrot.lane.b32.xlu0 %v5361, 95
      %v5375 = vpop.permute.xlu0 %5374
      %v5376 = vsel %vm1670, %v5365, %v5367
      %v5377 = vsel %vm1670, %v5367, %v5369
      %v5378 = vsel %vm1670, %v5371, %v5373
      %v5379 = vsel %vm1670, %v5373, %v5375
      %v5384 = vld [vmem:[%s83] sm:$0xff]
      %v5385 = vld [vmem:[%s83 + $0x8] sm:$0xff]
      %v5386 = vld [vmem:[%s85] sm:$0xff]
      %5388 = vset.pattern.permute.xlu0 0
      %5389 = vperm.xlu0 %5388, %v5386
      %v5390 = vpop.permute.xlu0 %5389
      %v5393 = vsel %vm2457, %v5385, 0
      %5395 = vmatprep.subr.mxu0 %v5169
      %5396 = vmatpush1.msra.mxu0 %v5168
      %5397 = vmatprep.subr.mxu0 %v5313
      %5398 = vmatpush1.msra.mxu0 %v5312
      %5399 = vmatprep.subr.mxu0 %v5183
      %5400 = vmatpush1.msra.mxu0 %v5182
      %5401 = vmatprep.subr.mxu0 %v5195
      %5402 = vmatpush1.msra.mxu0 %v5194
      %5403 = vmatprep.subr.mxu0 %v5323
      %5404 = vmatpush1.msra.mxu0 %v5322
      %5405 = vmatprep.subr.mxu0 %v5207
      %5406 = vmatpush1.msra.mxu0 %v5206
      %5407 = vmatprep.subr.mxu0 %v5219
      %5408 = vmatpush1.msra.mxu0 %v5218
      %5409 = vmatprep.subr.mxu0 %v5333
      %5410 = vmatpush1.msra.mxu0 %v5332
      %5411 = vmatprep.subr.mxu0 %v5231
      %5412 = vmatpush1.msra.mxu0 %v5230
      %5413 = vmatprep.subr.mxu0 %v5243
      %5414 = vmatpush1.msra.mxu0 %v5242
      %5415 = vmatprep.subr.mxu0 %v5343
      %5416 = vmatpush1.msra.mxu0 %v5342
      %5417 = vmatprep.subr.mxu0 %v5257
      %5418 = vmatpush1.msra.mxu0 %v5256
      %5419 = vmatprep.subr.mxu0 %v5269
      %5420 = vmatpush1.msra.mxu0 %v5268
      %5421 = vmatprep.subr.mxu0 %v5353
      %5422 = vmatpush1.msra.mxu0 %v5352
      %5423 = vmatprep.subr.mxu0 %v5281
      %5424 = vmatpush1.msra.mxu0 %v5280
      %5425 = vmatprep.subr.mxu0 %v5293
      %5426 = vmatpush1.msra.mxu0 %v5292
      %5427 = vmatprep.subr.mxu0 %v5377
      %5428 = vmatpush1.msra.mxu0 %v5376
      %5429 = vmatprep.subr.mxu0 %v5379
      %5430 = vmatpush1.msra.mxu0 %v5378
      %5431 = vmatprep.subr.mxu0 0.0
      %5432 = vmatpush1.msra.mxu0 0.0
      %5433 = vmatprep.subr.mxu0 0.0
      %5434 = vmatpush1.msra.mxu0 0.0
      %5435 = vmatprep.subr.mxu0 0.0
      %5436 = vmatpush1.msra.mxu0 0.0
      %5437 = vmatprep.subr.mxu0 0.0
      %5438 = vmatpush1.msra.mxu0 0.0
      %5439 = vmatprep.subr.mxu0 0.0
      %5440 = vmatpush1.msra.mxu0 0.0
      %5441 = vmatprep.subr.mxu0 0.0
      %5442 = vmatpush1.msra.mxu0 0.0
      %5443 = vmatprep.subr.mxu0 0.0
      %5444 = vmatpush1.msra.mxu0 0.0
      %5445 = vmatprep.subr.mxu0 0.0
      %5446 = vmatpush1.msra.mxu0 0.0
      %5447 = vmatprep.subr.mxu0 0.0
      %5448 = vmatpush1.msra.mxu0 0.0
      %5449 = vmatprep.subr.mxu0 0.0
      %5450 = vmatpush1.msra.mxu0 0.0
      %5451 = vmatprep.subr.mxu0 0.0
      %5452 = vmatpush1.msra.mxu0 0.0
      %5453 = vmatprep.subr.mxu0 0.0
      %5454 = vmatpush1.msra.mxu0 0.0
      %5455 = vmatprep.subr.mxu0 0.0
      %5456 = vmatpush1.msra.mxu0 0.0
      %5457 = vmatprep.subr.mxu0 0.0
      %5458 = vmatpush1.msra.mxu0 0.0
      %5459 = vmatprep.mubr.f32.mxu0 %v5393
      %5460 = vmatmul.mubr.f32.gmra.mrb[0].mxu0 %v5384
      %v5461 = vpop.f32.mrb[0].mxu0
      %v5462 = vadd.f32 %v5390, %v5461
      %v5463 = vpop.f32.mrb[0].mxu0
      %v5464 = vadd.f32 %v5390, %v5463
      %5465 = vdwg.mxu0
      %v5466 = vadd.f32 %v5462, %v5464
      %5467 = vadd.xlane.f32.xlu0 %v5466
      %v5468 = vpop.xlane.xlu0 %5467
      %v5469 = vmul.f32 %v5468, 0.00390625
      %v5470 = vmul.f32 %v5462, %v5462
      %v5471 = vmul.f32 %v5464, %v5464
      %v5472 = vadd.f32 %v5470, %v5471
      %5473 = vadd.xlane.f32.xlu0 %v5472
      %v5474 = vpop.xlane.xlu0 %5473
      %v5475 = vmul.f32 %v5474, 0.00390625
      %v5476 = vmul.f32 %v5469, %v5469
      %v5477 = vsub.f32 %v5475, %v5476
      %v5478 = vmax.f32 %v5477, 0.0
      %v5479 = vsub.f32 %v5462, %v5469
      %v5480 = vsub.f32 %v5464, %v5469
      %v5481 = vadd.f32 %v5478, 1e-05
      %v5482 = vrsqrt.pop %v5481
      %v5483 = vmul.f32 %v5479, %v5482
      %v5484 = vmul.f32 %v5480, %v5482
      %v5485 = vld [vmem:[%s87] sm:$0xff]
      %5487 = vset.pattern.permute.xlu0 0
      %5488 = vperm.xlu0 %5487, %v5485
      %v5489 = vpop.permute.xlu0 %5488
      %v5491 = vmul.f32 %v5483, %v5489
      %v5492 = vmul.f32 %v5484, %v5489
      %v5493 = vld [vmem:[%s89] sm:$0xff]
      %5495 = vset.pattern.permute.xlu0 0
      %5496 = vperm.xlu0 %5495, %v5493
      %v5497 = vpop.permute.xlu0 %5496
      %v5499 = vadd.f32 %v5491, %v5497
      %v5500 = vadd.f32 %v5492, %v5497
      %v5501 = vmax.f32 %v5499, 0.0
      %v5502 = vmax.f32 %v5500, 0.0
      %5505 = vrot.lane.b32.xlu0 %v5501, 17
      %v5506 = vpop.permute.xlu0 %5505
      %5507 = vrot.lane.b32.xlu0 %v5502, 17
      %v5508 = vpop.permute.xlu0 %5507
      %v5509 = vsel %vm1558, %v5506, %v5508
      %v5513 = vsel %vm1558, 0.0, %v5506
      %v5514 = vsel %vm1558, %v5508, 0.0
      %v5515 = vsel %vm1567, %v5513, 0.0
      %v5516 = vsel %vm1568, %v5509, 0.0
      %5519 = vrot.lane.b32.xlu0 %v5513, 126
      %v5520 = vpop.permute.xlu0 %5519
      %5521 = vrot.lane.b32.xlu0 %v5509, 126
      %v5522 = vpop.permute.xlu0 %5521
      %5523 = vrot.lane.b32.xlu0 %v5514, 126
      %v5524 = vpop.permute.xlu0 %5523
      %v5525 = vsel %vm1583, %v5520, %v5522
      %v5526 = vsel %vm1583, %v5522, %v5524
      %v5529 = vsel %vm1573, %v5525, 0.0
      %v5530 = vsel %vm1574, %v5526, 0.0
      %5531 = vrot.lane.b32.xlu0 %v5513, 112
      %v5532 = vpop.permute.xlu0 %5531
      %5533 = vrot.lane.b32.xlu0 %v5509, 112
      %v5534 = vpop.permute.xlu0 %5533
      %5535 = vrot.lane.b32.xlu0 %v5514, 112
      %v5536 = vpop.permute.xlu0 %5535
      %v5537 = vsel %vm1596, %v5532, %v5534
      %v5538 = vsel %vm1596, %v5534, %v5536
      %v5541 = vsel %vm1567, %v5537, 0.0
      %v5542 = vsel %vm1568, %v5538, 0.0
      %5543 = vrot.lane.b32.xlu0 %v5513, 110
      %v5544 = vpop.permute.xlu0 %5543
      %5545 = vrot.lane.b32.xlu0 %v5509, 110
      %v5546 = vpop.permute.xlu0 %5545
      %5547 = vrot.lane.b32.xlu0 %v5514, 110
      %v5548 = vpop.permute.xlu0 %5547
      %v5549 = vsel %vm1609, %v5544, %v5546
      %v5550 = vsel %vm1609, %v5546, %v5548
      %v5553 = vsel %vm1573, %v5549, 0.0
      %v5554 = vsel %vm1574, %v5550, 0.0
      %5555 = vrot.lane.b32.xlu0 %v5513, 96
      %v5556 = vpop.permute.xlu0 %5555
      %5557 = vrot.lane.b32.xlu0 %v5509, 96
      %v5558 = vpop.permute.xlu0 %5557
      %5559 = vrot.lane.b32.xlu0 %v5514, 96
      %v5560 = vpop.permute.xlu0 %5559
      %v5561 = vsel %vm1622, %v5556, %v5558
      %v5562 = vsel %vm1622, %v5558, %v5560
      %v5565 = vsel %vm1567, %v5561, 0.0
      %v5566 = vsel %vm1568, %v5562, 0.0
      %5567 = vrot.lane.b32.xlu0 %v5513, 94
      %v5568 = vpop.permute.xlu0 %5567
      %5569 = vrot.lane.b32.xlu0 %v5509, 94
      %v5570 = vpop.permute.xlu0 %5569
      %5571 = vrot.lane.b32.xlu0 %v5514, 94
      %v5572 = vpop.permute.xlu0 %5571
      %v5573 = vsel %vm1635, %v5568, %v5570
      %v5574 = vsel %vm1635, %v5570, %v5572
      %v5577 = vsel %vm1573, %v5573, 0.0
      %v5578 = vsel %vm1574, %v5574, 0.0
      %5579 = vrot.lane.b32.xlu0 %v5513, 127
      %v5580 = vpop.permute.xlu0 %5579
      %5581 = vrot.lane.b32.xlu0 %v5509, 127
      %v5582 = vpop.permute.xlu0 %5581
      %5583 = vrot.lane.b32.xlu0 %v5514, 127
      %v5584 = vpop.permute.xlu0 %5583
      %v5585 = vsel %vm1648, %v5580, %v5582
      %v5586 = vsel %vm1648, %v5582, %v5584
      %5589 = vrot.lane.b32.xlu0 %v5513, 111
      %v5590 = vpop.permute.xlu0 %5589
      %5591 = vrot.lane.b32.xlu0 %v5509, 111
      %v5592 = vpop.permute.xlu0 %5591
      %5593 = vrot.lane.b32.xlu0 %v5514, 111
      %v5594 = vpop.permute.xlu0 %5593
      %v5595 = vsel %vm1659, %v5590, %v5592
      %v5596 = vsel %vm1659, %v5592, %v5594
      %5599 = vrot.lane.b32.xlu0 %v5513, 95
      %v5600 = vpop.permute.xlu0 %5599
      %5601 = vrot.lane.b32.xlu0 %v5509, 95
      %v5602 = vpop.permute.xlu0 %5601
      %5603 = vrot.lane.b32.xlu0 %v5514, 95
      %v5604 = vpop.permute.xlu0 %5603
      %v5605 = vsel %vm1670, %v5600, %v5602
      %v5606 = vsel %vm1670, %v5602, %v5604
      %v5609 = vld [vmem:[%s91] sm:$0xff]
      %v5610 = vld [vmem:[%s93] sm:$0xff]
      %5612 = vset.pattern.permute.xlu0 0
      %5613 = vperm.xlu0 %5612, %v5610
      %v5614 = vpop.permute.xlu0 %5613
      %v5617 = vsel %vm1682, %v5609, 0
      %5619 = vmatprep.subr.mxu0 %v5516
      %5620 = vmatpush1.msra.mxu0 %v5515
      %5621 = vmatprep.subr.mxu0 %v5586
      %5622 = vmatpush1.msra.mxu0 %v5585
      %5623 = vmatprep.subr.mxu0 %v5530
      %5624 = vmatpush1.msra.mxu0 %v5529
      %5625 = vmatprep.subr.mxu0 %v5542
      %5626 = vmatpush1.msra.mxu0 %v5541
      %5627 = vmatprep.subr.mxu0 %v5596
      %5628 = vmatpush1.msra.mxu0 %v5595
      %5629 = vmatprep.subr.mxu0 %v5554
      %5630 = vmatpush1.msra.mxu0 %v5553
      %5631 = vmatprep.subr.mxu0 %v5566
      %5632 = vmatpush1.msra.mxu0 %v5565
      %5633 = vmatprep.subr.mxu0 %v5606
      %5634 = vmatpush1.msra.mxu0 %v5605
      %5635 = vmatprep.subr.mxu0 %v5578
      %5636 = vmatpush1.msra.mxu0 %v5577
      %5637 = vmatprep.subr.mxu0 0.0
      %5638 = vmatpush1.msra.mxu0 0.0
      %5639 = vmatprep.subr.mxu0 0.0
      %5640 = vmatpush1.msra.mxu0 0.0
      %5641 = vmatprep.subr.mxu0 0.0
      %5642 = vmatpush1.msra.mxu0 0.0
      %5643 = vmatprep.subr.mxu0 0.0
      %5644 = vmatpush1.msra.mxu0 0.0
      %5645 = vmatprep.subr.mxu0 0.0
      %5646 = vmatpush1.msra.mxu0 0.0
      %5647 = vmatprep.subr.mxu0 0.0
      %5648 = vmatpush1.msra.mxu0 0.0
      %5649 = vmatprep.subr.mxu0 0.0
      %5650 = vmatpush1.msra.mxu0 0.0
      %5651 = vmatprep.subr.mxu0 0.0
      %5652 = vmatpush1.msra.mxu0 0.0
      %5653 = vmatprep.subr.mxu0 0.0
      %5654 = vmatpush1.msra.mxu0 0.0
      %5655 = vmatprep.subr.mxu0 0.0
      %5656 = vmatpush1.msra.mxu0 0.0
      %5657 = vmatprep.subr.mxu0 0.0
      %5658 = vmatpush1.msra.mxu0 0.0
      %5659 = vmatprep.subr.mxu0 0.0
      %5660 = vmatpush1.msra.mxu0 0.0
      %5661 = vmatprep.subr.mxu0 0.0
      %5662 = vmatpush1.msra.mxu0 0.0
      %5663 = vmatprep.subr.mxu0 0.0
      %5664 = vmatpush1.msra.mxu0 0.0
      %5665 = vmatprep.subr.mxu0 0.0
      %5666 = vmatpush1.msra.mxu0 0.0
      %5667 = vmatprep.subr.mxu0 0.0
      %5668 = vmatpush1.msra.mxu0 0.0
      %5669 = vmatprep.subr.mxu0 0.0
      %5670 = vmatpush1.msra.mxu0 0.0
      %5671 = vmatprep.subr.mxu0 0.0
      %5672 = vmatpush1.msra.mxu0 0.0
      %5673 = vmatprep.subr.mxu0 0.0
      %5674 = vmatpush1.msra.mxu0 0.0
      %5675 = vmatprep.subr.mxu0 0.0
      %5676 = vmatpush1.msra.mxu0 0.0
      %5677 = vmatprep.subr.mxu0 0.0
      %5678 = vmatpush1.msra.mxu0 0.0
      %5679 = vmatprep.subr.mxu0 0.0
      %5680 = vmatpush1.msra.mxu0 0.0
      %5681 = vmatprep.subr.mxu0 0.0
      %5682 = vmatpush1.msra.mxu0 0.0
      %5683 = vmatprep.mubr.f32.mxu0 0.0
      %5684 = vmatmul.mubr.f32.gmra.mrb[0].mxu0 %v5617
      %v5685 = vpop.f32.mrb[0].mxu0
      %v5686 = vadd.f32 %v5614, %v5685
      %v5687 = vpop.f32.mrb[0].mxu0
      %v5688 = vadd.f32 %v5614, %v5687
      %5689 = vdwg.mxu0
      %v5690 = vadd.f32 %v5686, %v5688
      %5691 = vadd.xlane.f32.xlu0 %v5690
      %v5692 = vpop.xlane.xlu0 %5691
      %v5693 = vmul.f32 %v5692, 0.00390625
      %v5694 = vmul.f32 %v5686, %v5686
      %v5695 = vmul.f32 %v5688, %v5688
      %v5696 = vadd.f32 %v5694, %v5695
      %5697 = vadd.xlane.f32.xlu0 %v5696
      %v5698 = vpop.xlane.xlu0 %5697
      %v5699 = vmul.f32 %v5698, 0.00390625
      %v5700 = vmul.f32 %v5693, %v5693
      %v5701 = vsub.f32 %v5699, %v5700
      %v5702 = vmax.f32 %v5701, 0.0
      %v5703 = vsub.f32 %v5686, %v5693
      %v5704 = vsub.f32 %v5688, %v5693
      %v5705 = vadd.f32 %v5702, 1e-05
      %v5706 = vrsqrt.pop %v5705
      %v5707 = vmul.f32 %v5703, %v5706
      %v5708 = vmul.f32 %v5704, %v5706
      %v5709 = vld [vmem:[%s95] sm:$0xff]
      %5711 = vset.pattern.permute.xlu0 0
      %5712 = vperm.xlu0 %5711, %v5709
      %v5713 = vpop.permute.xlu0 %5712
      %v5715 = vmul.f32 %v5707, %v5713
      %v5716 = vmul.f32 %v5708, %v5713
      %v5717 = vld [vmem:[%s97] sm:$0xff]
      %5719 = vset.pattern.permute.xlu0 0
      %5720 = vperm.xlu0 %5719, %v5717
      %v5721 = vpop.permute.xlu0 %5720
      %v5723 = vadd.f32 %v5715, %v5721
      %v5724 = vadd.f32 %v5716, %v5721
      %v5725 = vmax.f32 %v5723, 0.0
      %v5726 = vmax.f32 %v5724, 0.0
      %v5727 = vld [vmem:[%s99] sm:$0xf]
      %v5728 = vld [vmem:[%s101] sm:$0xf]
      %5730 = vset.pattern.permute.xlu0 0
      %5731 = vperm.xlu0 %5730, %v5728
      %v5732 = vpop.permute.xlu0 %5731
      %vm5734 = vcmask 64512
      %v5736 = vsel %vm5734, %v5727, 0
      %5738 = vmatprep.subr.mxu0 %v5726
      %5739 = vmatpush1.msra.mxu0 %v5725
      %5740 = vmatprep.subr.mxu0 0.0
      %5741 = vmatpush1.msra.mxu0 0.0
      %5742 = vmatprep.subr.mxu0 0.0
      %5743 = vmatpush1.msra.mxu0 0.0
      %5744 = vmatprep.subr.mxu0 0.0
      %5745 = vmatpush1.msra.mxu0 0.0
      %5746 = vmatprep.subr.mxu0 0.0
      %5747 = vmatpush1.msra.mxu0 0.0
      %5748 = vmatprep.subr.mxu0 0.0
      %5749 = vmatpush1.msra.mxu0 0.0
      %5750 = vmatprep.subr.mxu0 0.0
      %5751 = vmatpush1.msra.mxu0 0.0
      %5752 = vmatprep.subr.mxu0 0.0
      %5753 = vmatpush1.msra.mxu0 0.0
      %5754 = vmatprep.subr.mxu0 0.0
      %5755 = vmatpush1.msra.mxu0 0.0
      %5756 = vmatprep.subr.mxu0 0.0
      %5757 = vmatpush1.msra.mxu0 0.0
      %5758 = vmatprep.subr.mxu0 0.0
      %5759 = vmatpush1.msra.mxu0 0.0
      %5760 = vmatprep.subr.mxu0 0.0
      %5761 = vmatpush1.msra.mxu0 0.0
      %5762 = vmatprep.subr.mxu0 0.0
      %5763 = vmatpush1.msra.mxu0 0.0
      %5764 = vmatprep.subr.mxu0 0.0
      %5765 = vmatpush1.msra.mxu0 0.0
      %5766 = vmatprep.subr.mxu0 0.0
      %5767 = vmatpush1.msra.mxu0 0.0
      %5768 = vmatprep.subr.mxu0 0.0
      %5769 = vmatpush1.msra.mxu0 0.0
      %5770 = vmatprep.subr.mxu0 0.0
      %5771 = vmatpush1.msra.mxu0 0.0
      %5772 = vmatprep.subr.mxu0 0.0
      %5773 = vmatpush1.msra.mxu0 0.0
      %5774 = vmatprep.subr.mxu0 0.0
      %5775 = vmatpush1.msra.mxu0 0.0
      %5776 = vmatprep.subr.mxu0 0.0
      %5777 = vmatpush1.msra.mxu0 0.0
      %5778 = vmatprep.subr.mxu0 0.0
      %5779 = vmatpush1.msra.mxu0 0.0
      %5780 = vmatprep.subr.mxu0 0.0
      %5781 = vmatpush1.msra.mxu0 0.0
      %5782 = vmatprep.subr.mxu0 0.0
      %5783 = vmatpush1.msra.mxu0 0.0
      %5784 = vmatprep.subr.mxu0 0.0
      %5785 = vmatpush1.msra.mxu0 0.0
      %5786 = vmatprep.subr.mxu0 0.0
      %5787 = vmatpush1.msra.mxu0 0.0
      %5788 = vmatprep.subr.mxu0 0.0
      %5789 = vmatpush1.msra.mxu0 0.0
      %5790 = vmatprep.subr.mxu0 0.0
      %5791 = vmatpush1.msra.mxu0 0.0
      %5792 = vmatprep.subr.mxu0 0.0
      %5793 = vmatpush1.msra.mxu0 0.0
      %5794 = vmatprep.subr.mxu0 0.0
      %5795 = vmatpush1.msra.mxu0 0.0
      %5796 = vmatprep.subr.mxu0 0.0
      %5797 = vmatpush1.msra.mxu0 0.0
      %5798 = vmatprep.subr.mxu0 0.0
      %5799 = vmatpush1.msra.mxu0 0.0
      %5800 = vmatprep.subr.mxu0 0.0
      %5801 = vmatpush1.msra.mxu0 0.0
      %5802 = vmatprep.mubr.f32.mxu0 0.0
      %5803 = vmatmul.mubr.f32.gmra.mrb[0].mxu0 %v5736
      %v5804 = vpop.f32.mrb[0].mxu0
      %v5805 = vadd.f32 %v5732, %v5804
      %v5806 = vpop.f32.mrb[0].mxu0
      %v5807 = vadd.f32 %v5732, %v5806
      %5808 = vdwg.mxu0
      %v5811 = vcombine.low %v5805, %v5807
      %5813 = vst [vmem:[%s1518] sm:$0xff] %v5811
      %p5814 = scmp.lt.s32.totalorder %s114, 1
      %s5815 = scalar_select %p5814, %s114, 1
      %s5816 = smul.addr %s5815, 2
      %s5817 = smul.addr %s5816, 4
      %s5818 = scalar_lea.vmem %s103, %s5817
      // Predicated region
      $region225: #{forward.1} parent=223 // pred_check
        %p5819 = pneg %p1208
      $region226: #{forward.1} parent=223 // pred_check_branch
        %5821 = sbr.rel (%p5819) target = $region228
      $region227: #{forward.1} parent=223 // pred_region
        _
      $region228: #{forward.1} parent=223 // pred_fallthru
        _
    $region224: #{forward.1} parent=5 // pred_fallthru
      _
    %p5822 = scmp.le.s32.totalorder 2, %s109
    // Predicated region
    $region229: #{forward.1} parent=5 // pred_check
      %p5823 = pneg %p5822
    $region230: #{forward.1} parent=5 // pred_check_branch
      %5825 = sbr.rel (%p5823) target = $region232
    $region231: #{forward.1} parent=5 // pred_region
      %s5826 = ssub.s32 %s109, 2
      // Predicated region
      $region233: #{forward.1} parent=231 // pred_check
        %p5827 = pneg %p1214
      $region234: #{forward.1} parent=231 // pred_check_branch
        %5829 = sbr.rel (%p5827) target = $region236
      $region235: #{forward.1} parent=231 // pred_region
        %p5830 = scmp.lt.s32.totalorder %s115, 1
        %s5831 = scalar_select %p5830, %s115, 1
        %s5832 = smul.addr %s5831, 2
        %s5833 = smul.addr %s5832, 4
        %s5834 = scalar_lea.vmem %s103, %s5833
      $region236: #{forward.1} parent=231 // pred_fallthru
        _
    $region232: #{forward.1} parent=5 // pred_fallthru
      _
  $region6: #{forward.1} parent=0 // loop_footer
    %s113 = sadd.s32 1, %s109
  $region7: #{forward.1} parent=0 // loop_footer_branch
    %108 = sbr.rel target = $region3
  $region8: #{forward.1} parent=0 // loop_exit
    _

</llo_original>
